<compile_context>
chip_gen: v7x
topology: tpu7x:2x2x1
jax: 0.10.0
libtpu: 0.0.40
codegen_flags: <defaults>
</compile_context>

<pallas_src>
import functools

import jax
import jax.numpy as jnp
from jax.experimental import pallas as pl
from jax.experimental.pallas import tpu as pltpu

LANE = 128  # every channel dim is padded to one 128-lane tile

# Tap offsets into the stacked (26, 128, 128) trunk weight tensor.
L1C1, L1C2, L1C3, L1DN = 0, 1, 10, 11
L2C1, L2C2, L2C3, L2DN = 12, 15, 24, 25
# Row order of the stacked per-conv BN scale/shift tensors.
S_L1C1, S_L1C2, S_L1C3, S_L1DN, S_L2C1, S_L2C2, S_L2C3, S_L2DN = range(8)


def _round_up(x, m):
    return (x + m - 1) // m * m


# ----------------------------- Pallas kernels -------------------------------

def _stem_pool_kernel(x_ref, w_ref, sc_ref, sh_ref, o_ref, *, t, n, oh, ow,
                      ph, pw):
    """Packed-K stem conv + BN + ReLU + (1,3,3)/s(1,2,2)/p(0,1,1) maxpool.

    x_ref: (M=oh*ow*t*n, K) bf16 im2col patches, rows ordered (oh, ow, t, n).
    w_ref: (K, C) bf16.  One MXU matmul; maxpool done on the f32 result.
    """
    y = jnp.dot(x_ref[...], w_ref[...], preferred_element_type=jnp.float32)
    y = jnp.maximum(y * sc_ref[...] + sh_ref[...], 0.0)        # folded BN+ReLU
    y = y.reshape(oh, ow, t * n, y.shape[-1])                  # pure relabel
    for i in range(ph):
        for j in range(pw):
            r0, r1 = max(0, 2 * i - 1), min(oh, 2 * i + 2)
            c0, c1 = max(0, 2 * j - 1), min(ow, 2 * j + 2)
            m = None
            for r in range(r0, r1):
                for c in range(c0, c1):
                    v = y[r, c]                                 # (t*n, C) f32
                    m = v if m is None else jnp.maximum(m, v)
            o_ref[i, j] = m.astype(o_ref.dtype)


def _trunk_kernel(x_ref, w_ref, sc_ref, sh_ref, o_ref, pad_sp, pad_t, *,
                  t, n, h, w):
    """layer1 + layer2 bottlenecks for one pathway, whole batch folded into M.

    x_ref : (h, w, t*n, C) bf16 activation, rows within a position = (t, n).
    w_ref : (26, C, C) bf16 stacked conv taps; sc_ref/sh_ref: (8, C) folded BN.
    pad_sp: (h+2, w+2, t*n, C) zero-bordered staging for 1x3x3 taps.
    pad_t : (h*w, (t+2)*n, C) zero-bordered staging for the 3x1x1 taps.
    """
    c = x_ref.shape[-1]
    tn = t * n
    m = h * w * tn

    def bn(y, idx):
        return y * sc_ref[idx:idx + 1, :] + sh_ref[idx:idx + 1, :]

    def mm(a2d, tap):
        return jnp.dot(a2d, w_ref[tap], preferred_element_type=jnp.float32)

    # Zero the staging buffers (borders stay zero; interiors are overwritten).
    pad_sp[...] = jnp.zeros(pad_sp.shape, pad_sp.dtype)
    pad_t[...] = jnp.zeros(pad_t.shape, pad_t.dtype)

    x1 = x_ref[...]                                    # (h, w, tn, c) bf16
    x1f = x1.reshape(m, c)

    # ------------------------------ layer1 ----------------------------------
    h1 = jnp.maximum(bn(mm(x1f, L1C1), S_L1C1), 0.0).astype(jnp.bfloat16)
    pad_sp[1:h + 1, 1:w + 1] = h1.reshape(h, w, tn, c)
    acc = jnp.zeros((m, c), jnp.float32)
    for i in range(9):                                 # 1x3x3 pad(0,1,1) s1
        dh, dw = i // 3, i % 3
        a = pad_sp[dh:dh + h, dw:dw + w].reshape(m, c)
        acc = acc + mm(a, L1C2 + i)
    h2 = jnp.maximum(bn(acc, S_L1C2), 0.0).astype(jnp.bfloat16)
    y3 = bn(mm(h2, L1C3), S_L1C3)                      # conv3 + BN (f32)
    idn = bn(mm(x1f, L1DN), S_L1DN)                    # downsample path (f32)
    x2 = jnp.maximum(y3 + idn, 0.0)                    # residual + ReLU (f32)
    x2b = x2.astype(jnp.bfloat16)

    # ------------------------------ layer2 ----------------------------------
    # conv1: 3x1x1 pad(1,0,0) -> shifts of the packed (t, n) sublane rows.
    pad_t[:, n:n + tn, :] = x2b.reshape(h * w, tn, c)
    acc = jnp.zeros((m, c), jnp.float32)
    for dt in range(3):
        a = pad_t[:, dt * n:dt * n + tn, :].reshape(m, c)
        acc = acc + mm(a, L2C1 + dt)
    g1 = jnp.maximum(bn(acc, S_L2C1), 0.0).astype(jnp.bfloat16)

    # conv2: 1x3x3 pad(0,1,1) stride(1,2,2) -- computed at stride 1 (better
    # MXU M); the strided positions are taken in the epilogue below.
    pad_sp[1:h + 1, 1:w + 1] = g1.reshape(h, w, tn, c)
    acc = jnp.zeros((m, c), jnp.float32)
    for i in range(9):
        dh, dw = i // 3, i % 3
        a = pad_sp[dh:dh + h, dw:dw + w].reshape(m, c)
        acc = acc + mm(a, L2C2 + i)
    g2 = jnp.maximum(bn(acc, S_L2C2), 0.0).astype(jnp.bfloat16)

    # conv3 + BN and 1x1 stride-2 downsample path (both position-wise).
    y3 = bn(mm(g2, L2C3), S_L2C3).reshape(h, w, tn, c)
    idn = bn(mm(x2b, L2DN), S_L2DN).reshape(h, w, tn, c)
    # residual add + ReLU at the stride-2 retained positions only.
    for oh in range(h // 2):
        for ow in range(w // 2):
            v = jnp.maximum(y3[2 * oh, 2 * ow] + idn[2 * oh, 2 * ow], 0.0)
            o_ref[oh, ow] = v.astype(o_ref.dtype)


# ------------------------------ pallas wrappers ------------------------------

def stem_and_pool(patches, stem_w, stem_scale, stem_shift, *, n, t, oh, ow):
    """One pallas_call: stem conv(packed K) + BN + ReLU + maxpool. grid=(P,)."""
    p, m1, k = patches.shape
    c = stem_w.shape[-1]
    ph, pw = oh // 2, ow // 2
    kern = functools.partial(_stem_pool_kernel, t=t, n=n, oh=oh, ow=ow,
                             ph=ph, pw=pw)
    return pl.pallas_call(
        kern,
        out_shape=jax.ShapeDtypeStruct((p, ph, pw, t * n, c), jnp.bfloat16),
        grid=(p,),
        in_specs=[
            pl.BlockSpec((None, m1, k), lambda i: (i, 0, 0)),
            pl.BlockSpec((None, k, c), lambda i: (i, 0, 0)),
            pl.BlockSpec((None, 1, c), lambda i: (i, 0, 0)),
            pl.BlockSpec((None, 1, c), lambda i: (i, 0, 0)),
        ],
        out_specs=pl.BlockSpec((None, ph, pw, t * n, c),
                               lambda i: (i, 0, 0, 0, 0)),
        compiler_params=pltpu.CompilerParams(
            dimension_semantics=("parallel",)),
    )(patches, stem_w, stem_scale, stem_shift)


def res_trunk(x1, w_all, sc_all, sh_all, *, t, n):
    """One pallas_call: layer1 + layer2 bottlenecks for both pathways."""
    p, h, w, tn, c = x1.shape
    kern = functools.partial(_trunk_kernel, t=t, n=n, h=h, w=w)
    return pl.pallas_call(
        kern,
        out_shape=jax.ShapeDtypeStruct((p, h // 2, w // 2, tn, c),
                                       jnp.float32),
        grid=(p,),
        in_specs=[
            pl.BlockSpec((None, h, w, tn, c), lambda i: (i, 0, 0, 0, 0)),
            pl.BlockSpec((None,) + tuple(w_all.shape[1:]),
                         lambda i: (i, 0, 0, 0)),
            pl.BlockSpec((None,) + tuple(sc_all.shape[1:]),
                         lambda i: (i, 0, 0)),
            pl.BlockSpec((None,) + tuple(sh_all.shape[1:]),
                         lambda i: (i, 0, 0)),
        ],
        out_specs=pl.BlockSpec((None, h // 2, w // 2, tn, c),
                               lambda i: (i, 0, 0, 0, 0)),
        scratch_shapes=[
            pltpu.VMEM((h + 2, w + 2, tn, c), jnp.bfloat16),   # 1x3x3 staging
            pltpu.VMEM((h * w, (t + 2) * n, c), jnp.bfloat16),  # 3x1x1 staging
        ],
        compiler_params=pltpu.CompilerParams(
            dimension_semantics=("parallel",)),
    )(x1, w_all, sc_all, sh_all)


# ------------------------------ network glue --------------------------------

def _stem_patches(xs, k_pad):
    """im2col the stem's (1,7,7)/s(1,2,2)/p(0,3,3) conv into the K dim.

    xs: (P, N, T, H, W, Cin) f32 -> (P, oh*ow*T*N, k_pad) bf16, rows ordered
    (oh, ow, t, n) so the stem output reshapes directly into the trunk layout.
    """
    p_, n_, t_, h_, w_, cin = xs.shape
    oh, ow = h_ // 2, w_ // 2
    xp = jnp.pad(xs, ((0, 0), (0, 0), (0, 0), (3, 3), (3, 3), (0, 0)))
    cols = []
    for dh in range(7):
        for dw in range(7):
            cols.append(xp[:, :, :, dh:dh + 2 * oh:2, dw:dw + 2 * ow:2, :])
    pat = jnp.concatenate(cols, axis=-1)                 # (P,N,T,oh,ow,49*Cin)
    pat = jnp.transpose(pat, (0, 3, 4, 2, 1, 5))         # (P,oh,ow,T,N,49*Cin)
    pat = pat.reshape(p_, oh * ow * t_ * n_, 49 * cin)
    pat = jnp.pad(pat, ((0, 0), (0, 0), (0, k_pad - 49 * cin)))
    return pat.astype(jnp.bfloat16), oh, ow


@functools.partial(jax.jit, static_argnames=("out_channels",))
def resnet3d_slowonly_2s_flc3_forward(x, x_local, full_params, local_params, *,
                                      out_channels):
    """x, x_local: NCDHW float32 tensors (PyTorch convention)."""
    xs = jnp.stack([x, x_local], axis=0)                 # (P, N, Cin, T, H, W)
    xs = jnp.transpose(xs, (0, 1, 3, 4, 5, 2))           # (P, N, T, H, W, Cin)
    n_, t_ = xs.shape[1], xs.shape[2]

    # Both pathways have identically-shaped params: stack on a leading axis so
    # one grid=(2,) 'parallel' pallas_call covers both.
    params = jax.tree_util.tree_map(lambda a, b: jnp.stack([a, b], axis=0),
                                    full_params, local_params)

    patches, oh, ow = _stem_patches(xs, params["stem_w"].shape[1])
    feat = stem_and_pool(patches, params["stem_w"], params["stem_scale"],
                         params["stem_shift"], n=n_, t=t_, oh=oh, ow=ow)
    feat = res_trunk(feat, params["w"], params["scale"], params["shift"],
                     t=t_, n=n_)

    # AdaptiveAvgPool3d((1,1,1)) + flatten + cat((full, local), dim=1).
    # Tiny (<10 KB) -> plain jnp, as recommended.
    p2, fh, fw, tn, c = feat.shape
    pooled = feat.reshape(p2, fh, fw, t_, n_, c).mean(axis=(1, 2, 3))
    return jnp.concatenate([pooled[0, :, :out_channels],
                            pooled[1, :, :out_channels]], axis=1)


# --------------------------- parameter creation ------------------------------

def _conv_bn_params(key, kt, kh, kw, cin, cout, eps=1e-5):
    k1, k2, k3 = jax.random.split(key, 3)
    fan_in = kt * kh * kw * cin
    w = jax.random.normal(k1, (kt, kh, kw, cin, cout), jnp.float32) * \
        (2.0 / fan_in) ** 0.5
    gamma = 1.0 + 0.1 * jax.random.normal(k2, (cout,), jnp.float32)
    beta = 0.1 * jax.random.normal(k3, (cout,), jnp.float32)
    # BN eval mode folded with the general formula (correct for real stats).
    running_mean = jnp.zeros((cout,), jnp.float32)
    running_var = jnp.ones((cout,), jnp.float32)
    scale = gamma / jnp.sqrt(running_var + eps)
    shift = beta - running_mean * scale
    return w, scale, shift


def init_pathway_params(key, in_channels, base):
    ks = jax.random.split(key, 9)

    # Stem: Conv3d (1,7,7)/s(1,2,2)/p(0,3,3) + BN, packed-K weight layout.
    w, sc, sh = _conv_bn_params(ks[0], 1, 7, 7, in_channels, base)
    k_real = 49 * in_channels
    k_pad = _round_up(k_real, LANE)
    assert _round_up(base * 8, LANE) == LANE, "channel tiling needed > 128"
    stem_w = jnp.zeros((k_pad, LANE), jnp.float32)
    stem_w = stem_w.at[:k_real, :base].set(w.reshape(k_real, base))
    stem_scale = jnp.zeros((1, LANE), jnp.float32).at[0, :base].set(sc)
    stem_shift = jnp.zeros((1, LANE), jnp.float32).at[0, :base].set(sh)

    # Trunk: layer1 + layer2 bottleneck convs, tap-stacked into one tensor.
    specs = [
        (1, 1, 1, base, base),          # layer1 conv1
        (1, 3, 3, base, base),          # layer1 conv2
        (1, 1, 1, base, base * 4),      # layer1 conv3
        (1, 1, 1, base, base * 4),      # layer1 downsample
        (3, 1, 1, base * 4, base * 2),  # layer2 conv1 (inflated 3x1x1)
        (1, 3, 3, base * 2, base * 2),  # layer2 conv2 (spatial stride 2)
        (1, 1, 1, base * 2, base * 8),  # layer2 conv3
        (1, 1, 1, base * 4, base * 8),  # layer2 downsample (stride 2)
    ]
    taps, scales, shifts = [], [], []
    for i, (kt, kh, kw, ci, co) in enumerate(specs):
        w, sc, sh = _conv_bn_params(ks[1 + i], kt, kh, kw, ci, co)
        nt = kt * kh * kw
        wt = jnp.zeros((nt, LANE, LANE), jnp.float32)
        wt = wt.at[:, :ci, :co].set(w.reshape(nt, ci, co))
        taps.append(wt)
        # Zero-padded scale/shift keep the padded channels exactly zero.
        scales.append(jnp.zeros((LANE,), jnp.float32).at[:co].set(sc))
        shifts.append(jnp.zeros((LANE,), jnp.float32).at[:co].set(sh))

    return dict(
        stem_w=stem_w.astype(jnp.bfloat16),
        stem_scale=stem_scale,
        stem_shift=stem_shift,
        w=jnp.concatenate(taps, axis=0).astype(jnp.bfloat16),  # (26, 128, 128)
        scale=jnp.stack(scales, axis=0),                        # (8, 128)
        shift=jnp.stack(shifts, axis=0),                        # (8, 128)
    )


# ---------------------------------- main -------------------------------------

if __name__ == "__main__":
    key = jax.random.PRNGKey(0)
    k_x, k_xl, k_full, k_local = jax.random.split(key, 4)

    N, Cin, T, H, W = 2, 3, 4, 16, 16
    base = 8
    x = jax.random.normal(k_x, (N, Cin, T, H, W), jnp.float32)
    x_local = jax.random.normal(k_xl, (N, Cin, T, H, W), jnp.float32)

    full_params = init_pathway_params(k_full, Cin, base)
    local_params = init_pathway_params(k_local, Cin, base)

    out = resnet3d_slowonly_2s_flc3_forward(
        x, x_local, full_params, local_params, out_channels=base * 8)
    out = jax.block_until_ready(out)

    assert out.shape == (N, 2 * base * 8), out.shape
    assert bool(jnp.all(jnp.isfinite(out)))
    print("KERNEL_OK")
</pallas_src>

<mosaic_0001>
module attributes {stable_mosaic.version = 11 : i64} {
  func.func @_stem_pool_kernel(%arg0: i32, %arg1: memref<1x512x256xbf16, #tpu.memory_space<vmem>>, %arg2: memref<1x256x128xbf16, #tpu.memory_space<vmem>>, %arg3: memref<1x1x128xf32, #tpu.memory_space<vmem>>, %arg4: memref<1x1x128xf32, #tpu.memory_space<vmem>>, %arg5: memref<1x4x4x8x128xbf16, #tpu.memory_space<vmem>>) attributes {dimension_semantics = [#tpu.dimension_semantics<parallel>], iteration_bounds = array<i64: 2>, scalar_prefetch = 0 : i64, scratch_operands = 0 : i64, tpu.core_type = #tpu.core_type<tc>, window_params = [{transform_indices = @transform_0, window_bounds = array<i64: 1, 512, 256>}, {transform_indices = @transform_1, window_bounds = array<i64: 1, 256, 128>}, {transform_indices = @transform_2, window_bounds = array<i64: 1, 1, 128>}, {transform_indices = @transform_3, window_bounds = array<i64: 1, 1, 128>}, {transform_indices = @transform_4, window_bounds = array<i64: 1, 4, 4, 8, 128>}]} {
    %c0 = arith.constant 0 : index
    %c0_0 = arith.constant 0 : index
    %c0_1 = arith.constant 0 : index
    %0 = vector.load %arg1[%c0, %c0_0, %c0_1] : memref<1x512x256xbf16, #tpu.memory_space<vmem>>, vector<1x512x256xbf16>
    %1 = vector.shape_cast %0 : vector<1x512x256xbf16> to vector<512x256xbf16>
    %c0_2 = arith.constant 0 : index
    %c0_3 = arith.constant 0 : index
    %c0_4 = arith.constant 0 : index
    %2 = vector.load %arg2[%c0_2, %c0_3, %c0_4] : memref<1x256x128xbf16, #tpu.memory_space<vmem>>, vector<1x256x128xbf16>
    %3 = vector.shape_cast %2 : vector<1x256x128xbf16> to vector<256x128xbf16>
    %cst = arith.constant dense<0.000000e+00> : vector<512x128xf32>
    %4 = tpu.matmul %1, %3, %cst {dimension_numbers = #tpu.dot_dimension_numbers<[1], [0], [0], [1], [0, 0, 1, 1], [], []>} : vector<512x256xbf16>, vector<256x128xbf16>, vector<512x128xf32> -> vector<512x128xf32>
    %c0_5 = arith.constant 0 : index
    %c0_6 = arith.constant 0 : index
    %c0_7 = arith.constant 0 : index
    %5 = vector.load %arg3[%c0_5, %c0_6, %c0_7] : memref<1x1x128xf32, #tpu.memory_space<vmem>>, vector<1x1x128xf32>
    %6 = vector.shape_cast %5 : vector<1x1x128xf32> to vector<1x128xf32>
    %7 = vector.broadcast %6 : vector<1x128xf32> to vector<512x128xf32>
    %8 = arith.mulf %4, %7 : vector<512x128xf32>
    %c0_8 = arith.constant 0 : index
    %c0_9 = arith.constant 0 : index
    %c0_10 = arith.constant 0 : index
    %9 = vector.load %arg4[%c0_8, %c0_9, %c0_10] : memref<1x1x128xf32, #tpu.memory_space<vmem>>, vector<1x1x128xf32>
    %10 = vector.shape_cast %9 : vector<1x1x128xf32> to vector<1x128xf32>
    %11 = vector.broadcast %10 : vector<1x128xf32> to vector<512x128xf32>
    %12 = arith.addf %8, %11 : vector<512x128xf32>
    %cst_11 = arith.constant 0.000000e+00 : f32
    %13 = vector.broadcast %cst_11 : f32 to vector<512x128xf32>
    %14 = arith.maximumf %12, %13 : vector<512x128xf32>
    %15 = vector.shape_cast %14 : vector<512x128xf32> to vector<8x8x8x128xf32>
    %16 = vector.extract_strided_slice %15 {offsets = [0, 0, 0, 0], sizes = [1, 1, 8, 128], strides = [1, 1, 1, 1]} : vector<8x8x8x128xf32> to vector<1x1x8x128xf32>
    %17 = vector.shape_cast %16 : vector<1x1x8x128xf32> to vector<8x128xf32>
    %18 = vector.extract_strided_slice %15 {offsets = [0, 1, 0, 0], sizes = [1, 1, 8, 128], strides = [1, 1, 1, 1]} : vector<8x8x8x128xf32> to vector<1x1x8x128xf32>
    %19 = vector.shape_cast %18 : vector<1x1x8x128xf32> to vector<8x128xf32>
    %20 = arith.maximumf %17, %19 : vector<8x128xf32>
    %21 = vector.extract_strided_slice %15 {offsets = [1, 0, 0, 0], sizes = [1, 1, 8, 128], strides = [1, 1, 1, 1]} : vector<8x8x8x128xf32> to vector<1x1x8x128xf32>
    %22 = vector.shape_cast %21 : vector<1x1x8x128xf32> to vector<8x128xf32>
    %23 = arith.maximumf %20, %22 : vector<8x128xf32>
    %24 = vector.extract_strided_slice %15 {offsets = [1, 1, 0, 0], sizes = [1, 1, 8, 128], strides = [1, 1, 1, 1]} : vector<8x8x8x128xf32> to vector<1x1x8x128xf32>
    %25 = vector.shape_cast %24 : vector<1x1x8x128xf32> to vector<8x128xf32>
    %26 = arith.maximumf %23, %25 : vector<8x128xf32>
    %27 = arith.truncf %26 : vector<8x128xf32> to vector<8x128xbf16>
    %c0_12 = arith.constant 0 : index
    %c0_13 = arith.constant 0 : index
    %c0_14 = arith.constant 0 : index
    %c0_15 = arith.constant 0 : index
    %c0_16 = arith.constant 0 : index
    %28 = vector.load %arg5[%c0_12, %c0_13, %c0_14, %c0_15, %c0_16] : memref<1x4x4x8x128xbf16, #tpu.memory_space<vmem>>, vector<1x1x1x8x128xbf16>
    %29 = vector.shape_cast %28 : vector<1x1x1x8x128xbf16> to vector<8x128xbf16>
    %30 = vector.shape_cast %27 : vector<8x128xbf16> to vector<1x1x1x8x128xbf16>
    tpu.vector_store %arg5[%c0_12, %c0_13, %c0_14, %c0_15, %c0_16], %30 {strides = array<i32>} : memref<1x4x4x8x128xbf16, #tpu.memory_space<vmem>>, vector<1x1x1x8x128xbf16>,
    %31 = vector.extract_strided_slice %15 {offsets = [0, 1, 0, 0], sizes = [1, 1, 8, 128], strides = [1, 1, 1, 1]} : vector<8x8x8x128xf32> to vector<1x1x8x128xf32>
    %32 = vector.shape_cast %31 : vector<1x1x8x128xf32> to vector<8x128xf32>
    %33 = vector.extract_strided_slice %15 {offsets = [0, 2, 0, 0], sizes = [1, 1, 8, 128], strides = [1, 1, 1, 1]} : vector<8x8x8x128xf32> to vector<1x1x8x128xf32>
    %34 = vector.shape_cast %33 : vector<1x1x8x128xf32> to vector<8x128xf32>
    %35 = arith.maximumf %32, %34 : vector<8x128xf32>
    %36 = vector.extract_strided_slice %15 {offsets = [0, 3, 0, 0], sizes = [1, 1, 8, 128], strides = [1, 1, 1, 1]} : vector<8x8x8x128xf32> to vector<1x1x8x128xf32>
    %37 = vector.shape_cast %36 : vector<1x1x8x128xf32> to vector<8x128xf32>
    %38 = arith.maximumf %35, %37 : vector<8x128xf32>
    %39 = vector.extract_strided_slice %15 {offsets = [1, 1, 0, 0], sizes = [1, 1, 8, 128], strides = [1, 1, 1, 1]} : vector<8x8x8x128xf32> to vector<1x1x8x128xf32>
    %40 = vector.shape_cast %39 : vector<1x1x8x128xf32> to vector<8x128xf32>
    %41 = arith.maximumf %38, %40 : vector<8x128xf32>
    %42 = vector.extract_strided_slice %15 {offsets = [1, 2, 0, 0], sizes = [1, 1, 8, 128], strides = [1, 1, 1, 1]} : vector<8x8x8x128xf32> to vector<1x1x8x128xf32>
    %43 = vector.shape_cast %42 : vector<1x1x8x128xf32> to vector<8x128xf32>
    %44 = arith.maximumf %41, %43 : vector<8x128xf32>
    %45 = vector.extract_strided_slice %15 {offsets = [1, 3, 0, 0], sizes = [1, 1, 8, 128], strides = [1, 1, 1, 1]} : vector<8x8x8x128xf32> to vector<1x1x8x128xf32>
    %46 = vector.shape_cast %45 : vector<1x1x8x128xf32> to vector<8x128xf32>
    %47 = arith.maximumf %44, %46 : vector<8x128xf32>
    %48 = arith.truncf %47 : vector<8x128xf32> to vector<8x128xbf16>
    %c0_17 = arith.constant 0 : index
    %c0_18 = arith.constant 0 : index
    %c1 = arith.constant 1 : index
    %c0_19 = arith.constant 0 : index
    %c0_20 = arith.constant 0 : index
    %49 = vector.load %arg5[%c0_17, %c0_18, %c1, %c0_19, %c0_20] : memref<1x4x4x8x128xbf16, #tpu.memory_space<vmem>>, vector<1x1x1x8x128xbf16>
    %50 = vector.shape_cast %49 : vector<1x1x1x8x128xbf16> to vector<8x128xbf16>
    %51 = vector.shape_cast %48 : vector<8x128xbf16> to vector<1x1x1x8x128xbf16>
    tpu.vector_store %arg5[%c0_17, %c0_18, %c1, %c0_19, %c0_20], %51 {strides = array<i32>} : memref<1x4x4x8x128xbf16, #tpu.memory_space<vmem>>, vector<1x1x1x8x128xbf16>,
    %52 = vector.extract_strided_slice %15 {offsets = [0, 3, 0, 0], sizes = [1, 1, 8, 128], strides = [1, 1, 1, 1]} : vector<8x8x8x128xf32> to vector<1x1x8x128xf32>
    %53 = vector.shape_cast %52 : vector<1x1x8x128xf32> to vector<8x128xf32>
    %54 = vector.extract_strided_slice %15 {offsets = [0, 4, 0, 0], sizes = [1, 1, 8, 128], strides = [1, 1, 1, 1]} : vector<8x8x8x128xf32> to vector<1x1x8x128xf32>
    %55 = vector.shape_cast %54 : vector<1x1x8x128xf32> to vector<8x128xf32>
    %56 = arith.maximumf %53, %55 : vector<8x128xf32>
    %57 = vector.extract_strided_slice %15 {offsets = [0, 5, 0, 0], sizes = [1, 1, 8, 128], strides = [1, 1, 1, 1]} : vector<8x8x8x128xf32> to vector<1x1x8x128xf32>
    %58 = vector.shape_cast %57 : vector<1x1x8x128xf32> to vector<8x128xf32>
    %59 = arith.maximumf %56, %58 : vector<8x128xf32>
    %60 = vector.extract_strided_slice %15 {offsets = [1, 3, 0, 0], sizes = [1, 1, 8, 128], strides = [1, 1, 1, 1]} : vector<8x8x8x128xf32> to vector<1x1x8x128xf32>
    %61 = vector.shape_cast %60 : vector<1x1x8x128xf32> to vector<8x128xf32>
    %62 = arith.maximumf %59, %61 : vector<8x128xf32>
    %63 = vector.extract_strided_slice %15 {offsets = [1, 4, 0, 0], sizes = [1, 1, 8, 128], strides = [1, 1, 1, 1]} : vector<8x8x8x128xf32> to vector<1x1x8x128xf32>
    %64 = vector.shape_cast %63 : vector<1x1x8x128xf32> to vector<8x128xf32>
    %65 = arith.maximumf %62, %64 : vector<8x128xf32>
    %66 = vector.extract_strided_slice %15 {offsets = [1, 5, 0, 0], sizes = [1, 1, 8, 128], strides = [1, 1, 1, 1]} : vector<8x8x8x128xf32> to vector<1x1x8x128xf32>
    %67 = vector.shape_cast %66 : vector<1x1x8x128xf32> to vector<8x128xf32>
    %68 = arith.maximumf %65, %67 : vector<8x128xf32>
    %69 = arith.truncf %68 : vector<8x128xf32> to vector<8x128xbf16>
    %c0_21 = arith.constant 0 : index
    %c0_22 = arith.constant 0 : index
    %c2 = arith.constant 2 : index
    %c0_23 = arith.constant 0 : index
    %c0_24 = arith.constant 0 : index
    %70 = vector.load %arg5[%c0_21, %c0_22, %c2, %c0_23, %c0_24] : memref<1x4x4x8x128xbf16, #tpu.memory_space<vmem>>, vector<1x1x1x8x128xbf16>
    %71 = vector.shape_cast %70 : vector<1x1x1x8x128xbf16> to vector<8x128xbf16>
    %72 = vector.shape_cast %69 : vector<8x128xbf16> to vector<1x1x1x8x128xbf16>
    tpu.vector_store %arg5[%c0_21, %c0_22, %c2, %c0_23, %c0_24], %72 {strides = array<i32>} : memref<1x4x4x8x128xbf16, #tpu.memory_space<vmem>>, vector<1x1x1x8x128xbf16>,
    %73 = vector.extract_strided_slice %15 {offsets = [0, 5, 0, 0], sizes = [1, 1, 8, 128], strides = [1, 1, 1, 1]} : vector<8x8x8x128xf32> to vector<1x1x8x128xf32>
    %74 = vector.shape_cast %73 : vector<1x1x8x128xf32> to vector<8x128xf32>
    %75 = vector.extract_strided_slice %15 {offsets = [0, 6, 0, 0], sizes = [1, 1, 8, 128], strides = [1, 1, 1, 1]} : vector<8x8x8x128xf32> to vector<1x1x8x128xf32>
    %76 = vector.shape_cast %75 : vector<1x1x8x128xf32> to vector<8x128xf32>
    %77 = arith.maximumf %74, %76 : vector<8x128xf32>
    %78 = vector.extract_strided_slice %15 {offsets = [0, 7, 0, 0], sizes = [1, 1, 8, 128], strides = [1, 1, 1, 1]} : vector<8x8x8x128xf32> to vector<1x1x8x128xf32>
    %79 = vector.shape_cast %78 : vector<1x1x8x128xf32> to vector<8x128xf32>
    %80 = arith.maximumf %77, %79 : vector<8x128xf32>
    %81 = vector.extract_strided_slice %15 {offsets = [1, 5, 0, 0], sizes = [1, 1, 8, 128], strides = [1, 1, 1, 1]} : vector<8x8x8x128xf32> to vector<1x1x8x128xf32>
    %82 = vector.shape_cast %81 : vector<1x1x8x128xf32> to vector<8x128xf32>
    %83 = arith.maximumf %80, %82 : vector<8x128xf32>
    %84 = vector.extract_strided_slice %15 {offsets = [1, 6, 0, 0], sizes = [1, 1, 8, 128], strides = [1, 1, 1, 1]} : vector<8x8x8x128xf32> to vector<1x1x8x128xf32>
    %85 = vector.shape_cast %84 : vector<1x1x8x128xf32> to vector<8x128xf32>
    %86 = arith.maximumf %83, %85 : vector<8x128xf32>
    %87 = vector.extract_strided_slice %15 {offsets = [1, 7, 0, 0], sizes = [1, 1, 8, 128], strides = [1, 1, 1, 1]} : vector<8x8x8x128xf32> to vector<1x1x8x128xf32>
    %88 = vector.shape_cast %87 : vector<1x1x8x128xf32> to vector<8x128xf32>
    %89 = arith.maximumf %86, %88 : vector<8x128xf32>
    %90 = arith.truncf %89 : vector<8x128xf32> to vector<8x128xbf16>
    %c0_25 = arith.constant 0 : index
    %c0_26 = arith.constant 0 : index
    %c3 = arith.constant 3 : index
    %c0_27 = arith.constant 0 : index
    %c0_28 = arith.constant 0 : index
    %91 = vector.load %arg5[%c0_25, %c0_26, %c3, %c0_27, %c0_28] : memref<1x4x4x8x128xbf16, #tpu.memory_space<vmem>>, vector<1x1x1x8x128xbf16>
    %92 = vector.shape_cast %91 : vector<1x1x1x8x128xbf16> to vector<8x128xbf16>
    %93 = vector.shape_cast %90 : vector<8x128xbf16> to vector<1x1x1x8x128xbf16>
    tpu.vector_store %arg5[%c0_25, %c0_26, %c3, %c0_27, %c0_28], %93 {strides = array<i32>} : memref<1x4x4x8x128xbf16, #tpu.memory_space<vmem>>, vector<1x1x1x8x128xbf16>,
    %94 = vector.extract_strided_slice %15 {offsets = [1, 0, 0, 0], sizes = [1, 1, 8, 128], strides = [1, 1, 1, 1]} : vector<8x8x8x128xf32> to vector<1x1x8x128xf32>
    %95 = vector.shape_cast %94 : vector<1x1x8x128xf32> to vector<8x128xf32>
    %96 = vector.extract_strided_slice %15 {offsets = [1, 1, 0, 0], sizes = [1, 1, 8, 128], strides = [1, 1, 1, 1]} : vector<8x8x8x128xf32> to vector<1x1x8x128xf32>
    %97 = vector.shape_cast %96 : vector<1x1x8x128xf32> to vector<8x128xf32>
    %98 = arith.maximumf %95, %97 : vector<8x128xf32>
    %99 = vector.extract_strided_slice %15 {offsets = [2, 0, 0, 0], sizes = [1, 1, 8, 128], strides = [1, 1, 1, 1]} : vector<8x8x8x128xf32> to vector<1x1x8x128xf32>
    %100 = vector.shape_cast %99 : vector<1x1x8x128xf32> to vector<8x128xf32>
    %101 = arith.maximumf %98, %100 : vector<8x128xf32>
    %102 = vector.extract_strided_slice %15 {offsets = [2, 1, 0, 0], sizes = [1, 1, 8, 128], strides = [1, 1, 1, 1]} : vector<8x8x8x128xf32> to vector<1x1x8x128xf32>
    %103 = vector.shape_cast %102 : vector<1x1x8x128xf32> to vector<8x128xf32>
    %104 = arith.maximumf %101, %103 : vector<8x128xf32>
    %105 = vector.extract_strided_slice %15 {offsets = [3, 0, 0, 0], sizes = [1, 1, 8, 128], strides = [1, 1, 1, 1]} : vector<8x8x8x128xf32> to vector<1x1x8x128xf32>
    %106 = vector.shape_cast %105 : vector<1x1x8x128xf32> to vector<8x128xf32>
    %107 = arith.maximumf %104, %106 : vector<8x128xf32>
    %108 = vector.extract_strided_slice %15 {offsets = [3, 1, 0, 0], sizes = [1, 1, 8, 128], strides = [1, 1, 1, 1]} : vector<8x8x8x128xf32> to vector<1x1x8x128xf32>
    %109 = vector.shape_cast %108 : vector<1x1x8x128xf32> to vector<8x128xf32>
    %110 = arith.maximumf %107, %109 : vector<8x128xf32>
    %111 = arith.truncf %110 : vector<8x128xf32> to vector<8x128xbf16>
    %c0_29 = arith.constant 0 : index
    %c1_30 = arith.constant 1 : index
    %c0_31 = arith.constant 0 : index
    %c0_32 = arith.constant 0 : index
    %c0_33 = arith.constant 0 : index
    %112 = vector.load %arg5[%c0_29, %c1_30, %c0_31, %c0_32, %c0_33] : memref<1x4x4x8x128xbf16, #tpu.memory_space<vmem>>, vector<1x1x1x8x128xbf16>
    %113 = vector.shape_cast %112 : vector<1x1x1x8x128xbf16> to vector<8x128xbf16>
    %114 = vector.shape_cast %111 : vector<8x128xbf16> to vector<1x1x1x8x128xbf16>
    tpu.vector_store %arg5[%c0_29, %c1_30, %c0_31, %c0_32, %c0_33], %114 {strides = array<i32>} : memref<1x4x4x8x128xbf16, #tpu.memory_space<vmem>>, vector<1x1x1x8x128xbf16>,
    %115 = vector.extract_strided_slice %15 {offsets = [1, 1, 0, 0], sizes = [1, 1, 8, 128], strides = [1, 1, 1, 1]} : vector<8x8x8x128xf32> to vector<1x1x8x128xf32>
    %116 = vector.shape_cast %115 : vector<1x1x8x128xf32> to vector<8x128xf32>
    %117 = vector.extract_strided_slice %15 {offsets = [1, 2, 0, 0], sizes = [1, 1, 8, 128], strides = [1, 1, 1, 1]} : vector<8x8x8x128xf32> to vector<1x1x8x128xf32>
    %118 = vector.shape_cast %117 : vector<1x1x8x128xf32> to vector<8x128xf32>
    %119 = arith.maximumf %116, %118 : vector<8x128xf32>
    %120 = vector.extract_strided_slice %15 {offsets = [1, 3, 0, 0], sizes = [1, 1, 8, 128], strides = [1, 1, 1, 1]} : vector<8x8x8x128xf32> to vector<1x1x8x128xf32>
    %121 = vector.shape_cast %120 : vector<1x1x8x128xf32> to vector<8x128xf32>
    %122 = arith.maximumf %119, %121 : vector<8x128xf32>
    %123 = vector.extract_strided_slice %15 {offsets = [2, 1, 0, 0], sizes = [1, 1, 8, 128], strides = [1, 1, 1, 1]} : vector<8x8x8x128xf32> to vector<1x1x8x128xf32>
    %124 = vector.shape_cast %123 : vector<1x1x8x128xf32> to vector<8x128xf32>
    %125 = arith.maximumf %122, %124 : vector<8x128xf32>
    %126 = vector.extract_strided_slice %15 {offsets = [2, 2, 0, 0], sizes = [1, 1, 8, 128], strides = [1, 1, 1, 1]} : vector<8x8x8x128xf32> to vector<1x1x8x128xf32>
    %127 = vector.shape_cast %126 : vector<1x1x8x128xf32> to vector<8x128xf32>
    %128 = arith.maximumf %125, %127 : vector<8x128xf32>
    %129 = vector.extract_strided_slice %15 {offsets = [2, 3, 0, 0], sizes = [1, 1, 8, 128], strides = [1, 1, 1, 1]} : vector<8x8x8x128xf32> to vector<1x1x8x128xf32>
    %130 = vector.shape_cast %129 : vector<1x1x8x128xf32> to vector<8x128xf32>
    %131 = arith.maximumf %128, %130 : vector<8x128xf32>
    %132 = vector.extract_strided_slice %15 {offsets = [3, 1, 0, 0], sizes = [1, 1, 8, 128], strides = [1, 1, 1, 1]} : vector<8x8x8x128xf32> to vector<1x1x8x128xf32>
    %133 = vector.shape_cast %132 : vector<1x1x8x128xf32> to vector<8x128xf32>
    %134 = arith.maximumf %131, %133 : vector<8x128xf32>
    %135 = vector.extract_strided_slice %15 {offsets = [3, 2, 0, 0], sizes = [1, 1, 8, 128], strides = [1, 1, 1, 1]} : vector<8x8x8x128xf32> to vector<1x1x8x128xf32>
    %136 = vector.shape_cast %135 : vector<1x1x8x128xf32> to vector<8x128xf32>
    %137 = arith.maximumf %134, %136 : vector<8x128xf32>
    %138 = vector.extract_strided_slice %15 {offsets = [3, 3, 0, 0], sizes = [1, 1, 8, 128], strides = [1, 1, 1, 1]} : vector<8x8x8x128xf32> to vector<1x1x8x128xf32>
    %139 = vector.shape_cast %138 : vector<1x1x8x128xf32> to vector<8x128xf32>
    %140 = arith.maximumf %137, %139 : vector<8x128xf32>
    %141 = arith.truncf %140 : vector<8x128xf32> to vector<8x128xbf16>
    %c0_34 = arith.constant 0 : index
    %c1_35 = arith.constant 1 : index
    %c1_36 = arith.constant 1 : index
    %c0_37 = arith.constant 0 : index
    %c0_38 = arith.constant 0 : index
    %142 = vector.load %arg5[%c0_34, %c1_35, %c1_36, %c0_37, %c0_38] : memref<1x4x4x8x128xbf16, #tpu.memory_space<vmem>>, vector<1x1x1x8x128xbf16>
    %143 = vector.shape_cast %142 : vector<1x1x1x8x128xbf16> to vector<8x128xbf16>
    %144 = vector.shape_cast %141 : vector<8x128xbf16> to vector<1x1x1x8x128xbf16>
    tpu.vector_store %arg5[%c0_34, %c1_35, %c1_36, %c0_37, %c0_38], %144 {strides = array<i32>} : memref<1x4x4x8x128xbf16, #tpu.memory_space<vmem>>, vector<1x1x1x8x128xbf16>,
    %145 = vector.extract_strided_slice %15 {offsets = [1, 3, 0, 0], sizes = [1, 1, 8, 128], strides = [1, 1, 1, 1]} : vector<8x8x8x128xf32> to vector<1x1x8x128xf32>
    %146 = vector.shape_cast %145 : vector<1x1x8x128xf32> to vector<8x128xf32>
    %147 = vector.extract_strided_slice %15 {offsets = [1, 4, 0, 0], sizes = [1, 1, 8, 128], strides = [1, 1, 1, 1]} : vector<8x8x8x128xf32> to vector<1x1x8x128xf32>
    %148 = vector.shape_cast %147 : vector<1x1x8x128xf32> to vector<8x128xf32>
    %149 = arith.maximumf %146, %148 : vector<8x128xf32>
    %150 = vector.extract_strided_slice %15 {offsets = [1, 5, 0, 0], sizes = [1, 1, 8, 128], strides = [1, 1, 1, 1]} : vector<8x8x8x128xf32> to vector<1x1x8x128xf32>
    %151 = vector.shape_cast %150 : vector<1x1x8x128xf32> to vector<8x128xf32>
    %152 = arith.maximumf %149, %151 : vector<8x128xf32>
    %153 = vector.extract_strided_slice %15 {offsets = [2, 3, 0, 0], sizes = [1, 1, 8, 128], strides = [1, 1, 1, 1]} : vector<8x8x8x128xf32> to vector<1x1x8x128xf32>
    %154 = vector.shape_cast %153 : vector<1x1x8x128xf32> to vector<8x128xf32>
    %155 = arith.maximumf %152, %154 : vector<8x128xf32>
    %156 = vector.extract_strided_slice %15 {offsets = [2, 4, 0, 0], sizes = [1, 1, 8, 128], strides = [1, 1, 1, 1]} : vector<8x8x8x128xf32> to vector<1x1x8x128xf32>
    %157 = vector.shape_cast %156 : vector<1x1x8x128xf32> to vector<8x128xf32>
    %158 = arith.maximumf %155, %157 : vector<8x128xf32>
    %159 = vector.extract_strided_slice %15 {offsets = [2, 5, 0, 0], sizes = [1, 1, 8, 128], strides = [1, 1, 1, 1]} : vector<8x8x8x128xf32> to vector<1x1x8x128xf32>
    %160 = vector.shape_cast %159 : vector<1x1x8x128xf32> to vector<8x128xf32>
    %161 = arith.maximumf %158, %160 : vector<8x128xf32>
    %162 = vector.extract_strided_slice %15 {offsets = [3, 3, 0, 0], sizes = [1, 1, 8, 128], strides = [1, 1, 1, 1]} : vector<8x8x8x128xf32> to vector<1x1x8x128xf32>
    %163 = vector.shape_cast %162 : vector<1x1x8x128xf32> to vector<8x128xf32>
    %164 = arith.maximumf %161, %163 : vector<8x128xf32>
    %165 = vector.extract_strided_slice %15 {offsets = [3, 4, 0, 0], sizes = [1, 1, 8, 128], strides = [1, 1, 1, 1]} : vector<8x8x8x128xf32> to vector<1x1x8x128xf32>
    %166 = vector.shape_cast %165 : vector<1x1x8x128xf32> to vector<8x128xf32>
    %167 = arith.maximumf %164, %166 : vector<8x128xf32>
    %168 = vector.extract_strided_slice %15 {offsets = [3, 5, 0, 0], sizes = [1, 1, 8, 128], strides = [1, 1, 1, 1]} : vector<8x8x8x128xf32> to vector<1x1x8x128xf32>
    %169 = vector.shape_cast %168 : vector<1x1x8x128xf32> to vector<8x128xf32>
    %170 = arith.maximumf %167, %169 : vector<8x128xf32>
    %171 = arith.truncf %170 : vector<8x128xf32> to vector<8x128xbf16>
    %c0_39 = arith.constant 0 : index
    %c1_40 = arith.constant 1 : index
    %c2_41 = arith.constant 2 : index
    %c0_42 = arith.constant 0 : index
    %c0_43 = arith.constant 0 : index
    %172 = vector.load %arg5[%c0_39, %c1_40, %c2_41, %c0_42, %c0_43] : memref<1x4x4x8x128xbf16, #tpu.memory_space<vmem>>, vector<1x1x1x8x128xbf16>
    %173 = vector.shape_cast %172 : vector<1x1x1x8x128xbf16> to vector<8x128xbf16>
    %174 = vector.shape_cast %171 : vector<8x128xbf16> to vector<1x1x1x8x128xbf16>
    tpu.vector_store %arg5[%c0_39, %c1_40, %c2_41, %c0_42, %c0_43], %174 {strides = array<i32>} : memref<1x4x4x8x128xbf16, #tpu.memory_space<vmem>>, vector<1x1x1x8x128xbf16>,
    %175 = vector.extract_strided_slice %15 {offsets = [1, 5, 0, 0], sizes = [1, 1, 8, 128], strides = [1, 1, 1, 1]} : vector<8x8x8x128xf32> to vector<1x1x8x128xf32>
    %176 = vector.shape_cast %175 : vector<1x1x8x128xf32> to vector<8x128xf32>
    %177 = vector.extract_strided_slice %15 {offsets = [1, 6, 0, 0], sizes = [1, 1, 8, 128], strides = [1, 1, 1, 1]} : vector<8x8x8x128xf32> to vector<1x1x8x128xf32>
    %178 = vector.shape_cast %177 : vector<1x1x8x128xf32> to vector<8x128xf32>
    %179 = arith.maximumf %176, %178 : vector<8x128xf32>
    %180 = vector.extract_strided_slice %15 {offsets = [1, 7, 0, 0], sizes = [1, 1, 8, 128], strides = [1, 1, 1, 1]} : vector<8x8x8x128xf32> to vector<1x1x8x128xf32>
    %181 = vector.shape_cast %180 : vector<1x1x8x128xf32> to vector<8x128xf32>
    %182 = arith.maximumf %179, %181 : vector<8x128xf32>
    %183 = vector.extract_strided_slice %15 {offsets = [2, 5, 0, 0], sizes = [1, 1, 8, 128], strides = [1, 1, 1, 1]} : vector<8x8x8x128xf32> to vector<1x1x8x128xf32>
    %184 = vector.shape_cast %183 : vector<1x1x8x128xf32> to vector<8x128xf32>
    %185 = arith.maximumf %182, %184 : vector<8x128xf32>
    %186 = vector.extract_strided_slice %15 {offsets = [2, 6, 0, 0], sizes = [1, 1, 8, 128], strides = [1, 1, 1, 1]} : vector<8x8x8x128xf32> to vector<1x1x8x128xf32>
    %187 = vector.shape_cast %186 : vector<1x1x8x128xf32> to vector<8x128xf32>
    %188 = arith.maximumf %185, %187 : vector<8x128xf32>
    %189 = vector.extract_strided_slice %15 {offsets = [2, 7, 0, 0], sizes = [1, 1, 8, 128], strides = [1, 1, 1, 1]} : vector<8x8x8x128xf32> to vector<1x1x8x128xf32>
    %190 = vector.shape_cast %189 : vector<1x1x8x128xf32> to vector<8x128xf32>
    %191 = arith.maximumf %188, %190 : vector<8x128xf32>
    %192 = vector.extract_strided_slice %15 {offsets = [3, 5, 0, 0], sizes = [1, 1, 8, 128], strides = [1, 1, 1, 1]} : vector<8x8x8x128xf32> to vector<1x1x8x128xf32>
    %193 = vector.shape_cast %192 : vector<1x1x8x128xf32> to vector<8x128xf32>
    %194 = arith.maximumf %191, %193 : vector<8x128xf32>
    %195 = vector.extract_strided_slice %15 {offsets = [3, 6, 0, 0], sizes = [1, 1, 8, 128], strides = [1, 1, 1, 1]} : vector<8x8x8x128xf32> to vector<1x1x8x128xf32>
    %196 = vector.shape_cast %195 : vector<1x1x8x128xf32> to vector<8x128xf32>
    %197 = arith.maximumf %194, %196 : vector<8x128xf32>
    %198 = vector.extract_strided_slice %15 {offsets = [3, 7, 0, 0], sizes = [1, 1, 8, 128], strides = [1, 1, 1, 1]} : vector<8x8x8x128xf32> to vector<1x1x8x128xf32>
    %199 = vector.shape_cast %198 : vector<1x1x8x128xf32> to vector<8x128xf32>
    %200 = arith.maximumf %197, %199 : vector<8x128xf32>
    %201 = arith.truncf %200 : vector<8x128xf32> to vector<8x128xbf16>
    %c0_44 = arith.constant 0 : index
    %c1_45 = arith.constant 1 : index
    %c3_46 = arith.constant 3 : index
    %c0_47 = arith.constant 0 : index
    %c0_48 = arith.constant 0 : index
    %202 = vector.load %arg5[%c0_44, %c1_45, %c3_46, %c0_47, %c0_48] : memref<1x4x4x8x128xbf16, #tpu.memory_space<vmem>>, vector<1x1x1x8x128xbf16>
    %203 = vector.shape_cast %202 : vector<1x1x1x8x128xbf16> to vector<8x128xbf16>
    %204 = vector.shape_cast %201 : vector<8x128xbf16> to vector<1x1x1x8x128xbf16>
    tpu.vector_store %arg5[%c0_44, %c1_45, %c3_46, %c0_47, %c0_48], %204 {strides = array<i32>} : memref<1x4x4x8x128xbf16, #tpu.memory_space<vmem>>, vector<1x1x1x8x128xbf16>,
    %205 = vector.extract_strided_slice %15 {offsets = [3, 0, 0, 0], sizes = [1, 1, 8, 128], strides = [1, 1, 1, 1]} : vector<8x8x8x128xf32> to vector<1x1x8x128xf32>
    %206 = vector.shape_cast %205 : vector<1x1x8x128xf32> to vector<8x128xf32>
    %207 = vector.extract_strided_slice %15 {offsets = [3, 1, 0, 0], sizes = [1, 1, 8, 128], strides = [1, 1, 1, 1]} : vector<8x8x8x128xf32> to vector<1x1x8x128xf32>
    %208 = vector.shape_cast %207 : vector<1x1x8x128xf32> to vector<8x128xf32>
    %209 = arith.maximumf %206, %208 : vector<8x128xf32>
    %210 = vector.extract_strided_slice %15 {offsets = [4, 0, 0, 0], sizes = [1, 1, 8, 128], strides = [1, 1, 1, 1]} : vector<8x8x8x128xf32> to vector<1x1x8x128xf32>
    %211 = vector.shape_cast %210 : vector<1x1x8x128xf32> to vector<8x128xf32>
    %212 = arith.maximumf %209, %211 : vector<8x128xf32>
    %213 = vector.extract_strided_slice %15 {offsets = [4, 1, 0, 0], sizes = [1, 1, 8, 128], strides = [1, 1, 1, 1]} : vector<8x8x8x128xf32> to vector<1x1x8x128xf32>
    %214 = vector.shape_cast %213 : vector<1x1x8x128xf32> to vector<8x128xf32>
    %215 = arith.maximumf %212, %214 : vector<8x128xf32>
    %216 = vector.extract_strided_slice %15 {offsets = [5, 0, 0, 0], sizes = [1, 1, 8, 128], strides = [1, 1, 1, 1]} : vector<8x8x8x128xf32> to vector<1x1x8x128xf32>
    %217 = vector.shape_cast %216 : vector<1x1x8x128xf32> to vector<8x128xf32>
    %218 = arith.maximumf %215, %217 : vector<8x128xf32>
    %219 = vector.extract_strided_slice %15 {offsets = [5, 1, 0, 0], sizes = [1, 1, 8, 128], strides = [1, 1, 1, 1]} : vector<8x8x8x128xf32> to vector<1x1x8x128xf32>
    %220 = vector.shape_cast %219 : vector<1x1x8x128xf32> to vector<8x128xf32>
    %221 = arith.maximumf %218, %220 : vector<8x128xf32>
    %222 = arith.truncf %221 : vector<8x128xf32> to vector<8x128xbf16>
    %c0_49 = arith.constant 0 : index
    %c2_50 = arith.constant 2 : index
    %c0_51 = arith.constant 0 : index
    %c0_52 = arith.constant 0 : index
    %c0_53 = arith.constant 0 : index
    %223 = vector.load %arg5[%c0_49, %c2_50, %c0_51, %c0_52, %c0_53] : memref<1x4x4x8x128xbf16, #tpu.memory_space<vmem>>, vector<1x1x1x8x128xbf16>
    %224 = vector.shape_cast %223 : vector<1x1x1x8x128xbf16> to vector<8x128xbf16>
    %225 = vector.shape_cast %222 : vector<8x128xbf16> to vector<1x1x1x8x128xbf16>
    tpu.vector_store %arg5[%c0_49, %c2_50, %c0_51, %c0_52, %c0_53], %225 {strides = array<i32>} : memref<1x4x4x8x128xbf16, #tpu.memory_space<vmem>>, vector<1x1x1x8x128xbf16>,
    %226 = vector.extract_strided_slice %15 {offsets = [3, 1, 0, 0], sizes = [1, 1, 8, 128], strides = [1, 1, 1, 1]} : vector<8x8x8x128xf32> to vector<1x1x8x128xf32>
    %227 = vector.shape_cast %226 : vector<1x1x8x128xf32> to vector<8x128xf32>
    %228 = vector.extract_strided_slice %15 {offsets = [3, 2, 0, 0], sizes = [1, 1, 8, 128], strides = [1, 1, 1, 1]} : vector<8x8x8x128xf32> to vector<1x1x8x128xf32>
    %229 = vector.shape_cast %228 : vector<1x1x8x128xf32> to vector<8x128xf32>
    %230 = arith.maximumf %227, %229 : vector<8x128xf32>
    %231 = vector.extract_strided_slice %15 {offsets = [3, 3, 0, 0], sizes = [1, 1, 8, 128], strides = [1, 1, 1, 1]} : vector<8x8x8x128xf32> to vector<1x1x8x128xf32>
    %232 = vector.shape_cast %231 : vector<1x1x8x128xf32> to vector<8x128xf32>
    %233 = arith.maximumf %230, %232 : vector<8x128xf32>
    %234 = vector.extract_strided_slice %15 {offsets = [4, 1, 0, 0], sizes = [1, 1, 8, 128], strides = [1, 1, 1, 1]} : vector<8x8x8x128xf32> to vector<1x1x8x128xf32>
    %235 = vector.shape_cast %234 : vector<1x1x8x128xf32> to vector<8x128xf32>
    %236 = arith.maximumf %233, %235 : vector<8x128xf32>
    %237 = vector.extract_strided_slice %15 {offsets = [4, 2, 0, 0], sizes = [1, 1, 8, 128], strides = [1, 1, 1, 1]} : vector<8x8x8x128xf32> to vector<1x1x8x128xf32>
    %238 = vector.shape_cast %237 : vector<1x1x8x128xf32> to vector<8x128xf32>
    %239 = arith.maximumf %236, %238 : vector<8x128xf32>
    %240 = vector.extract_strided_slice %15 {offsets = [4, 3, 0, 0], sizes = [1, 1, 8, 128], strides = [1, 1, 1, 1]} : vector<8x8x8x128xf32> to vector<1x1x8x128xf32>
    %241 = vector.shape_cast %240 : vector<1x1x8x128xf32> to vector<8x128xf32>
    %242 = arith.maximumf %239, %241 : vector<8x128xf32>
    %243 = vector.extract_strided_slice %15 {offsets = [5, 1, 0, 0], sizes = [1, 1, 8, 128], strides = [1, 1, 1, 1]} : vector<8x8x8x128xf32> to vector<1x1x8x128xf32>
    %244 = vector.shape_cast %243 : vector<1x1x8x128xf32> to vector<8x128xf32>
    %245 = arith.maximumf %242, %244 : vector<8x128xf32>
    %246 = vector.extract_strided_slice %15 {offsets = [5, 2, 0, 0], sizes = [1, 1, 8, 128], strides = [1, 1, 1, 1]} : vector<8x8x8x128xf32> to vector<1x1x8x128xf32>
    %247 = vector.shape_cast %246 : vector<1x1x8x128xf32> to vector<8x128xf32>
    %248 = arith.maximumf %245, %247 : vector<8x128xf32>
    %249 = vector.extract_strided_slice %15 {offsets = [5, 3, 0, 0], sizes = [1, 1, 8, 128], strides = [1, 1, 1, 1]} : vector<8x8x8x128xf32> to vector<1x1x8x128xf32>
    %250 = vector.shape_cast %249 : vector<1x1x8x128xf32> to vector<8x128xf32>
    %251 = arith.maximumf %248, %250 : vector<8x128xf32>
    %252 = arith.truncf %251 : vector<8x128xf32> to vector<8x128xbf16>
    %c0_54 = arith.constant 0 : index
    %c2_55 = arith.constant 2 : index
    %c1_56 = arith.constant 1 : index
    %c0_57 = arith.constant 0 : index
    %c0_58 = arith.constant 0 : index
    %253 = vector.load %arg5[%c0_54, %c2_55, %c1_56, %c0_57, %c0_58] : memref<1x4x4x8x128xbf16, #tpu.memory_space<vmem>>, vector<1x1x1x8x128xbf16>
    %254 = vector.shape_cast %253 : vector<1x1x1x8x128xbf16> to vector<8x128xbf16>
    %255 = vector.shape_cast %252 : vector<8x128xbf16> to vector<1x1x1x8x128xbf16>
    tpu.vector_store %arg5[%c0_54, %c2_55, %c1_56, %c0_57, %c0_58], %255 {strides = array<i32>} : memref<1x4x4x8x128xbf16, #tpu.memory_space<vmem>>, vector<1x1x1x8x128xbf16>,
    %256 = vector.extract_strided_slice %15 {offsets = [3, 3, 0, 0], sizes = [1, 1, 8, 128], strides = [1, 1, 1, 1]} : vector<8x8x8x128xf32> to vector<1x1x8x128xf32>
    %257 = vector.shape_cast %256 : vector<1x1x8x128xf32> to vector<8x128xf32>
    %258 = vector.extract_strided_slice %15 {offsets = [3, 4, 0, 0], sizes = [1, 1, 8, 128], strides = [1, 1, 1, 1]} : vector<8x8x8x128xf32> to vector<1x1x8x128xf32>
    %259 = vector.shape_cast %258 : vector<1x1x8x128xf32> to vector<8x128xf32>
    %260 = arith.maximumf %257, %259 : vector<8x128xf32>
    %261 = vector.extract_strided_slice %15 {offsets = [3, 5, 0, 0], sizes = [1, 1, 8, 128], strides = [1, 1, 1, 1]} : vector<8x8x8x128xf32> to vector<1x1x8x128xf32>
    %262 = vector.shape_cast %261 : vector<1x1x8x128xf32> to vector<8x128xf32>
    %263 = arith.maximumf %260, %262 : vector<8x128xf32>
    %264 = vector.extract_strided_slice %15 {offsets = [4, 3, 0, 0], sizes = [1, 1, 8, 128], strides = [1, 1, 1, 1]} : vector<8x8x8x128xf32> to vector<1x1x8x128xf32>
    %265 = vector.shape_cast %264 : vector<1x1x8x128xf32> to vector<8x128xf32>
    %266 = arith.maximumf %263, %265 : vector<8x128xf32>
    %267 = vector.extract_strided_slice %15 {offsets = [4, 4, 0, 0], sizes = [1, 1, 8, 128], strides = [1, 1, 1, 1]} : vector<8x8x8x128xf32> to vector<1x1x8x128xf32>
    %268 = vector.shape_cast %267 : vector<1x1x8x128xf32> to vector<8x128xf32>
    %269 = arith.maximumf %266, %268 : vector<8x128xf32>
    %270 = vector.extract_strided_slice %15 {offsets = [4, 5, 0, 0], sizes = [1, 1, 8, 128], strides = [1, 1, 1, 1]} : vector<8x8x8x128xf32> to vector<1x1x8x128xf32>
    %271 = vector.shape_cast %270 : vector<1x1x8x128xf32> to vector<8x128xf32>
    %272 = arith.maximumf %269, %271 : vector<8x128xf32>
    %273 = vector.extract_strided_slice %15 {offsets = [5, 3, 0, 0], sizes = [1, 1, 8, 128], strides = [1, 1, 1, 1]} : vector<8x8x8x128xf32> to vector<1x1x8x128xf32>
    %274 = vector.shape_cast %273 : vector<1x1x8x128xf32> to vector<8x128xf32>
    %275 = arith.maximumf %272, %274 : vector<8x128xf32>
    %276 = vector.extract_strided_slice %15 {offsets = [5, 4, 0, 0], sizes = [1, 1, 8, 128], strides = [1, 1, 1, 1]} : vector<8x8x8x128xf32> to vector<1x1x8x128xf32>
    %277 = vector.shape_cast %276 : vector<1x1x8x128xf32> to vector<8x128xf32>
    %278 = arith.maximumf %275, %277 : vector<8x128xf32>
    %279 = vector.extract_strided_slice %15 {offsets = [5, 5, 0, 0], sizes = [1, 1, 8, 128], strides = [1, 1, 1, 1]} : vector<8x8x8x128xf32> to vector<1x1x8x128xf32>
    %280 = vector.shape_cast %279 : vector<1x1x8x128xf32> to vector<8x128xf32>
    %281 = arith.maximumf %278, %280 : vector<8x128xf32>
    %282 = arith.truncf %281 : vector<8x128xf32> to vector<8x128xbf16>
    %c0_59 = arith.constant 0 : index
    %c2_60 = arith.constant 2 : index
    %c2_61 = arith.constant 2 : index
    %c0_62 = arith.constant 0 : index
    %c0_63 = arith.constant 0 : index
    %283 = vector.load %arg5[%c0_59, %c2_60, %c2_61, %c0_62, %c0_63] : memref<1x4x4x8x128xbf16, #tpu.memory_space<vmem>>, vector<1x1x1x8x128xbf16>
    %284 = vector.shape_cast %283 : vector<1x1x1x8x128xbf16> to vector<8x128xbf16>
    %285 = vector.shape_cast %282 : vector<8x128xbf16> to vector<1x1x1x8x128xbf16>
    tpu.vector_store %arg5[%c0_59, %c2_60, %c2_61, %c0_62, %c0_63], %285 {strides = array<i32>} : memref<1x4x4x8x128xbf16, #tpu.memory_space<vmem>>, vector<1x1x1x8x128xbf16>,
    %286 = vector.extract_strided_slice %15 {offsets = [3, 5, 0, 0], sizes = [1, 1, 8, 128], strides = [1, 1, 1, 1]} : vector<8x8x8x128xf32> to vector<1x1x8x128xf32>
    %287 = vector.shape_cast %286 : vector<1x1x8x128xf32> to vector<8x128xf32>
    %288 = vector.extract_strided_slice %15 {offsets = [3, 6, 0, 0], sizes = [1, 1, 8, 128], strides = [1, 1, 1, 1]} : vector<8x8x8x128xf32> to vector<1x1x8x128xf32>
    %289 = vector.shape_cast %288 : vector<1x1x8x128xf32> to vector<8x128xf32>
    %290 = arith.maximumf %287, %289 : vector<8x128xf32>
    %291 = vector.extract_strided_slice %15 {offsets = [3, 7, 0, 0], sizes = [1, 1, 8, 128], strides = [1, 1, 1, 1]} : vector<8x8x8x128xf32> to vector<1x1x8x128xf32>
    %292 = vector.shape_cast %291 : vector<1x1x8x128xf32> to vector<8x128xf32>
    %293 = arith.maximumf %290, %292 : vector<8x128xf32>
    %294 = vector.extract_strided_slice %15 {offsets = [4, 5, 0, 0], sizes = [1, 1, 8, 128], strides = [1, 1, 1, 1]} : vector<8x8x8x128xf32> to vector<1x1x8x128xf32>
    %295 = vector.shape_cast %294 : vector<1x1x8x128xf32> to vector<8x128xf32>
    %296 = arith.maximumf %293, %295 : vector<8x128xf32>
    %297 = vector.extract_strided_slice %15 {offsets = [4, 6, 0, 0], sizes = [1, 1, 8, 128], strides = [1, 1, 1, 1]} : vector<8x8x8x128xf32> to vector<1x1x8x128xf32>
    %298 = vector.shape_cast %297 : vector<1x1x8x128xf32> to vector<8x128xf32>
    %299 = arith.maximumf %296, %298 : vector<8x128xf32>
    %300 = vector.extract_strided_slice %15 {offsets = [4, 7, 0, 0], sizes = [1, 1, 8, 128], strides = [1, 1, 1, 1]} : vector<8x8x8x128xf32> to vector<1x1x8x128xf32>
    %301 = vector.shape_cast %300 : vector<1x1x8x128xf32> to vector<8x128xf32>
    %302 = arith.maximumf %299, %301 : vector<8x128xf32>
    %303 = vector.extract_strided_slice %15 {offsets = [5, 5, 0, 0], sizes = [1, 1, 8, 128], strides = [1, 1, 1, 1]} : vector<8x8x8x128xf32> to vector<1x1x8x128xf32>
    %304 = vector.shape_cast %303 : vector<1x1x8x128xf32> to vector<8x128xf32>
    %305 = arith.maximumf %302, %304 : vector<8x128xf32>
    %306 = vector.extract_strided_slice %15 {offsets = [5, 6, 0, 0], sizes = [1, 1, 8, 128], strides = [1, 1, 1, 1]} : vector<8x8x8x128xf32> to vector<1x1x8x128xf32>
    %307 = vector.shape_cast %306 : vector<1x1x8x128xf32> to vector<8x128xf32>
    %308 = arith.maximumf %305, %307 : vector<8x128xf32>
    %309 = vector.extract_strided_slice %15 {offsets = [5, 7, 0, 0], sizes = [1, 1, 8, 128], strides = [1, 1, 1, 1]} : vector<8x8x8x128xf32> to vector<1x1x8x128xf32>
    %310 = vector.shape_cast %309 : vector<1x1x8x128xf32> to vector<8x128xf32>
    %311 = arith.maximumf %308, %310 : vector<8x128xf32>
    %312 = arith.truncf %311 : vector<8x128xf32> to vector<8x128xbf16>
    %c0_64 = arith.constant 0 : index
    %c2_65 = arith.constant 2 : index
    %c3_66 = arith.constant 3 : index
    %c0_67 = arith.constant 0 : index
    %c0_68 = arith.constant 0 : index
    %313 = vector.load %arg5[%c0_64, %c2_65, %c3_66, %c0_67, %c0_68] : memref<1x4x4x8x128xbf16, #tpu.memory_space<vmem>>, vector<1x1x1x8x128xbf16>
    %314 = vector.shape_cast %313 : vector<1x1x1x8x128xbf16> to vector<8x128xbf16>
    %315 = vector.shape_cast %312 : vector<8x128xbf16> to vector<1x1x1x8x128xbf16>
    tpu.vector_store %arg5[%c0_64, %c2_65, %c3_66, %c0_67, %c0_68], %315 {strides = array<i32>} : memref<1x4x4x8x128xbf16, #tpu.memory_space<vmem>>, vector<1x1x1x8x128xbf16>,
    %316 = vector.extract_strided_slice %15 {offsets = [5, 0, 0, 0], sizes = [1, 1, 8, 128], strides = [1, 1, 1, 1]} : vector<8x8x8x128xf32> to vector<1x1x8x128xf32>
    %317 = vector.shape_cast %316 : vector<1x1x8x128xf32> to vector<8x128xf32>
    %318 = vector.extract_strided_slice %15 {offsets = [5, 1, 0, 0], sizes = [1, 1, 8, 128], strides = [1, 1, 1, 1]} : vector<8x8x8x128xf32> to vector<1x1x8x128xf32>
    %319 = vector.shape_cast %318 : vector<1x1x8x128xf32> to vector<8x128xf32>
    %320 = arith.maximumf %317, %319 : vector<8x128xf32>
    %321 = vector.extract_strided_slice %15 {offsets = [6, 0, 0, 0], sizes = [1, 1, 8, 128], strides = [1, 1, 1, 1]} : vector<8x8x8x128xf32> to vector<1x1x8x128xf32>
    %322 = vector.shape_cast %321 : vector<1x1x8x128xf32> to vector<8x128xf32>
    %323 = arith.maximumf %320, %322 : vector<8x128xf32>
    %324 = vector.extract_strided_slice %15 {offsets = [6, 1, 0, 0], sizes = [1, 1, 8, 128], strides = [1, 1, 1, 1]} : vector<8x8x8x128xf32> to vector<1x1x8x128xf32>
    %325 = vector.shape_cast %324 : vector<1x1x8x128xf32> to vector<8x128xf32>
    %326 = arith.maximumf %323, %325 : vector<8x128xf32>
    %327 = vector.extract_strided_slice %15 {offsets = [7, 0, 0, 0], sizes = [1, 1, 8, 128], strides = [1, 1, 1, 1]} : vector<8x8x8x128xf32> to vector<1x1x8x128xf32>
    %328 = vector.shape_cast %327 : vector<1x1x8x128xf32> to vector<8x128xf32>
    %329 = arith.maximumf %326, %328 : vector<8x128xf32>
    %330 = vector.extract_strided_slice %15 {offsets = [7, 1, 0, 0], sizes = [1, 1, 8, 128], strides = [1, 1, 1, 1]} : vector<8x8x8x128xf32> to vector<1x1x8x128xf32>
    %331 = vector.shape_cast %330 : vector<1x1x8x128xf32> to vector<8x128xf32>
    %332 = arith.maximumf %329, %331 : vector<8x128xf32>
    %333 = arith.truncf %332 : vector<8x128xf32> to vector<8x128xbf16>
    %c0_69 = arith.constant 0 : index
    %c3_70 = arith.constant 3 : index
    %c0_71 = arith.constant 0 : index
    %c0_72 = arith.constant 0 : index
    %c0_73 = arith.constant 0 : index
    %334 = vector.load %arg5[%c0_69, %c3_70, %c0_71, %c0_72, %c0_73] : memref<1x4x4x8x128xbf16, #tpu.memory_space<vmem>>, vector<1x1x1x8x128xbf16>
    %335 = vector.shape_cast %334 : vector<1x1x1x8x128xbf16> to vector<8x128xbf16>
    %336 = vector.shape_cast %333 : vector<8x128xbf16> to vector<1x1x1x8x128xbf16>
    tpu.vector_store %arg5[%c0_69, %c3_70, %c0_71, %c0_72, %c0_73], %336 {strides = array<i32>} : memref<1x4x4x8x128xbf16, #tpu.memory_space<vmem>>, vector<1x1x1x8x128xbf16>,
    %337 = vector.extract_strided_slice %15 {offsets = [5, 1, 0, 0], sizes = [1, 1, 8, 128], strides = [1, 1, 1, 1]} : vector<8x8x8x128xf32> to vector<1x1x8x128xf32>
    %338 = vector.shape_cast %337 : vector<1x1x8x128xf32> to vector<8x128xf32>
    %339 = vector.extract_strided_slice %15 {offsets = [5, 2, 0, 0], sizes = [1, 1, 8, 128], strides = [1, 1, 1, 1]} : vector<8x8x8x128xf32> to vector<1x1x8x128xf32>
    %340 = vector.shape_cast %339 : vector<1x1x8x128xf32> to vector<8x128xf32>
    %341 = arith.maximumf %338, %340 : vector<8x128xf32>
    %342 = vector.extract_strided_slice %15 {offsets = [5, 3, 0, 0], sizes = [1, 1, 8, 128], strides = [1, 1, 1, 1]} : vector<8x8x8x128xf32> to vector<1x1x8x128xf32>
    %343 = vector.shape_cast %342 : vector<1x1x8x128xf32> to vector<8x128xf32>
    %344 = arith.maximumf %341, %343 : vector<8x128xf32>
    %345 = vector.extract_strided_slice %15 {offsets = [6, 1, 0, 0], sizes = [1, 1, 8, 128], strides = [1, 1, 1, 1]} : vector<8x8x8x128xf32> to vector<1x1x8x128xf32>
    %346 = vector.shape_cast %345 : vector<1x1x8x128xf32> to vector<8x128xf32>
    %347 = arith.maximumf %344, %346 : vector<8x128xf32>
    %348 = vector.extract_strided_slice %15 {offsets = [6, 2, 0, 0], sizes = [1, 1, 8, 128], strides = [1, 1, 1, 1]} : vector<8x8x8x128xf32> to vector<1x1x8x128xf32>
    %349 = vector.shape_cast %348 : vector<1x1x8x128xf32> to vector<8x128xf32>
    %350 = arith.maximumf %347, %349 : vector<8x128xf32>
    %351 = vector.extract_strided_slice %15 {offsets = [6, 3, 0, 0], sizes = [1, 1, 8, 128], strides = [1, 1, 1, 1]} : vector<8x8x8x128xf32> to vector<1x1x8x128xf32>
    %352 = vector.shape_cast %351 : vector<1x1x8x128xf32> to vector<8x128xf32>
    %353 = arith.maximumf %350, %352 : vector<8x128xf32>
    %354 = vector.extract_strided_slice %15 {offsets = [7, 1, 0, 0], sizes = [1, 1, 8, 128], strides = [1, 1, 1, 1]} : vector<8x8x8x128xf32> to vector<1x1x8x128xf32>
    %355 = vector.shape_cast %354 : vector<1x1x8x128xf32> to vector<8x128xf32>
    %356 = arith.maximumf %353, %355 : vector<8x128xf32>
    %357 = vector.extract_strided_slice %15 {offsets = [7, 2, 0, 0], sizes = [1, 1, 8, 128], strides = [1, 1, 1, 1]} : vector<8x8x8x128xf32> to vector<1x1x8x128xf32>
    %358 = vector.shape_cast %357 : vector<1x1x8x128xf32> to vector<8x128xf32>
    %359 = arith.maximumf %356, %358 : vector<8x128xf32>
    %360 = vector.extract_strided_slice %15 {offsets = [7, 3, 0, 0], sizes = [1, 1, 8, 128], strides = [1, 1, 1, 1]} : vector<8x8x8x128xf32> to vector<1x1x8x128xf32>
    %361 = vector.shape_cast %360 : vector<1x1x8x128xf32> to vector<8x128xf32>
    %362 = arith.maximumf %359, %361 : vector<8x128xf32>
    %363 = arith.truncf %362 : vector<8x128xf32> to vector<8x128xbf16>
    %c0_74 = arith.constant 0 : index
    %c3_75 = arith.constant 3 : index
    %c1_76 = arith.constant 1 : index
    %c0_77 = arith.constant 0 : index
    %c0_78 = arith.constant 0 : index
    %364 = vector.load %arg5[%c0_74, %c3_75, %c1_76, %c0_77, %c0_78] : memref<1x4x4x8x128xbf16, #tpu.memory_space<vmem>>, vector<1x1x1x8x128xbf16>
    %365 = vector.shape_cast %364 : vector<1x1x1x8x128xbf16> to vector<8x128xbf16>
    %366 = vector.shape_cast %363 : vector<8x128xbf16> to vector<1x1x1x8x128xbf16>
    tpu.vector_store %arg5[%c0_74, %c3_75, %c1_76, %c0_77, %c0_78], %366 {strides = array<i32>} : memref<1x4x4x8x128xbf16, #tpu.memory_space<vmem>>, vector<1x1x1x8x128xbf16>,
    %367 = vector.extract_strided_slice %15 {offsets = [5, 3, 0, 0], sizes = [1, 1, 8, 128], strides = [1, 1, 1, 1]} : vector<8x8x8x128xf32> to vector<1x1x8x128xf32>
    %368 = vector.shape_cast %367 : vector<1x1x8x128xf32> to vector<8x128xf32>
    %369 = vector.extract_strided_slice %15 {offsets = [5, 4, 0, 0], sizes = [1, 1, 8, 128], strides = [1, 1, 1, 1]} : vector<8x8x8x128xf32> to vector<1x1x8x128xf32>
    %370 = vector.shape_cast %369 : vector<1x1x8x128xf32> to vector<8x128xf32>
    %371 = arith.maximumf %368, %370 : vector<8x128xf32>
    %372 = vector.extract_strided_slice %15 {offsets = [5, 5, 0, 0], sizes = [1, 1, 8, 128], strides = [1, 1, 1, 1]} : vector<8x8x8x128xf32> to vector<1x1x8x128xf32>
    %373 = vector.shape_cast %372 : vector<1x1x8x128xf32> to vector<8x128xf32>
    %374 = arith.maximumf %371, %373 : vector<8x128xf32>
    %375 = vector.extract_strided_slice %15 {offsets = [6, 3, 0, 0], sizes = [1, 1, 8, 128], strides = [1, 1, 1, 1]} : vector<8x8x8x128xf32> to vector<1x1x8x128xf32>
    %376 = vector.shape_cast %375 : vector<1x1x8x128xf32> to vector<8x128xf32>
    %377 = arith.maximumf %374, %376 : vector<8x128xf32>
    %378 = vector.extract_strided_slice %15 {offsets = [6, 4, 0, 0], sizes = [1, 1, 8, 128], strides = [1, 1, 1, 1]} : vector<8x8x8x128xf32> to vector<1x1x8x128xf32>
    %379 = vector.shape_cast %378 : vector<1x1x8x128xf32> to vector<8x128xf32>
    %380 = arith.maximumf %377, %379 : vector<8x128xf32>
    %381 = vector.extract_strided_slice %15 {offsets = [6, 5, 0, 0], sizes = [1, 1, 8, 128], strides = [1, 1, 1, 1]} : vector<8x8x8x128xf32> to vector<1x1x8x128xf32>
    %382 = vector.shape_cast %381 : vector<1x1x8x128xf32> to vector<8x128xf32>
    %383 = arith.maximumf %380, %382 : vector<8x128xf32>
    %384 = vector.extract_strided_slice %15 {offsets = [7, 3, 0, 0], sizes = [1, 1, 8, 128], strides = [1, 1, 1, 1]} : vector<8x8x8x128xf32> to vector<1x1x8x128xf32>
    %385 = vector.shape_cast %384 : vector<1x1x8x128xf32> to vector<8x128xf32>
    %386 = arith.maximumf %383, %385 : vector<8x128xf32>
    %387 = vector.extract_strided_slice %15 {offsets = [7, 4, 0, 0], sizes = [1, 1, 8, 128], strides = [1, 1, 1, 1]} : vector<8x8x8x128xf32> to vector<1x1x8x128xf32>
    %388 = vector.shape_cast %387 : vector<1x1x8x128xf32> to vector<8x128xf32>
    %389 = arith.maximumf %386, %388 : vector<8x128xf32>
    %390 = vector.extract_strided_slice %15 {offsets = [7, 5, 0, 0], sizes = [1, 1, 8, 128], strides = [1, 1, 1, 1]} : vector<8x8x8x128xf32> to vector<1x1x8x128xf32>
    %391 = vector.shape_cast %390 : vector<1x1x8x128xf32> to vector<8x128xf32>
    %392 = arith.maximumf %389, %391 : vector<8x128xf32>
    %393 = arith.truncf %392 : vector<8x128xf32> to vector<8x128xbf16>
    %c0_79 = arith.constant 0 : index
    %c3_80 = arith.constant 3 : index
    %c2_81 = arith.constant 2 : index
    %c0_82 = arith.constant 0 : index
    %c0_83 = arith.constant 0 : index
    %394 = vector.load %arg5[%c0_79, %c3_80, %c2_81, %c0_82, %c0_83] : memref<1x4x4x8x128xbf16, #tpu.memory_space<vmem>>, vector<1x1x1x8x128xbf16>
    %395 = vector.shape_cast %394 : vector<1x1x1x8x128xbf16> to vector<8x128xbf16>
    %396 = vector.shape_cast %393 : vector<8x128xbf16> to vector<1x1x1x8x128xbf16>
    tpu.vector_store %arg5[%c0_79, %c3_80, %c2_81, %c0_82, %c0_83], %396 {strides = array<i32>} : memref<1x4x4x8x128xbf16, #tpu.memory_space<vmem>>, vector<1x1x1x8x128xbf16>,
    %397 = vector.extract_strided_slice %15 {offsets = [5, 5, 0, 0], sizes = [1, 1, 8, 128], strides = [1, 1, 1, 1]} : vector<8x8x8x128xf32> to vector<1x1x8x128xf32>
    %398 = vector.shape_cast %397 : vector<1x1x8x128xf32> to vector<8x128xf32>
    %399 = vector.extract_strided_slice %15 {offsets = [5, 6, 0, 0], sizes = [1, 1, 8, 128], strides = [1, 1, 1, 1]} : vector<8x8x8x128xf32> to vector<1x1x8x128xf32>
    %400 = vector.shape_cast %399 : vector<1x1x8x128xf32> to vector<8x128xf32>
    %401 = arith.maximumf %398, %400 : vector<8x128xf32>
    %402 = vector.extract_strided_slice %15 {offsets = [5, 7, 0, 0], sizes = [1, 1, 8, 128], strides = [1, 1, 1, 1]} : vector<8x8x8x128xf32> to vector<1x1x8x128xf32>
    %403 = vector.shape_cast %402 : vector<1x1x8x128xf32> to vector<8x128xf32>
    %404 = arith.maximumf %401, %403 : vector<8x128xf32>
    %405 = vector.extract_strided_slice %15 {offsets = [6, 5, 0, 0], sizes = [1, 1, 8, 128], strides = [1, 1, 1, 1]} : vector<8x8x8x128xf32> to vector<1x1x8x128xf32>
    %406 = vector.shape_cast %405 : vector<1x1x8x128xf32> to vector<8x128xf32>
    %407 = arith.maximumf %404, %406 : vector<8x128xf32>
    %408 = vector.extract_strided_slice %15 {offsets = [6, 6, 0, 0], sizes = [1, 1, 8, 128], strides = [1, 1, 1, 1]} : vector<8x8x8x128xf32> to vector<1x1x8x128xf32>
    %409 = vector.shape_cast %408 : vector<1x1x8x128xf32> to vector<8x128xf32>
    %410 = arith.maximumf %407, %409 : vector<8x128xf32>
    %411 = vector.extract_strided_slice %15 {offsets = [6, 7, 0, 0], sizes = [1, 1, 8, 128], strides = [1, 1, 1, 1]} : vector<8x8x8x128xf32> to vector<1x1x8x128xf32>
    %412 = vector.shape_cast %411 : vector<1x1x8x128xf32> to vector<8x128xf32>
    %413 = arith.maximumf %410, %412 : vector<8x128xf32>
    %414 = vector.extract_strided_slice %15 {offsets = [7, 5, 0, 0], sizes = [1, 1, 8, 128], strides = [1, 1, 1, 1]} : vector<8x8x8x128xf32> to vector<1x1x8x128xf32>
    %415 = vector.shape_cast %414 : vector<1x1x8x128xf32> to vector<8x128xf32>
    %416 = arith.maximumf %413, %415 : vector<8x128xf32>
    %417 = vector.extract_strided_slice %15 {offsets = [7, 6, 0, 0], sizes = [1, 1, 8, 128], strides = [1, 1, 1, 1]} : vector<8x8x8x128xf32> to vector<1x1x8x128xf32>
    %418 = vector.shape_cast %417 : vector<1x1x8x128xf32> to vector<8x128xf32>
    %419 = arith.maximumf %416, %418 : vector<8x128xf32>
    %420 = vector.extract_strided_slice %15 {offsets = [7, 7, 0, 0], sizes = [1, 1, 8, 128], strides = [1, 1, 1, 1]} : vector<8x8x8x128xf32> to vector<1x1x8x128xf32>
    %421 = vector.shape_cast %420 : vector<1x1x8x128xf32> to vector<8x128xf32>
    %422 = arith.maximumf %419, %421 : vector<8x128xf32>
    %423 = arith.truncf %422 : vector<8x128xf32> to vector<8x128xbf16>
    %c0_84 = arith.constant 0 : index
    %c3_85 = arith.constant 3 : index
    %c3_86 = arith.constant 3 : index
    %c0_87 = arith.constant 0 : index
    %c0_88 = arith.constant 0 : index
    %424 = vector.load %arg5[%c0_84, %c3_85, %c3_86, %c0_87, %c0_88] : memref<1x4x4x8x128xbf16, #tpu.memory_space<vmem>>, vector<1x1x1x8x128xbf16>
    %425 = vector.shape_cast %424 : vector<1x1x1x8x128xbf16> to vector<8x128xbf16>
    %426 = vector.shape_cast %423 : vector<8x128xbf16> to vector<1x1x1x8x128xbf16>
    tpu.vector_store %arg5[%c0_84, %c3_85, %c3_86, %c0_87, %c0_88], %426 {strides = array<i32>} : memref<1x4x4x8x128xbf16, #tpu.memory_space<vmem>>, vector<1x1x1x8x128xbf16>,
    return
  }
  func.func @transform_0(%arg0: i32) -> (i32, i32, i32) {
    %c0_i32 = arith.constant 0 : i32
    %c0_i32_0 = arith.constant 0 : i32
    %c0_i32_1 = arith.constant 0 : i32
    return %arg0, %c0_i32, %c0_i32_0 : i32, i32, i32
  }
  func.func @transform_1(%arg0: i32) -> (i32, i32, i32) {
    %c0_i32 = arith.constant 0 : i32
    %c0_i32_0 = arith.constant 0 : i32
    %c0_i32_1 = arith.constant 0 : i32
    return %arg0, %c0_i32, %c0_i32_0 : i32, i32, i32
  }
  func.func @transform_2(%arg0: i32) -> (i32, i32, i32) {
    %c0_i32 = arith.constant 0 : i32
    %c0_i32_0 = arith.constant 0 : i32
    %c0_i32_1 = arith.constant 0 : i32
    return %arg0, %c0_i32, %c0_i32_0 : i32, i32, i32
  }
  func.func @transform_3(%arg0: i32) -> (i32, i32, i32) {
    %c0_i32 = arith.constant 0 : i32
    %c0_i32_0 = arith.constant 0 : i32
    %c0_i32_1 = arith.constant 0 : i32
    return %arg0, %c0_i32, %c0_i32_0 : i32, i32, i32
  }
  func.func @transform_4(%arg0: i32) -> (i32, i32, i32, i32, i32) {
    %c0_i32 = arith.constant 0 : i32
    %c0_i32_0 = arith.constant 0 : i32
    %c0_i32_1 = arith.constant 0 : i32
    %c0_i32_2 = arith.constant 0 : i32
    %c0_i32_3 = arith.constant 0 : i32
    return %arg0, %c0_i32, %c0_i32_0, %c0_i32_1, %c0_i32_2 : i32, i32, i32, i32, i32
  }
}

module attributes {stable_mosaic.version = 11 : i64} {
  func.func @_trunk_kernel(%arg0: i32, %arg1: memref<1x4x4x8x128xbf16, #tpu.memory_space<vmem>>, %arg2: memref<1x26x128x128xbf16, #tpu.memory_space<vmem>>, %arg3: memref<1x8x128xf32, #tpu.memory_space<vmem>>, %arg4: memref<1x8x128xf32, #tpu.memory_space<vmem>>, %arg5: memref<1x2x2x8x128xf32, #tpu.memory_space<vmem>>, %arg6: memref<6x6x8x128xbf16, #tpu.memory_space<vmem>>, %arg7: memref<16x12x128xbf16, #tpu.memory_space<vmem>>) attributes {dimension_semantics = [#tpu.dimension_semantics<parallel>], iteration_bounds = array<i64: 2>, scalar_prefetch = 0 : i64, scratch_operands = 2 : i64, tpu.core_type = #tpu.core_type<tc>, window_params = [{transform_indices = @transform_0, window_bounds = array<i64: 1, 4, 4, 8, 128>}, {transform_indices = @transform_1, window_bounds = array<i64: 1, 26, 128, 128>}, {transform_indices = @transform_2, window_bounds = array<i64: 1, 8, 128>}, {transform_indices = @transform_3, window_bounds = array<i64: 1, 8, 128>}, {transform_indices = @transform_4, window_bounds = array<i64: 1, 2, 2, 8, 128>}]} {
    %cst = arith.constant 0.000000e+00 : bf16
    %0 = vector.broadcast %cst : bf16 to vector<6x6x8x128xbf16>
    %c0 = arith.constant 0 : index
    %c0_0 = arith.constant 0 : index
    %c0_1 = arith.constant 0 : index
    %c0_2 = arith.constant 0 : index
    %1 = vector.load %arg6[%c0, %c0_0, %c0_1, %c0_2] : memref<6x6x8x128xbf16, #tpu.memory_space<vmem>>, vector<6x6x8x128xbf16>
    tpu.vector_store %arg6[%c0, %c0_0, %c0_1, %c0_2], %0 {strides = array<i32>} : memref<6x6x8x128xbf16, #tpu.memory_space<vmem>>, vector<6x6x8x128xbf16>,
    %cst_3 = arith.constant 0.000000e+00 : bf16
    %2 = vector.broadcast %cst_3 : bf16 to vector<16x12x128xbf16>
    %c0_4 = arith.constant 0 : index
    %c0_5 = arith.constant 0 : index
    %c0_6 = arith.constant 0 : index
    %3 = vector.load %arg7[%c0_4, %c0_5, %c0_6] : memref<16x12x128xbf16, #tpu.memory_space<vmem>>, vector<16x12x128xbf16>
    tpu.vector_store %arg7[%c0_4, %c0_5, %c0_6], %2 {strides = array<i32>} : memref<16x12x128xbf16, #tpu.memory_space<vmem>>, vector<16x12x128xbf16>,
    %c0_7 = arith.constant 0 : index
    %c0_8 = arith.constant 0 : index
    %c0_9 = arith.constant 0 : index
    %c0_10 = arith.constant 0 : index
    %c0_11 = arith.constant 0 : index
    %4 = vector.load %arg1[%c0_7, %c0_8, %c0_9, %c0_10, %c0_11] : memref<1x4x4x8x128xbf16, #tpu.memory_space<vmem>>, vector<1x4x4x8x128xbf16>
    %5 = vector.shape_cast %4 : vector<1x4x4x8x128xbf16> to vector<4x4x8x128xbf16>
    %6 = vector.shape_cast %5 : vector<4x4x8x128xbf16> to vector<128x128xbf16>
    %c0_12 = arith.constant 0 : index
    %c0_13 = arith.constant 0 : index
    %c0_14 = arith.constant 0 : index
    %c0_15 = arith.constant 0 : index
    %7 = vector.load %arg2[%c0_12, %c0_13, %c0_14, %c0_15] : memref<1x26x128x128xbf16, #tpu.memory_space<vmem>>, vector<1x1x128x128xbf16>
    %8 = vector.shape_cast %7 : vector<1x1x128x128xbf16> to vector<128x128xbf16>
    %cst_16 = arith.constant dense<0.000000e+00> : vector<128x128xf32>
    %9 = tpu.matmul %6, %8, %cst_16 {dimension_numbers = #tpu.dot_dimension_numbers<[1], [0], [0], [1], [0, 0, 1, 1], [], []>} : vector<128x128xbf16>, vector<128x128xbf16>, vector<128x128xf32> -> vector<128x128xf32>
    %c0_17 = arith.constant 0 : index
    %c0_18 = arith.constant 0 : index
    %c0_19 = arith.constant 0 : index
    %10 = vector.load %arg3[%c0_17, %c0_18, %c0_19] : memref<1x8x128xf32, #tpu.memory_space<vmem>>, vector<1x1x128xf32>
    %11 = vector.shape_cast %10 : vector<1x1x128xf32> to vector<1x128xf32>
    %12 = vector.broadcast %11 : vector<1x128xf32> to vector<128x128xf32>
    %13 = arith.mulf %9, %12 : vector<128x128xf32>
    %c0_20 = arith.constant 0 : index
    %c0_21 = arith.constant 0 : index
    %c0_22 = arith.constant 0 : index
    %14 = vector.load %arg4[%c0_20, %c0_21, %c0_22] : memref<1x8x128xf32, #tpu.memory_space<vmem>>, vector<1x1x128xf32>
    %15 = vector.shape_cast %14 : vector<1x1x128xf32> to vector<1x128xf32>
    %16 = vector.broadcast %15 : vector<1x128xf32> to vector<128x128xf32>
    %17 = arith.addf %13, %16 : vector<128x128xf32>
    %cst_23 = arith.constant 0.000000e+00 : f32
    %18 = vector.broadcast %cst_23 : f32 to vector<128x128xf32>
    %19 = arith.maximumf %17, %18 : vector<128x128xf32>
    %20 = arith.truncf %19 : vector<128x128xf32> to vector<128x128xbf16>
    %21 = vector.shape_cast %20 : vector<128x128xbf16> to vector<4x4x8x128xbf16>
    %c1 = arith.constant 1 : index
    %c1_24 = arith.constant 1 : index
    %c0_25 = arith.constant 0 : index
    %c0_26 = arith.constant 0 : index
    %22 = vector.load %arg6[%c1, %c1_24, %c0_25, %c0_26] : memref<6x6x8x128xbf16, #tpu.memory_space<vmem>>, vector<4x4x8x128xbf16>
    tpu.vector_store %arg6[%c1, %c1_24, %c0_25, %c0_26], %21 {strides = array<i32>} : memref<6x6x8x128xbf16, #tpu.memory_space<vmem>>, vector<4x4x8x128xbf16>,
    %cst_27 = arith.constant 0.000000e+00 : f32
    %23 = vector.broadcast %cst_27 : f32 to vector<128x128xf32>
    %c0_28 = arith.constant 0 : index
    %c0_29 = arith.constant 0 : index
    %c0_30 = arith.constant 0 : index
    %c0_31 = arith.constant 0 : index
    %24 = vector.load %arg6[%c0_28, %c0_29, %c0_30, %c0_31] : memref<6x6x8x128xbf16, #tpu.memory_space<vmem>>, vector<4x4x8x128xbf16>
    %25 = vector.shape_cast %24 : vector<4x4x8x128xbf16> to vector<128x128xbf16>
    %c0_32 = arith.constant 0 : index
    %c1_33 = arith.constant 1 : index
    %c0_34 = arith.constant 0 : index
    %c0_35 = arith.constant 0 : index
    %26 = vector.load %arg2[%c0_32, %c1_33, %c0_34, %c0_35] : memref<1x26x128x128xbf16, #tpu.memory_space<vmem>>, vector<1x1x128x128xbf16>
    %27 = vector.shape_cast %26 : vector<1x1x128x128xbf16> to vector<128x128xbf16>
    %cst_36 = arith.constant dense<0.000000e+00> : vector<128x128xf32>
    %28 = tpu.matmul %25, %27, %cst_36 {dimension_numbers = #tpu.dot_dimension_numbers<[1], [0], [0], [1], [0, 0, 1, 1], [], []>} : vector<128x128xbf16>, vector<128x128xbf16>, vector<128x128xf32> -> vector<128x128xf32>
    %29 = arith.addf %23, %28 : vector<128x128xf32>
    %c0_37 = arith.constant 0 : index
    %c1_38 = arith.constant 1 : index
    %c0_39 = arith.constant 0 : index
    %c0_40 = arith.constant 0 : index
    %30 = vector.load %arg6[%c0_37, %c1_38, %c0_39, %c0_40] : memref<6x6x8x128xbf16, #tpu.memory_space<vmem>>, vector<4x4x8x128xbf16>
    %31 = vector.shape_cast %30 : vector<4x4x8x128xbf16> to vector<128x128xbf16>
    %c0_41 = arith.constant 0 : index
    %c2 = arith.constant 2 : index
    %c0_42 = arith.constant 0 : index
    %c0_43 = arith.constant 0 : index
    %32 = vector.load %arg2[%c0_41, %c2, %c0_42, %c0_43] : memref<1x26x128x128xbf16, #tpu.memory_space<vmem>>, vector<1x1x128x128xbf16>
    %33 = vector.shape_cast %32 : vector<1x1x128x128xbf16> to vector<128x128xbf16>
    %cst_44 = arith.constant dense<0.000000e+00> : vector<128x128xf32>
    %34 = tpu.matmul %31, %33, %cst_44 {dimension_numbers = #tpu.dot_dimension_numbers<[1], [0], [0], [1], [0, 0, 1, 1], [], []>} : vector<128x128xbf16>, vector<128x128xbf16>, vector<128x128xf32> -> vector<128x128xf32>
    %35 = arith.addf %29, %34 : vector<128x128xf32>
    %c0_45 = arith.constant 0 : index
    %c2_46 = arith.constant 2 : index
    %c0_47 = arith.constant 0 : index
    %c0_48 = arith.constant 0 : index
    %36 = vector.load %arg6[%c0_45, %c2_46, %c0_47, %c0_48] : memref<6x6x8x128xbf16, #tpu.memory_space<vmem>>, vector<4x4x8x128xbf16>
    %37 = vector.shape_cast %36 : vector<4x4x8x128xbf16> to vector<128x128xbf16>
    %c0_49 = arith.constant 0 : index
    %c3 = arith.constant 3 : index
    %c0_50 = arith.constant 0 : index
    %c0_51 = arith.constant 0 : index
    %38 = vector.load %arg2[%c0_49, %c3, %c0_50, %c0_51] : memref<1x26x128x128xbf16, #tpu.memory_space<vmem>>, vector<1x1x128x128xbf16>
    %39 = vector.shape_cast %38 : vector<1x1x128x128xbf16> to vector<128x128xbf16>
    %cst_52 = arith.constant dense<0.000000e+00> : vector<128x128xf32>
    %40 = tpu.matmul %37, %39, %cst_52 {dimension_numbers = #tpu.dot_dimension_numbers<[1], [0], [0], [1], [0, 0, 1, 1], [], []>} : vector<128x128xbf16>, vector<128x128xbf16>, vector<128x128xf32> -> vector<128x128xf32>
    %41 = arith.addf %35, %40 : vector<128x128xf32>
    %c1_53 = arith.constant 1 : index
    %c0_54 = arith.constant 0 : index
    %c0_55 = arith.constant 0 : index
    %c0_56 = arith.constant 0 : index
    %42 = vector.load %arg6[%c1_53, %c0_54, %c0_55, %c0_56] : memref<6x6x8x128xbf16, #tpu.memory_space<vmem>>, vector<4x4x8x128xbf16>
    %43 = vector.shape_cast %42 : vector<4x4x8x128xbf16> to vector<128x128xbf16>
    %c0_57 = arith.constant 0 : index
    %c4 = arith.constant 4 : index
    %c0_58 = arith.constant 0 : index
    %c0_59 = arith.constant 0 : index
    %44 = vector.load %arg2[%c0_57, %c4, %c0_58, %c0_59] : memref<1x26x128x128xbf16, #tpu.memory_space<vmem>>, vector<1x1x128x128xbf16>
    %45 = vector.shape_cast %44 : vector<1x1x128x128xbf16> to vector<128x128xbf16>
    %cst_60 = arith.constant dense<0.000000e+00> : vector<128x128xf32>
    %46 = tpu.matmul %43, %45, %cst_60 {dimension_numbers = #tpu.dot_dimension_numbers<[1], [0], [0], [1], [0, 0, 1, 1], [], []>} : vector<128x128xbf16>, vector<128x128xbf16>, vector<128x128xf32> -> vector<128x128xf32>
    %47 = arith.addf %41, %46 : vector<128x128xf32>
    %c1_61 = arith.constant 1 : index
    %c1_62 = arith.constant 1 : index
    %c0_63 = arith.constant 0 : index
    %c0_64 = arith.constant 0 : index
    %48 = vector.load %arg6[%c1_61, %c1_62, %c0_63, %c0_64] : memref<6x6x8x128xbf16, #tpu.memory_space<vmem>>, vector<4x4x8x128xbf16>
    %49 = vector.shape_cast %48 : vector<4x4x8x128xbf16> to vector<128x128xbf16>
    %c0_65 = arith.constant 0 : index
    %c5 = arith.constant 5 : index
    %c0_66 = arith.constant 0 : index
    %c0_67 = arith.constant 0 : index
    %50 = vector.load %arg2[%c0_65, %c5, %c0_66, %c0_67] : memref<1x26x128x128xbf16, #tpu.memory_space<vmem>>, vector<1x1x128x128xbf16>
    %51 = vector.shape_cast %50 : vector<1x1x128x128xbf16> to vector<128x128xbf16>
    %cst_68 = arith.constant dense<0.000000e+00> : vector<128x128xf32>
    %52 = tpu.matmul %49, %51, %cst_68 {dimension_numbers = #tpu.dot_dimension_numbers<[1], [0], [0], [1], [0, 0, 1, 1], [], []>} : vector<128x128xbf16>, vector<128x128xbf16>, vector<128x128xf32> -> vector<128x128xf32>
    %53 = arith.addf %47, %52 : vector<128x128xf32>
    %c1_69 = arith.constant 1 : index
    %c2_70 = arith.constant 2 : index
    %c0_71 = arith.constant 0 : index
    %c0_72 = arith.constant 0 : index
    %54 = vector.load %arg6[%c1_69, %c2_70, %c0_71, %c0_72] : memref<6x6x8x128xbf16, #tpu.memory_space<vmem>>, vector<4x4x8x128xbf16>
    %55 = vector.shape_cast %54 : vector<4x4x8x128xbf16> to vector<128x128xbf16>
    %c0_73 = arith.constant 0 : index
    %c6 = arith.constant 6 : index
    %c0_74 = arith.constant 0 : index
    %c0_75 = arith.constant 0 : index
    %56 = vector.load %arg2[%c0_73, %c6, %c0_74, %c0_75] : memref<1x26x128x128xbf16, #tpu.memory_space<vmem>>, vector<1x1x128x128xbf16>
    %57 = vector.shape_cast %56 : vector<1x1x128x128xbf16> to vector<128x128xbf16>
    %cst_76 = arith.constant dense<0.000000e+00> : vector<128x128xf32>
    %58 = tpu.matmul %55, %57, %cst_76 {dimension_numbers = #tpu.dot_dimension_numbers<[1], [0], [0], [1], [0, 0, 1, 1], [], []>} : vector<128x128xbf16>, vector<128x128xbf16>, vector<128x128xf32> -> vector<128x128xf32>
    %59 = arith.addf %53, %58 : vector<128x128xf32>
    %c2_77 = arith.constant 2 : index
    %c0_78 = arith.constant 0 : index
    %c0_79 = arith.constant 0 : index
    %c0_80 = arith.constant 0 : index
    %60 = vector.load %arg6[%c2_77, %c0_78, %c0_79, %c0_80] : memref<6x6x8x128xbf16, #tpu.memory_space<vmem>>, vector<4x4x8x128xbf16>
    %61 = vector.shape_cast %60 : vector<4x4x8x128xbf16> to vector<128x128xbf16>
    %c0_81 = arith.constant 0 : index
    %c7 = arith.constant 7 : index
    %c0_82 = arith.constant 0 : index
    %c0_83 = arith.constant 0 : index
    %62 = vector.load %arg2[%c0_81, %c7, %c0_82, %c0_83] : memref<1x26x128x128xbf16, #tpu.memory_space<vmem>>, vector<1x1x128x128xbf16>
    %63 = vector.shape_cast %62 : vector<1x1x128x128xbf16> to vector<128x128xbf16>
    %cst_84 = arith.constant dense<0.000000e+00> : vector<128x128xf32>
    %64 = tpu.matmul %61, %63, %cst_84 {dimension_numbers = #tpu.dot_dimension_numbers<[1], [0], [0], [1], [0, 0, 1, 1], [], []>} : vector<128x128xbf16>, vector<128x128xbf16>, vector<128x128xf32> -> vector<128x128xf32>
    %65 = arith.addf %59, %64 : vector<128x128xf32>
    %c2_85 = arith.constant 2 : index
    %c1_86 = arith.constant 1 : index
    %c0_87 = arith.constant 0 : index
    %c0_88 = arith.constant 0 : index
    %66 = vector.load %arg6[%c2_85, %c1_86, %c0_87, %c0_88] : memref<6x6x8x128xbf16, #tpu.memory_space<vmem>>, vector<4x4x8x128xbf16>
    %67 = vector.shape_cast %66 : vector<4x4x8x128xbf16> to vector<128x128xbf16>
    %c0_89 = arith.constant 0 : index
    %c8 = arith.constant 8 : index
    %c0_90 = arith.constant 0 : index
    %c0_91 = arith.constant 0 : index
    %68 = vector.load %arg2[%c0_89, %c8, %c0_90, %c0_91] : memref<1x26x128x128xbf16, #tpu.memory_space<vmem>>, vector<1x1x128x128xbf16>
    %69 = vector.shape_cast %68 : vector<1x1x128x128xbf16> to vector<128x128xbf16>
    %cst_92 = arith.constant dense<0.000000e+00> : vector<128x128xf32>
    %70 = tpu.matmul %67, %69, %cst_92 {dimension_numbers = #tpu.dot_dimension_numbers<[1], [0], [0], [1], [0, 0, 1, 1], [], []>} : vector<128x128xbf16>, vector<128x128xbf16>, vector<128x128xf32> -> vector<128x128xf32>
    %71 = arith.addf %65, %70 : vector<128x128xf32>
    %c2_93 = arith.constant 2 : index
    %c2_94 = arith.constant 2 : index
    %c0_95 = arith.constant 0 : index
    %c0_96 = arith.constant 0 : index
    %72 = vector.load %arg6[%c2_93, %c2_94, %c0_95, %c0_96] : memref<6x6x8x128xbf16, #tpu.memory_space<vmem>>, vector<4x4x8x128xbf16>
    %73 = vector.shape_cast %72 : vector<4x4x8x128xbf16> to vector<128x128xbf16>
    %c0_97 = arith.constant 0 : index
    %c9 = arith.constant 9 : index
    %c0_98 = arith.constant 0 : index
    %c0_99 = arith.constant 0 : index
    %74 = vector.load %arg2[%c0_97, %c9, %c0_98, %c0_99] : memref<1x26x128x128xbf16, #tpu.memory_space<vmem>>, vector<1x1x128x128xbf16>
    %75 = vector.shape_cast %74 : vector<1x1x128x128xbf16> to vector<128x128xbf16>
    %cst_100 = arith.constant dense<0.000000e+00> : vector<128x128xf32>
    %76 = tpu.matmul %73, %75, %cst_100 {dimension_numbers = #tpu.dot_dimension_numbers<[1], [0], [0], [1], [0, 0, 1, 1], [], []>} : vector<128x128xbf16>, vector<128x128xbf16>, vector<128x128xf32> -> vector<128x128xf32>
    %77 = arith.addf %71, %76 : vector<128x128xf32>
    %c0_101 = arith.constant 0 : index
    %c1_102 = arith.constant 1 : index
    %c0_103 = arith.constant 0 : index
    %78 = vector.load %arg3[%c0_101, %c1_102, %c0_103] : memref<1x8x128xf32, #tpu.memory_space<vmem>>, vector<1x1x128xf32>
    %79 = vector.shape_cast %78 : vector<1x1x128xf32> to vector<1x128xf32>
    %80 = vector.broadcast %79 : vector<1x128xf32> to vector<128x128xf32>
    %81 = arith.mulf %77, %80 : vector<128x128xf32>
    %c0_104 = arith.constant 0 : index
    %c1_105 = arith.constant 1 : index
    %c0_106 = arith.constant 0 : index
    %82 = vector.load %arg4[%c0_104, %c1_105, %c0_106] : memref<1x8x128xf32, #tpu.memory_space<vmem>>, vector<1x1x128xf32>
    %83 = vector.shape_cast %82 : vector<1x1x128xf32> to vector<1x128xf32>
    %84 = vector.broadcast %83 : vector<1x128xf32> to vector<128x128xf32>
    %85 = arith.addf %81, %84 : vector<128x128xf32>
    %cst_107 = arith.constant 0.000000e+00 : f32
    %86 = vector.broadcast %cst_107 : f32 to vector<128x128xf32>
    %87 = arith.maximumf %85, %86 : vector<128x128xf32>
    %88 = arith.truncf %87 : vector<128x128xf32> to vector<128x128xbf16>
    %c0_108 = arith.constant 0 : index
    %c10 = arith.constant 10 : index
    %c0_109 = arith.constant 0 : index
    %c0_110 = arith.constant 0 : index
    %89 = vector.load %arg2[%c0_108, %c10, %c0_109, %c0_110] : memref<1x26x128x128xbf16, #tpu.memory_space<vmem>>, vector<1x1x128x128xbf16>
    %90 = vector.shape_cast %89 : vector<1x1x128x128xbf16> to vector<128x128xbf16>
    %cst_111 = arith.constant dense<0.000000e+00> : vector<128x128xf32>
    %91 = tpu.matmul %88, %90, %cst_111 {dimension_numbers = #tpu.dot_dimension_numbers<[1], [0], [0], [1], [0, 0, 1, 1], [], []>} : vector<128x128xbf16>, vector<128x128xbf16>, vector<128x128xf32> -> vector<128x128xf32>
    %c0_112 = arith.constant 0 : index
    %c2_113 = arith.constant 2 : index
    %c0_114 = arith.constant 0 : index
    %92 = vector.load %arg3[%c0_112, %c2_113, %c0_114] : memref<1x8x128xf32, #tpu.memory_space<vmem>>, vector<1x1x128xf32>
    %93 = vector.shape_cast %92 : vector<1x1x128xf32> to vector<1x128xf32>
    %94 = vector.broadcast %93 : vector<1x128xf32> to vector<128x128xf32>
    %95 = arith.mulf %91, %94 : vector<128x128xf32>
    %c0_115 = arith.constant 0 : index
    %c2_116 = arith.constant 2 : index
    %c0_117 = arith.constant 0 : index
    %96 = vector.load %arg4[%c0_115, %c2_116, %c0_117] : memref<1x8x128xf32, #tpu.memory_space<vmem>>, vector<1x1x128xf32>
    %97 = vector.shape_cast %96 : vector<1x1x128xf32> to vector<1x128xf32>
    %98 = vector.broadcast %97 : vector<1x128xf32> to vector<128x128xf32>
    %99 = arith.addf %95, %98 : vector<128x128xf32>
    %c0_118 = arith.constant 0 : index
    %c11 = arith.constant 11 : index
    %c0_119 = arith.constant 0 : index
    %c0_120 = arith.constant 0 : index
    %100 = vector.load %arg2[%c0_118, %c11, %c0_119, %c0_120] : memref<1x26x128x128xbf16, #tpu.memory_space<vmem>>, vector<1x1x128x128xbf16>
    %101 = vector.shape_cast %100 : vector<1x1x128x128xbf16> to vector<128x128xbf16>
    %cst_121 = arith.constant dense<0.000000e+00> : vector<128x128xf32>
    %102 = tpu.matmul %6, %101, %cst_121 {dimension_numbers = #tpu.dot_dimension_numbers<[1], [0], [0], [1], [0, 0, 1, 1], [], []>} : vector<128x128xbf16>, vector<128x128xbf16>, vector<128x128xf32> -> vector<128x128xf32>
    %c0_122 = arith.constant 0 : index
    %c3_123 = arith.constant 3 : index
    %c0_124 = arith.constant 0 : index
    %103 = vector.load %arg3[%c0_122, %c3_123, %c0_124] : memref<1x8x128xf32, #tpu.memory_space<vmem>>, vector<1x1x128xf32>
    %104 = vector.shape_cast %103 : vector<1x1x128xf32> to vector<1x128xf32>
    %105 = vector.broadcast %104 : vector<1x128xf32> to vector<128x128xf32>
    %106 = arith.mulf %102, %105 : vector<128x128xf32>
    %c0_125 = arith.constant 0 : index
    %c3_126 = arith.constant 3 : index
    %c0_127 = arith.constant 0 : index
    %107 = vector.load %arg4[%c0_125, %c3_126, %c0_127] : memref<1x8x128xf32, #tpu.memory_space<vmem>>, vector<1x1x128xf32>
    %108 = vector.shape_cast %107 : vector<1x1x128xf32> to vector<1x128xf32>
    %109 = vector.broadcast %108 : vector<1x128xf32> to vector<128x128xf32>
    %110 = arith.addf %106, %109 : vector<128x128xf32>
    %111 = arith.addf %99, %110 : vector<128x128xf32>
    %cst_128 = arith.constant 0.000000e+00 : f32
    %112 = vector.broadcast %cst_128 : f32 to vector<128x128xf32>
    %113 = arith.maximumf %111, %112 : vector<128x128xf32>
    %114 = arith.truncf %113 : vector<128x128xf32> to vector<128x128xbf16>
    %115 = vector.shape_cast %114 : vector<128x128xbf16> to vector<16x8x128xbf16>
    %c0_129 = arith.constant 0 : index
    %c2_130 = arith.constant 2 : index
    %c0_131 = arith.constant 0 : index
    %116 = vector.load %arg7[%c0_129, %c2_130, %c0_131] : memref<16x12x128xbf16, #tpu.memory_space<vmem>>, vector<16x8x128xbf16>
    tpu.vector_store %arg7[%c0_129, %c2_130, %c0_131], %115 {strides = array<i32>} : memref<16x12x128xbf16, #tpu.memory_space<vmem>>, vector<16x8x128xbf16>,
    %cst_132 = arith.constant 0.000000e+00 : f32
    %117 = vector.broadcast %cst_132 : f32 to vector<128x128xf32>
    %c0_133 = arith.constant 0 : index
    %c0_134 = arith.constant 0 : index
    %c0_135 = arith.constant 0 : index
    %118 = vector.load %arg7[%c0_133, %c0_134, %c0_135] : memref<16x12x128xbf16, #tpu.memory_space<vmem>>, vector<16x8x128xbf16>
    %119 = vector.shape_cast %118 : vector<16x8x128xbf16> to vector<128x128xbf16>
    %c0_136 = arith.constant 0 : index
    %c12 = arith.constant 12 : index
    %c0_137 = arith.constant 0 : index
    %c0_138 = arith.constant 0 : index
    %120 = vector.load %arg2[%c0_136, %c12, %c0_137, %c0_138] : memref<1x26x128x128xbf16, #tpu.memory_space<vmem>>, vector<1x1x128x128xbf16>
    %121 = vector.shape_cast %120 : vector<1x1x128x128xbf16> to vector<128x128xbf16>
    %cst_139 = arith.constant dense<0.000000e+00> : vector<128x128xf32>
    %122 = tpu.matmul %119, %121, %cst_139 {dimension_numbers = #tpu.dot_dimension_numbers<[1], [0], [0], [1], [0, 0, 1, 1], [], []>} : vector<128x128xbf16>, vector<128x128xbf16>, vector<128x128xf32> -> vector<128x128xf32>
    %123 = arith.addf %117, %122 : vector<128x128xf32>
    %c0_140 = arith.constant 0 : index
    %c2_141 = arith.constant 2 : index
    %c0_142 = arith.constant 0 : index
    %124 = vector.load %arg7[%c0_140, %c2_141, %c0_142] : memref<16x12x128xbf16, #tpu.memory_space<vmem>>, vector<16x8x128xbf16>
    %125 = vector.shape_cast %124 : vector<16x8x128xbf16> to vector<128x128xbf16>
    %c0_143 = arith.constant 0 : index
    %c13 = arith.constant 13 : index
    %c0_144 = arith.constant 0 : index
    %c0_145 = arith.constant 0 : index
    %126 = vector.load %arg2[%c0_143, %c13, %c0_144, %c0_145] : memref<1x26x128x128xbf16, #tpu.memory_space<vmem>>, vector<1x1x128x128xbf16>
    %127 = vector.shape_cast %126 : vector<1x1x128x128xbf16> to vector<128x128xbf16>
    %cst_146 = arith.constant dense<0.000000e+00> : vector<128x128xf32>
    %128 = tpu.matmul %125, %127, %cst_146 {dimension_numbers = #tpu.dot_dimension_numbers<[1], [0], [0], [1], [0, 0, 1, 1], [], []>} : vector<128x128xbf16>, vector<128x128xbf16>, vector<128x128xf32> -> vector<128x128xf32>
    %129 = arith.addf %123, %128 : vector<128x128xf32>
    %c0_147 = arith.constant 0 : index
    %c4_148 = arith.constant 4 : index
    %c0_149 = arith.constant 0 : index
    %130 = vector.load %arg7[%c0_147, %c4_148, %c0_149] : memref<16x12x128xbf16, #tpu.memory_space<vmem>>, vector<16x8x128xbf16>
    %131 = vector.shape_cast %130 : vector<16x8x128xbf16> to vector<128x128xbf16>
    %c0_150 = arith.constant 0 : index
    %c14 = arith.constant 14 : index
    %c0_151 = arith.constant 0 : index
    %c0_152 = arith.constant 0 : index
    %132 = vector.load %arg2[%c0_150, %c14, %c0_151, %c0_152] : memref<1x26x128x128xbf16, #tpu.memory_space<vmem>>, vector<1x1x128x128xbf16>
    %133 = vector.shape_cast %132 : vector<1x1x128x128xbf16> to vector<128x128xbf16>
    %cst_153 = arith.constant dense<0.000000e+00> : vector<128x128xf32>
    %134 = tpu.matmul %131, %133, %cst_153 {dimension_numbers = #tpu.dot_dimension_numbers<[1], [0], [0], [1], [0, 0, 1, 1], [], []>} : vector<128x128xbf16>, vector<128x128xbf16>, vector<128x128xf32> -> vector<128x128xf32>
    %135 = arith.addf %129, %134 : vector<128x128xf32>
    %c0_154 = arith.constant 0 : index
    %c4_155 = arith.constant 4 : index
    %c0_156 = arith.constant 0 : index
    %136 = vector.load %arg3[%c0_154, %c4_155, %c0_156] : memref<1x8x128xf32, #tpu.memory_space<vmem>>, vector<1x1x128xf32>
    %137 = vector.shape_cast %136 : vector<1x1x128xf32> to vector<1x128xf32>
    %138 = vector.broadcast %137 : vector<1x128xf32> to vector<128x128xf32>
    %139 = arith.mulf %135, %138 : vector<128x128xf32>
    %c0_157 = arith.constant 0 : index
    %c4_158 = arith.constant 4 : index
    %c0_159 = arith.constant 0 : index
    %140 = vector.load %arg4[%c0_157, %c4_158, %c0_159] : memref<1x8x128xf32, #tpu.memory_space<vmem>>, vector<1x1x128xf32>
    %141 = vector.shape_cast %140 : vector<1x1x128xf32> to vector<1x128xf32>
    %142 = vector.broadcast %141 : vector<1x128xf32> to vector<128x128xf32>
    %143 = arith.addf %139, %142 : vector<128x128xf32>
    %cst_160 = arith.constant 0.000000e+00 : f32
    %144 = vector.broadcast %cst_160 : f32 to vector<128x128xf32>
    %145 = arith.maximumf %143, %144 : vector<128x128xf32>
    %146 = arith.truncf %145 : vector<128x128xf32> to vector<128x128xbf16>
    %147 = vector.shape_cast %146 : vector<128x128xbf16> to vector<4x4x8x128xbf16>
    %c1_161 = arith.constant 1 : index
    %c1_162 = arith.constant 1 : index
    %c0_163 = arith.constant 0 : index
    %c0_164 = arith.constant 0 : index
    %148 = vector.load %arg6[%c1_161, %c1_162, %c0_163, %c0_164] : memref<6x6x8x128xbf16, #tpu.memory_space<vmem>>, vector<4x4x8x128xbf16>
    tpu.vector_store %arg6[%c1_161, %c1_162, %c0_163, %c0_164], %147 {strides = array<i32>} : memref<6x6x8x128xbf16, #tpu.memory_space<vmem>>, vector<4x4x8x128xbf16>,
    %cst_165 = arith.constant 0.000000e+00 : f32
    %149 = vector.broadcast %cst_165 : f32 to vector<128x128xf32>
    %c0_166 = arith.constant 0 : index
    %c0_167 = arith.constant 0 : index
    %c0_168 = arith.constant 0 : index
    %c0_169 = arith.constant 0 : index
    %150 = vector.load %arg6[%c0_166, %c0_167, %c0_168, %c0_169] : memref<6x6x8x128xbf16, #tpu.memory_space<vmem>>, vector<4x4x8x128xbf16>
    %151 = vector.shape_cast %150 : vector<4x4x8x128xbf16> to vector<128x128xbf16>
    %c0_170 = arith.constant 0 : index
    %c15 = arith.constant 15 : index
    %c0_171 = arith.constant 0 : index
    %c0_172 = arith.constant 0 : index
    %152 = vector.load %arg2[%c0_170, %c15, %c0_171, %c0_172] : memref<1x26x128x128xbf16, #tpu.memory_space<vmem>>, vector<1x1x128x128xbf16>
    %153 = vector.shape_cast %152 : vector<1x1x128x128xbf16> to vector<128x128xbf16>
    %cst_173 = arith.constant dense<0.000000e+00> : vector<128x128xf32>
    %154 = tpu.matmul %151, %153, %cst_173 {dimension_numbers = #tpu.dot_dimension_numbers<[1], [0], [0], [1], [0, 0, 1, 1], [], []>} : vector<128x128xbf16>, vector<128x128xbf16>, vector<128x128xf32> -> vector<128x128xf32>
    %155 = arith.addf %149, %154 : vector<128x128xf32>
    %c0_174 = arith.constant 0 : index
    %c1_175 = arith.constant 1 : index
    %c0_176 = arith.constant 0 : index
    %c0_177 = arith.constant 0 : index
    %156 = vector.load %arg6[%c0_174, %c1_175, %c0_176, %c0_177] : memref<6x6x8x128xbf16, #tpu.memory_space<vmem>>, vector<4x4x8x128xbf16>
    %157 = vector.shape_cast %156 : vector<4x4x8x128xbf16> to vector<128x128xbf16>
    %c0_178 = arith.constant 0 : index
    %c16 = arith.constant 16 : index
    %c0_179 = arith.constant 0 : index
    %c0_180 = arith.constant 0 : index
    %158 = vector.load %arg2[%c0_178, %c16, %c0_179, %c0_180] : memref<1x26x128x128xbf16, #tpu.memory_space<vmem>>, vector<1x1x128x128xbf16>
    %159 = vector.shape_cast %158 : vector<1x1x128x128xbf16> to vector<128x128xbf16>
    %cst_181 = arith.constant dense<0.000000e+00> : vector<128x128xf32>
    %160 = tpu.matmul %157, %159, %cst_181 {dimension_numbers = #tpu.dot_dimension_numbers<[1], [0], [0], [1], [0, 0, 1, 1], [], []>} : vector<128x128xbf16>, vector<128x128xbf16>, vector<128x128xf32> -> vector<128x128xf32>
    %161 = arith.addf %155, %160 : vector<128x128xf32>
    %c0_182 = arith.constant 0 : index
    %c2_183 = arith.constant 2 : index
    %c0_184 = arith.constant 0 : index
    %c0_185 = arith.constant 0 : index
    %162 = vector.load %arg6[%c0_182, %c2_183, %c0_184, %c0_185] : memref<6x6x8x128xbf16, #tpu.memory_space<vmem>>, vector<4x4x8x128xbf16>
    %163 = vector.shape_cast %162 : vector<4x4x8x128xbf16> to vector<128x128xbf16>
    %c0_186 = arith.constant 0 : index
    %c17 = arith.constant 17 : index
    %c0_187 = arith.constant 0 : index
    %c0_188 = arith.constant 0 : index
    %164 = vector.load %arg2[%c0_186, %c17, %c0_187, %c0_188] : memref<1x26x128x128xbf16, #tpu.memory_space<vmem>>, vector<1x1x128x128xbf16>
    %165 = vector.shape_cast %164 : vector<1x1x128x128xbf16> to vector<128x128xbf16>
    %cst_189 = arith.constant dense<0.000000e+00> : vector<128x128xf32>
    %166 = tpu.matmul %163, %165, %cst_189 {dimension_numbers = #tpu.dot_dimension_numbers<[1], [0], [0], [1], [0, 0, 1, 1], [], []>} : vector<128x128xbf16>, vector<128x128xbf16>, vector<128x128xf32> -> vector<128x128xf32>
    %167 = arith.addf %161, %166 : vector<128x128xf32>
    %c1_190 = arith.constant 1 : index
    %c0_191 = arith.constant 0 : index
    %c0_192 = arith.constant 0 : index
    %c0_193 = arith.constant 0 : index
    %168 = vector.load %arg6[%c1_190, %c0_191, %c0_192, %c0_193] : memref<6x6x8x128xbf16, #tpu.memory_space<vmem>>, vector<4x4x8x128xbf16>
    %169 = vector.shape_cast %168 : vector<4x4x8x128xbf16> to vector<128x128xbf16>
    %c0_194 = arith.constant 0 : index
    %c18 = arith.constant 18 : index
    %c0_195 = arith.constant 0 : index
    %c0_196 = arith.constant 0 : index
    %170 = vector.load %arg2[%c0_194, %c18, %c0_195, %c0_196] : memref<1x26x128x128xbf16, #tpu.memory_space<vmem>>, vector<1x1x128x128xbf16>
    %171 = vector.shape_cast %170 : vector<1x1x128x128xbf16> to vector<128x128xbf16>
    %cst_197 = arith.constant dense<0.000000e+00> : vector<128x128xf32>
    %172 = tpu.matmul %169, %171, %cst_197 {dimension_numbers = #tpu.dot_dimension_numbers<[1], [0], [0], [1], [0, 0, 1, 1], [], []>} : vector<128x128xbf16>, vector<128x128xbf16>, vector<128x128xf32> -> vector<128x128xf32>
    %173 = arith.addf %167, %172 : vector<128x128xf32>
    %c1_198 = arith.constant 1 : index
    %c1_199 = arith.constant 1 : index
    %c0_200 = arith.constant 0 : index
    %c0_201 = arith.constant 0 : index
    %174 = vector.load %arg6[%c1_198, %c1_199, %c0_200, %c0_201] : memref<6x6x8x128xbf16, #tpu.memory_space<vmem>>, vector<4x4x8x128xbf16>
    %175 = vector.shape_cast %174 : vector<4x4x8x128xbf16> to vector<128x128xbf16>
    %c0_202 = arith.constant 0 : index
    %c19 = arith.constant 19 : index
    %c0_203 = arith.constant 0 : index
    %c0_204 = arith.constant 0 : index
    %176 = vector.load %arg2[%c0_202, %c19, %c0_203, %c0_204] : memref<1x26x128x128xbf16, #tpu.memory_space<vmem>>, vector<1x1x128x128xbf16>
    %177 = vector.shape_cast %176 : vector<1x1x128x128xbf16> to vector<128x128xbf16>
    %cst_205 = arith.constant dense<0.000000e+00> : vector<128x128xf32>
    %178 = tpu.matmul %175, %177, %cst_205 {dimension_numbers = #tpu.dot_dimension_numbers<[1], [0], [0], [1], [0, 0, 1, 1], [], []>} : vector<128x128xbf16>, vector<128x128xbf16>, vector<128x128xf32> -> vector<128x128xf32>
    %179 = arith.addf %173, %178 : vector<128x128xf32>
    %c1_206 = arith.constant 1 : index
    %c2_207 = arith.constant 2 : index
    %c0_208 = arith.constant 0 : index
    %c0_209 = arith.constant 0 : index
    %180 = vector.load %arg6[%c1_206, %c2_207, %c0_208, %c0_209] : memref<6x6x8x128xbf16, #tpu.memory_space<vmem>>, vector<4x4x8x128xbf16>
    %181 = vector.shape_cast %180 : vector<4x4x8x128xbf16> to vector<128x128xbf16>
    %c0_210 = arith.constant 0 : index
    %c20 = arith.constant 20 : index
    %c0_211 = arith.constant 0 : index
    %c0_212 = arith.constant 0 : index
    %182 = vector.load %arg2[%c0_210, %c20, %c0_211, %c0_212] : memref<1x26x128x128xbf16, #tpu.memory_space<vmem>>, vector<1x1x128x128xbf16>
    %183 = vector.shape_cast %182 : vector<1x1x128x128xbf16> to vector<128x128xbf16>
    %cst_213 = arith.constant dense<0.000000e+00> : vector<128x128xf32>
    %184 = tpu.matmul %181, %183, %cst_213 {dimension_numbers = #tpu.dot_dimension_numbers<[1], [0], [0], [1], [0, 0, 1, 1], [], []>} : vector<128x128xbf16>, vector<128x128xbf16>, vector<128x128xf32> -> vector<128x128xf32>
    %185 = arith.addf %179, %184 : vector<128x128xf32>
    %c2_214 = arith.constant 2 : index
    %c0_215 = arith.constant 0 : index
    %c0_216 = arith.constant 0 : index
    %c0_217 = arith.constant 0 : index
    %186 = vector.load %arg6[%c2_214, %c0_215, %c0_216, %c0_217] : memref<6x6x8x128xbf16, #tpu.memory_space<vmem>>, vector<4x4x8x128xbf16>
    %187 = vector.shape_cast %186 : vector<4x4x8x128xbf16> to vector<128x128xbf16>
    %c0_218 = arith.constant 0 : index
    %c21 = arith.constant 21 : index
    %c0_219 = arith.constant 0 : index
    %c0_220 = arith.constant 0 : index
    %188 = vector.load %arg2[%c0_218, %c21, %c0_219, %c0_220] : memref<1x26x128x128xbf16, #tpu.memory_space<vmem>>, vector<1x1x128x128xbf16>
    %189 = vector.shape_cast %188 : vector<1x1x128x128xbf16> to vector<128x128xbf16>
    %cst_221 = arith.constant dense<0.000000e+00> : vector<128x128xf32>
    %190 = tpu.matmul %187, %189, %cst_221 {dimension_numbers = #tpu.dot_dimension_numbers<[1], [0], [0], [1], [0, 0, 1, 1], [], []>} : vector<128x128xbf16>, vector<128x128xbf16>, vector<128x128xf32> -> vector<128x128xf32>
    %191 = arith.addf %185, %190 : vector<128x128xf32>
    %c2_222 = arith.constant 2 : index
    %c1_223 = arith.constant 1 : index
    %c0_224 = arith.constant 0 : index
    %c0_225 = arith.constant 0 : index
    %192 = vector.load %arg6[%c2_222, %c1_223, %c0_224, %c0_225] : memref<6x6x8x128xbf16, #tpu.memory_space<vmem>>, vector<4x4x8x128xbf16>
    %193 = vector.shape_cast %192 : vector<4x4x8x128xbf16> to vector<128x128xbf16>
    %c0_226 = arith.constant 0 : index
    %c22 = arith.constant 22 : index
    %c0_227 = arith.constant 0 : index
    %c0_228 = arith.constant 0 : index
    %194 = vector.load %arg2[%c0_226, %c22, %c0_227, %c0_228] : memref<1x26x128x128xbf16, #tpu.memory_space<vmem>>, vector<1x1x128x128xbf16>
    %195 = vector.shape_cast %194 : vector<1x1x128x128xbf16> to vector<128x128xbf16>
    %cst_229 = arith.constant dense<0.000000e+00> : vector<128x128xf32>
    %196 = tpu.matmul %193, %195, %cst_229 {dimension_numbers = #tpu.dot_dimension_numbers<[1], [0], [0], [1], [0, 0, 1, 1], [], []>} : vector<128x128xbf16>, vector<128x128xbf16>, vector<128x128xf32> -> vector<128x128xf32>
    %197 = arith.addf %191, %196 : vector<128x128xf32>
    %c2_230 = arith.constant 2 : index
    %c2_231 = arith.constant 2 : index
    %c0_232 = arith.constant 0 : index
    %c0_233 = arith.constant 0 : index
    %198 = vector.load %arg6[%c2_230, %c2_231, %c0_232, %c0_233] : memref<6x6x8x128xbf16, #tpu.memory_space<vmem>>, vector<4x4x8x128xbf16>
    %199 = vector.shape_cast %198 : vector<4x4x8x128xbf16> to vector<128x128xbf16>
    %c0_234 = arith.constant 0 : index
    %c23 = arith.constant 23 : index
    %c0_235 = arith.constant 0 : index
    %c0_236 = arith.constant 0 : index
    %200 = vector.load %arg2[%c0_234, %c23, %c0_235, %c0_236] : memref<1x26x128x128xbf16, #tpu.memory_space<vmem>>, vector<1x1x128x128xbf16>
    %201 = vector.shape_cast %200 : vector<1x1x128x128xbf16> to vector<128x128xbf16>
    %cst_237 = arith.constant dense<0.000000e+00> : vector<128x128xf32>
    %202 = tpu.matmul %199, %201, %cst_237 {dimension_numbers = #tpu.dot_dimension_numbers<[1], [0], [0], [1], [0, 0, 1, 1], [], []>} : vector<128x128xbf16>, vector<128x128xbf16>, vector<128x128xf32> -> vector<128x128xf32>
    %203 = arith.addf %197, %202 : vector<128x128xf32>
    %c0_238 = arith.constant 0 : index
    %c5_239 = arith.constant 5 : index
    %c0_240 = arith.constant 0 : index
    %204 = vector.load %arg3[%c0_238, %c5_239, %c0_240] : memref<1x8x128xf32, #tpu.memory_space<vmem>>, vector<1x1x128xf32>
    %205 = vector.shape_cast %204 : vector<1x1x128xf32> to vector<1x128xf32>
    %206 = vector.broadcast %205 : vector<1x128xf32> to vector<128x128xf32>
    %207 = arith.mulf %203, %206 : vector<128x128xf32>
    %c0_241 = arith.constant 0 : index
    %c5_242 = arith.constant 5 : index
    %c0_243 = arith.constant 0 : index
    %208 = vector.load %arg4[%c0_241, %c5_242, %c0_243] : memref<1x8x128xf32, #tpu.memory_space<vmem>>, vector<1x1x128xf32>
    %209 = vector.shape_cast %208 : vector<1x1x128xf32> to vector<1x128xf32>
    %210 = vector.broadcast %209 : vector<1x128xf32> to vector<128x128xf32>
    %211 = arith.addf %207, %210 : vector<128x128xf32>
    %cst_244 = arith.constant 0.000000e+00 : f32
    %212 = vector.broadcast %cst_244 : f32 to vector<128x128xf32>
    %213 = arith.maximumf %211, %212 : vector<128x128xf32>
    %214 = arith.truncf %213 : vector<128x128xf32> to vector<128x128xbf16>
    %c0_245 = arith.constant 0 : index
    %c24 = arith.constant 24 : index
    %c0_246 = arith.constant 0 : index
    %c0_247 = arith.constant 0 : index
    %215 = vector.load %arg2[%c0_245, %c24, %c0_246, %c0_247] : memref<1x26x128x128xbf16, #tpu.memory_space<vmem>>, vector<1x1x128x128xbf16>
    %216 = vector.shape_cast %215 : vector<1x1x128x128xbf16> to vector<128x128xbf16>
    %cst_248 = arith.constant dense<0.000000e+00> : vector<128x128xf32>
    %217 = tpu.matmul %214, %216, %cst_248 {dimension_numbers = #tpu.dot_dimension_numbers<[1], [0], [0], [1], [0, 0, 1, 1], [], []>} : vector<128x128xbf16>, vector<128x128xbf16>, vector<128x128xf32> -> vector<128x128xf32>
    %c0_249 = arith.constant 0 : index
    %c6_250 = arith.constant 6 : index
    %c0_251 = arith.constant 0 : index
    %218 = vector.load %arg3[%c0_249, %c6_250, %c0_251] : memref<1x8x128xf32, #tpu.memory_space<vmem>>, vector<1x1x128xf32>
    %219 = vector.shape_cast %218 : vector<1x1x128xf32> to vector<1x128xf32>
    %220 = vector.broadcast %219 : vector<1x128xf32> to vector<128x128xf32>
    %221 = arith.mulf %217, %220 : vector<128x128xf32>
    %c0_252 = arith.constant 0 : index
    %c6_253 = arith.constant 6 : index
    %c0_254 = arith.constant 0 : index
    %222 = vector.load %arg4[%c0_252, %c6_253, %c0_254] : memref<1x8x128xf32, #tpu.memory_space<vmem>>, vector<1x1x128xf32>
    %223 = vector.shape_cast %222 : vector<1x1x128xf32> to vector<1x128xf32>
    %224 = vector.broadcast %223 : vector<1x128xf32> to vector<128x128xf32>
    %225 = arith.addf %221, %224 : vector<128x128xf32>
    %226 = vector.shape_cast %225 : vector<128x128xf32> to vector<4x4x8x128xf32>
    %c0_255 = arith.constant 0 : index
    %c25 = arith.constant 25 : index
    %c0_256 = arith.constant 0 : index
    %c0_257 = arith.constant 0 : index
    %227 = vector.load %arg2[%c0_255, %c25, %c0_256, %c0_257] : memref<1x26x128x128xbf16, #tpu.memory_space<vmem>>, vector<1x1x128x128xbf16>
    %228 = vector.shape_cast %227 : vector<1x1x128x128xbf16> to vector<128x128xbf16>
    %cst_258 = arith.constant dense<0.000000e+00> : vector<128x128xf32>
    %229 = tpu.matmul %114, %228, %cst_258 {dimension_numbers = #tpu.dot_dimension_numbers<[1], [0], [0], [1], [0, 0, 1, 1], [], []>} : vector<128x128xbf16>, vector<128x128xbf16>, vector<128x128xf32> -> vector<128x128xf32>
    %c0_259 = arith.constant 0 : index
    %c7_260 = arith.constant 7 : index
    %c0_261 = arith.constant 0 : index
    %230 = vector.load %arg3[%c0_259, %c7_260, %c0_261] : memref<1x8x128xf32, #tpu.memory_space<vmem>>, vector<1x1x128xf32>
    %231 = vector.shape_cast %230 : vector<1x1x128xf32> to vector<1x128xf32>
    %232 = vector.broadcast %231 : vector<1x128xf32> to vector<128x128xf32>
    %233 = arith.mulf %229, %232 : vector<128x128xf32>
    %c0_262 = arith.constant 0 : index
    %c7_263 = arith.constant 7 : index
    %c0_264 = arith.constant 0 : index
    %234 = vector.load %arg4[%c0_262, %c7_263, %c0_264] : memref<1x8x128xf32, #tpu.memory_space<vmem>>, vector<1x1x128xf32>
    %235 = vector.shape_cast %234 : vector<1x1x128xf32> to vector<1x128xf32>
    %236 = vector.broadcast %235 : vector<1x128xf32> to vector<128x128xf32>
    %237 = arith.addf %233, %236 : vector<128x128xf32>
    %238 = vector.shape_cast %237 : vector<128x128xf32> to vector<4x4x8x128xf32>
    %239 = vector.extract_strided_slice %226 {offsets = [0, 0, 0, 0], sizes = [1, 1, 8, 128], strides = [1, 1, 1, 1]} : vector<4x4x8x128xf32> to vector<1x1x8x128xf32>
    %240 = vector.shape_cast %239 : vector<1x1x8x128xf32> to vector<8x128xf32>
    %241 = vector.extract_strided_slice %238 {offsets = [0, 0, 0, 0], sizes = [1, 1, 8, 128], strides = [1, 1, 1, 1]} : vector<4x4x8x128xf32> to vector<1x1x8x128xf32>
    %242 = vector.shape_cast %241 : vector<1x1x8x128xf32> to vector<8x128xf32>
    %243 = arith.addf %240, %242 : vector<8x128xf32>
    %cst_265 = arith.constant 0.000000e+00 : f32
    %244 = vector.broadcast %cst_265 : f32 to vector<8x128xf32>
    %245 = arith.maximumf %243, %244 : vector<8x128xf32>
    %c0_266 = arith.constant 0 : index
    %c0_267 = arith.constant 0 : index
    %c0_268 = arith.constant 0 : index
    %c0_269 = arith.constant 0 : index
    %c0_270 = arith.constant 0 : index
    %246 = vector.load %arg5[%c0_266, %c0_267, %c0_268, %c0_269, %c0_270] : memref<1x2x2x8x128xf32, #tpu.memory_space<vmem>>, vector<1x1x1x8x128xf32>
    %247 = vector.shape_cast %246 : vector<1x1x1x8x128xf32> to vector<8x128xf32>
    %248 = vector.shape_cast %245 : vector<8x128xf32> to vector<1x1x1x8x128xf32>
    tpu.vector_store %arg5[%c0_266, %c0_267, %c0_268, %c0_269, %c0_270], %248 {strides = array<i32>} : memref<1x2x2x8x128xf32, #tpu.memory_space<vmem>>, vector<1x1x1x8x128xf32>,
    %249 = vector.extract_strided_slice %226 {offsets = [0, 2, 0, 0], sizes = [1, 1, 8, 128], strides = [1, 1, 1, 1]} : vector<4x4x8x128xf32> to vector<1x1x8x128xf32>
    %250 = vector.shape_cast %249 : vector<1x1x8x128xf32> to vector<8x128xf32>
    %251 = vector.extract_strided_slice %238 {offsets = [0, 2, 0, 0], sizes = [1, 1, 8, 128], strides = [1, 1, 1, 1]} : vector<4x4x8x128xf32> to vector<1x1x8x128xf32>
    %252 = vector.shape_cast %251 : vector<1x1x8x128xf32> to vector<8x128xf32>
    %253 = arith.addf %250, %252 : vector<8x128xf32>
    %cst_271 = arith.constant 0.000000e+00 : f32
    %254 = vector.broadcast %cst_271 : f32 to vector<8x128xf32>
    %255 = arith.maximumf %253, %254 : vector<8x128xf32>
    %c0_272 = arith.constant 0 : index
    %c0_273 = arith.constant 0 : index
    %c1_274 = arith.constant 1 : index
    %c0_275 = arith.constant 0 : index
    %c0_276 = arith.constant 0 : index
    %256 = vector.load %arg5[%c0_272, %c0_273, %c1_274, %c0_275, %c0_276] : memref<1x2x2x8x128xf32, #tpu.memory_space<vmem>>, vector<1x1x1x8x128xf32>
    %257 = vector.shape_cast %256 : vector<1x1x1x8x128xf32> to vector<8x128xf32>
    %258 = vector.shape_cast %255 : vector<8x128xf32> to vector<1x1x1x8x128xf32>
    tpu.vector_store %arg5[%c0_272, %c0_273, %c1_274, %c0_275, %c0_276], %258 {strides = array<i32>} : memref<1x2x2x8x128xf32, #tpu.memory_space<vmem>>, vector<1x1x1x8x128xf32>,
    %259 = vector.extract_strided_slice %226 {offsets = [2, 0, 0, 0], sizes = [1, 1, 8, 128], strides = [1, 1, 1, 1]} : vector<4x4x8x128xf32> to vector<1x1x8x128xf32>
    %260 = vector.shape_cast %259 : vector<1x1x8x128xf32> to vector<8x128xf32>
    %261 = vector.extract_strided_slice %238 {offsets = [2, 0, 0, 0], sizes = [1, 1, 8, 128], strides = [1, 1, 1, 1]} : vector<4x4x8x128xf32> to vector<1x1x8x128xf32>
    %262 = vector.shape_cast %261 : vector<1x1x8x128xf32> to vector<8x128xf32>
    %263 = arith.addf %260, %262 : vector<8x128xf32>
    %cst_277 = arith.constant 0.000000e+00 : f32
    %264 = vector.broadcast %cst_277 : f32 to vector<8x128xf32>
    %265 = arith.maximumf %263, %264 : vector<8x128xf32>
    %c0_278 = arith.constant 0 : index
    %c1_279 = arith.constant 1 : index
    %c0_280 = arith.constant 0 : index
    %c0_281 = arith.constant 0 : index
    %c0_282 = arith.constant 0 : index
    %266 = vector.load %arg5[%c0_278, %c1_279, %c0_280, %c0_281, %c0_282] : memref<1x2x2x8x128xf32, #tpu.memory_space<vmem>>, vector<1x1x1x8x128xf32>
    %267 = vector.shape_cast %266 : vector<1x1x1x8x128xf32> to vector<8x128xf32>
    %268 = vector.shape_cast %265 : vector<8x128xf32> to vector<1x1x1x8x128xf32>
    tpu.vector_store %arg5[%c0_278, %c1_279, %c0_280, %c0_281, %c0_282], %268 {strides = array<i32>} : memref<1x2x2x8x128xf32, #tpu.memory_space<vmem>>, vector<1x1x1x8x128xf32>,
    %269 = vector.extract_strided_slice %226 {offsets = [2, 2, 0, 0], sizes = [1, 1, 8, 128], strides = [1, 1, 1, 1]} : vector<4x4x8x128xf32> to vector<1x1x8x128xf32>
    %270 = vector.shape_cast %269 : vector<1x1x8x128xf32> to vector<8x128xf32>
    %271 = vector.extract_strided_slice %238 {offsets = [2, 2, 0, 0], sizes = [1, 1, 8, 128], strides = [1, 1, 1, 1]} : vector<4x4x8x128xf32> to vector<1x1x8x128xf32>
    %272 = vector.shape_cast %271 : vector<1x1x8x128xf32> to vector<8x128xf32>
    %273 = arith.addf %270, %272 : vector<8x128xf32>
    %cst_283 = arith.constant 0.000000e+00 : f32
    %274 = vector.broadcast %cst_283 : f32 to vector<8x128xf32>
    %275 = arith.maximumf %273, %274 : vector<8x128xf32>
    %c0_284 = arith.constant 0 : index
    %c1_285 = arith.constant 1 : index
    %c1_286 = arith.constant 1 : index
    %c0_287 = arith.constant 0 : index
    %c0_288 = arith.constant 0 : index
    %276 = vector.load %arg5[%c0_284, %c1_285, %c1_286, %c0_287, %c0_288] : memref<1x2x2x8x128xf32, #tpu.memory_space<vmem>>, vector<1x1x1x8x128xf32>
    %277 = vector.shape_cast %276 : vector<1x1x1x8x128xf32> to vector<8x128xf32>
    %278 = vector.shape_cast %275 : vector<8x128xf32> to vector<1x1x1x8x128xf32>
    tpu.vector_store %arg5[%c0_284, %c1_285, %c1_286, %c0_287, %c0_288], %278 {strides = array<i32>} : memref<1x2x2x8x128xf32, #tpu.memory_space<vmem>>, vector<1x1x1x8x128xf32>,
    return
  }
  func.func @transform_0(%arg0: i32) -> (i32, i32, i32, i32, i32) {
    %c0_i32 = arith.constant 0 : i32
    %c0_i32_0 = arith.constant 0 : i32
    %c0_i32_1 = arith.constant 0 : i32
    %c0_i32_2 = arith.constant 0 : i32
    %c0_i32_3 = arith.constant 0 : i32
    return %arg0, %c0_i32, %c0_i32_0, %c0_i32_1, %c0_i32_2 : i32, i32, i32, i32, i32
  }
  func.func @transform_1(%arg0: i32) -> (i32, i32, i32, i32) {
    %c0_i32 = arith.constant 0 : i32
    %c0_i32_0 = arith.constant 0 : i32
    %c0_i32_1 = arith.constant 0 : i32
    %c0_i32_2 = arith.constant 0 : i32
    return %arg0, %c0_i32, %c0_i32_0, %c0_i32_1 : i32, i32, i32, i32
  }
  func.func @transform_2(%arg0: i32) -> (i32, i32, i32) {
    %c0_i32 = arith.constant 0 : i32
    %c0_i32_0 = arith.constant 0 : i32
    %c0_i32_1 = arith.constant 0 : i32
    return %arg0, %c0_i32, %c0_i32_0 : i32, i32, i32
  }
  func.func @transform_3(%arg0: i32) -> (i32, i32, i32) {
    %c0_i32 = arith.constant 0 : i32
    %c0_i32_0 = arith.constant 0 : i32
    %c0_i32_1 = arith.constant 0 : i32
    return %arg0, %c0_i32, %c0_i32_0 : i32, i32, i32
  }
  func.func @transform_4(%arg0: i32) -> (i32, i32, i32, i32, i32) {
    %c0_i32 = arith.constant 0 : i32
    %c0_i32_0 = arith.constant 0 : i32
    %c0_i32_1 = arith.constant 0 : i32
    %c0_i32_2 = arith.constant 0 : i32
    %c0_i32_3 = arith.constant 0 : i32
    return %arg0, %c0_i32, %c0_i32_0, %c0_i32_1, %c0_i32_2 : i32, i32, i32, i32, i32
  }
}

</mosaic_0001>

<llo_original>
// kernel: resnet3d_slowonly_2s_flc3_forward.2
$region0: #{resnet3d_slowonly_2s_flc3_forward.2}
  #allocation0 [shape = 'u32[]', space=smem, size = 0x4, offset = 0x4, fixed_abs, tag = 'smem constant byte address 0x4 - core index']
  #allocation1 [shape = 'u32[144,128]{1,0:T(1,128)}', space=vmem, size = 0x12000, scoped, tag = 'internal scratch']
  %s0 = inlined_call_operand.vmem [shape: bf16[2,512,256], index: 0, kind: input, shape index: {}]
  %s1 = inlined_call_operand.vmem [shape: bf16[2,256,128], index: 1, kind: input, shape index: {}]
  %s2 = inlined_call_operand.vmem [shape: f32[2,1,128], index: 2, kind: input, shape index: {}]
  %s3 = inlined_call_operand.vmem [shape: f32[2,1,128], index: 3, kind: input, shape index: {}]
  %s4 = inlined_call_operand.vmem [shape: bf16[2,4,4,8,128], index: 4, kind: output, shape index: {}]
  %s5 = sld [smem:[#allocation0]]
  $region49: #{resnet3d_slowonly_2s_flc3_forward.2} parent=0
    _
  %s7 = ssub.s32 1, %s5
  %s8 = scalar_select 0, %s7, %s5
  loop: start=0, step=1, limit=4
  $region2: #{resnet3d_slowonly_2s_flc3_forward.2} parent=0 // loop_pre_header
    _
  $region3: #{resnet3d_slowonly_2s_flc3_forward.2} parent=0 // loop_header
    %s10 = sphi 0, %s14
    %p11 = scmp.ge.s32.totalorder %s10, 4
    %s20 = sphi 0, %s22
    %s23 = sphi 0, %s20
    %s24 = sphi 0, %s23
    %s40 = sphi 0, %s24
    %s46 = sphi 0, %s48
    %s49 = sphi 0, %s46
    %s50 = sphi 0, %s49
    %s66 = sphi 0, %s50
    %s72 = sphi 0, %s74
    %s75 = sphi 0, %s72
    %s76 = sphi 0, %s75
    %s92 = sphi 0, %s76
    %s98 = sphi 0, %s100
    %s101 = sphi 0, %s98
    %s102 = sphi 0, %s101
    %s118 = sphi 0, %s102
    %s124 = sphi 0, %s126
    %s127 = sphi 0, %s124
    %s128 = sphi 0, %s127
    %s144 = sphi 0, %s128
  $region4: #{resnet3d_slowonly_2s_flc3_forward.2} parent=0 // loop_header_branch
    %13 = sbr.rel (%p11) target = $region8
  $region5: #{resnet3d_slowonly_2s_flc3_forward.2} parent=0 // loop_body
    %s15 = ssub.s32 %s10, 1
    %s16 = ssub.s32 %s10, 2
    %s17 = sadd.s32 %s10, 1
    %s18 = ssub.s32 %s10, %s17
    %p19 = scmp.eq.s32.totalorder %s18, 0
    %s21 = sadd.s32 %s20, 1
    %s22 = scalar_select %p19, %s20, %s21
    %p25 = pneg %p19
    %p26 = scmp.eq.s32.totalorder %s10, 1
    %p27 = por %p25, %p26
    %p28 = scmp.ne.s32.totalorder %s20, %s23
    %p29 = scmp.eq.s32.totalorder %s10, 0
    %p30 = por %p28, %p29
    %p31 = scmp.ne.s32.totalorder %s20, %s23
    %p32 = scmp.eq.s32.totalorder %s15, 1
    %p33 = por %p31, %p32
    %p34 = scmp.ne.s32.totalorder %s23, %s24
    %p35 = scmp.eq.s32.totalorder %s15, 0
    %p36 = por %p34, %p35
    %p37 = scmp.ne.s32.totalorder %s23, %s24
    %p38 = scmp.eq.s32.totalorder %s16, 1
    %p39 = por %p37, %p38
    %p41 = scmp.ne.s32.totalorder %s24, %s40
    %p42 = scmp.eq.s32.totalorder %s16, 0
    %p43 = por %p41, %p42
    %s44 = ssub.s32 %s10, %s17
    %p45 = scmp.eq.s32.totalorder %s44, 0
    %s47 = sadd.s32 %s46, 1
    %s48 = scalar_select %p45, %s46, %s47
    %p51 = pneg %p45
    %p52 = scmp.eq.s32.totalorder %s10, 1
    %p53 = por %p51, %p52
    %p54 = scmp.ne.s32.totalorder %s46, %s49
    %p55 = scmp.eq.s32.totalorder %s10, 0
    %p56 = por %p54, %p55
    %p57 = scmp.ne.s32.totalorder %s46, %s49
    %p58 = scmp.eq.s32.totalorder %s15, 1
    %p59 = por %p57, %p58
    %p60 = scmp.ne.s32.totalorder %s49, %s50
    %p61 = scmp.eq.s32.totalorder %s15, 0
    %p62 = por %p60, %p61
    %p63 = scmp.ne.s32.totalorder %s49, %s50
    %p64 = scmp.eq.s32.totalorder %s16, 1
    %p65 = por %p63, %p64
    %p67 = scmp.ne.s32.totalorder %s50, %s66
    %p68 = scmp.eq.s32.totalorder %s16, 0
    %p69 = por %p67, %p68
    %s70 = ssub.s32 %s10, %s17
    %p71 = scmp.eq.s32.totalorder %s70, 0
    %s73 = sadd.s32 %s72, 1
    %s74 = scalar_select %p71, %s72, %s73
    %p77 = pneg %p71
    %p78 = scmp.eq.s32.totalorder %s10, 1
    %p79 = por %p77, %p78
    %p80 = scmp.ne.s32.totalorder %s72, %s75
    %p81 = scmp.eq.s32.totalorder %s10, 0
    %p82 = por %p80, %p81
    %p83 = scmp.ne.s32.totalorder %s72, %s75
    %p84 = scmp.eq.s32.totalorder %s15, 1
    %p85 = por %p83, %p84
    %p86 = scmp.ne.s32.totalorder %s75, %s76
    %p87 = scmp.eq.s32.totalorder %s15, 0
    %p88 = por %p86, %p87
    %p89 = scmp.ne.s32.totalorder %s75, %s76
    %p90 = scmp.eq.s32.totalorder %s16, 1
    %p91 = por %p89, %p90
    %p93 = scmp.ne.s32.totalorder %s76, %s92
    %p94 = scmp.eq.s32.totalorder %s16, 0
    %p95 = por %p93, %p94
    %s96 = ssub.s32 %s10, %s17
    %p97 = scmp.eq.s32.totalorder %s96, 0
    %s99 = sadd.s32 %s98, 1
    %s100 = scalar_select %p97, %s98, %s99
    %p103 = pneg %p97
    %p104 = scmp.eq.s32.totalorder %s10, 1
    %p105 = por %p103, %p104
    %p106 = scmp.ne.s32.totalorder %s98, %s101
    %p107 = scmp.eq.s32.totalorder %s10, 0
    %p108 = por %p106, %p107
    %p109 = scmp.ne.s32.totalorder %s98, %s101
    %p110 = scmp.eq.s32.totalorder %s15, 1
    %p111 = por %p109, %p110
    %p112 = scmp.ne.s32.totalorder %s101, %s102
    %p113 = scmp.eq.s32.totalorder %s15, 0
    %p114 = por %p112, %p113
    %p115 = scmp.ne.s32.totalorder %s101, %s102
    %p116 = scmp.eq.s32.totalorder %s16, 1
    %p117 = por %p115, %p116
    %p119 = scmp.ne.s32.totalorder %s102, %s118
    %p120 = scmp.eq.s32.totalorder %s16, 0
    %p121 = por %p119, %p120
    %s122 = ssub.s32 %s10, %s17
    %p123 = scmp.eq.s32.totalorder %s122, 0
    %s125 = sadd.s32 %s124, 1
    %s126 = scalar_select %p123, %s124, %s125
    %p129 = pneg %p123
    %p130 = scmp.eq.s32.totalorder %s10, 1
    %p131 = por %p129, %p130
    %p132 = scmp.ne.s32.totalorder %s124, %s127
    %p133 = scmp.eq.s32.totalorder %s10, 0
    %p134 = por %p132, %p133
    %p135 = scmp.ne.s32.totalorder %s124, %s127
    %p136 = scmp.eq.s32.totalorder %s15, 1
    %p137 = por %p135, %p136
    %p138 = scmp.ne.s32.totalorder %s127, %s128
    %p139 = scmp.eq.s32.totalorder %s15, 0
    %p140 = por %p138, %p139
    %p141 = scmp.ne.s32.totalorder %s127, %s128
    %p142 = scmp.eq.s32.totalorder %s16, 1
    %p143 = por %p141, %p142
    %p145 = scmp.ne.s32.totalorder %s128, %s144
    %p146 = scmp.eq.s32.totalorder %s16, 0
    %p147 = por %p145, %p146
    %p148 = scmp.le.s32.totalorder 1, %s10
    %p149 = scmp.lt.s32.totalorder %s10, 3
    %p150 = pnand %p148, %p149
    %p151 = pneg %p150
    // Predicated region
    $region9: #{resnet3d_slowonly_2s_flc3_forward.2} parent=5 // pred_check
      _
    $region10: #{resnet3d_slowonly_2s_flc3_forward.2} parent=5 // pred_check_branch
      %153 = sbr.rel (%p150) target = $region12
    $region11: #{resnet3d_slowonly_2s_flc3_forward.2} parent=5 // pred_region
      %s154 = ssub.s32 %s10, 1
    $region12: #{resnet3d_slowonly_2s_flc3_forward.2} parent=5 // pred_fallthru
      _
    %p155 = scmp.lt.s32.totalorder %s10, 2
    // Predicated region
    $region13: #{resnet3d_slowonly_2s_flc3_forward.2} parent=5 // pred_check
      %p156 = pneg %p155
    $region14: #{resnet3d_slowonly_2s_flc3_forward.2} parent=5 // pred_check_branch
      %158 = sbr.rel (%p156) target = $region16
    $region15: #{resnet3d_slowonly_2s_flc3_forward.2} parent=5 // pred_region
      // Predicated region
      $region17: #{resnet3d_slowonly_2s_flc3_forward.2} parent=15 // pred_check
        %p159 = pneg %p30
      $region18: #{resnet3d_slowonly_2s_flc3_forward.2} parent=15 // pred_check_branch
        %161 = sbr.rel (%p159) target = $region20
      $region19: #{resnet3d_slowonly_2s_flc3_forward.2} parent=15 // pred_region
        %p162 = scmp.lt.s32.totalorder %s10, 1
        %s163 = scalar_select %p162, %s10, 1
        %s164 = smul.addr %s163, 128
        %s165 = smul.addr %s164, 4
        %s166 = scalar_lea.vmem %s0, %s165
      $region20: #{resnet3d_slowonly_2s_flc3_forward.2} parent=15 // pred_fallthru
        _
      // Predicated region
      $region21: #{resnet3d_slowonly_2s_flc3_forward.2} parent=15 // pred_check
        %p167 = pneg %p56
      $region22: #{resnet3d_slowonly_2s_flc3_forward.2} parent=15 // pred_check_branch
        %169 = sbr.rel (%p167) target = $region24
      $region23: #{resnet3d_slowonly_2s_flc3_forward.2} parent=15 // pred_region
        %p170 = scmp.lt.s32.totalorder %s10, 1
        %s171 = scalar_select %p170, %s10, 1
        %s172 = smul.addr %s171, 32
        %s173 = smul.addr %s172, 4
        %s174 = scalar_lea.vmem %s1, %s173
      $region24: #{resnet3d_slowonly_2s_flc3_forward.2} parent=15 // pred_fallthru
        _
      // Predicated region
      $region25: #{resnet3d_slowonly_2s_flc3_forward.2} parent=15 // pred_check
        %p175 = pneg %p82
      $region26: #{resnet3d_slowonly_2s_flc3_forward.2} parent=15 // pred_check_branch
        %177 = sbr.rel (%p175) target = $region28
      $region27: #{resnet3d_slowonly_2s_flc3_forward.2} parent=15 // pred_region
        %p178 = scmp.lt.s32.totalorder %s10, 1
        %s179 = scalar_select %p178, %s10, 1
        %s180 = scalar_lea.vmem %s2, %s179
      $region28: #{resnet3d_slowonly_2s_flc3_forward.2} parent=15 // pred_fallthru
        _
      // Predicated region
      $region29: #{resnet3d_slowonly_2s_flc3_forward.2} parent=15 // pred_check
        %p181 = pneg %p108
      $region30: #{resnet3d_slowonly_2s_flc3_forward.2} parent=15 // pred_check_branch
        %183 = sbr.rel (%p181) target = $region32
      $region31: #{resnet3d_slowonly_2s_flc3_forward.2} parent=15 // pred_region
        %p184 = scmp.lt.s32.totalorder %s10, 1
        %s185 = scalar_select %p184, %s10, 1
        %s186 = scalar_lea.vmem %s3, %s185
      $region32: #{resnet3d_slowonly_2s_flc3_forward.2} parent=15 // pred_fallthru
        _
    $region16: #{resnet3d_slowonly_2s_flc3_forward.2} parent=5 // pred_fallthru
      _
    %p187 = scmp.le.s32.totalorder 1, %s10
    %p188 = scmp.lt.s32.totalorder %s10, 3
    %p189 = pnand %p187, %p188
    %p190 = pneg %p189
    // Predicated region
    $region33: #{resnet3d_slowonly_2s_flc3_forward.2} parent=5 // pred_check
      _
    $region34: #{resnet3d_slowonly_2s_flc3_forward.2} parent=5 // pred_check_branch
      %192 = sbr.rel (%p189) target = $region36
    $region35: #{resnet3d_slowonly_2s_flc3_forward.2} parent=5 // pred_region
      %s193 = ssub.s32 %s10, 1
      %p194 = scmp.lt.s32.totalorder %s15, 1
      %s195 = scalar_select %p194, %s15, 1
      %s196 = smul.addr %s195, 128
      %s197 = smul.addr %s196, 4
      %s198 = scalar_lea.vmem %s0, %s197
      %p199 = pneg %p36
      %p200 = pneg %p33
      %p201 = scmp.lt.s32.totalorder %s15, 1
      %s202 = scalar_select %p201, %s15, 1
      %s203 = smul.addr %s202, 32
      %s204 = smul.addr %s203, 4
      %s205 = scalar_lea.vmem %s1, %s204
      %p206 = pneg %p62
      %p207 = pneg %p59
      %p208 = scmp.lt.s32.totalorder %s15, 1
      %s209 = scalar_select %p208, %s15, 1
      %s210 = scalar_lea.vmem %s2, %s209
      %p211 = pneg %p88
      %p212 = pneg %p85
      %p213 = scmp.lt.s32.totalorder %s15, 1
      %s214 = scalar_select %p213, %s15, 1
      %s215 = scalar_lea.vmem %s3, %s214
      %p216 = pneg %p114
      %p217 = pneg %p111
      %p218 = pneg %p140
      %p219 = pneg %p137
      %p220 = scmp.lt.s32.totalorder %s15, 1
      %s221 = scalar_select %p220, %s15, 1
      %s222 = smul.addr %s221, 16
      %s223 = smul.addr %s222, 4
      %s224 = scalar_lea.vmem %s4, %s223
      %p225 = scmp.lt.s32.totalorder %s15, 1
      %s226 = scalar_select %p225, %s15, 1
      %s227 = smul.addr %s226, 128
      %s228 = smul.addr %s227, 4
      %s229 = scalar_lea.vmem %s0, %s228
      %p230 = scmp.lt.s32.totalorder %s15, 1
      %s231 = scalar_select %p230, %s15, 1
      %s232 = smul.addr %s231, 32
      %s233 = smul.addr %s232, 4
      %s234 = scalar_lea.vmem %s1, %s233
      %p235 = scmp.lt.s32.totalorder %s15, 1
      %s236 = scalar_select %p235, %s15, 1
      %s237 = scalar_lea.vmem %s2, %s236
      %p238 = scmp.lt.s32.totalorder %s15, 1
      %s239 = scalar_select %p238, %s15, 1
      %s240 = scalar_lea.vmem %s3, %s239
      %p241 = scmp.lt.s32.totalorder %s15, 1
      %s242 = scalar_select %p241, %s15, 1
      %s243 = smul.addr %s242, 16
      %s244 = smul.addr %s243, 4
      %s245 = scalar_lea.vmem %s4, %s244
      %v247 = vld [vmem:[%s229] sm:$0xff]
      %v248 = vld [vmem:[%s229 + $0x8] sm:$0xff]
      %v249 = vld [vmem:[%s229 + $0x10] sm:$0xff]
      %v250 = vld [vmem:[%s229 + $0x18] sm:$0xff]
      %v251 = vld [vmem:[%s229 + $0x20] sm:$0xff]
      %v252 = vld [vmem:[%s229 + $0x28] sm:$0xff]
      %v253 = vld [vmem:[%s229 + $0x30] sm:$0xff]
      %v254 = vld [vmem:[%s229 + $0x38] sm:$0xff]
      %v255 = vld [vmem:[%s229 + $0x40] sm:$0xff]
      %v256 = vld [vmem:[%s229 + $0x48] sm:$0xff]
      %v257 = vld [vmem:[%s229 + $0x50] sm:$0xff]
      %v258 = vld [vmem:[%s229 + $0x58] sm:$0xff]
      %v259 = vld [vmem:[%s229 + $0x60] sm:$0xff]
      %v260 = vld [vmem:[%s229 + $0x68] sm:$0xff]
      %v261 = vld [vmem:[%s229 + $0x70] sm:$0xff]
      %v262 = vld [vmem:[%s229 + $0x78] sm:$0xff]
      %v263 = vld [vmem:[%s229 + $0x80] sm:$0xff]
      %v264 = vld [vmem:[%s229 + $0x88] sm:$0xff]
      %v265 = vld [vmem:[%s229 + $0x90] sm:$0xff]
      %v266 = vld [vmem:[%s229 + $0x98] sm:$0xff]
      %v267 = vld [vmem:[%s229 + $0xa0] sm:$0xff]
      %v268 = vld [vmem:[%s229 + $0xa8] sm:$0xff]
      %v269 = vld [vmem:[%s229 + $0xb0] sm:$0xff]
      %v270 = vld [vmem:[%s229 + $0xb8] sm:$0xff]
      %v271 = vld [vmem:[%s229 + $0xc0] sm:$0xff]
      %v272 = vld [vmem:[%s229 + $0xc8] sm:$0xff]
      %v273 = vld [vmem:[%s229 + $0xd0] sm:$0xff]
      %v274 = vld [vmem:[%s229 + $0xd8] sm:$0xff]
      %v275 = vld [vmem:[%s229 + $0xe0] sm:$0xff]
      %v276 = vld [vmem:[%s229 + $0xe8] sm:$0xff]
      %v277 = vld [vmem:[%s229 + $0xf0] sm:$0xff]
      %v278 = vld [vmem:[%s229 + $0xf8] sm:$0xff]
      %v279 = vld [vmem:[%s229 + $0x100] sm:$0xff]
      %v280 = vld [vmem:[%s229 + $0x108] sm:$0xff]
      %v281 = vld [vmem:[%s229 + $0x110] sm:$0xff]
      %v282 = vld [vmem:[%s229 + $0x118] sm:$0xff]
      %v283 = vld [vmem:[%s229 + $0x120] sm:$0xff]
      %v284 = vld [vmem:[%s229 + $0x128] sm:$0xff]
      %v285 = vld [vmem:[%s229 + $0x130] sm:$0xff]
      %v286 = vld [vmem:[%s229 + $0x138] sm:$0xff]
      %v287 = vld [vmem:[%s229 + $0x140] sm:$0xff]
      %v288 = vld [vmem:[%s229 + $0x148] sm:$0xff]
      %v289 = vld [vmem:[%s229 + $0x150] sm:$0xff]
      %v290 = vld [vmem:[%s229 + $0x158] sm:$0xff]
      %v291 = vld [vmem:[%s229 + $0x160] sm:$0xff]
      %v292 = vld [vmem:[%s229 + $0x168] sm:$0xff]
      %v293 = vld [vmem:[%s229 + $0x170] sm:$0xff]
      %v294 = vld [vmem:[%s229 + $0x178] sm:$0xff]
      %v295 = vld [vmem:[%s229 + $0x180] sm:$0xff]
      %v296 = vld [vmem:[%s229 + $0x188] sm:$0xff]
      %v297 = vld [vmem:[%s229 + $0x190] sm:$0xff]
      %v298 = vld [vmem:[%s229 + $0x198] sm:$0xff]
      %v299 = vld [vmem:[%s229 + $0x1a0] sm:$0xff]
      %v300 = vld [vmem:[%s229 + $0x1a8] sm:$0xff]
      %v301 = vld [vmem:[%s229 + $0x1b0] sm:$0xff]
      %v302 = vld [vmem:[%s229 + $0x1b8] sm:$0xff]
      %v303 = vld [vmem:[%s229 + $0x1c0] sm:$0xff]
      %v304 = vld [vmem:[%s229 + $0x1c8] sm:$0xff]
      %v305 = vld [vmem:[%s229 + $0x1d0] sm:$0xff]
      %v306 = vld [vmem:[%s229 + $0x1d8] sm:$0xff]
      %v307 = vld [vmem:[%s229 + $0x1e0] sm:$0xff]
      %v308 = vld [vmem:[%s229 + $0x1e8] sm:$0xff]
      %v309 = vld [vmem:[%s229 + $0x1f0] sm:$0xff]
      %v310 = vld [vmem:[%s229 + $0x1f8] sm:$0xff]
      %v311 = vld [vmem:[%s234] sm:$0xf]
      %v312 = vld [vmem:[%s234 + $0x4] sm:$0xf]
      %v313 = vld [vmem:[%s234 + $0x8] sm:$0xf]
      %v314 = vld [vmem:[%s234 + $0xc] sm:$0xf]
      %v315 = vld [vmem:[%s234 + $0x10] sm:$0xf]
      %v316 = vld [vmem:[%s234 + $0x14] sm:$0xf]
      %v317 = vld [vmem:[%s234 + $0x18] sm:$0xf]
      %v318 = vld [vmem:[%s234 + $0x1c] sm:$0xf]
      %v319 = vld [vmem:[%s234 + $0x20] sm:$0xf]
      %v320 = vld [vmem:[%s234 + $0x24] sm:$0xf]
      %v321 = vld [vmem:[%s234 + $0x28] sm:$0xf]
      %v322 = vld [vmem:[%s234 + $0x2c] sm:$0xf]
      %v323 = vld [vmem:[%s234 + $0x30] sm:$0xf]
      %v324 = vld [vmem:[%s234 + $0x34] sm:$0xf]
      %v325 = vld [vmem:[%s234 + $0x38] sm:$0xf]
      %v326 = vld [vmem:[%s234 + $0x3c] sm:$0xf]
      %v327 = vld [vmem:[%s234 + $0x40] sm:$0xf]
      %v328 = vld [vmem:[%s234 + $0x44] sm:$0xf]
      %v329 = vld [vmem:[%s234 + $0x48] sm:$0xf]
      %v330 = vld [vmem:[%s234 + $0x4c] sm:$0xf]
      %v331 = vld [vmem:[%s234 + $0x50] sm:$0xf]
      %v332 = vld [vmem:[%s234 + $0x54] sm:$0xf]
      %v333 = vld [vmem:[%s234 + $0x58] sm:$0xf]
      %v334 = vld [vmem:[%s234 + $0x5c] sm:$0xf]
      %v335 = vld [vmem:[%s234 + $0x60] sm:$0xf]
      %v336 = vld [vmem:[%s234 + $0x64] sm:$0xf]
      %v337 = vld [vmem:[%s234 + $0x68] sm:$0xf]
      %v338 = vld [vmem:[%s234 + $0x6c] sm:$0xf]
      %v339 = vld [vmem:[%s234 + $0x70] sm:$0xf]
      %v340 = vld [vmem:[%s234 + $0x74] sm:$0xf]
      %v341 = vld [vmem:[%s234 + $0x78] sm:$0xf]
      %v342 = vld [vmem:[%s234 + $0x7c] sm:$0xf]
      %v407 = vunpack.c.l.b16 %v247
      %v408 = vunpack.c.h.b16 %v247
      %v409 = vunpack.c.l.b16 %v248
      %v410 = vunpack.c.h.b16 %v248
      %v411 = vunpack.c.l.b16 %v249
      %v412 = vunpack.c.h.b16 %v249
      %v413 = vunpack.c.l.b16 %v250
      %v414 = vunpack.c.h.b16 %v250
      %v415 = vunpack.c.l.b16 %v251
      %v416 = vunpack.c.h.b16 %v251
      %v417 = vunpack.c.l.b16 %v252
      %v418 = vunpack.c.h.b16 %v252
      %v419 = vunpack.c.l.b16 %v253
      %v420 = vunpack.c.h.b16 %v253
      %v421 = vunpack.c.l.b16 %v254
      %v422 = vunpack.c.h.b16 %v254
      %v423 = vunpack.c.l.b16 %v255
      %v424 = vunpack.c.h.b16 %v255
      %v425 = vunpack.c.l.b16 %v256
      %v426 = vunpack.c.h.b16 %v256
      %v427 = vunpack.c.l.b16 %v257
      %v428 = vunpack.c.h.b16 %v257
      %v429 = vunpack.c.l.b16 %v258
      %v430 = vunpack.c.h.b16 %v258
      %v431 = vunpack.c.l.b16 %v259
      %v432 = vunpack.c.h.b16 %v259
      %v433 = vunpack.c.l.b16 %v260
      %v434 = vunpack.c.h.b16 %v260
      %v435 = vunpack.c.l.b16 %v261
      %v436 = vunpack.c.h.b16 %v261
      %v437 = vunpack.c.l.b16 %v262
      %v438 = vunpack.c.h.b16 %v262
      %v439 = vunpack.c.l.b16 %v263
      %v440 = vunpack.c.h.b16 %v263
      %v441 = vunpack.c.l.b16 %v264
      %v442 = vunpack.c.h.b16 %v264
      %v443 = vunpack.c.l.b16 %v265
      %v444 = vunpack.c.h.b16 %v265
      %v445 = vunpack.c.l.b16 %v266
      %v446 = vunpack.c.h.b16 %v266
      %v447 = vunpack.c.l.b16 %v267
      %v448 = vunpack.c.h.b16 %v267
      %v449 = vunpack.c.l.b16 %v268
      %v450 = vunpack.c.h.b16 %v268
      %v451 = vunpack.c.l.b16 %v269
      %v452 = vunpack.c.h.b16 %v269
      %v453 = vunpack.c.l.b16 %v270
      %v454 = vunpack.c.h.b16 %v270
      %v455 = vunpack.c.l.b16 %v271
      %v456 = vunpack.c.h.b16 %v271
      %v457 = vunpack.c.l.b16 %v272
      %v458 = vunpack.c.h.b16 %v272
      %v459 = vunpack.c.l.b16 %v273
      %v460 = vunpack.c.h.b16 %v273
      %v461 = vunpack.c.l.b16 %v274
      %v462 = vunpack.c.h.b16 %v274
      %v463 = vunpack.c.l.b16 %v275
      %v464 = vunpack.c.h.b16 %v275
      %v465 = vunpack.c.l.b16 %v276
      %v466 = vunpack.c.h.b16 %v276
      %v467 = vunpack.c.l.b16 %v277
      %v468 = vunpack.c.h.b16 %v277
      %v469 = vunpack.c.l.b16 %v278
      %v470 = vunpack.c.h.b16 %v278
      %v471 = vunpack.c.l.b16 %v279
      %v472 = vunpack.c.h.b16 %v279
      %v473 = vunpack.c.l.b16 %v280
      %v474 = vunpack.c.h.b16 %v280
      %v475 = vunpack.c.l.b16 %v281
      %v476 = vunpack.c.h.b16 %v281
      %v477 = vunpack.c.l.b16 %v282
      %v478 = vunpack.c.h.b16 %v282
      %v479 = vunpack.c.l.b16 %v283
      %v480 = vunpack.c.h.b16 %v283
      %v481 = vunpack.c.l.b16 %v284
      %v482 = vunpack.c.h.b16 %v284
      %v483 = vunpack.c.l.b16 %v285
      %v484 = vunpack.c.h.b16 %v285
      %v485 = vunpack.c.l.b16 %v286
      %v486 = vunpack.c.h.b16 %v286
      %v487 = vunpack.c.l.b16 %v287
      %v488 = vunpack.c.h.b16 %v287
      %v489 = vunpack.c.l.b16 %v288
      %v490 = vunpack.c.h.b16 %v288
      %v491 = vunpack.c.l.b16 %v289
      %v492 = vunpack.c.h.b16 %v289
      %v493 = vunpack.c.l.b16 %v290
      %v494 = vunpack.c.h.b16 %v290
      %v495 = vunpack.c.l.b16 %v291
      %v496 = vunpack.c.h.b16 %v291
      %v497 = vunpack.c.l.b16 %v292
      %v498 = vunpack.c.h.b16 %v292
      %v499 = vunpack.c.l.b16 %v293
      %v500 = vunpack.c.h.b16 %v293
      %v501 = vunpack.c.l.b16 %v294
      %v502 = vunpack.c.h.b16 %v294
      %v503 = vunpack.c.l.b16 %v295
      %v504 = vunpack.c.h.b16 %v295
      %v505 = vunpack.c.l.b16 %v296
      %v506 = vunpack.c.h.b16 %v296
      %v507 = vunpack.c.l.b16 %v297
      %v508 = vunpack.c.h.b16 %v297
      %v509 = vunpack.c.l.b16 %v298
      %v510 = vunpack.c.h.b16 %v298
      %v511 = vunpack.c.l.b16 %v299
      %v512 = vunpack.c.h.b16 %v299
      %v513 = vunpack.c.l.b16 %v300
      %v514 = vunpack.c.h.b16 %v300
      %v515 = vunpack.c.l.b16 %v301
      %v516 = vunpack.c.h.b16 %v301
      %v517 = vunpack.c.l.b16 %v302
      %v518 = vunpack.c.h.b16 %v302
      %v519 = vunpack.c.l.b16 %v303
      %v520 = vunpack.c.h.b16 %v303
      %v521 = vunpack.c.l.b16 %v304
      %v522 = vunpack.c.h.b16 %v304
      %v523 = vunpack.c.l.b16 %v305
      %v524 = vunpack.c.h.b16 %v305
      %v525 = vunpack.c.l.b16 %v306
      %v526 = vunpack.c.h.b16 %v306
      %v527 = vunpack.c.l.b16 %v307
      %v528 = vunpack.c.h.b16 %v307
      %v529 = vunpack.c.l.b16 %v308
      %v530 = vunpack.c.h.b16 %v308
      %v531 = vunpack.c.l.b16 %v309
      %v532 = vunpack.c.h.b16 %v309
      %v533 = vunpack.c.l.b16 %v310
      %v534 = vunpack.c.h.b16 %v310
      %v535 = vpack.c.b16 %v409, %v407
      %v536 = vpack.c.b16 %v410, %v408
      %v537 = vpack.c.b16 %v413, %v411
      %v538 = vpack.c.b16 %v414, %v412
      %v539 = vpack.c.b16 %v417, %v415
      %v540 = vpack.c.b16 %v418, %v416
      %v541 = vpack.c.b16 %v421, %v419
      %v542 = vpack.c.b16 %v422, %v420
      %v543 = vpack.c.b16 %v425, %v423
      %v544 = vpack.c.b16 %v426, %v424
      %v545 = vpack.c.b16 %v429, %v427
      %v546 = vpack.c.b16 %v430, %v428
      %v547 = vpack.c.b16 %v433, %v431
      %v548 = vpack.c.b16 %v434, %v432
      %v549 = vpack.c.b16 %v437, %v435
      %v550 = vpack.c.b16 %v438, %v436
      %v551 = vpack.c.b16 %v441, %v439
      %v552 = vpack.c.b16 %v442, %v440
      %v553 = vpack.c.b16 %v445, %v443
      %v554 = vpack.c.b16 %v446, %v444
      %v555 = vpack.c.b16 %v449, %v447
      %v556 = vpack.c.b16 %v450, %v448
      %v557 = vpack.c.b16 %v453, %v451
      %v558 = vpack.c.b16 %v454, %v452
      %v559 = vpack.c.b16 %v457, %v455
      %v560 = vpack.c.b16 %v458, %v456
      %v561 = vpack.c.b16 %v461, %v459
      %v562 = vpack.c.b16 %v462, %v460
      %v563 = vpack.c.b16 %v465, %v463
      %v564 = vpack.c.b16 %v466, %v464
      %v565 = vpack.c.b16 %v469, %v467
      %v566 = vpack.c.b16 %v470, %v468
      %v567 = vpack.c.b16 %v473, %v471
      %v568 = vpack.c.b16 %v474, %v472
      %v569 = vpack.c.b16 %v477, %v475
      %v570 = vpack.c.b16 %v478, %v476
      %v571 = vpack.c.b16 %v481, %v479
      %v572 = vpack.c.b16 %v482, %v480
      %v573 = vpack.c.b16 %v485, %v483
      %v574 = vpack.c.b16 %v486, %v484
      %v575 = vpack.c.b16 %v489, %v487
      %v576 = vpack.c.b16 %v490, %v488
      %v577 = vpack.c.b16 %v493, %v491
      %v578 = vpack.c.b16 %v494, %v492
      %v579 = vpack.c.b16 %v497, %v495
      %v580 = vpack.c.b16 %v498, %v496
      %v581 = vpack.c.b16 %v501, %v499
      %v582 = vpack.c.b16 %v502, %v500
      %v583 = vpack.c.b16 %v505, %v503
      %v584 = vpack.c.b16 %v506, %v504
      %v585 = vpack.c.b16 %v509, %v507
      %v586 = vpack.c.b16 %v510, %v508
      %v587 = vpack.c.b16 %v513, %v511
      %v588 = vpack.c.b16 %v514, %v512
      %v589 = vpack.c.b16 %v517, %v515
      %v590 = vpack.c.b16 %v518, %v516
      %v591 = vpack.c.b16 %v521, %v519
      %v592 = vpack.c.b16 %v522, %v520
      %v593 = vpack.c.b16 %v525, %v523
      %v594 = vpack.c.b16 %v526, %v524
      %v595 = vpack.c.b16 %v529, %v527
      %v596 = vpack.c.b16 %v530, %v528
      %v597 = vpack.c.b16 %v533, %v531
      %v598 = vpack.c.b16 %v534, %v532
      %v695 = vunpack.c.l.b16 %v311
      %v696 = vunpack.c.l.b16 %v312
      %v697 = vunpack.c.l.b16 %v313
      %v698 = vunpack.c.l.b16 %v314
      %v699 = vunpack.c.l.b16 %v315
      %v700 = vunpack.c.l.b16 %v316
      %v701 = vunpack.c.l.b16 %v317
      %v702 = vunpack.c.l.b16 %v318
      %v703 = vunpack.c.l.b16 %v319
      %v704 = vunpack.c.l.b16 %v320
      %v705 = vunpack.c.l.b16 %v321
      %v706 = vunpack.c.l.b16 %v322
      %v707 = vunpack.c.l.b16 %v323
      %v708 = vunpack.c.l.b16 %v324
      %v709 = vunpack.c.l.b16 %v325
      %v710 = vunpack.c.l.b16 %v326
      %v711 = vunpack.c.l.b16 %v327
      %v712 = vunpack.c.l.b16 %v328
      %v713 = vunpack.c.l.b16 %v329
      %v714 = vunpack.c.l.b16 %v330
      %v715 = vunpack.c.l.b16 %v331
      %v716 = vunpack.c.l.b16 %v332
      %v717 = vunpack.c.l.b16 %v333
      %v718 = vunpack.c.l.b16 %v334
      %v719 = vunpack.c.l.b16 %v335
      %v720 = vunpack.c.l.b16 %v336
      %v721 = vunpack.c.l.b16 %v337
      %v722 = vunpack.c.l.b16 %v338
      %v723 = vunpack.c.l.b16 %v339
      %v724 = vunpack.c.l.b16 %v340
      %v725 = vunpack.c.l.b16 %v341
      %v726 = vunpack.c.l.b16 %v342
      %v727 = vpack.c.b16 %v696, %v695
      %v728 = vpack.c.b16 %v698, %v697
      %v729 = vpack.c.b16 %v700, %v699
      %v730 = vpack.c.b16 %v702, %v701
      %v731 = vpack.c.b16 %v704, %v703
      %v732 = vpack.c.b16 %v706, %v705
      %v733 = vpack.c.b16 %v708, %v707
      %v734 = vpack.c.b16 %v710, %v709
      %v735 = vpack.c.b16 %v712, %v711
      %v736 = vpack.c.b16 %v714, %v713
      %v737 = vpack.c.b16 %v716, %v715
      %v738 = vpack.c.b16 %v718, %v717
      %v739 = vpack.c.b16 %v720, %v719
      %v740 = vpack.c.b16 %v722, %v721
      %v741 = vpack.c.b16 %v724, %v723
      %v742 = vpack.c.b16 %v726, %v725
      %759 = vmatprep.subr.bf16.mxu0 0
      %760 = vmatpush1.bf16.msra.mxu0 %v727
      %761 = vmatprep.subr.bf16.mxu0 0
      %762 = vmatpush1.bf16.msra.mxu0 %v728
      %763 = vmatprep.subr.bf16.mxu0 0
      %764 = vmatpush1.bf16.msra.mxu0 %v729
      %765 = vmatprep.subr.bf16.mxu0 0
      %766 = vmatpush1.bf16.msra.mxu0 %v730
      %767 = vmatprep.subr.bf16.mxu0 0
      %768 = vmatpush1.bf16.msra.mxu0 %v731
      %769 = vmatprep.subr.bf16.mxu0 0
      %770 = vmatpush1.bf16.msra.mxu0 %v732
      %771 = vmatprep.subr.bf16.mxu0 0
      %772 = vmatpush1.bf16.msra.mxu0 %v733
      %773 = vmatprep.subr.bf16.mxu0 0
      %774 = vmatpush1.bf16.msra.mxu0 %v734
      %775 = vmatprep.subr.bf16.mxu0 0
      %776 = vmatpush1.bf16.msra.mxu0 %v735
      %777 = vmatprep.subr.bf16.mxu0 0
      %778 = vmatpush1.bf16.msra.mxu0 %v736
      %779 = vmatprep.subr.bf16.mxu0 0
      %780 = vmatpush1.bf16.msra.mxu0 %v737
      %781 = vmatprep.subr.bf16.mxu0 0
      %782 = vmatpush1.bf16.msra.mxu0 %v738
      %783 = vmatprep.subr.bf16.mxu0 0
      %784 = vmatpush1.bf16.msra.mxu0 %v739
      %785 = vmatprep.subr.bf16.mxu0 0
      %786 = vmatpush1.bf16.msra.mxu0 %v740
      %787 = vmatprep.subr.bf16.mxu0 0
      %788 = vmatpush1.bf16.msra.mxu0 %v741
      %789 = vmatprep.subr.bf16.mxu0 0
      %790 = vmatpush1.bf16.msra.mxu0 %v742
      %791 = vmatprep.mubr.bf16.mxu0 %v536
      %792 = vmatmul.mubr.bf16.gmra.mrb[0].mxu0 %v535
      %v793 = vpop.f32.mrb[0].mxu0
      %v794 = vadd.f32 0.0, %v793
      %v795 = vpop.f32.mrb[0].mxu0
      %v796 = vpop.f32.mrb[0].mxu0
      %v797 = vadd.f32 0.0, %v796
      %v798 = vpop.f32.mrb[0].mxu0
      %799 = vmatprep.mubr.bf16.mxu0 %v538
      %800 = vmatmul.mubr.bf16.gmra.mrb[0].mxu0 %v537
      %v801 = vpop.f32.mrb[0].mxu0
      %v802 = vadd.f32 0.0, %v801
      %v803 = vpop.f32.mrb[0].mxu0
      %v804 = vpop.f32.mrb[0].mxu0
      %v805 = vadd.f32 0.0, %v804
      %v806 = vpop.f32.mrb[0].mxu0
      %807 = vmatprep.mubr.bf16.mxu0 %v540
      %808 = vmatmul.mubr.bf16.gmra.mrb[0].mxu0 %v539
      %v809 = vpop.f32.mrb[0].mxu0
      %v810 = vadd.f32 0.0, %v809
      %v811 = vpop.f32.mrb[0].mxu0
      %v812 = vpop.f32.mrb[0].mxu0
      %v813 = vadd.f32 0.0, %v812
      %v814 = vpop.f32.mrb[0].mxu0
      %815 = vmatprep.mubr.bf16.mxu0 %v542
      %816 = vmatmul.mubr.bf16.gmra.mrb[0].mxu0 %v541
      %v817 = vpop.f32.mrb[0].mxu0
      %v818 = vadd.f32 0.0, %v817
      %v819 = vpop.f32.mrb[0].mxu0
      %v820 = vpop.f32.mrb[0].mxu0
      %v821 = vadd.f32 0.0, %v820
      %v822 = vpop.f32.mrb[0].mxu0
      %823 = vmatprep.mubr.bf16.mxu0 %v544
      %824 = vmatmul.mubr.bf16.gmra.mrb[0].mxu0 %v543
      %v825 = vpop.f32.mrb[0].mxu0
      %v826 = vadd.f32 0.0, %v825
      %v827 = vpop.f32.mrb[0].mxu0
      %v828 = vpop.f32.mrb[0].mxu0
      %v829 = vadd.f32 0.0, %v828
      %v830 = vpop.f32.mrb[0].mxu0
      %831 = vmatprep.mubr.bf16.mxu0 %v546
      %832 = vmatmul.mubr.bf16.gmra.mrb[0].mxu0 %v545
      %v833 = vpop.f32.mrb[0].mxu0
      %v834 = vadd.f32 0.0, %v833
      %v835 = vpop.f32.mrb[0].mxu0
      %v836 = vpop.f32.mrb[0].mxu0
      %v837 = vadd.f32 0.0, %v836
      %v838 = vpop.f32.mrb[0].mxu0
      %839 = vmatprep.mubr.bf16.mxu0 %v548
      %840 = vmatmul.mubr.bf16.gmra.mrb[0].mxu0 %v547
      %v841 = vpop.f32.mrb[0].mxu0
      %v842 = vadd.f32 0.0, %v841
      %v843 = vpop.f32.mrb[0].mxu0
      %v844 = vpop.f32.mrb[0].mxu0
      %v845 = vadd.f32 0.0, %v844
      %v846 = vpop.f32.mrb[0].mxu0
      %847 = vmatprep.mubr.bf16.mxu0 %v550
      %848 = vmatmul.mubr.bf16.gmra.mrb[0].mxu0 %v549
      %v849 = vpop.f32.mrb[0].mxu0
      %v850 = vadd.f32 0.0, %v849
      %v851 = vpop.f32.mrb[0].mxu0
      %v852 = vpop.f32.mrb[0].mxu0
      %v853 = vadd.f32 0.0, %v852
      %v854 = vpop.f32.mrb[0].mxu0
      %855 = vmatprep.mubr.bf16.mxu0 %v552
      %856 = vmatmul.mubr.bf16.gmra.mrb[0].mxu0 %v551
      %v857 = vpop.f32.mrb[0].mxu0
      %v858 = vadd.f32 0.0, %v857
      %v859 = vpop.f32.mrb[0].mxu0
      %v860 = vpop.f32.mrb[0].mxu0
      %v861 = vadd.f32 0.0, %v860
      %v862 = vpop.f32.mrb[0].mxu0
      %863 = vmatprep.mubr.bf16.mxu0 %v554
      %864 = vmatmul.mubr.bf16.gmra.mrb[0].mxu0 %v553
      %v865 = vpop.f32.mrb[0].mxu0
      %v866 = vadd.f32 0.0, %v865
      %v867 = vpop.f32.mrb[0].mxu0
      %v868 = vpop.f32.mrb[0].mxu0
      %v869 = vadd.f32 0.0, %v868
      %v870 = vpop.f32.mrb[0].mxu0
      %871 = vmatprep.mubr.bf16.mxu0 %v556
      %872 = vmatmul.mubr.bf16.gmra.mrb[0].mxu0 %v555
      %v873 = vpop.f32.mrb[0].mxu0
      %v874 = vadd.f32 0.0, %v873
      %v875 = vpop.f32.mrb[0].mxu0
      %v876 = vpop.f32.mrb[0].mxu0
      %v877 = vadd.f32 0.0, %v876
      %v878 = vpop.f32.mrb[0].mxu0
      %879 = vmatprep.mubr.bf16.mxu0 %v558
      %880 = vmatmul.mubr.bf16.gmra.mrb[0].mxu0 %v557
      %v881 = vpop.f32.mrb[0].mxu0
      %v882 = vadd.f32 0.0, %v881
      %v883 = vpop.f32.mrb[0].mxu0
      %v884 = vpop.f32.mrb[0].mxu0
      %v885 = vadd.f32 0.0, %v884
      %v886 = vpop.f32.mrb[0].mxu0
      %887 = vmatprep.mubr.bf16.mxu0 %v560
      %888 = vmatmul.mubr.bf16.gmra.mrb[0].mxu0 %v559
      %v889 = vpop.f32.mrb[0].mxu0
      %v890 = vadd.f32 0.0, %v889
      %v891 = vpop.f32.mrb[0].mxu0
      %v892 = vpop.f32.mrb[0].mxu0
      %v893 = vadd.f32 0.0, %v892
      %v894 = vpop.f32.mrb[0].mxu0
      %895 = vmatprep.mubr.bf16.mxu0 %v562
      %896 = vmatmul.mubr.bf16.gmra.mrb[0].mxu0 %v561
      %v897 = vpop.f32.mrb[0].mxu0
      %v898 = vadd.f32 0.0, %v897
      %v899 = vpop.f32.mrb[0].mxu0
      %v900 = vpop.f32.mrb[0].mxu0
      %v901 = vadd.f32 0.0, %v900
      %v902 = vpop.f32.mrb[0].mxu0
      %903 = vmatprep.mubr.bf16.mxu0 %v564
      %904 = vmatmul.mubr.bf16.gmra.mrb[0].mxu0 %v563
      %v905 = vpop.f32.mrb[0].mxu0
      %v906 = vadd.f32 0.0, %v905
      %v907 = vpop.f32.mrb[0].mxu0
      %v908 = vpop.f32.mrb[0].mxu0
      %v909 = vadd.f32 0.0, %v908
      %v910 = vpop.f32.mrb[0].mxu0
      %911 = vmatprep.mubr.bf16.mxu0 %v566
      %912 = vmatmul.mubr.bf16.gmra.mrb[0].mxu0 %v565
      %v913 = vpop.f32.mrb[0].mxu0
      %v914 = vadd.f32 0.0, %v913
      %v915 = vpop.f32.mrb[0].mxu0
      %v916 = vpop.f32.mrb[0].mxu0
      %v917 = vadd.f32 0.0, %v916
      %v918 = vpop.f32.mrb[0].mxu0
      %919 = vmatprep.mubr.bf16.mxu0 %v568
      %920 = vmatmul.mubr.bf16.gmra.mrb[0].mxu0 %v567
      %v921 = vpop.f32.mrb[0].mxu0
      %v922 = vadd.f32 0.0, %v921
      %v923 = vpop.f32.mrb[0].mxu0
      %v924 = vpop.f32.mrb[0].mxu0
      %v925 = vadd.f32 0.0, %v924
      %v926 = vpop.f32.mrb[0].mxu0
      %927 = vmatprep.mubr.bf16.mxu0 %v570
      %928 = vmatmul.mubr.bf16.gmra.mrb[0].mxu0 %v569
      %v929 = vpop.f32.mrb[0].mxu0
      %v930 = vadd.f32 0.0, %v929
      %v931 = vpop.f32.mrb[0].mxu0
      %v932 = vpop.f32.mrb[0].mxu0
      %v933 = vadd.f32 0.0, %v932
      %v934 = vpop.f32.mrb[0].mxu0
      %935 = vmatprep.mubr.bf16.mxu0 %v572
      %936 = vmatmul.mubr.bf16.gmra.mrb[0].mxu0 %v571
      %v937 = vpop.f32.mrb[0].mxu0
      %v938 = vadd.f32 0.0, %v937
      %v939 = vpop.f32.mrb[0].mxu0
      %v940 = vpop.f32.mrb[0].mxu0
      %v941 = vadd.f32 0.0, %v940
      %v942 = vpop.f32.mrb[0].mxu0
      %943 = vmatprep.mubr.bf16.mxu0 %v574
      %944 = vmatmul.mubr.bf16.gmra.mrb[0].mxu0 %v573
      %v945 = vpop.f32.mrb[0].mxu0
      %v946 = vadd.f32 0.0, %v945
      %v947 = vpop.f32.mrb[0].mxu0
      %v948 = vpop.f32.mrb[0].mxu0
      %v949 = vadd.f32 0.0, %v948
      %v950 = vpop.f32.mrb[0].mxu0
      %951 = vmatprep.mubr.bf16.mxu0 %v576
      %952 = vmatmul.mubr.bf16.gmra.mrb[0].mxu0 %v575
      %v953 = vpop.f32.mrb[0].mxu0
      %v954 = vadd.f32 0.0, %v953
      %v955 = vpop.f32.mrb[0].mxu0
      %v956 = vpop.f32.mrb[0].mxu0
      %v957 = vadd.f32 0.0, %v956
      %v958 = vpop.f32.mrb[0].mxu0
      %959 = vmatprep.mubr.bf16.mxu0 %v578
      %960 = vmatmul.mubr.bf16.gmra.mrb[0].mxu0 %v577
      %v961 = vpop.f32.mrb[0].mxu0
      %v962 = vadd.f32 0.0, %v961
      %v963 = vpop.f32.mrb[0].mxu0
      %v964 = vpop.f32.mrb[0].mxu0
      %v965 = vadd.f32 0.0, %v964
      %v966 = vpop.f32.mrb[0].mxu0
      %967 = vmatprep.mubr.bf16.mxu0 %v580
      %968 = vmatmul.mubr.bf16.gmra.mrb[0].mxu0 %v579
      %v969 = vpop.f32.mrb[0].mxu0
      %v970 = vadd.f32 0.0, %v969
      %v971 = vpop.f32.mrb[0].mxu0
      %v972 = vpop.f32.mrb[0].mxu0
      %v973 = vadd.f32 0.0, %v972
      %v974 = vpop.f32.mrb[0].mxu0
      %975 = vmatprep.mubr.bf16.mxu0 %v582
      %976 = vmatmul.mubr.bf16.gmra.mrb[0].mxu0 %v581
      %v977 = vpop.f32.mrb[0].mxu0
      %v978 = vadd.f32 0.0, %v977
      %v979 = vpop.f32.mrb[0].mxu0
      %v980 = vpop.f32.mrb[0].mxu0
      %v981 = vadd.f32 0.0, %v980
      %v982 = vpop.f32.mrb[0].mxu0
      %983 = vmatprep.mubr.bf16.mxu0 %v584
      %984 = vmatmul.mubr.bf16.gmra.mrb[0].mxu0 %v583
      %v985 = vpop.f32.mrb[0].mxu0
      %v986 = vadd.f32 0.0, %v985
      %v987 = vpop.f32.mrb[0].mxu0
      %v988 = vpop.f32.mrb[0].mxu0
      %v989 = vadd.f32 0.0, %v988
      %v990 = vpop.f32.mrb[0].mxu0
      %991 = vmatprep.mubr.bf16.mxu0 %v586
      %992 = vmatmul.mubr.bf16.gmra.mrb[0].mxu0 %v585
      %v993 = vpop.f32.mrb[0].mxu0
      %v994 = vadd.f32 0.0, %v993
      %v995 = vpop.f32.mrb[0].mxu0
      %v996 = vpop.f32.mrb[0].mxu0
      %v997 = vadd.f32 0.0, %v996
      %v998 = vpop.f32.mrb[0].mxu0
      %999 = vmatprep.mubr.bf16.mxu0 %v588
      %1000 = vmatmul.mubr.bf16.gmra.mrb[0].mxu0 %v587
      %v1001 = vpop.f32.mrb[0].mxu0
      %v1002 = vadd.f32 0.0, %v1001
      %v1003 = vpop.f32.mrb[0].mxu0
      %v1004 = vpop.f32.mrb[0].mxu0
      %v1005 = vadd.f32 0.0, %v1004
      %v1006 = vpop.f32.mrb[0].mxu0
      %1007 = vmatprep.mubr.bf16.mxu0 %v590
      %1008 = vmatmul.mubr.bf16.gmra.mrb[0].mxu0 %v589
      %v1009 = vpop.f32.mrb[0].mxu0
      %v1010 = vadd.f32 0.0, %v1009
      %v1011 = vpop.f32.mrb[0].mxu0
      %v1012 = vpop.f32.mrb[0].mxu0
      %v1013 = vadd.f32 0.0, %v1012
      %v1014 = vpop.f32.mrb[0].mxu0
      %1015 = vmatprep.mubr.bf16.mxu0 %v592
      %1016 = vmatmul.mubr.bf16.gmra.mrb[0].mxu0 %v591
      %v1017 = vpop.f32.mrb[0].mxu0
      %v1018 = vadd.f32 0.0, %v1017
      %v1019 = vpop.f32.mrb[0].mxu0
      %v1020 = vpop.f32.mrb[0].mxu0
      %v1021 = vadd.f32 0.0, %v1020
      %v1022 = vpop.f32.mrb[0].mxu0
      %1023 = vmatprep.mubr.bf16.mxu0 %v594
      %1024 = vmatmul.mubr.bf16.gmra.mrb[0].mxu0 %v593
      %v1025 = vpop.f32.mrb[0].mxu0
      %v1026 = vadd.f32 0.0, %v1025
      %v1027 = vpop.f32.mrb[0].mxu0
      %v1028 = vpop.f32.mrb[0].mxu0
      %v1029 = vadd.f32 0.0, %v1028
      %v1030 = vpop.f32.mrb[0].mxu0
      %1031 = vmatprep.mubr.bf16.mxu0 %v596
      %1032 = vmatmul.mubr.bf16.gmra.mrb[0].mxu0 %v595
      %v1033 = vpop.f32.mrb[0].mxu0
      %v1034 = vadd.f32 0.0, %v1033
      %v1035 = vpop.f32.mrb[0].mxu0
      %v1036 = vpop.f32.mrb[0].mxu0
      %v1037 = vadd.f32 0.0, %v1036
      %v1038 = vpop.f32.mrb[0].mxu0
      %1039 = vmatprep.mubr.bf16.mxu0 %v598
      %1040 = vmatmul.mubr.bf16.gmra.mrb[0].mxu0 %v597
      %v1041 = vpop.f32.mrb[0].mxu0
      %v1042 = vadd.f32 0.0, %v1041
      %v1043 = vpop.f32.mrb[0].mxu0
      %v1044 = vpop.f32.mrb[0].mxu0
      %v1045 = vadd.f32 0.0, %v1044
      %v1046 = vpop.f32.mrb[0].mxu0
      %1047 = vdwg.mxu0
      %v1048 = vld [vmem:[%s237] sm:$0x1]
      %v1050 = vlaneseq
      %v1051 = vshrl.u32 %v1050, 7
      %v1052 = vsub.s32 0, %v1051
      %v1053 = vrot.slane %v1048, %v1052
      %v1055 = vmul.f32 %v794, %v1053
      %v1056 = vmul.f32 %v797, %v1053
      %v1057 = vmul.f32 %v802, %v1053
      %v1058 = vmul.f32 %v805, %v1053
      %v1059 = vmul.f32 %v810, %v1053
      %v1060 = vmul.f32 %v813, %v1053
      %v1061 = vmul.f32 %v818, %v1053
      %v1062 = vmul.f32 %v821, %v1053
      %v1063 = vmul.f32 %v826, %v1053
      %v1064 = vmul.f32 %v829, %v1053
      %v1065 = vmul.f32 %v834, %v1053
      %v1066 = vmul.f32 %v837, %v1053
      %v1067 = vmul.f32 %v842, %v1053
      %v1068 = vmul.f32 %v845, %v1053
      %v1069 = vmul.f32 %v850, %v1053
      %v1070 = vmul.f32 %v853, %v1053
      %v1071 = vmul.f32 %v858, %v1053
      %v1072 = vmul.f32 %v861, %v1053
      %v1073 = vmul.f32 %v866, %v1053
      %v1074 = vmul.f32 %v869, %v1053
      %v1075 = vmul.f32 %v874, %v1053
      %v1076 = vmul.f32 %v877, %v1053
      %v1077 = vmul.f32 %v882, %v1053
      %v1078 = vmul.f32 %v885, %v1053
      %v1079 = vmul.f32 %v890, %v1053
      %v1080 = vmul.f32 %v893, %v1053
      %v1081 = vmul.f32 %v898, %v1053
      %v1082 = vmul.f32 %v901, %v1053
      %v1083 = vmul.f32 %v906, %v1053
      %v1084 = vmul.f32 %v909, %v1053
      %v1085 = vmul.f32 %v914, %v1053
      %v1086 = vmul.f32 %v917, %v1053
      %v1087 = vmul.f32 %v922, %v1053
      %v1088 = vmul.f32 %v925, %v1053
      %v1089 = vmul.f32 %v930, %v1053
      %v1090 = vmul.f32 %v933, %v1053
      %v1091 = vmul.f32 %v938, %v1053
      %v1092 = vmul.f32 %v941, %v1053
      %v1093 = vmul.f32 %v946, %v1053
      %v1094 = vmul.f32 %v949, %v1053
      %v1095 = vmul.f32 %v954, %v1053
      %v1096 = vmul.f32 %v957, %v1053
      %v1097 = vmul.f32 %v962, %v1053
      %v1098 = vmul.f32 %v965, %v1053
      %v1099 = vmul.f32 %v970, %v1053
      %v1100 = vmul.f32 %v973, %v1053
      %v1101 = vmul.f32 %v978, %v1053
      %v1102 = vmul.f32 %v981, %v1053
      %v1103 = vmul.f32 %v986, %v1053
      %v1104 = vmul.f32 %v989, %v1053
      %v1105 = vmul.f32 %v994, %v1053
      %v1106 = vmul.f32 %v997, %v1053
      %v1107 = vmul.f32 %v1002, %v1053
      %v1108 = vmul.f32 %v1005, %v1053
      %v1109 = vmul.f32 %v1010, %v1053
      %v1110 = vmul.f32 %v1013, %v1053
      %v1111 = vmul.f32 %v1018, %v1053
      %v1112 = vmul.f32 %v1021, %v1053
      %v1113 = vmul.f32 %v1026, %v1053
      %v1114 = vmul.f32 %v1029, %v1053
      %v1115 = vmul.f32 %v1034, %v1053
      %v1116 = vmul.f32 %v1037, %v1053
      %v1117 = vmul.f32 %v1042, %v1053
      %v1118 = vmul.f32 %v1045, %v1053
      %v1119 = vld [vmem:[%s240] sm:$0x1]
      %v1121 = vlaneseq
      %v1122 = vshrl.u32 %v1121, 7
      %v1123 = vsub.s32 0, %v1122
      %v1124 = vrot.slane %v1119, %v1123
      %v1126 = vadd.f32 %v1055, %v1124
      %v1127 = vadd.f32 %v1056, %v1124
      %v1128 = vadd.f32 %v1057, %v1124
      %v1129 = vadd.f32 %v1058, %v1124
      %v1130 = vadd.f32 %v1059, %v1124
      %v1131 = vadd.f32 %v1060, %v1124
      %v1132 = vadd.f32 %v1061, %v1124
      %v1133 = vadd.f32 %v1062, %v1124
      %v1134 = vadd.f32 %v1063, %v1124
      %v1135 = vadd.f32 %v1064, %v1124
      %v1136 = vadd.f32 %v1065, %v1124
      %v1137 = vadd.f32 %v1066, %v1124
      %v1138 = vadd.f32 %v1067, %v1124
      %v1139 = vadd.f32 %v1068, %v1124
      %v1140 = vadd.f32 %v1069, %v1124
      %v1141 = vadd.f32 %v1070, %v1124
      %v1142 = vadd.f32 %v1071, %v1124
      %v1143 = vadd.f32 %v1072, %v1124
      %v1144 = vadd.f32 %v1073, %v1124
      %v1145 = vadd.f32 %v1074, %v1124
      %v1146 = vadd.f32 %v1075, %v1124
      %v1147 = vadd.f32 %v1076, %v1124
      %v1148 = vadd.f32 %v1077, %v1124
      %v1149 = vadd.f32 %v1078, %v1124
      %v1150 = vadd.f32 %v1079, %v1124
      %v1151 = vadd.f32 %v1080, %v1124
      %v1152 = vadd.f32 %v1081, %v1124
      %v1153 = vadd.f32 %v1082, %v1124
      %v1154 = vadd.f32 %v1083, %v1124
      %v1155 = vadd.f32 %v1084, %v1124
      %v1156 = vadd.f32 %v1085, %v1124
      %v1157 = vadd.f32 %v1086, %v1124
      %v1158 = vadd.f32 %v1087, %v1124
      %v1159 = vadd.f32 %v1088, %v1124
      %v1160 = vadd.f32 %v1089, %v1124
      %v1161 = vadd.f32 %v1090, %v1124
      %v1162 = vadd.f32 %v1091, %v1124
      %v1163 = vadd.f32 %v1092, %v1124
      %v1164 = vadd.f32 %v1093, %v1124
      %v1165 = vadd.f32 %v1094, %v1124
      %v1166 = vadd.f32 %v1095, %v1124
      %v1167 = vadd.f32 %v1096, %v1124
      %v1168 = vadd.f32 %v1097, %v1124
      %v1169 = vadd.f32 %v1098, %v1124
      %v1170 = vadd.f32 %v1099, %v1124
      %v1171 = vadd.f32 %v1100, %v1124
      %v1172 = vadd.f32 %v1101, %v1124
      %v1173 = vadd.f32 %v1102, %v1124
      %v1174 = vadd.f32 %v1103, %v1124
      %v1175 = vadd.f32 %v1104, %v1124
      %v1176 = vadd.f32 %v1105, %v1124
      %v1177 = vadd.f32 %v1106, %v1124
      %v1178 = vadd.f32 %v1107, %v1124
      %v1179 = vadd.f32 %v1108, %v1124
      %v1180 = vadd.f32 %v1109, %v1124
      %v1181 = vadd.f32 %v1110, %v1124
      %v1182 = vadd.f32 %v1111, %v1124
      %v1183 = vadd.f32 %v1112, %v1124
      %v1184 = vadd.f32 %v1113, %v1124
      %v1185 = vadd.f32 %v1114, %v1124
      %v1186 = vadd.f32 %v1115, %v1124
      %v1187 = vadd.f32 %v1116, %v1124
      %v1188 = vadd.f32 %v1117, %v1124
      %v1189 = vadd.f32 %v1118, %v1124
      %v1190 = vmax.f32 %v1126, 0.0
      %v1191 = vmax.f32 %v1127, 0.0
      %v1192 = vmax.f32 %v1128, 0.0
      %v1193 = vmax.f32 %v1129, 0.0
      %v1194 = vmax.f32 %v1130, 0.0
      %v1195 = vmax.f32 %v1131, 0.0
      %v1196 = vmax.f32 %v1132, 0.0
      %v1197 = vmax.f32 %v1133, 0.0
      %v1198 = vmax.f32 %v1134, 0.0
      %v1199 = vmax.f32 %v1135, 0.0
      %v1200 = vmax.f32 %v1136, 0.0
      %v1201 = vmax.f32 %v1137, 0.0
      %v1202 = vmax.f32 %v1138, 0.0
      %v1203 = vmax.f32 %v1139, 0.0
      %v1204 = vmax.f32 %v1140, 0.0
      %v1205 = vmax.f32 %v1141, 0.0
      %v1206 = vmax.f32 %v1142, 0.0
      %v1207 = vmax.f32 %v1143, 0.0
      %v1208 = vmax.f32 %v1144, 0.0
      %v1209 = vmax.f32 %v1145, 0.0
      %v1210 = vmax.f32 %v1146, 0.0
      %v1211 = vmax.f32 %v1147, 0.0
      %v1212 = vmax.f32 %v1148, 0.0
      %v1213 = vmax.f32 %v1149, 0.0
      %v1214 = vmax.f32 %v1150, 0.0
      %v1215 = vmax.f32 %v1151, 0.0
      %v1216 = vmax.f32 %v1152, 0.0
      %v1217 = vmax.f32 %v1153, 0.0
      %v1218 = vmax.f32 %v1154, 0.0
      %v1219 = vmax.f32 %v1155, 0.0
      %v1220 = vmax.f32 %v1156, 0.0
      %v1221 = vmax.f32 %v1157, 0.0
      %v1222 = vmax.f32 %v1158, 0.0
      %v1223 = vmax.f32 %v1159, 0.0
      %v1224 = vmax.f32 %v1160, 0.0
      %v1225 = vmax.f32 %v1161, 0.0
      %v1226 = vmax.f32 %v1162, 0.0
      %v1227 = vmax.f32 %v1163, 0.0
      %v1228 = vmax.f32 %v1164, 0.0
      %v1229 = vmax.f32 %v1165, 0.0
      %v1230 = vmax.f32 %v1166, 0.0
      %v1231 = vmax.f32 %v1167, 0.0
      %v1232 = vmax.f32 %v1168, 0.0
      %v1233 = vmax.f32 %v1169, 0.0
      %v1234 = vmax.f32 %v1170, 0.0
      %v1235 = vmax.f32 %v1171, 0.0
      %v1236 = vmax.f32 %v1172, 0.0
      %v1237 = vmax.f32 %v1173, 0.0
      %v1238 = vmax.f32 %v1174, 0.0
      %v1239 = vmax.f32 %v1175, 0.0
      %v1240 = vmax.f32 %v1176, 0.0
      %v1241 = vmax.f32 %v1177, 0.0
      %v1242 = vmax.f32 %v1178, 0.0
      %v1243 = vmax.f32 %v1179, 0.0
      %v1244 = vmax.f32 %v1180, 0.0
      %v1245 = vmax.f32 %v1181, 0.0
      %v1246 = vmax.f32 %v1182, 0.0
      %v1247 = vmax.f32 %v1183, 0.0
      %v1248 = vmax.f32 %v1184, 0.0
      %v1249 = vmax.f32 %v1185, 0.0
      %v1250 = vmax.f32 %v1186, 0.0
      %v1251 = vmax.f32 %v1187, 0.0
      %v1252 = vmax.f32 %v1188, 0.0
      %v1253 = vmax.f32 %v1189, 0.0
      %v1254 = vmax.f32 %v1190, %v1191
      %v1255 = vmax.f32 %v1254, %v1198
      %v1256 = vmax.f32 %v1255, %v1199
      %v1257 = vpack.c.bf16 %v1256, %v1256
      %1258 = vst [vmem:[%s245] sm:$0xf] %v1257
      %v1259 = vmax.f32 %v1191, %v1192
      %v1260 = vmax.f32 %v1259, %v1193
      %v1261 = vmax.f32 %v1260, %v1199
      %v1262 = vmax.f32 %v1261, %v1200
      %v1263 = vmax.f32 %v1262, %v1201
      %v1264 = vpack.c.bf16 %v1263, %v1263
      %s1265 = scalar_lea.vmem %s245, 4
      %1266 = vst [vmem:[%s1265] sm:$0xf] %v1264
      %v1267 = vmax.f32 %v1193, %v1194
      %v1268 = vmax.f32 %v1267, %v1195
      %v1269 = vmax.f32 %v1268, %v1201
      %v1270 = vmax.f32 %v1269, %v1202
      %v1271 = vmax.f32 %v1270, %v1203
      %v1272 = vpack.c.bf16 %v1271, %v1271
      %s1273 = scalar_lea.vmem %s245, 8
      %1274 = vst [vmem:[%s1273] sm:$0xf] %v1272
      %v1275 = vmax.f32 %v1195, %v1196
      %v1276 = vmax.f32 %v1275, %v1197
      %v1277 = vmax.f32 %v1276, %v1203
      %v1278 = vmax.f32 %v1277, %v1204
      %v1279 = vmax.f32 %v1278, %v1205
      %v1280 = vpack.c.bf16 %v1279, %v1279
      %s1281 = scalar_lea.vmem %s245, 12
      %1282 = vst [vmem:[%s1281] sm:$0xf] %v1280
      %v1283 = vmax.f32 %v1198, %v1199
      %v1284 = vmax.f32 %v1283, %v1206
      %v1285 = vmax.f32 %v1284, %v1207
      %v1286 = vmax.f32 %v1285, %v1214
      %v1287 = vmax.f32 %v1286, %v1215
      %v1288 = vpack.c.bf16 %v1287, %v1287
      %s1289 = scalar_lea.vmem %s245, 16
      %1290 = vst [vmem:[%s1289] sm:$0xf] %v1288
      %v1291 = vmax.f32 %v1199, %v1200
      %v1292 = vmax.f32 %v1291, %v1201
      %v1293 = vmax.f32 %v1292, %v1207
      %v1294 = vmax.f32 %v1293, %v1208
      %v1295 = vmax.f32 %v1294, %v1209
      %v1296 = vmax.f32 %v1295, %v1215
      %v1297 = vmax.f32 %v1296, %v1216
      %v1298 = vmax.f32 %v1297, %v1217
      %v1299 = vpack.c.bf16 %v1298, %v1298
      %s1300 = scalar_lea.vmem %s245, 20
      %1301 = vst [vmem:[%s1300] sm:$0xf] %v1299
      %v1302 = vmax.f32 %v1201, %v1202
      %v1303 = vmax.f32 %v1302, %v1203
      %v1304 = vmax.f32 %v1303, %v1209
      %v1305 = vmax.f32 %v1304, %v1210
      %v1306 = vmax.f32 %v1305, %v1211
      %v1307 = vmax.f32 %v1306, %v1217
      %v1308 = vmax.f32 %v1307, %v1218
      %v1309 = vmax.f32 %v1308, %v1219
      %v1310 = vpack.c.bf16 %v1309, %v1309
      %s1311 = scalar_lea.vmem %s245, 24
      %1312 = vst [vmem:[%s1311] sm:$0xf] %v1310
      %v1313 = vmax.f32 %v1203, %v1204
      %v1314 = vmax.f32 %v1313, %v1205
      %v1315 = vmax.f32 %v1314, %v1211
      %v1316 = vmax.f32 %v1315, %v1212
      %v1317 = vmax.f32 %v1316, %v1213
      %v1318 = vmax.f32 %v1317, %v1219
      %v1319 = vmax.f32 %v1318, %v1220
      %v1320 = vmax.f32 %v1319, %v1221
      %v1321 = vpack.c.bf16 %v1320, %v1320
      %s1322 = scalar_lea.vmem %s245, 28
      %1323 = vst [vmem:[%s1322] sm:$0xf] %v1321
      %v1324 = vmax.f32 %v1214, %v1215
      %v1325 = vmax.f32 %v1324, %v1222
      %v1326 = vmax.f32 %v1325, %v1223
      %v1327 = vmax.f32 %v1326, %v1230
      %v1328 = vmax.f32 %v1327, %v1231
      %v1329 = vpack.c.bf16 %v1328, %v1328
      %s1330 = scalar_lea.vmem %s245, 32
      %1331 = vst [vmem:[%s1330] sm:$0xf] %v1329
      %v1332 = vmax.f32 %v1215, %v1216
      %v1333 = vmax.f32 %v1332, %v1217
      %v1334 = vmax.f32 %v1333, %v1223
      %v1335 = vmax.f32 %v1334, %v1224
      %v1336 = vmax.f32 %v1335, %v1225
      %v1337 = vmax.f32 %v1336, %v1231
      %v1338 = vmax.f32 %v1337, %v1232
      %v1339 = vmax.f32 %v1338, %v1233
      %v1340 = vpack.c.bf16 %v1339, %v1339
      %s1341 = scalar_lea.vmem %s245, 36
      %1342 = vst [vmem:[%s1341] sm:$0xf] %v1340
      %v1343 = vmax.f32 %v1217, %v1218
      %v1344 = vmax.f32 %v1343, %v1219
      %v1345 = vmax.f32 %v1344, %v1225
      %v1346 = vmax.f32 %v1345, %v1226
      %v1347 = vmax.f32 %v1346, %v1227
      %v1348 = vmax.f32 %v1347, %v1233
      %v1349 = vmax.f32 %v1348, %v1234
      %v1350 = vmax.f32 %v1349, %v1235
      %v1351 = vpack.c.bf16 %v1350, %v1350
      %s1352 = scalar_lea.vmem %s245, 40
      %1353 = vst [vmem:[%s1352] sm:$0xf] %v1351
      %v1354 = vmax.f32 %v1219, %v1220
      %v1355 = vmax.f32 %v1354, %v1221
      %v1356 = vmax.f32 %v1355, %v1227
      %v1357 = vmax.f32 %v1356, %v1228
      %v1358 = vmax.f32 %v1357, %v1229
      %v1359 = vmax.f32 %v1358, %v1235
      %v1360 = vmax.f32 %v1359, %v1236
      %v1361 = vmax.f32 %v1360, %v1237
      %v1362 = vpack.c.bf16 %v1361, %v1361
      %s1363 = scalar_lea.vmem %s245, 44
      %1364 = vst [vmem:[%s1363] sm:$0xf] %v1362
      %v1365 = vmax.f32 %v1230, %v1231
      %v1366 = vmax.f32 %v1365, %v1238
      %v1367 = vmax.f32 %v1366, %v1239
      %v1368 = vmax.f32 %v1367, %v1246
      %v1369 = vmax.f32 %v1368, %v1247
      %v1370 = vpack.c.bf16 %v1369, %v1369
      %s1371 = scalar_lea.vmem %s245, 48
      %1372 = vst [vmem:[%s1371] sm:$0xf] %v1370
      %v1373 = vmax.f32 %v1231, %v1232
      %v1374 = vmax.f32 %v1373, %v1233
      %v1375 = vmax.f32 %v1374, %v1239
      %v1376 = vmax.f32 %v1375, %v1240
      %v1377 = vmax.f32 %v1376, %v1241
      %v1378 = vmax.f32 %v1377, %v1247
      %v1379 = vmax.f32 %v1378, %v1248
      %v1380 = vmax.f32 %v1379, %v1249
      %v1381 = vpack.c.bf16 %v1380, %v1380
      %s1382 = scalar_lea.vmem %s245, 52
      %1383 = vst [vmem:[%s1382] sm:$0xf] %v1381
      %v1384 = vmax.f32 %v1233, %v1234
      %v1385 = vmax.f32 %v1384, %v1235
      %v1386 = vmax.f32 %v1385, %v1241
      %v1387 = vmax.f32 %v1386, %v1242
      %v1388 = vmax.f32 %v1387, %v1243
      %v1389 = vmax.f32 %v1388, %v1249
      %v1390 = vmax.f32 %v1389, %v1250
      %v1391 = vmax.f32 %v1390, %v1251
      %v1392 = vpack.c.bf16 %v1391, %v1391
      %s1393 = scalar_lea.vmem %s245, 56
      %1394 = vst [vmem:[%s1393] sm:$0xf] %v1392
      %v1395 = vmax.f32 %v1235, %v1236
      %v1396 = vmax.f32 %v1395, %v1237
      %v1397 = vmax.f32 %v1396, %v1243
      %v1398 = vmax.f32 %v1397, %v1244
      %v1399 = vmax.f32 %v1398, %v1245
      %v1400 = vmax.f32 %v1399, %v1251
      %v1401 = vmax.f32 %v1400, %v1252
      %v1402 = vmax.f32 %v1401, %v1253
      %v1403 = vpack.c.bf16 %v1402, %v1402
      %s1404 = scalar_lea.vmem %s245, 60
      %1405 = vst [vmem:[%s1404] sm:$0xf] %v1403
      %p1406 = scmp.lt.s32.totalorder %s15, 1
      %s1407 = scalar_select %p1406, %s15, 1
      %s1408 = smul.addr %s1407, 16
      %s1409 = smul.addr %s1408, 4
      %s1410 = scalar_lea.vmem %s4, %s1409
      // Predicated region
      $region37: #{resnet3d_slowonly_2s_flc3_forward.2} parent=35 // pred_check
        %p1411 = pneg %p137
      $region38: #{resnet3d_slowonly_2s_flc3_forward.2} parent=35 // pred_check_branch
        %1413 = sbr.rel (%p1411) target = $region40
      $region39: #{resnet3d_slowonly_2s_flc3_forward.2} parent=35 // pred_region
        _
      $region40: #{resnet3d_slowonly_2s_flc3_forward.2} parent=35 // pred_fallthru
        _
    $region36: #{resnet3d_slowonly_2s_flc3_forward.2} parent=5 // pred_fallthru
      _
    %p1414 = scmp.le.s32.totalorder 2, %s10
    // Predicated region
    $region41: #{resnet3d_slowonly_2s_flc3_forward.2} parent=5 // pred_check
      %p1415 = pneg %p1414
    $region42: #{resnet3d_slowonly_2s_flc3_forward.2} parent=5 // pred_check_branch
      %1417 = sbr.rel (%p1415) target = $region44
    $region43: #{resnet3d_slowonly_2s_flc3_forward.2} parent=5 // pred_region
      %s1418 = ssub.s32 %s10, 2
      // Predicated region
      $region45: #{resnet3d_slowonly_2s_flc3_forward.2} parent=43 // pred_check
        %p1419 = pneg %p143
      $region46: #{resnet3d_slowonly_2s_flc3_forward.2} parent=43 // pred_check_branch
        %1421 = sbr.rel (%p1419) target = $region48
      $region47: #{resnet3d_slowonly_2s_flc3_forward.2} parent=43 // pred_region
        %p1422 = scmp.lt.s32.totalorder %s16, 1
        %s1423 = scalar_select %p1422, %s16, 1
        %s1424 = smul.addr %s1423, 16
        %s1425 = smul.addr %s1424, 4
        %s1426 = scalar_lea.vmem %s4, %s1425
      $region48: #{resnet3d_slowonly_2s_flc3_forward.2} parent=43 // pred_fallthru
        _
    $region44: #{resnet3d_slowonly_2s_flc3_forward.2} parent=5 // pred_fallthru
      _
  $region6: #{resnet3d_slowonly_2s_flc3_forward.2} parent=0 // loop_footer
    %s14 = sadd.s32 1, %s10
  $region7: #{resnet3d_slowonly_2s_flc3_forward.2} parent=0 // loop_footer_branch
    %9 = sbr.rel target = $region3
  $region8: #{resnet3d_slowonly_2s_flc3_forward.2} parent=0 // loop_exit
    _

// kernel: resnet3d_slowonly_2s_flc3_forward.3
$region0: #{resnet3d_slowonly_2s_flc3_forward.3}
  #allocation0 [shape = 'u32[]', space=smem, size = 0x4, offset = 0x4, fixed_abs, tag = 'smem constant byte address 0x4 - core index']
  #allocation1 [shape = 'u32[144,128]{1,0:T(1,128)}', space=vmem, size = 0x12000, scoped, tag = 'internal scratch']
  #allocation2 [shape = 'bf16[6,6,8,128]{3,2,1,0:T(8,128)(2,1)}', space=vmem, size = 0x12000, scoped, tag = 'scratch operand']
  #allocation3 [shape = 'bf16[16,12,128]{2,1,0:T(8,128)(2,1)}', space=vmem, size = 0x10000, scoped, tag = 'scratch operand']
  %s0 = inlined_call_operand.vmem [shape: bf16[2,4,4,8,128], index: 0, kind: input, shape index: {}]
  %s1 = inlined_call_operand.vmem [shape: bf16[2,26,128,128], index: 1, kind: input, shape index: {}]
  %s2 = inlined_call_operand.vmem [shape: f32[2,8,128], index: 2, kind: input, shape index: {}]
  %s3 = inlined_call_operand.vmem [shape: f32[2,8,128], index: 3, kind: input, shape index: {}]
  %s4 = inlined_call_operand.vmem [shape: f32[2,2,2,8,128], index: 4, kind: output, shape index: {}]
  %s5 = sld [smem:[#allocation0]]
  $region49: #{resnet3d_slowonly_2s_flc3_forward.3} parent=0
    _
  %s7 = ssub.s32 1, %s5
  %s8 = scalar_select 0, %s7, %s5
  loop: start=0, step=1, limit=4
  $region2: #{resnet3d_slowonly_2s_flc3_forward.3} parent=0 // loop_pre_header
    _
  $region3: #{resnet3d_slowonly_2s_flc3_forward.3} parent=0 // loop_header
    %s10 = sphi 0, %s14
    %p11 = scmp.ge.s32.totalorder %s10, 4
    %s20 = sphi 0, %s22
    %s23 = sphi 0, %s20
    %s24 = sphi 0, %s23
    %s40 = sphi 0, %s24
    %s46 = sphi 0, %s48
    %s49 = sphi 0, %s46
    %s50 = sphi 0, %s49
    %s66 = sphi 0, %s50
    %s72 = sphi 0, %s74
    %s75 = sphi 0, %s72
    %s76 = sphi 0, %s75
    %s92 = sphi 0, %s76
    %s98 = sphi 0, %s100
    %s101 = sphi 0, %s98
    %s102 = sphi 0, %s101
    %s118 = sphi 0, %s102
    %s124 = sphi 0, %s126
    %s127 = sphi 0, %s124
    %s128 = sphi 0, %s127
    %s144 = sphi 0, %s128
  $region4: #{resnet3d_slowonly_2s_flc3_forward.3} parent=0 // loop_header_branch
    %13 = sbr.rel (%p11) target = $region8
  $region5: #{resnet3d_slowonly_2s_flc3_forward.3} parent=0 // loop_body
    %s15 = ssub.s32 %s10, 1
    %s16 = ssub.s32 %s10, 2
    %s17 = sadd.s32 %s10, 1
    %s18 = ssub.s32 %s10, %s17
    %p19 = scmp.eq.s32.totalorder %s18, 0
    %s21 = sadd.s32 %s20, 1
    %s22 = scalar_select %p19, %s20, %s21
    %p25 = pneg %p19
    %p26 = scmp.eq.s32.totalorder %s10, 1
    %p27 = por %p25, %p26
    %p28 = scmp.ne.s32.totalorder %s20, %s23
    %p29 = scmp.eq.s32.totalorder %s10, 0
    %p30 = por %p28, %p29
    %p31 = scmp.ne.s32.totalorder %s20, %s23
    %p32 = scmp.eq.s32.totalorder %s15, 1
    %p33 = por %p31, %p32
    %p34 = scmp.ne.s32.totalorder %s23, %s24
    %p35 = scmp.eq.s32.totalorder %s15, 0
    %p36 = por %p34, %p35
    %p37 = scmp.ne.s32.totalorder %s23, %s24
    %p38 = scmp.eq.s32.totalorder %s16, 1
    %p39 = por %p37, %p38
    %p41 = scmp.ne.s32.totalorder %s24, %s40
    %p42 = scmp.eq.s32.totalorder %s16, 0
    %p43 = por %p41, %p42
    %s44 = ssub.s32 %s10, %s17
    %p45 = scmp.eq.s32.totalorder %s44, 0
    %s47 = sadd.s32 %s46, 1
    %s48 = scalar_select %p45, %s46, %s47
    %p51 = pneg %p45
    %p52 = scmp.eq.s32.totalorder %s10, 1
    %p53 = por %p51, %p52
    %p54 = scmp.ne.s32.totalorder %s46, %s49
    %p55 = scmp.eq.s32.totalorder %s10, 0
    %p56 = por %p54, %p55
    %p57 = scmp.ne.s32.totalorder %s46, %s49
    %p58 = scmp.eq.s32.totalorder %s15, 1
    %p59 = por %p57, %p58
    %p60 = scmp.ne.s32.totalorder %s49, %s50
    %p61 = scmp.eq.s32.totalorder %s15, 0
    %p62 = por %p60, %p61
    %p63 = scmp.ne.s32.totalorder %s49, %s50
    %p64 = scmp.eq.s32.totalorder %s16, 1
    %p65 = por %p63, %p64
    %p67 = scmp.ne.s32.totalorder %s50, %s66
    %p68 = scmp.eq.s32.totalorder %s16, 0
    %p69 = por %p67, %p68
    %s70 = ssub.s32 %s10, %s17
    %p71 = scmp.eq.s32.totalorder %s70, 0
    %s73 = sadd.s32 %s72, 1
    %s74 = scalar_select %p71, %s72, %s73
    %p77 = pneg %p71
    %p78 = scmp.eq.s32.totalorder %s10, 1
    %p79 = por %p77, %p78
    %p80 = scmp.ne.s32.totalorder %s72, %s75
    %p81 = scmp.eq.s32.totalorder %s10, 0
    %p82 = por %p80, %p81
    %p83 = scmp.ne.s32.totalorder %s72, %s75
    %p84 = scmp.eq.s32.totalorder %s15, 1
    %p85 = por %p83, %p84
    %p86 = scmp.ne.s32.totalorder %s75, %s76
    %p87 = scmp.eq.s32.totalorder %s15, 0
    %p88 = por %p86, %p87
    %p89 = scmp.ne.s32.totalorder %s75, %s76
    %p90 = scmp.eq.s32.totalorder %s16, 1
    %p91 = por %p89, %p90
    %p93 = scmp.ne.s32.totalorder %s76, %s92
    %p94 = scmp.eq.s32.totalorder %s16, 0
    %p95 = por %p93, %p94
    %s96 = ssub.s32 %s10, %s17
    %p97 = scmp.eq.s32.totalorder %s96, 0
    %s99 = sadd.s32 %s98, 1
    %s100 = scalar_select %p97, %s98, %s99
    %p103 = pneg %p97
    %p104 = scmp.eq.s32.totalorder %s10, 1
    %p105 = por %p103, %p104
    %p106 = scmp.ne.s32.totalorder %s98, %s101
    %p107 = scmp.eq.s32.totalorder %s10, 0
    %p108 = por %p106, %p107
    %p109 = scmp.ne.s32.totalorder %s98, %s101
    %p110 = scmp.eq.s32.totalorder %s15, 1
    %p111 = por %p109, %p110
    %p112 = scmp.ne.s32.totalorder %s101, %s102
    %p113 = scmp.eq.s32.totalorder %s15, 0
    %p114 = por %p112, %p113
    %p115 = scmp.ne.s32.totalorder %s101, %s102
    %p116 = scmp.eq.s32.totalorder %s16, 1
    %p117 = por %p115, %p116
    %p119 = scmp.ne.s32.totalorder %s102, %s118
    %p120 = scmp.eq.s32.totalorder %s16, 0
    %p121 = por %p119, %p120
    %s122 = ssub.s32 %s10, %s17
    %p123 = scmp.eq.s32.totalorder %s122, 0
    %s125 = sadd.s32 %s124, 1
    %s126 = scalar_select %p123, %s124, %s125
    %p129 = pneg %p123
    %p130 = scmp.eq.s32.totalorder %s10, 1
    %p131 = por %p129, %p130
    %p132 = scmp.ne.s32.totalorder %s124, %s127
    %p133 = scmp.eq.s32.totalorder %s10, 0
    %p134 = por %p132, %p133
    %p135 = scmp.ne.s32.totalorder %s124, %s127
    %p136 = scmp.eq.s32.totalorder %s15, 1
    %p137 = por %p135, %p136
    %p138 = scmp.ne.s32.totalorder %s127, %s128
    %p139 = scmp.eq.s32.totalorder %s15, 0
    %p140 = por %p138, %p139
    %p141 = scmp.ne.s32.totalorder %s127, %s128
    %p142 = scmp.eq.s32.totalorder %s16, 1
    %p143 = por %p141, %p142
    %p145 = scmp.ne.s32.totalorder %s128, %s144
    %p146 = scmp.eq.s32.totalorder %s16, 0
    %p147 = por %p145, %p146
    %p148 = scmp.le.s32.totalorder 1, %s10
    %p149 = scmp.lt.s32.totalorder %s10, 3
    %p150 = pnand %p148, %p149
    %p151 = pneg %p150
    // Predicated region
    $region9: #{resnet3d_slowonly_2s_flc3_forward.3} parent=5 // pred_check
      _
    $region10: #{resnet3d_slowonly_2s_flc3_forward.3} parent=5 // pred_check_branch
      %153 = sbr.rel (%p150) target = $region12
    $region11: #{resnet3d_slowonly_2s_flc3_forward.3} parent=5 // pred_region
      %s154 = ssub.s32 %s10, 1
    $region12: #{resnet3d_slowonly_2s_flc3_forward.3} parent=5 // pred_fallthru
      _
    %p155 = scmp.lt.s32.totalorder %s10, 2
    // Predicated region
    $region13: #{resnet3d_slowonly_2s_flc3_forward.3} parent=5 // pred_check
      %p156 = pneg %p155
    $region14: #{resnet3d_slowonly_2s_flc3_forward.3} parent=5 // pred_check_branch
      %158 = sbr.rel (%p156) target = $region16
    $region15: #{resnet3d_slowonly_2s_flc3_forward.3} parent=5 // pred_region
      // Predicated region
      $region17: #{resnet3d_slowonly_2s_flc3_forward.3} parent=15 // pred_check
        %p159 = pneg %p30
      $region18: #{resnet3d_slowonly_2s_flc3_forward.3} parent=15 // pred_check_branch
        %161 = sbr.rel (%p159) target = $region20
      $region19: #{resnet3d_slowonly_2s_flc3_forward.3} parent=15 // pred_region
        %p162 = scmp.lt.s32.totalorder %s10, 1
        %s163 = scalar_select %p162, %s10, 1
        %s164 = smul.addr %s163, 16
        %s165 = smul.addr %s164, 4
        %s166 = scalar_lea.vmem %s0, %s165
      $region20: #{resnet3d_slowonly_2s_flc3_forward.3} parent=15 // pred_fallthru
        _
      // Predicated region
      $region21: #{resnet3d_slowonly_2s_flc3_forward.3} parent=15 // pred_check
        %p167 = pneg %p56
      $region22: #{resnet3d_slowonly_2s_flc3_forward.3} parent=15 // pred_check_branch
        %169 = sbr.rel (%p167) target = $region24
      $region23: #{resnet3d_slowonly_2s_flc3_forward.3} parent=15 // pred_region
        %p170 = scmp.lt.s32.totalorder %s10, 1
        %s171 = scalar_select %p170, %s10, 1
        %s172 = smul.addr %s171, 416
        %s173 = smul.addr %s172, 4
        %s174 = scalar_lea.vmem %s1, %s173
      $region24: #{resnet3d_slowonly_2s_flc3_forward.3} parent=15 // pred_fallthru
        _
      // Predicated region
      $region25: #{resnet3d_slowonly_2s_flc3_forward.3} parent=15 // pred_check
        %p175 = pneg %p82
      $region26: #{resnet3d_slowonly_2s_flc3_forward.3} parent=15 // pred_check_branch
        %177 = sbr.rel (%p175) target = $region28
      $region27: #{resnet3d_slowonly_2s_flc3_forward.3} parent=15 // pred_region
        %p178 = scmp.lt.s32.totalorder %s10, 1
        %s179 = scalar_select %p178, %s10, 1
        %s180 = smul.addr %s179, 8
        %s181 = scalar_lea.vmem %s2, %s180
      $region28: #{resnet3d_slowonly_2s_flc3_forward.3} parent=15 // pred_fallthru
        _
      // Predicated region
      $region29: #{resnet3d_slowonly_2s_flc3_forward.3} parent=15 // pred_check
        %p182 = pneg %p108
      $region30: #{resnet3d_slowonly_2s_flc3_forward.3} parent=15 // pred_check_branch
        %184 = sbr.rel (%p182) target = $region32
      $region31: #{resnet3d_slowonly_2s_flc3_forward.3} parent=15 // pred_region
        %p185 = scmp.lt.s32.totalorder %s10, 1
        %s186 = scalar_select %p185, %s10, 1
        %s187 = smul.addr %s186, 8
        %s188 = scalar_lea.vmem %s3, %s187
      $region32: #{resnet3d_slowonly_2s_flc3_forward.3} parent=15 // pred_fallthru
        _
    $region16: #{resnet3d_slowonly_2s_flc3_forward.3} parent=5 // pred_fallthru
      _
    %p189 = scmp.le.s32.totalorder 1, %s10
    %p190 = scmp.lt.s32.totalorder %s10, 3
    %p191 = pnand %p189, %p190
    %p192 = pneg %p191
    // Predicated region
    $region33: #{resnet3d_slowonly_2s_flc3_forward.3} parent=5 // pred_check
      _
    $region34: #{resnet3d_slowonly_2s_flc3_forward.3} parent=5 // pred_check_branch
      %194 = sbr.rel (%p191) target = $region36
    $region35: #{resnet3d_slowonly_2s_flc3_forward.3} parent=5 // pred_region
      %s195 = ssub.s32 %s10, 1
      %p196 = scmp.lt.s32.totalorder %s15, 1
      %s197 = scalar_select %p196, %s15, 1
      %s198 = smul.addr %s197, 16
      %s199 = smul.addr %s198, 4
      %s200 = scalar_lea.vmem %s0, %s199
      %p201 = pneg %p36
      %p202 = pneg %p33
      %p203 = scmp.lt.s32.totalorder %s15, 1
      %s204 = scalar_select %p203, %s15, 1
      %s205 = smul.addr %s204, 416
      %s206 = smul.addr %s205, 4
      %s207 = scalar_lea.vmem %s1, %s206
      %p208 = pneg %p62
      %p209 = pneg %p59
      %p210 = scmp.lt.s32.totalorder %s15, 1
      %s211 = scalar_select %p210, %s15, 1
      %s212 = smul.addr %s211, 8
      %s213 = scalar_lea.vmem %s2, %s212
      %p214 = pneg %p88
      %p215 = pneg %p85
      %p216 = scmp.lt.s32.totalorder %s15, 1
      %s217 = scalar_select %p216, %s15, 1
      %s218 = smul.addr %s217, 8
      %s219 = scalar_lea.vmem %s3, %s218
      %p220 = pneg %p114
      %p221 = pneg %p111
      %p222 = pneg %p140
      %p223 = pneg %p137
      %p224 = scmp.lt.s32.totalorder %s15, 1
      %s225 = scalar_select %p224, %s15, 1
      %s226 = smul.addr %s225, 4
      %s227 = smul.addr %s226, 8
      %s228 = scalar_lea.vmem %s4, %s227
      %p229 = scmp.lt.s32.totalorder %s15, 1
      %s230 = scalar_select %p229, %s15, 1
      %s231 = smul.addr %s230, 16
      %s232 = smul.addr %s231, 4
      %s233 = scalar_lea.vmem %s0, %s232
      %p234 = scmp.lt.s32.totalorder %s15, 1
      %s235 = scalar_select %p234, %s15, 1
      %s236 = smul.addr %s235, 416
      %s237 = smul.addr %s236, 4
      %s238 = scalar_lea.vmem %s1, %s237
      %p239 = scmp.lt.s32.totalorder %s15, 1
      %s240 = scalar_select %p239, %s15, 1
      %s241 = smul.addr %s240, 8
      %s242 = scalar_lea.vmem %s2, %s241
      %p243 = scmp.lt.s32.totalorder %s15, 1
      %s244 = scalar_select %p243, %s15, 1
      %s245 = smul.addr %s244, 8
      %s246 = scalar_lea.vmem %s3, %s245
      %p247 = scmp.lt.s32.totalorder %s15, 1
      %s248 = scalar_select %p247, %s15, 1
      %s249 = smul.addr %s248, 4
      %s250 = smul.addr %s249, 8
      %s251 = scalar_lea.vmem %s4, %s250
      %253 = vst [vmem:[#allocation2] sm:$0xf] 0
      %254 = vst [vmem:[#allocation2 + $0x4] sm:$0xf] 0
      %255 = vst [vmem:[#allocation2 + $0x8] sm:$0xf] 0
      %256 = vst [vmem:[#allocation2 + $0xc] sm:$0xf] 0
      %257 = vst [vmem:[#allocation2 + $0x10] sm:$0xf] 0
      %258 = vst [vmem:[#allocation2 + $0x14] sm:$0xf] 0
      %259 = vst [vmem:[#allocation2 + $0x18] sm:$0xf] 0
      %260 = vst [vmem:[#allocation2 + $0x1c] sm:$0xf] 0
      %261 = vst [vmem:[#allocation2 + $0x20] sm:$0xf] 0
      %262 = vst [vmem:[#allocation2 + $0x24] sm:$0xf] 0
      %263 = vst [vmem:[#allocation2 + $0x28] sm:$0xf] 0
      %264 = vst [vmem:[#allocation2 + $0x2c] sm:$0xf] 0
      %265 = vst [vmem:[#allocation2 + $0x30] sm:$0xf] 0
      %266 = vst [vmem:[#allocation2 + $0x34] sm:$0xf] 0
      %267 = vst [vmem:[#allocation2 + $0x38] sm:$0xf] 0
      %268 = vst [vmem:[#allocation2 + $0x3c] sm:$0xf] 0
      %269 = vst [vmem:[#allocation2 + $0x40] sm:$0xf] 0
      %270 = vst [vmem:[#allocation2 + $0x44] sm:$0xf] 0
      %271 = vst [vmem:[#allocation2 + $0x48] sm:$0xf] 0
      %272 = vst [vmem:[#allocation2 + $0x4c] sm:$0xf] 0
      %273 = vst [vmem:[#allocation2 + $0x50] sm:$0xf] 0
      %274 = vst [vmem:[#allocation2 + $0x54] sm:$0xf] 0
      %275 = vst [vmem:[#allocation2 + $0x58] sm:$0xf] 0
      %276 = vst [vmem:[#allocation2 + $0x5c] sm:$0xf] 0
      %277 = vst [vmem:[#allocation2 + $0x60] sm:$0xf] 0
      %278 = vst [vmem:[#allocation2 + $0x64] sm:$0xf] 0
      %279 = vst [vmem:[#allocation2 + $0x68] sm:$0xf] 0
      %280 = vst [vmem:[#allocation2 + $0x6c] sm:$0xf] 0
      %281 = vst [vmem:[#allocation2 + $0x70] sm:$0xf] 0
      %282 = vst [vmem:[#allocation2 + $0x74] sm:$0xf] 0
      %283 = vst [vmem:[#allocation2 + $0x78] sm:$0xf] 0
      %284 = vst [vmem:[#allocation2 + $0x7c] sm:$0xf] 0
      %285 = vst [vmem:[#allocation2 + $0x80] sm:$0xf] 0
      %286 = vst [vmem:[#allocation2 + $0x84] sm:$0xf] 0
      %287 = vst [vmem:[#allocation2 + $0x88] sm:$0xf] 0
      %288 = vst [vmem:[#allocation2 + $0x8c] sm:$0xf] 0
      %289 = vst [vmem:[#allocation3] sm:$0xf] 0
      %290 = vst [vmem:[#allocation3 + $0x4] sm:$0x3] 0
      %291 = vst [vmem:[#allocation3 + $0x8] sm:$0xf] 0
      %292 = vst [vmem:[#allocation3 + $0xc] sm:$0x3] 0
      %293 = vst [vmem:[#allocation3 + $0x10] sm:$0xf] 0
      %294 = vst [vmem:[#allocation3 + $0x14] sm:$0x3] 0
      %295 = vst [vmem:[#allocation3 + $0x18] sm:$0xf] 0
      %296 = vst [vmem:[#allocation3 + $0x1c] sm:$0x3] 0
      %297 = vst [vmem:[#allocation3 + $0x20] sm:$0xf] 0
      %298 = vst [vmem:[#allocation3 + $0x24] sm:$0x3] 0
      %299 = vst [vmem:[#allocation3 + $0x28] sm:$0xf] 0
      %300 = vst [vmem:[#allocation3 + $0x2c] sm:$0x3] 0
      %301 = vst [vmem:[#allocation3 + $0x30] sm:$0xf] 0
      %302 = vst [vmem:[#allocation3 + $0x34] sm:$0x3] 0
      %303 = vst [vmem:[#allocation3 + $0x38] sm:$0xf] 0
      %304 = vst [vmem:[#allocation3 + $0x3c] sm:$0x3] 0
      %305 = vst [vmem:[#allocation3 + $0x40] sm:$0xf] 0
      %306 = vst [vmem:[#allocation3 + $0x44] sm:$0x3] 0
      %307 = vst [vmem:[#allocation3 + $0x48] sm:$0xf] 0
      %308 = vst [vmem:[#allocation3 + $0x4c] sm:$0x3] 0
      %309 = vst [vmem:[#allocation3 + $0x50] sm:$0xf] 0
      %310 = vst [vmem:[#allocation3 + $0x54] sm:$0x3] 0
      %311 = vst [vmem:[#allocation3 + $0x58] sm:$0xf] 0
      %312 = vst [vmem:[#allocation3 + $0x5c] sm:$0x3] 0
      %313 = vst [vmem:[#allocation3 + $0x60] sm:$0xf] 0
      %314 = vst [vmem:[#allocation3 + $0x64] sm:$0x3] 0
      %315 = vst [vmem:[#allocation3 + $0x68] sm:$0xf] 0
      %316 = vst [vmem:[#allocation3 + $0x6c] sm:$0x3] 0
      %317 = vst [vmem:[#allocation3 + $0x70] sm:$0xf] 0
      %318 = vst [vmem:[#allocation3 + $0x74] sm:$0x3] 0
      %319 = vst [vmem:[#allocation3 + $0x78] sm:$0xf] 0
      %320 = vst [vmem:[#allocation3 + $0x7c] sm:$0x3] 0
      %v321 = vld [vmem:[%s233] sm:$0xf]
      %v322 = vld [vmem:[%s233 + $0x4] sm:$0xf]
      %v323 = vld [vmem:[%s233 + $0x8] sm:$0xf]
      %v324 = vld [vmem:[%s233 + $0xc] sm:$0xf]
      %v325 = vld [vmem:[%s233 + $0x10] sm:$0xf]
      %v326 = vld [vmem:[%s233 + $0x14] sm:$0xf]
      %v327 = vld [vmem:[%s233 + $0x18] sm:$0xf]
      %v328 = vld [vmem:[%s233 + $0x1c] sm:$0xf]
      %v329 = vld [vmem:[%s233 + $0x20] sm:$0xf]
      %v330 = vld [vmem:[%s233 + $0x24] sm:$0xf]
      %v331 = vld [vmem:[%s233 + $0x28] sm:$0xf]
      %v332 = vld [vmem:[%s233 + $0x2c] sm:$0xf]
      %v333 = vld [vmem:[%s233 + $0x30] sm:$0xf]
      %v334 = vld [vmem:[%s233 + $0x34] sm:$0xf]
      %v335 = vld [vmem:[%s233 + $0x38] sm:$0xf]
      %v336 = vld [vmem:[%s233 + $0x3c] sm:$0xf]
      %v337 = vld [vmem:[%s238] sm:$0xf]
      %v338 = vld [vmem:[%s238 + $0x4] sm:$0xf]
      %v339 = vld [vmem:[%s238 + $0x8] sm:$0xf]
      %v340 = vld [vmem:[%s238 + $0xc] sm:$0xf]
      %v341 = vld [vmem:[%s238 + $0x10] sm:$0xf]
      %v342 = vld [vmem:[%s238 + $0x14] sm:$0xf]
      %v343 = vld [vmem:[%s238 + $0x18] sm:$0xf]
      %v344 = vld [vmem:[%s238 + $0x1c] sm:$0xf]
      %v345 = vld [vmem:[%s238 + $0x20] sm:$0xf]
      %v346 = vld [vmem:[%s238 + $0x24] sm:$0xf]
      %v347 = vld [vmem:[%s238 + $0x28] sm:$0xf]
      %v348 = vld [vmem:[%s238 + $0x2c] sm:$0xf]
      %v349 = vld [vmem:[%s238 + $0x30] sm:$0xf]
      %v350 = vld [vmem:[%s238 + $0x34] sm:$0xf]
      %v351 = vld [vmem:[%s238 + $0x38] sm:$0xf]
      %v352 = vld [vmem:[%s238 + $0x3c] sm:$0xf]
      %v369 = vunpack.c.l.b16 %v321
      %v370 = vunpack.c.l.b16 %v322
      %v371 = vunpack.c.l.b16 %v323
      %v372 = vunpack.c.l.b16 %v324
      %v373 = vunpack.c.l.b16 %v325
      %v374 = vunpack.c.l.b16 %v326
      %v375 = vunpack.c.l.b16 %v327
      %v376 = vunpack.c.l.b16 %v328
      %v377 = vunpack.c.l.b16 %v329
      %v378 = vunpack.c.l.b16 %v330
      %v379 = vunpack.c.l.b16 %v331
      %v380 = vunpack.c.l.b16 %v332
      %v381 = vunpack.c.l.b16 %v333
      %v382 = vunpack.c.l.b16 %v334
      %v383 = vunpack.c.l.b16 %v335
      %v384 = vunpack.c.l.b16 %v336
      %v385 = vpack.c.b16 %v370, %v369
      %v386 = vpack.c.b16 %v372, %v371
      %v387 = vpack.c.b16 %v374, %v373
      %v388 = vpack.c.b16 %v376, %v375
      %v389 = vpack.c.b16 %v378, %v377
      %v390 = vpack.c.b16 %v380, %v379
      %v391 = vpack.c.b16 %v382, %v381
      %v392 = vpack.c.b16 %v384, %v383
      %v417 = vunpack.c.l.b16 %v337
      %v418 = vunpack.c.l.b16 %v338
      %v419 = vunpack.c.l.b16 %v339
      %v420 = vunpack.c.l.b16 %v340
      %v421 = vunpack.c.l.b16 %v341
      %v422 = vunpack.c.l.b16 %v342
      %v423 = vunpack.c.l.b16 %v343
      %v424 = vunpack.c.l.b16 %v344
      %v425 = vunpack.c.l.b16 %v345
      %v426 = vunpack.c.l.b16 %v346
      %v427 = vunpack.c.l.b16 %v347
      %v428 = vunpack.c.l.b16 %v348
      %v429 = vunpack.c.l.b16 %v349
      %v430 = vunpack.c.l.b16 %v350
      %v431 = vunpack.c.l.b16 %v351
      %v432 = vunpack.c.l.b16 %v352
      %v433 = vpack.c.b16 %v418, %v417
      %v434 = vpack.c.b16 %v420, %v419
      %v435 = vpack.c.b16 %v422, %v421
      %v436 = vpack.c.b16 %v424, %v423
      %v437 = vpack.c.b16 %v426, %v425
      %v438 = vpack.c.b16 %v428, %v427
      %v439 = vpack.c.b16 %v430, %v429
      %v440 = vpack.c.b16 %v432, %v431
      %449 = vmatprep.subr.bf16.mxu0 0
      %450 = vmatpush1.bf16.msra.mxu0 %v433
      %451 = vmatprep.subr.bf16.mxu0 0
      %452 = vmatpush1.bf16.msra.mxu0 %v434
      %453 = vmatprep.subr.bf16.mxu0 0
      %454 = vmatpush1.bf16.msra.mxu0 %v435
      %455 = vmatprep.subr.bf16.mxu0 0
      %456 = vmatpush1.bf16.msra.mxu0 %v436
      %457 = vmatprep.subr.bf16.mxu0 0
      %458 = vmatpush1.bf16.msra.mxu0 %v437
      %459 = vmatprep.subr.bf16.mxu0 0
      %460 = vmatpush1.bf16.msra.mxu0 %v438
      %461 = vmatprep.subr.bf16.mxu0 0
      %462 = vmatpush1.bf16.msra.mxu0 %v439
      %463 = vmatprep.subr.bf16.mxu0 0
      %464 = vmatpush1.bf16.msra.mxu0 %v440
      %465 = vmatprep.subr.bf16.mxu0 0
      %466 = vmatpush1.bf16.msra.mxu0 0
      %467 = vmatprep.subr.bf16.mxu0 0
      %468 = vmatpush1.bf16.msra.mxu0 0
      %469 = vmatprep.subr.bf16.mxu0 0
      %470 = vmatpush1.bf16.msra.mxu0 0
      %471 = vmatprep.subr.bf16.mxu0 0
      %472 = vmatpush1.bf16.msra.mxu0 0
      %473 = vmatprep.subr.bf16.mxu0 0
      %474 = vmatpush1.bf16.msra.mxu0 0
      %475 = vmatprep.subr.bf16.mxu0 0
      %476 = vmatpush1.bf16.msra.mxu0 0
      %477 = vmatprep.subr.bf16.mxu0 0
      %478 = vmatpush1.bf16.msra.mxu0 0
      %479 = vmatprep.subr.bf16.mxu0 0
      %480 = vmatpush1.bf16.msra.mxu0 0
      %481 = vmatprep.mubr.bf16.mxu0 0
      %482 = vmatmul.mubr.bf16.gmra.mrb[0].mxu0 %v385
      %v483 = vpop.f32.mrb[0].mxu0
      %v484 = vadd.f32 0.0, %v483
      %v485 = vpop.f32.mrb[0].mxu0
      %v486 = vpop.f32.mrb[0].mxu0
      %v487 = vadd.f32 0.0, %v486
      %v488 = vpop.f32.mrb[0].mxu0
      %489 = vmatprep.mubr.bf16.mxu0 0
      %490 = vmatmul.mubr.bf16.gmra.mrb[0].mxu0 %v386
      %v491 = vpop.f32.mrb[0].mxu0
      %v492 = vadd.f32 0.0, %v491
      %v493 = vpop.f32.mrb[0].mxu0
      %v494 = vpop.f32.mrb[0].mxu0
      %v495 = vadd.f32 0.0, %v494
      %v496 = vpop.f32.mrb[0].mxu0
      %497 = vmatprep.mubr.bf16.mxu0 0
      %498 = vmatmul.mubr.bf16.gmra.mrb[0].mxu0 %v387
      %v499 = vpop.f32.mrb[0].mxu0
      %v500 = vadd.f32 0.0, %v499
      %v501 = vpop.f32.mrb[0].mxu0
      %v502 = vpop.f32.mrb[0].mxu0
      %v503 = vadd.f32 0.0, %v502
      %v504 = vpop.f32.mrb[0].mxu0
      %505 = vmatprep.mubr.bf16.mxu0 0
      %506 = vmatmul.mubr.bf16.gmra.mrb[0].mxu0 %v388
      %v507 = vpop.f32.mrb[0].mxu0
      %v508 = vadd.f32 0.0, %v507
      %v509 = vpop.f32.mrb[0].mxu0
      %v510 = vpop.f32.mrb[0].mxu0
      %v511 = vadd.f32 0.0, %v510
      %v512 = vpop.f32.mrb[0].mxu0
      %513 = vmatprep.mubr.bf16.mxu0 0
      %514 = vmatmul.mubr.bf16.gmra.mrb[0].mxu0 %v389
      %v515 = vpop.f32.mrb[0].mxu0
      %v516 = vadd.f32 0.0, %v515
      %v517 = vpop.f32.mrb[0].mxu0
      %v518 = vpop.f32.mrb[0].mxu0
      %v519 = vadd.f32 0.0, %v518
      %v520 = vpop.f32.mrb[0].mxu0
      %521 = vmatprep.mubr.bf16.mxu0 0
      %522 = vmatmul.mubr.bf16.gmra.mrb[0].mxu0 %v390
      %v523 = vpop.f32.mrb[0].mxu0
      %v524 = vadd.f32 0.0, %v523
      %v525 = vpop.f32.mrb[0].mxu0
      %v526 = vpop.f32.mrb[0].mxu0
      %v527 = vadd.f32 0.0, %v526
      %v528 = vpop.f32.mrb[0].mxu0
      %529 = vmatprep.mubr.bf16.mxu0 0
      %530 = vmatmul.mubr.bf16.gmra.mrb[0].mxu0 %v391
      %v531 = vpop.f32.mrb[0].mxu0
      %v532 = vadd.f32 0.0, %v531
      %v533 = vpop.f32.mrb[0].mxu0
      %v534 = vpop.f32.mrb[0].mxu0
      %v535 = vadd.f32 0.0, %v534
      %v536 = vpop.f32.mrb[0].mxu0
      %537 = vmatprep.mubr.bf16.mxu0 0
      %538 = vmatmul.mubr.bf16.gmra.mrb[0].mxu0 %v392
      %v539 = vpop.f32.mrb[0].mxu0
      %v540 = vadd.f32 0.0, %v539
      %v541 = vpop.f32.mrb[0].mxu0
      %v542 = vpop.f32.mrb[0].mxu0
      %v543 = vadd.f32 0.0, %v542
      %v544 = vpop.f32.mrb[0].mxu0
      %545 = vdwg.mxu0
      %v546 = vld [vmem:[%s242] sm:$0x1]
      %v547 = vlaneseq
      %v548 = vshrl.u32 %v547, 7
      %v549 = vsub.s32 0, %v548
      %v550 = vrot.slane %v546, %v549
      %v551 = vmul.f32 %v484, %v550
      %v552 = vmul.f32 %v487, %v550
      %v553 = vmul.f32 %v492, %v550
      %v554 = vmul.f32 %v495, %v550
      %v555 = vmul.f32 %v500, %v550
      %v556 = vmul.f32 %v503, %v550
      %v557 = vmul.f32 %v508, %v550
      %v558 = vmul.f32 %v511, %v550
      %v559 = vmul.f32 %v516, %v550
      %v560 = vmul.f32 %v519, %v550
      %v561 = vmul.f32 %v524, %v550
      %v562 = vmul.f32 %v527, %v550
      %v563 = vmul.f32 %v532, %v550
      %v564 = vmul.f32 %v535, %v550
      %v565 = vmul.f32 %v540, %v550
      %v566 = vmul.f32 %v543, %v550
      %v567 = vld [vmem:[%s246] sm:$0x1]
      %v568 = vlaneseq
      %v569 = vshrl.u32 %v568, 7
      %v570 = vsub.s32 0, %v569
      %v571 = vrot.slane %v567, %v570
      %v572 = vadd.f32 %v551, %v571
      %v573 = vadd.f32 %v552, %v571
      %v574 = vadd.f32 %v553, %v571
      %v575 = vadd.f32 %v554, %v571
      %v576 = vadd.f32 %v555, %v571
      %v577 = vadd.f32 %v556, %v571
      %v578 = vadd.f32 %v557, %v571
      %v579 = vadd.f32 %v558, %v571
      %v580 = vadd.f32 %v559, %v571
      %v581 = vadd.f32 %v560, %v571
      %v582 = vadd.f32 %v561, %v571
      %v583 = vadd.f32 %v562, %v571
      %v584 = vadd.f32 %v563, %v571
      %v585 = vadd.f32 %v564, %v571
      %v586 = vadd.f32 %v565, %v571
      %v587 = vadd.f32 %v566, %v571
      %v588 = vmax.f32 %v572, 0.0
      %v589 = vmax.f32 %v573, 0.0
      %v590 = vmax.f32 %v574, 0.0
      %v591 = vmax.f32 %v575, 0.0
      %v592 = vmax.f32 %v576, 0.0
      %v593 = vmax.f32 %v577, 0.0
      %v594 = vmax.f32 %v578, 0.0
      %v595 = vmax.f32 %v579, 0.0
      %v596 = vmax.f32 %v580, 0.0
      %v597 = vmax.f32 %v581, 0.0
      %v598 = vmax.f32 %v582, 0.0
      %v599 = vmax.f32 %v583, 0.0
      %v600 = vmax.f32 %v584, 0.0
      %v601 = vmax.f32 %v585, 0.0
      %v602 = vmax.f32 %v586, 0.0
      %v603 = vmax.f32 %v587, 0.0
      %v604 = vpack.c.bf16 %v589, %v588
      %v605 = vpack.c.bf16 %v591, %v590
      %v606 = vpack.c.bf16 %v593, %v592
      %v607 = vpack.c.bf16 %v595, %v594
      %v608 = vpack.c.bf16 %v597, %v596
      %v609 = vpack.c.bf16 %v599, %v598
      %v610 = vpack.c.bf16 %v601, %v600
      %v611 = vpack.c.bf16 %v603, %v602
      %v620 = vunpack.c.l.b16 %v604
      %v621 = vunpack.c.h.b16 %v604
      %v622 = vunpack.c.l.b16 %v605
      %v623 = vunpack.c.h.b16 %v605
      %v624 = vunpack.c.l.b16 %v606
      %v625 = vunpack.c.h.b16 %v606
      %v626 = vunpack.c.l.b16 %v607
      %v627 = vunpack.c.h.b16 %v607
      %v628 = vunpack.c.l.b16 %v608
      %v629 = vunpack.c.h.b16 %v608
      %v630 = vunpack.c.l.b16 %v609
      %v631 = vunpack.c.h.b16 %v609
      %v632 = vunpack.c.l.b16 %v610
      %v633 = vunpack.c.h.b16 %v610
      %v634 = vunpack.c.l.b16 %v611
      %v635 = vunpack.c.h.b16 %v611
      %v636 = vpack.c.b16 %v620, %v620
      %v637 = vpack.c.b16 %v621, %v621
      %v638 = vpack.c.b16 %v622, %v622
      %v639 = vpack.c.b16 %v623, %v623
      %v640 = vpack.c.b16 %v624, %v624
      %v641 = vpack.c.b16 %v625, %v625
      %v642 = vpack.c.b16 %v626, %v626
      %v643 = vpack.c.b16 %v627, %v627
      %v644 = vpack.c.b16 %v628, %v628
      %v645 = vpack.c.b16 %v629, %v629
      %v646 = vpack.c.b16 %v630, %v630
      %v647 = vpack.c.b16 %v631, %v631
      %v648 = vpack.c.b16 %v632, %v632
      %v649 = vpack.c.b16 %v633, %v633
      %v650 = vpack.c.b16 %v634, %v634
      %v651 = vpack.c.b16 %v635, %v635
      %s668 = scalar_lea.vmem [#allocation2], 28
      %669 = vst [vmem:[%s668] sm:$0xf] %v636
      %670 = vst [vmem:[%s668 + $0x4] sm:$0xf] %v637
      %671 = vst [vmem:[%s668 + $0x8] sm:$0xf] %v638
      %672 = vst [vmem:[%s668 + $0xc] sm:$0xf] %v639
      %673 = vst [vmem:[%s668 + $0x18] sm:$0xf] %v640
      %674 = vst [vmem:[%s668 + $0x1c] sm:$0xf] %v641
      %675 = vst [vmem:[%s668 + $0x20] sm:$0xf] %v642
      %676 = vst [vmem:[%s668 + $0x24] sm:$0xf] %v643
      %677 = vst [vmem:[%s668 + $0x30] sm:$0xf] %v644
      %678 = vst [vmem:[%s668 + $0x34] sm:$0xf] %v645
      %679 = vst [vmem:[%s668 + $0x38] sm:$0xf] %v646
      %680 = vst [vmem:[%s668 + $0x3c] sm:$0xf] %v647
      %681 = vst [vmem:[%s668 + $0x48] sm:$0xf] %v648
      %682 = vst [vmem:[%s668 + $0x4c] sm:$0xf] %v649
      %683 = vst [vmem:[%s668 + $0x50] sm:$0xf] %v650
      %684 = vst [vmem:[%s668 + $0x54] sm:$0xf] %v651
      %v685 = vld [vmem:[#allocation2] sm:$0xf]
      %v686 = vld [vmem:[#allocation2 + $0x4] sm:$0xf]
      %v687 = vld [vmem:[#allocation2 + $0x8] sm:$0xf]
      %v688 = vld [vmem:[#allocation2 + $0xc] sm:$0xf]
      %v689 = vld [vmem:[#allocation2 + $0x18] sm:$0xf]
      %v690 = vld [vmem:[#allocation2 + $0x1c] sm:$0xf]
      %v691 = vld [vmem:[#allocation2 + $0x20] sm:$0xf]
      %v692 = vld [vmem:[#allocation2 + $0x24] sm:$0xf]
      %v693 = vld [vmem:[#allocation2 + $0x30] sm:$0xf]
      %v694 = vld [vmem:[#allocation2 + $0x34] sm:$0xf]
      %v695 = vld [vmem:[#allocation2 + $0x38] sm:$0xf]
      %v696 = vld [vmem:[#allocation2 + $0x3c] sm:$0xf]
      %v697 = vld [vmem:[#allocation2 + $0x48] sm:$0xf]
      %v698 = vld [vmem:[#allocation2 + $0x4c] sm:$0xf]
      %v699 = vld [vmem:[#allocation2 + $0x50] sm:$0xf]
      %v700 = vld [vmem:[#allocation2 + $0x54] sm:$0xf]
      %s701 = scalar_lea.vmem %s238, 64
      %v702 = vld [vmem:[%s701] sm:$0xf]
      %v703 = vld [vmem:[%s701 + $0x4] sm:$0xf]
      %v704 = vld [vmem:[%s701 + $0x8] sm:$0xf]
      %v705 = vld [vmem:[%s701 + $0xc] sm:$0xf]
      %v706 = vld [vmem:[%s701 + $0x10] sm:$0xf]
      %v707 = vld [vmem:[%s701 + $0x14] sm:$0xf]
      %v708 = vld [vmem:[%s701 + $0x18] sm:$0xf]
      %v709 = vld [vmem:[%s701 + $0x1c] sm:$0xf]
      %v710 = vld [vmem:[%s701 + $0x20] sm:$0xf]
      %v711 = vld [vmem:[%s701 + $0x24] sm:$0xf]
      %v712 = vld [vmem:[%s701 + $0x28] sm:$0xf]
      %v713 = vld [vmem:[%s701 + $0x2c] sm:$0xf]
      %v714 = vld [vmem:[%s701 + $0x30] sm:$0xf]
      %v715 = vld [vmem:[%s701 + $0x34] sm:$0xf]
      %v716 = vld [vmem:[%s701 + $0x38] sm:$0xf]
      %v717 = vld [vmem:[%s701 + $0x3c] sm:$0xf]
      %s718 = scalar_lea.vmem [#allocation2], 4
      %v719 = vld [vmem:[%s718] sm:$0xf]
      %v720 = vld [vmem:[%s718 + $0x4] sm:$0xf]
      %v721 = vld [vmem:[%s718 + $0x8] sm:$0xf]
      %v722 = vld [vmem:[%s718 + $0xc] sm:$0xf]
      %v723 = vld [vmem:[%s718 + $0x18] sm:$0xf]
      %v724 = vld [vmem:[%s718 + $0x1c] sm:$0xf]
      %v725 = vld [vmem:[%s718 + $0x20] sm:$0xf]
      %v726 = vld [vmem:[%s718 + $0x24] sm:$0xf]
      %v727 = vld [vmem:[%s718 + $0x30] sm:$0xf]
      %v728 = vld [vmem:[%s718 + $0x34] sm:$0xf]
      %v729 = vld [vmem:[%s718 + $0x38] sm:$0xf]
      %v730 = vld [vmem:[%s718 + $0x3c] sm:$0xf]
      %v731 = vld [vmem:[%s718 + $0x48] sm:$0xf]
      %v732 = vld [vmem:[%s718 + $0x4c] sm:$0xf]
      %v733 = vld [vmem:[%s718 + $0x50] sm:$0xf]
      %v734 = vld [vmem:[%s718 + $0x54] sm:$0xf]
      %s735 = scalar_lea.vmem %s238, 128
      %v736 = vld [vmem:[%s735] sm:$0xf]
      %v737 = vld [vmem:[%s735 + $0x4] sm:$0xf]
      %v738 = vld [vmem:[%s735 + $0x8] sm:$0xf]
      %v739 = vld [vmem:[%s735 + $0xc] sm:$0xf]
      %v740 = vld [vmem:[%s735 + $0x10] sm:$0xf]
      %v741 = vld [vmem:[%s735 + $0x14] sm:$0xf]
      %v742 = vld [vmem:[%s735 + $0x18] sm:$0xf]
      %v743 = vld [vmem:[%s735 + $0x1c] sm:$0xf]
      %v744 = vld [vmem:[%s735 + $0x20] sm:$0xf]
      %v745 = vld [vmem:[%s735 + $0x24] sm:$0xf]
      %v746 = vld [vmem:[%s735 + $0x28] sm:$0xf]
      %v747 = vld [vmem:[%s735 + $0x2c] sm:$0xf]
      %v748 = vld [vmem:[%s735 + $0x30] sm:$0xf]
      %v749 = vld [vmem:[%s735 + $0x34] sm:$0xf]
      %v750 = vld [vmem:[%s735 + $0x38] sm:$0xf]
      %v751 = vld [vmem:[%s735 + $0x3c] sm:$0xf]
      %v768 = vunpack.c.l.b16 %v719
      %v769 = vunpack.c.l.b16 %v720
      %v770 = vunpack.c.l.b16 %v721
      %v771 = vunpack.c.l.b16 %v722
      %v772 = vunpack.c.l.b16 %v723
      %v773 = vunpack.c.l.b16 %v724
      %v774 = vunpack.c.l.b16 %v725
      %v775 = vunpack.c.l.b16 %v726
      %v776 = vunpack.c.l.b16 %v727
      %v777 = vunpack.c.l.b16 %v728
      %v778 = vunpack.c.l.b16 %v729
      %v779 = vunpack.c.l.b16 %v730
      %v780 = vunpack.c.l.b16 %v731
      %v781 = vunpack.c.l.b16 %v732
      %v782 = vunpack.c.l.b16 %v733
      %v783 = vunpack.c.l.b16 %v734
      %v784 = vpack.c.b16 %v769, %v768
      %v785 = vpack.c.b16 %v771, %v770
      %v786 = vpack.c.b16 %v773, %v772
      %v787 = vpack.c.b16 %v775, %v774
      %v788 = vpack.c.b16 %v777, %v776
      %v789 = vpack.c.b16 %v779, %v778
      %v790 = vpack.c.b16 %v781, %v780
      %v791 = vpack.c.b16 %v783, %v782
      %v816 = vunpack.c.l.b16 %v736
      %v817 = vunpack.c.l.b16 %v737
      %v818 = vunpack.c.l.b16 %v738
      %v819 = vunpack.c.l.b16 %v739
      %v820 = vunpack.c.l.b16 %v740
      %v821 = vunpack.c.l.b16 %v741
      %v822 = vunpack.c.l.b16 %v742
      %v823 = vunpack.c.l.b16 %v743
      %v824 = vunpack.c.l.b16 %v744
      %v825 = vunpack.c.l.b16 %v745
      %v826 = vunpack.c.l.b16 %v746
      %v827 = vunpack.c.l.b16 %v747
      %v828 = vunpack.c.l.b16 %v748
      %v829 = vunpack.c.l.b16 %v749
      %v830 = vunpack.c.l.b16 %v750
      %v831 = vunpack.c.l.b16 %v751
      %v832 = vpack.c.b16 %v817, %v816
      %v833 = vpack.c.b16 %v819, %v818
      %v834 = vpack.c.b16 %v821, %v820
      %v835 = vpack.c.b16 %v823, %v822
      %v836 = vpack.c.b16 %v825, %v824
      %v837 = vpack.c.b16 %v827, %v826
      %v838 = vpack.c.b16 %v829, %v828
      %v839 = vpack.c.b16 %v831, %v830
      %848 = vmatprep.subr.bf16.mxu0 0
      %849 = vmatpush1.bf16.msra.mxu0 %v832
      %850 = vmatprep.subr.bf16.mxu0 0
      %851 = vmatpush1.bf16.msra.mxu0 %v833
      %852 = vmatprep.subr.bf16.mxu0 0
      %853 = vmatpush1.bf16.msra.mxu0 %v834
      %854 = vmatprep.subr.bf16.mxu0 0
      %855 = vmatpush1.bf16.msra.mxu0 %v835
      %856 = vmatprep.subr.bf16.mxu0 0
      %857 = vmatpush1.bf16.msra.mxu0 %v836
      %858 = vmatprep.subr.bf16.mxu0 0
      %859 = vmatpush1.bf16.msra.mxu0 %v837
      %860 = vmatprep.subr.bf16.mxu0 0
      %861 = vmatpush1.bf16.msra.mxu0 %v838
      %862 = vmatprep.subr.bf16.mxu0 0
      %863 = vmatpush1.bf16.msra.mxu0 %v839
      %864 = vmatprep.subr.bf16.mxu0 0
      %865 = vmatpush1.bf16.msra.mxu0 0
      %866 = vmatprep.subr.bf16.mxu0 0
      %867 = vmatpush1.bf16.msra.mxu0 0
      %868 = vmatprep.subr.bf16.mxu0 0
      %869 = vmatpush1.bf16.msra.mxu0 0
      %870 = vmatprep.subr.bf16.mxu0 0
      %871 = vmatpush1.bf16.msra.mxu0 0
      %872 = vmatprep.subr.bf16.mxu0 0
      %873 = vmatpush1.bf16.msra.mxu0 0
      %874 = vmatprep.subr.bf16.mxu0 0
      %875 = vmatpush1.bf16.msra.mxu0 0
      %876 = vmatprep.subr.bf16.mxu0 0
      %877 = vmatpush1.bf16.msra.mxu0 0
      %878 = vmatprep.subr.bf16.mxu0 0
      %879 = vmatpush1.bf16.msra.mxu0 0
      %880 = vmatprep.mubr.bf16.mxu0 0
      %881 = vmatmul.mubr.bf16.gmra.mrb[0].mxu0 %v784
      %v882 = vpop.f32.mrb[0].mxu0
      %v883 = vadd.f32 0.0, %v882
      %v884 = vpop.f32.mrb[0].mxu0
      %v885 = vpop.f32.mrb[0].mxu0
      %v886 = vadd.f32 0.0, %v885
      %v887 = vpop.f32.mrb[0].mxu0
      %888 = vmatprep.mubr.bf16.mxu0 0
      %889 = vmatmul.mubr.bf16.gmra.mrb[0].mxu0 %v785
      %v890 = vpop.f32.mrb[0].mxu0
      %v891 = vadd.f32 0.0, %v890
      %v892 = vpop.f32.mrb[0].mxu0
      %v893 = vpop.f32.mrb[0].mxu0
      %v894 = vadd.f32 0.0, %v893
      %v895 = vpop.f32.mrb[0].mxu0
      %896 = vmatprep.mubr.bf16.mxu0 0
      %897 = vmatmul.mubr.bf16.gmra.mrb[0].mxu0 %v786
      %v898 = vpop.f32.mrb[0].mxu0
      %v899 = vadd.f32 0.0, %v898
      %v900 = vpop.f32.mrb[0].mxu0
      %v901 = vpop.f32.mrb[0].mxu0
      %v902 = vadd.f32 0.0, %v901
      %v903 = vpop.f32.mrb[0].mxu0
      %904 = vmatprep.mubr.bf16.mxu0 0
      %905 = vmatmul.mubr.bf16.gmra.mrb[0].mxu0 %v787
      %v906 = vpop.f32.mrb[0].mxu0
      %v907 = vadd.f32 0.0, %v906
      %v908 = vpop.f32.mrb[0].mxu0
      %v909 = vpop.f32.mrb[0].mxu0
      %v910 = vadd.f32 0.0, %v909
      %v911 = vpop.f32.mrb[0].mxu0
      %912 = vmatprep.mubr.bf16.mxu0 0
      %913 = vmatmul.mubr.bf16.gmra.mrb[0].mxu0 %v788
      %v914 = vpop.f32.mrb[0].mxu0
      %v915 = vadd.f32 0.0, %v914
      %v916 = vpop.f32.mrb[0].mxu0
      %v917 = vpop.f32.mrb[0].mxu0
      %v918 = vadd.f32 0.0, %v917
      %v919 = vpop.f32.mrb[0].mxu0
      %920 = vmatprep.mubr.bf16.mxu0 0
      %921 = vmatmul.mubr.bf16.gmra.mrb[0].mxu0 %v789
      %v922 = vpop.f32.mrb[0].mxu0
      %v923 = vadd.f32 0.0, %v922
      %v924 = vpop.f32.mrb[0].mxu0
      %v925 = vpop.f32.mrb[0].mxu0
      %v926 = vadd.f32 0.0, %v925
      %v927 = vpop.f32.mrb[0].mxu0
      %928 = vmatprep.mubr.bf16.mxu0 0
      %929 = vmatmul.mubr.bf16.gmra.mrb[0].mxu0 %v790
      %v930 = vpop.f32.mrb[0].mxu0
      %v931 = vadd.f32 0.0, %v930
      %v932 = vpop.f32.mrb[0].mxu0
      %v933 = vpop.f32.mrb[0].mxu0
      %v934 = vadd.f32 0.0, %v933
      %v935 = vpop.f32.mrb[0].mxu0
      %936 = vmatprep.mubr.bf16.mxu0 0
      %937 = vmatmul.mubr.bf16.gmra.mrb[0].mxu0 %v791
      %v938 = vpop.f32.mrb[0].mxu0
      %v939 = vadd.f32 0.0, %v938
      %v940 = vpop.f32.mrb[0].mxu0
      %v941 = vpop.f32.mrb[0].mxu0
      %v942 = vadd.f32 0.0, %v941
      %v943 = vpop.f32.mrb[0].mxu0
      %944 = vdwg.mxu0
      %v961 = vunpack.c.l.b16 %v685
      %v962 = vunpack.c.l.b16 %v686
      %v963 = vunpack.c.l.b16 %v687
      %v964 = vunpack.c.l.b16 %v688
      %v965 = vunpack.c.l.b16 %v689
      %v966 = vunpack.c.l.b16 %v690
      %v967 = vunpack.c.l.b16 %v691
      %v968 = vunpack.c.l.b16 %v692
      %v969 = vunpack.c.l.b16 %v693
      %v970 = vunpack.c.l.b16 %v694
      %v971 = vunpack.c.l.b16 %v695
      %v972 = vunpack.c.l.b16 %v696
      %v973 = vunpack.c.l.b16 %v697
      %v974 = vunpack.c.l.b16 %v698
      %v975 = vunpack.c.l.b16 %v699
      %v976 = vunpack.c.l.b16 %v700
      %v977 = vpack.c.b16 %v962, %v961
      %v978 = vpack.c.b16 %v964, %v963
      %v979 = vpack.c.b16 %v966, %v965
      %v980 = vpack.c.b16 %v968, %v967
      %v981 = vpack.c.b16 %v970, %v969
      %v982 = vpack.c.b16 %v972, %v971
      %v983 = vpack.c.b16 %v974, %v973
      %v984 = vpack.c.b16 %v976, %v975
      %v1009 = vunpack.c.l.b16 %v702
      %v1010 = vunpack.c.l.b16 %v703
      %v1011 = vunpack.c.l.b16 %v704
      %v1012 = vunpack.c.l.b16 %v705
      %v1013 = vunpack.c.l.b16 %v706
      %v1014 = vunpack.c.l.b16 %v707
      %v1015 = vunpack.c.l.b16 %v708
      %v1016 = vunpack.c.l.b16 %v709
      %v1017 = vunpack.c.l.b16 %v710
      %v1018 = vunpack.c.l.b16 %v711
      %v1019 = vunpack.c.l.b16 %v712
      %v1020 = vunpack.c.l.b16 %v713
      %v1021 = vunpack.c.l.b16 %v714
      %v1022 = vunpack.c.l.b16 %v715
      %v1023 = vunpack.c.l.b16 %v716
      %v1024 = vunpack.c.l.b16 %v717
      %v1025 = vpack.c.b16 %v1010, %v1009
      %v1026 = vpack.c.b16 %v1012, %v1011
      %v1027 = vpack.c.b16 %v1014, %v1013
      %v1028 = vpack.c.b16 %v1016, %v1015
      %v1029 = vpack.c.b16 %v1018, %v1017
      %v1030 = vpack.c.b16 %v1020, %v1019
      %v1031 = vpack.c.b16 %v1022, %v1021
      %v1032 = vpack.c.b16 %v1024, %v1023
      %1041 = vmatprep.subr.bf16.mxu0 0
      %1042 = vmatpush1.bf16.msra.mxu0 %v1025
      %1043 = vmatprep.subr.bf16.mxu0 0
      %1044 = vmatpush1.bf16.msra.mxu0 %v1026
      %1045 = vmatprep.subr.bf16.mxu0 0
      %1046 = vmatpush1.bf16.msra.mxu0 %v1027
      %1047 = vmatprep.subr.bf16.mxu0 0
      %1048 = vmatpush1.bf16.msra.mxu0 %v1028
      %1049 = vmatprep.subr.bf16.mxu0 0
      %1050 = vmatpush1.bf16.msra.mxu0 %v1029
      %1051 = vmatprep.subr.bf16.mxu0 0
      %1052 = vmatpush1.bf16.msra.mxu0 %v1030
      %1053 = vmatprep.subr.bf16.mxu0 0
      %1054 = vmatpush1.bf16.msra.mxu0 %v1031
      %1055 = vmatprep.subr.bf16.mxu0 0
      %1056 = vmatpush1.bf16.msra.mxu0 %v1032
      %1057 = vmatprep.subr.bf16.mxu0 0
      %1058 = vmatpush1.bf16.msra.mxu0 0
      %1059 = vmatprep.subr.bf16.mxu0 0
      %1060 = vmatpush1.bf16.msra.mxu0 0
      %1061 = vmatprep.subr.bf16.mxu0 0
      %1062 = vmatpush1.bf16.msra.mxu0 0
      %1063 = vmatprep.subr.bf16.mxu0 0
      %1064 = vmatpush1.bf16.msra.mxu0 0
      %1065 = vmatprep.subr.bf16.mxu0 0
      %1066 = vmatpush1.bf16.msra.mxu0 0
      %1067 = vmatprep.subr.bf16.mxu0 0
      %1068 = vmatpush1.bf16.msra.mxu0 0
      %1069 = vmatprep.subr.bf16.mxu0 0
      %1070 = vmatpush1.bf16.msra.mxu0 0
      %1071 = vmatprep.subr.bf16.mxu0 0
      %1072 = vmatpush1.bf16.msra.mxu0 0
      %1073 = vmatprep.mubr.bf16.mxu0 0
      %1074 = vmatmul.mubr.bf16.gmra.mrb[0].mxu0 %v977
      %v1075 = vpop.f32.mrb[0].mxu0
      %v1076 = vadd.f32 %v883, %v1075
      %v1077 = vpop.f32.mrb[0].mxu0
      %v1078 = vpop.f32.mrb[0].mxu0
      %v1079 = vadd.f32 %v886, %v1078
      %v1080 = vpop.f32.mrb[0].mxu0
      %1081 = vmatprep.mubr.bf16.mxu0 0
      %1082 = vmatmul.mubr.bf16.gmra.mrb[0].mxu0 %v978
      %v1083 = vpop.f32.mrb[0].mxu0
      %v1084 = vadd.f32 %v891, %v1083
      %v1085 = vpop.f32.mrb[0].mxu0
      %v1086 = vpop.f32.mrb[0].mxu0
      %v1087 = vadd.f32 %v894, %v1086
      %v1088 = vpop.f32.mrb[0].mxu0
      %1089 = vmatprep.mubr.bf16.mxu0 0
      %1090 = vmatmul.mubr.bf16.gmra.mrb[0].mxu0 %v979
      %v1091 = vpop.f32.mrb[0].mxu0
      %v1092 = vadd.f32 %v899, %v1091
      %v1093 = vpop.f32.mrb[0].mxu0
      %v1094 = vpop.f32.mrb[0].mxu0
      %v1095 = vadd.f32 %v902, %v1094
      %v1096 = vpop.f32.mrb[0].mxu0
      %1097 = vmatprep.mubr.bf16.mxu0 0
      %1098 = vmatmul.mubr.bf16.gmra.mrb[0].mxu0 %v980
      %v1099 = vpop.f32.mrb[0].mxu0
      %v1100 = vadd.f32 %v907, %v1099
      %v1101 = vpop.f32.mrb[0].mxu0
      %v1102 = vpop.f32.mrb[0].mxu0
      %v1103 = vadd.f32 %v910, %v1102
      %v1104 = vpop.f32.mrb[0].mxu0
      %1105 = vmatprep.mubr.bf16.mxu0 0
      %1106 = vmatmul.mubr.bf16.gmra.mrb[0].mxu0 %v981
      %v1107 = vpop.f32.mrb[0].mxu0
      %v1108 = vadd.f32 %v915, %v1107
      %v1109 = vpop.f32.mrb[0].mxu0
      %v1110 = vpop.f32.mrb[0].mxu0
      %v1111 = vadd.f32 %v918, %v1110
      %v1112 = vpop.f32.mrb[0].mxu0
      %1113 = vmatprep.mubr.bf16.mxu0 0
      %1114 = vmatmul.mubr.bf16.gmra.mrb[0].mxu0 %v982
      %v1115 = vpop.f32.mrb[0].mxu0
      %v1116 = vadd.f32 %v923, %v1115
      %v1117 = vpop.f32.mrb[0].mxu0
      %v1118 = vpop.f32.mrb[0].mxu0
      %v1119 = vadd.f32 %v926, %v1118
      %v1120 = vpop.f32.mrb[0].mxu0
      %1121 = vmatprep.mubr.bf16.mxu0 0
      %1122 = vmatmul.mubr.bf16.gmra.mrb[0].mxu0 %v983
      %v1123 = vpop.f32.mrb[0].mxu0
      %v1124 = vadd.f32 %v931, %v1123
      %v1125 = vpop.f32.mrb[0].mxu0
      %v1126 = vpop.f32.mrb[0].mxu0
      %v1127 = vadd.f32 %v934, %v1126
      %v1128 = vpop.f32.mrb[0].mxu0
      %1129 = vmatprep.mubr.bf16.mxu0 0
      %1130 = vmatmul.mubr.bf16.gmra.mrb[0].mxu0 %v984
      %v1131 = vpop.f32.mrb[0].mxu0
      %v1132 = vadd.f32 %v939, %v1131
      %v1133 = vpop.f32.mrb[0].mxu0
      %v1134 = vpop.f32.mrb[0].mxu0
      %v1135 = vadd.f32 %v942, %v1134
      %v1136 = vpop.f32.mrb[0].mxu0
      %1137 = vdwg.mxu0
      %s1138 = scalar_lea.vmem [#allocation2], 8
      %v1139 = vld [vmem:[%s1138] sm:$0xf]
      %v1140 = vld [vmem:[%s1138 + $0x4] sm:$0xf]
      %v1141 = vld [vmem:[%s1138 + $0x8] sm:$0xf]
      %v1142 = vld [vmem:[%s1138 + $0xc] sm:$0xf]
      %v1143 = vld [vmem:[%s1138 + $0x18] sm:$0xf]
      %v1144 = vld [vmem:[%s1138 + $0x1c] sm:$0xf]
      %v1145 = vld [vmem:[%s1138 + $0x20] sm:$0xf]
      %v1146 = vld [vmem:[%s1138 + $0x24] sm:$0xf]
      %v1147 = vld [vmem:[%s1138 + $0x30] sm:$0xf]
      %v1148 = vld [vmem:[%s1138 + $0x34] sm:$0xf]
      %v1149 = vld [vmem:[%s1138 + $0x38] sm:$0xf]
      %v1150 = vld [vmem:[%s1138 + $0x3c] sm:$0xf]
      %v1151 = vld [vmem:[%s1138 + $0x48] sm:$0xf]
      %v1152 = vld [vmem:[%s1138 + $0x4c] sm:$0xf]
      %v1153 = vld [vmem:[%s1138 + $0x50] sm:$0xf]
      %v1154 = vld [vmem:[%s1138 + $0x54] sm:$0xf]
      %s1155 = scalar_lea.vmem %s238, 192
      %v1156 = vld [vmem:[%s1155] sm:$0xf]
      %v1157 = vld [vmem:[%s1155 + $0x4] sm:$0xf]
      %v1158 = vld [vmem:[%s1155 + $0x8] sm:$0xf]
      %v1159 = vld [vmem:[%s1155 + $0xc] sm:$0xf]
      %v1160 = vld [vmem:[%s1155 + $0x10] sm:$0xf]
      %v1161 = vld [vmem:[%s1155 + $0x14] sm:$0xf]
      %v1162 = vld [vmem:[%s1155 + $0x18] sm:$0xf]
      %v1163 = vld [vmem:[%s1155 + $0x1c] sm:$0xf]
      %v1164 = vld [vmem:[%s1155 + $0x20] sm:$0xf]
      %v1165 = vld [vmem:[%s1155 + $0x24] sm:$0xf]
      %v1166 = vld [vmem:[%s1155 + $0x28] sm:$0xf]
      %v1167 = vld [vmem:[%s1155 + $0x2c] sm:$0xf]
      %v1168 = vld [vmem:[%s1155 + $0x30] sm:$0xf]
      %v1169 = vld [vmem:[%s1155 + $0x34] sm:$0xf]
      %v1170 = vld [vmem:[%s1155 + $0x38] sm:$0xf]
      %v1171 = vld [vmem:[%s1155 + $0x3c] sm:$0xf]
      %v1188 = vunpack.c.l.b16 %v1139
      %v1189 = vunpack.c.l.b16 %v1140
      %v1190 = vunpack.c.l.b16 %v1141
      %v1191 = vunpack.c.l.b16 %v1142
      %v1192 = vunpack.c.l.b16 %v1143
      %v1193 = vunpack.c.l.b16 %v1144
      %v1194 = vunpack.c.l.b16 %v1145
      %v1195 = vunpack.c.l.b16 %v1146
      %v1196 = vunpack.c.l.b16 %v1147
      %v1197 = vunpack.c.l.b16 %v1148
      %v1198 = vunpack.c.l.b16 %v1149
      %v1199 = vunpack.c.l.b16 %v1150
      %v1200 = vunpack.c.l.b16 %v1151
      %v1201 = vunpack.c.l.b16 %v1152
      %v1202 = vunpack.c.l.b16 %v1153
      %v1203 = vunpack.c.l.b16 %v1154
      %v1204 = vpack.c.b16 %v1189, %v1188
      %v1205 = vpack.c.b16 %v1191, %v1190
      %v1206 = vpack.c.b16 %v1193, %v1192
      %v1207 = vpack.c.b16 %v1195, %v1194
      %v1208 = vpack.c.b16 %v1197, %v1196
      %v1209 = vpack.c.b16 %v1199, %v1198
      %v1210 = vpack.c.b16 %v1201, %v1200
      %v1211 = vpack.c.b16 %v1203, %v1202
      %v1236 = vunpack.c.l.b16 %v1156
      %v1237 = vunpack.c.l.b16 %v1157
      %v1238 = vunpack.c.l.b16 %v1158
      %v1239 = vunpack.c.l.b16 %v1159
      %v1240 = vunpack.c.l.b16 %v1160
      %v1241 = vunpack.c.l.b16 %v1161
      %v1242 = vunpack.c.l.b16 %v1162
      %v1243 = vunpack.c.l.b16 %v1163
      %v1244 = vunpack.c.l.b16 %v1164
      %v1245 = vunpack.c.l.b16 %v1165
      %v1246 = vunpack.c.l.b16 %v1166
      %v1247 = vunpack.c.l.b16 %v1167
      %v1248 = vunpack.c.l.b16 %v1168
      %v1249 = vunpack.c.l.b16 %v1169
      %v1250 = vunpack.c.l.b16 %v1170
      %v1251 = vunpack.c.l.b16 %v1171
      %v1252 = vpack.c.b16 %v1237, %v1236
      %v1253 = vpack.c.b16 %v1239, %v1238
      %v1254 = vpack.c.b16 %v1241, %v1240
      %v1255 = vpack.c.b16 %v1243, %v1242
      %v1256 = vpack.c.b16 %v1245, %v1244
      %v1257 = vpack.c.b16 %v1247, %v1246
      %v1258 = vpack.c.b16 %v1249, %v1248
      %v1259 = vpack.c.b16 %v1251, %v1250
      %1268 = vmatprep.subr.bf16.mxu0 0
      %1269 = vmatpush1.bf16.msra.mxu0 %v1252
      %1270 = vmatprep.subr.bf16.mxu0 0
      %1271 = vmatpush1.bf16.msra.mxu0 %v1253
      %1272 = vmatprep.subr.bf16.mxu0 0
      %1273 = vmatpush1.bf16.msra.mxu0 %v1254
      %1274 = vmatprep.subr.bf16.mxu0 0
      %1275 = vmatpush1.bf16.msra.mxu0 %v1255
      %1276 = vmatprep.subr.bf16.mxu0 0
      %1277 = vmatpush1.bf16.msra.mxu0 %v1256
      %1278 = vmatprep.subr.bf16.mxu0 0
      %1279 = vmatpush1.bf16.msra.mxu0 %v1257
      %1280 = vmatprep.subr.bf16.mxu0 0
      %1281 = vmatpush1.bf16.msra.mxu0 %v1258
      %1282 = vmatprep.subr.bf16.mxu0 0
      %1283 = vmatpush1.bf16.msra.mxu0 %v1259
      %1284 = vmatprep.subr.bf16.mxu0 0
      %1285 = vmatpush1.bf16.msra.mxu0 0
      %1286 = vmatprep.subr.bf16.mxu0 0
      %1287 = vmatpush1.bf16.msra.mxu0 0
      %1288 = vmatprep.subr.bf16.mxu0 0
      %1289 = vmatpush1.bf16.msra.mxu0 0
      %1290 = vmatprep.subr.bf16.mxu0 0
      %1291 = vmatpush1.bf16.msra.mxu0 0
      %1292 = vmatprep.subr.bf16.mxu0 0
      %1293 = vmatpush1.bf16.msra.mxu0 0
      %1294 = vmatprep.subr.bf16.mxu0 0
      %1295 = vmatpush1.bf16.msra.mxu0 0
      %1296 = vmatprep.subr.bf16.mxu0 0
      %1297 = vmatpush1.bf16.msra.mxu0 0
      %1298 = vmatprep.subr.bf16.mxu0 0
      %1299 = vmatpush1.bf16.msra.mxu0 0
      %1300 = vmatprep.mubr.bf16.mxu0 0
      %1301 = vmatmul.mubr.bf16.gmra.mrb[0].mxu0 %v1204
      %v1302 = vpop.f32.mrb[0].mxu0
      %v1303 = vadd.f32 0.0, %v1302
      %v1304 = vpop.f32.mrb[0].mxu0
      %v1305 = vpop.f32.mrb[0].mxu0
      %v1306 = vadd.f32 0.0, %v1305
      %v1307 = vpop.f32.mrb[0].mxu0
      %1308 = vmatprep.mubr.bf16.mxu0 0
      %1309 = vmatmul.mubr.bf16.gmra.mrb[0].mxu0 %v1205
      %v1310 = vpop.f32.mrb[0].mxu0
      %v1311 = vadd.f32 0.0, %v1310
      %v1312 = vpop.f32.mrb[0].mxu0
      %v1313 = vpop.f32.mrb[0].mxu0
      %v1314 = vadd.f32 0.0, %v1313
      %v1315 = vpop.f32.mrb[0].mxu0
      %1316 = vmatprep.mubr.bf16.mxu0 0
      %1317 = vmatmul.mubr.bf16.gmra.mrb[0].mxu0 %v1206
      %v1318 = vpop.f32.mrb[0].mxu0
      %v1319 = vadd.f32 0.0, %v1318
      %v1320 = vpop.f32.mrb[0].mxu0
      %v1321 = vpop.f32.mrb[0].mxu0
      %v1322 = vadd.f32 0.0, %v1321
      %v1323 = vpop.f32.mrb[0].mxu0
      %1324 = vmatprep.mubr.bf16.mxu0 0
      %1325 = vmatmul.mubr.bf16.gmra.mrb[0].mxu0 %v1207
      %v1326 = vpop.f32.mrb[0].mxu0
      %v1327 = vadd.f32 0.0, %v1326
      %v1328 = vpop.f32.mrb[0].mxu0
      %v1329 = vpop.f32.mrb[0].mxu0
      %v1330 = vadd.f32 0.0, %v1329
      %v1331 = vpop.f32.mrb[0].mxu0
      %1332 = vmatprep.mubr.bf16.mxu0 0
      %1333 = vmatmul.mubr.bf16.gmra.mrb[0].mxu0 %v1208
      %v1334 = vpop.f32.mrb[0].mxu0
      %v1335 = vadd.f32 0.0, %v1334
      %v1336 = vpop.f32.mrb[0].mxu0
      %v1337 = vpop.f32.mrb[0].mxu0
      %v1338 = vadd.f32 0.0, %v1337
      %v1339 = vpop.f32.mrb[0].mxu0
      %1340 = vmatprep.mubr.bf16.mxu0 0
      %1341 = vmatmul.mubr.bf16.gmra.mrb[0].mxu0 %v1209
      %v1342 = vpop.f32.mrb[0].mxu0
      %v1343 = vadd.f32 0.0, %v1342
      %v1344 = vpop.f32.mrb[0].mxu0
      %v1345 = vpop.f32.mrb[0].mxu0
      %v1346 = vadd.f32 0.0, %v1345
      %v1347 = vpop.f32.mrb[0].mxu0
      %1348 = vmatprep.mubr.bf16.mxu0 0
      %1349 = vmatmul.mubr.bf16.gmra.mrb[0].mxu0 %v1210
      %v1350 = vpop.f32.mrb[0].mxu0
      %v1351 = vadd.f32 0.0, %v1350
      %v1352 = vpop.f32.mrb[0].mxu0
      %v1353 = vpop.f32.mrb[0].mxu0
      %v1354 = vadd.f32 0.0, %v1353
      %v1355 = vpop.f32.mrb[0].mxu0
      %1356 = vmatprep.mubr.bf16.mxu0 0
      %1357 = vmatmul.mubr.bf16.gmra.mrb[0].mxu0 %v1211
      %v1358 = vpop.f32.mrb[0].mxu0
      %v1359 = vadd.f32 0.0, %v1358
      %v1360 = vpop.f32.mrb[0].mxu0
      %v1361 = vpop.f32.mrb[0].mxu0
      %v1362 = vadd.f32 0.0, %v1361
      %v1363 = vpop.f32.mrb[0].mxu0
      %1364 = vdwg.mxu0
      %v1365 = vadd.f32 %v1076, %v1303
      %v1366 = vadd.f32 %v1079, %v1306
      %v1367 = vadd.f32 %v1084, %v1311
      %v1368 = vadd.f32 %v1087, %v1314
      %v1369 = vadd.f32 %v1092, %v1319
      %v1370 = vadd.f32 %v1095, %v1322
      %v1371 = vadd.f32 %v1100, %v1327
      %v1372 = vadd.f32 %v1103, %v1330
      %v1373 = vadd.f32 %v1108, %v1335
      %v1374 = vadd.f32 %v1111, %v1338
      %v1375 = vadd.f32 %v1116, %v1343
      %v1376 = vadd.f32 %v1119, %v1346
      %v1377 = vadd.f32 %v1124, %v1351
      %v1378 = vadd.f32 %v1127, %v1354
      %v1379 = vadd.f32 %v1132, %v1359
      %v1380 = vadd.f32 %v1135, %v1362
      %s1381 = scalar_lea.vmem [#allocation2], 24
      %v1382 = vld [vmem:[%s1381] sm:$0xf]
      %v1383 = vld [vmem:[%s1381 + $0x4] sm:$0xf]
      %v1384 = vld [vmem:[%s1381 + $0x8] sm:$0xf]
      %v1385 = vld [vmem:[%s1381 + $0xc] sm:$0xf]
      %v1386 = vld [vmem:[%s1381 + $0x18] sm:$0xf]
      %v1387 = vld [vmem:[%s1381 + $0x1c] sm:$0xf]
      %v1388 = vld [vmem:[%s1381 + $0x20] sm:$0xf]
      %v1389 = vld [vmem:[%s1381 + $0x24] sm:$0xf]
      %v1390 = vld [vmem:[%s1381 + $0x30] sm:$0xf]
      %v1391 = vld [vmem:[%s1381 + $0x34] sm:$0xf]
      %v1392 = vld [vmem:[%s1381 + $0x38] sm:$0xf]
      %v1393 = vld [vmem:[%s1381 + $0x3c] sm:$0xf]
      %v1394 = vld [vmem:[%s1381 + $0x48] sm:$0xf]
      %v1395 = vld [vmem:[%s1381 + $0x4c] sm:$0xf]
      %v1396 = vld [vmem:[%s1381 + $0x50] sm:$0xf]
      %v1397 = vld [vmem:[%s1381 + $0x54] sm:$0xf]
      %s1398 = scalar_lea.vmem %s238, 256
      %v1399 = vld [vmem:[%s1398] sm:$0xf]
      %v1400 = vld [vmem:[%s1398 + $0x4] sm:$0xf]
      %v1401 = vld [vmem:[%s1398 + $0x8] sm:$0xf]
      %v1402 = vld [vmem:[%s1398 + $0xc] sm:$0xf]
      %v1403 = vld [vmem:[%s1398 + $0x10] sm:$0xf]
      %v1404 = vld [vmem:[%s1398 + $0x14] sm:$0xf]
      %v1405 = vld [vmem:[%s1398 + $0x18] sm:$0xf]
      %v1406 = vld [vmem:[%s1398 + $0x1c] sm:$0xf]
      %v1407 = vld [vmem:[%s1398 + $0x20] sm:$0xf]
      %v1408 = vld [vmem:[%s1398 + $0x24] sm:$0xf]
      %v1409 = vld [vmem:[%s1398 + $0x28] sm:$0xf]
      %v1410 = vld [vmem:[%s1398 + $0x2c] sm:$0xf]
      %v1411 = vld [vmem:[%s1398 + $0x30] sm:$0xf]
      %v1412 = vld [vmem:[%s1398 + $0x34] sm:$0xf]
      %v1413 = vld [vmem:[%s1398 + $0x38] sm:$0xf]
      %v1414 = vld [vmem:[%s1398 + $0x3c] sm:$0xf]
      %v1431 = vunpack.c.l.b16 %v1382
      %v1432 = vunpack.c.l.b16 %v1383
      %v1433 = vunpack.c.l.b16 %v1384
      %v1434 = vunpack.c.l.b16 %v1385
      %v1435 = vunpack.c.l.b16 %v1386
      %v1436 = vunpack.c.l.b16 %v1387
      %v1437 = vunpack.c.l.b16 %v1388
      %v1438 = vunpack.c.l.b16 %v1389
      %v1439 = vunpack.c.l.b16 %v1390
      %v1440 = vunpack.c.l.b16 %v1391
      %v1441 = vunpack.c.l.b16 %v1392
      %v1442 = vunpack.c.l.b16 %v1393
      %v1443 = vunpack.c.l.b16 %v1394
      %v1444 = vunpack.c.l.b16 %v1395
      %v1445 = vunpack.c.l.b16 %v1396
      %v1446 = vunpack.c.l.b16 %v1397
      %v1447 = vpack.c.b16 %v1432, %v1431
      %v1448 = vpack.c.b16 %v1434, %v1433
      %v1449 = vpack.c.b16 %v1436, %v1435
      %v1450 = vpack.c.b16 %v1438, %v1437
      %v1451 = vpack.c.b16 %v1440, %v1439
      %v1452 = vpack.c.b16 %v1442, %v1441
      %v1453 = vpack.c.b16 %v1444, %v1443
      %v1454 = vpack.c.b16 %v1446, %v1445
      %v1479 = vunpack.c.l.b16 %v1399
      %v1480 = vunpack.c.l.b16 %v1400
      %v1481 = vunpack.c.l.b16 %v1401
      %v1482 = vunpack.c.l.b16 %v1402
      %v1483 = vunpack.c.l.b16 %v1403
      %v1484 = vunpack.c.l.b16 %v1404
      %v1485 = vunpack.c.l.b16 %v1405
      %v1486 = vunpack.c.l.b16 %v1406
      %v1487 = vunpack.c.l.b16 %v1407
      %v1488 = vunpack.c.l.b16 %v1408
      %v1489 = vunpack.c.l.b16 %v1409
      %v1490 = vunpack.c.l.b16 %v1410
      %v1491 = vunpack.c.l.b16 %v1411
      %v1492 = vunpack.c.l.b16 %v1412
      %v1493 = vunpack.c.l.b16 %v1413
      %v1494 = vunpack.c.l.b16 %v1414
      %v1495 = vpack.c.b16 %v1480, %v1479
      %v1496 = vpack.c.b16 %v1482, %v1481
      %v1497 = vpack.c.b16 %v1484, %v1483
      %v1498 = vpack.c.b16 %v1486, %v1485
      %v1499 = vpack.c.b16 %v1488, %v1487
      %v1500 = vpack.c.b16 %v1490, %v1489
      %v1501 = vpack.c.b16 %v1492, %v1491
      %v1502 = vpack.c.b16 %v1494, %v1493
      %1511 = vmatprep.subr.bf16.mxu0 0
      %1512 = vmatpush1.bf16.msra.mxu0 %v1495
      %1513 = vmatprep.subr.bf16.mxu0 0
      %1514 = vmatpush1.bf16.msra.mxu0 %v1496
      %1515 = vmatprep.subr.bf16.mxu0 0
      %1516 = vmatpush1.bf16.msra.mxu0 %v1497
      %1517 = vmatprep.subr.bf16.mxu0 0
      %1518 = vmatpush1.bf16.msra.mxu0 %v1498
      %1519 = vmatprep.subr.bf16.mxu0 0
      %1520 = vmatpush1.bf16.msra.mxu0 %v1499
      %1521 = vmatprep.subr.bf16.mxu0 0
      %1522 = vmatpush1.bf16.msra.mxu0 %v1500
      %1523 = vmatprep.subr.bf16.mxu0 0
      %1524 = vmatpush1.bf16.msra.mxu0 %v1501
      %1525 = vmatprep.subr.bf16.mxu0 0
      %1526 = vmatpush1.bf16.msra.mxu0 %v1502
      %1527 = vmatprep.subr.bf16.mxu0 0
      %1528 = vmatpush1.bf16.msra.mxu0 0
      %1529 = vmatprep.subr.bf16.mxu0 0
      %1530 = vmatpush1.bf16.msra.mxu0 0
      %1531 = vmatprep.subr.bf16.mxu0 0
      %1532 = vmatpush1.bf16.msra.mxu0 0
      %1533 = vmatprep.subr.bf16.mxu0 0
      %1534 = vmatpush1.bf16.msra.mxu0 0
      %1535 = vmatprep.subr.bf16.mxu0 0
      %1536 = vmatpush1.bf16.msra.mxu0 0
      %1537 = vmatprep.subr.bf16.mxu0 0
      %1538 = vmatpush1.bf16.msra.mxu0 0
      %1539 = vmatprep.subr.bf16.mxu0 0
      %1540 = vmatpush1.bf16.msra.mxu0 0
      %1541 = vmatprep.subr.bf16.mxu0 0
      %1542 = vmatpush1.bf16.msra.mxu0 0
      %1543 = vmatprep.mubr.bf16.mxu0 0
      %1544 = vmatmul.mubr.bf16.gmra.mrb[0].mxu0 %v1447
      %v1545 = vpop.f32.mrb[0].mxu0
      %v1546 = vadd.f32 0.0, %v1545
      %v1547 = vpop.f32.mrb[0].mxu0
      %v1548 = vpop.f32.mrb[0].mxu0
      %v1549 = vadd.f32 0.0, %v1548
      %v1550 = vpop.f32.mrb[0].mxu0
      %1551 = vmatprep.mubr.bf16.mxu0 0
      %1552 = vmatmul.mubr.bf16.gmra.mrb[0].mxu0 %v1448
      %v1553 = vpop.f32.mrb[0].mxu0
      %v1554 = vadd.f32 0.0, %v1553
      %v1555 = vpop.f32.mrb[0].mxu0
      %v1556 = vpop.f32.mrb[0].mxu0
      %v1557 = vadd.f32 0.0, %v1556
      %v1558 = vpop.f32.mrb[0].mxu0
      %1559 = vmatprep.mubr.bf16.mxu0 0
      %1560 = vmatmul.mubr.bf16.gmra.mrb[0].mxu0 %v1449
      %v1561 = vpop.f32.mrb[0].mxu0
      %v1562 = vadd.f32 0.0, %v1561
      %v1563 = vpop.f32.mrb[0].mxu0
      %v1564 = vpop.f32.mrb[0].mxu0
      %v1565 = vadd.f32 0.0, %v1564
      %v1566 = vpop.f32.mrb[0].mxu0
      %1567 = vmatprep.mubr.bf16.mxu0 0
      %1568 = vmatmul.mubr.bf16.gmra.mrb[0].mxu0 %v1450
      %v1569 = vpop.f32.mrb[0].mxu0
      %v1570 = vadd.f32 0.0, %v1569
      %v1571 = vpop.f32.mrb[0].mxu0
      %v1572 = vpop.f32.mrb[0].mxu0
      %v1573 = vadd.f32 0.0, %v1572
      %v1574 = vpop.f32.mrb[0].mxu0
      %1575 = vmatprep.mubr.bf16.mxu0 0
      %1576 = vmatmul.mubr.bf16.gmra.mrb[0].mxu0 %v1451
      %v1577 = vpop.f32.mrb[0].mxu0
      %v1578 = vadd.f32 0.0, %v1577
      %v1579 = vpop.f32.mrb[0].mxu0
      %v1580 = vpop.f32.mrb[0].mxu0
      %v1581 = vadd.f32 0.0, %v1580
      %v1582 = vpop.f32.mrb[0].mxu0
      %1583 = vmatprep.mubr.bf16.mxu0 0
      %1584 = vmatmul.mubr.bf16.gmra.mrb[0].mxu0 %v1452
      %v1585 = vpop.f32.mrb[0].mxu0
      %v1586 = vadd.f32 0.0, %v1585
      %v1587 = vpop.f32.mrb[0].mxu0
      %v1588 = vpop.f32.mrb[0].mxu0
      %v1589 = vadd.f32 0.0, %v1588
      %v1590 = vpop.f32.mrb[0].mxu0
      %1591 = vmatprep.mubr.bf16.mxu0 0
      %1592 = vmatmul.mubr.bf16.gmra.mrb[0].mxu0 %v1453
      %v1593 = vpop.f32.mrb[0].mxu0
      %v1594 = vadd.f32 0.0, %v1593
      %v1595 = vpop.f32.mrb[0].mxu0
      %v1596 = vpop.f32.mrb[0].mxu0
      %v1597 = vadd.f32 0.0, %v1596
      %v1598 = vpop.f32.mrb[0].mxu0
      %1599 = vmatprep.mubr.bf16.mxu0 0
      %1600 = vmatmul.mubr.bf16.gmra.mrb[0].mxu0 %v1454
      %v1601 = vpop.f32.mrb[0].mxu0
      %v1602 = vadd.f32 0.0, %v1601
      %v1603 = vpop.f32.mrb[0].mxu0
      %v1604 = vpop.f32.mrb[0].mxu0
      %v1605 = vadd.f32 0.0, %v1604
      %v1606 = vpop.f32.mrb[0].mxu0
      %1607 = vdwg.mxu0
      %v1608 = vadd.f32 %v1365, %v1546
      %v1609 = vadd.f32 %v1366, %v1549
      %v1610 = vadd.f32 %v1367, %v1554
      %v1611 = vadd.f32 %v1368, %v1557
      %v1612 = vadd.f32 %v1369, %v1562
      %v1613 = vadd.f32 %v1370, %v1565
      %v1614 = vadd.f32 %v1371, %v1570
      %v1615 = vadd.f32 %v1372, %v1573
      %v1616 = vadd.f32 %v1373, %v1578
      %v1617 = vadd.f32 %v1374, %v1581
      %v1618 = vadd.f32 %v1375, %v1586
      %v1619 = vadd.f32 %v1376, %v1589
      %v1620 = vadd.f32 %v1377, %v1594
      %v1621 = vadd.f32 %v1378, %v1597
      %v1622 = vadd.f32 %v1379, %v1602
      %v1623 = vadd.f32 %v1380, %v1605
      %v1624 = vld [vmem:[%s668] sm:$0xf]
      %v1625 = vld [vmem:[%s668 + $0x4] sm:$0xf]
      %v1626 = vld [vmem:[%s668 + $0x8] sm:$0xf]
      %v1627 = vld [vmem:[%s668 + $0xc] sm:$0xf]
      %v1628 = vld [vmem:[%s668 + $0x18] sm:$0xf]
      %v1629 = vld [vmem:[%s668 + $0x1c] sm:$0xf]
      %v1630 = vld [vmem:[%s668 + $0x20] sm:$0xf]
      %v1631 = vld [vmem:[%s668 + $0x24] sm:$0xf]
      %v1632 = vld [vmem:[%s668 + $0x30] sm:$0xf]
      %v1633 = vld [vmem:[%s668 + $0x34] sm:$0xf]
      %v1634 = vld [vmem:[%s668 + $0x38] sm:$0xf]
      %v1635 = vld [vmem:[%s668 + $0x3c] sm:$0xf]
      %v1636 = vld [vmem:[%s668 + $0x48] sm:$0xf]
      %v1637 = vld [vmem:[%s668 + $0x4c] sm:$0xf]
      %v1638 = vld [vmem:[%s668 + $0x50] sm:$0xf]
      %v1639 = vld [vmem:[%s668 + $0x54] sm:$0xf]
      %s1640 = scalar_lea.vmem %s238, 320
      %v1641 = vld [vmem:[%s1640] sm:$0xf]
      %v1642 = vld [vmem:[%s1640 + $0x4] sm:$0xf]
      %v1643 = vld [vmem:[%s1640 + $0x8] sm:$0xf]
      %v1644 = vld [vmem:[%s1640 + $0xc] sm:$0xf]
      %v1645 = vld [vmem:[%s1640 + $0x10] sm:$0xf]
      %v1646 = vld [vmem:[%s1640 + $0x14] sm:$0xf]
      %v1647 = vld [vmem:[%s1640 + $0x18] sm:$0xf]
      %v1648 = vld [vmem:[%s1640 + $0x1c] sm:$0xf]
      %v1649 = vld [vmem:[%s1640 + $0x20] sm:$0xf]
      %v1650 = vld [vmem:[%s1640 + $0x24] sm:$0xf]
      %v1651 = vld [vmem:[%s1640 + $0x28] sm:$0xf]
      %v1652 = vld [vmem:[%s1640 + $0x2c] sm:$0xf]
      %v1653 = vld [vmem:[%s1640 + $0x30] sm:$0xf]
      %v1654 = vld [vmem:[%s1640 + $0x34] sm:$0xf]
      %v1655 = vld [vmem:[%s1640 + $0x38] sm:$0xf]
      %v1656 = vld [vmem:[%s1640 + $0x3c] sm:$0xf]
      %v1673 = vunpack.c.l.b16 %v1624
      %v1674 = vunpack.c.l.b16 %v1625
      %v1675 = vunpack.c.l.b16 %v1626
      %v1676 = vunpack.c.l.b16 %v1627
      %v1677 = vunpack.c.l.b16 %v1628
      %v1678 = vunpack.c.l.b16 %v1629
      %v1679 = vunpack.c.l.b16 %v1630
      %v1680 = vunpack.c.l.b16 %v1631
      %v1681 = vunpack.c.l.b16 %v1632
      %v1682 = vunpack.c.l.b16 %v1633
      %v1683 = vunpack.c.l.b16 %v1634
      %v1684 = vunpack.c.l.b16 %v1635
      %v1685 = vunpack.c.l.b16 %v1636
      %v1686 = vunpack.c.l.b16 %v1637
      %v1687 = vunpack.c.l.b16 %v1638
      %v1688 = vunpack.c.l.b16 %v1639
      %v1689 = vpack.c.b16 %v1674, %v1673
      %v1690 = vpack.c.b16 %v1676, %v1675
      %v1691 = vpack.c.b16 %v1678, %v1677
      %v1692 = vpack.c.b16 %v1680, %v1679
      %v1693 = vpack.c.b16 %v1682, %v1681
      %v1694 = vpack.c.b16 %v1684, %v1683
      %v1695 = vpack.c.b16 %v1686, %v1685
      %v1696 = vpack.c.b16 %v1688, %v1687
      %v1721 = vunpack.c.l.b16 %v1641
      %v1722 = vunpack.c.l.b16 %v1642
      %v1723 = vunpack.c.l.b16 %v1643
      %v1724 = vunpack.c.l.b16 %v1644
      %v1725 = vunpack.c.l.b16 %v1645
      %v1726 = vunpack.c.l.b16 %v1646
      %v1727 = vunpack.c.l.b16 %v1647
      %v1728 = vunpack.c.l.b16 %v1648
      %v1729 = vunpack.c.l.b16 %v1649
      %v1730 = vunpack.c.l.b16 %v1650
      %v1731 = vunpack.c.l.b16 %v1651
      %v1732 = vunpack.c.l.b16 %v1652
      %v1733 = vunpack.c.l.b16 %v1653
      %v1734 = vunpack.c.l.b16 %v1654
      %v1735 = vunpack.c.l.b16 %v1655
      %v1736 = vunpack.c.l.b16 %v1656
      %v1737 = vpack.c.b16 %v1722, %v1721
      %v1738 = vpack.c.b16 %v1724, %v1723
      %v1739 = vpack.c.b16 %v1726, %v1725
      %v1740 = vpack.c.b16 %v1728, %v1727
      %v1741 = vpack.c.b16 %v1730, %v1729
      %v1742 = vpack.c.b16 %v1732, %v1731
      %v1743 = vpack.c.b16 %v1734, %v1733
      %v1744 = vpack.c.b16 %v1736, %v1735
      %1753 = vmatprep.subr.bf16.mxu0 0
      %1754 = vmatpush1.bf16.msra.mxu0 %v1737
      %1755 = vmatprep.subr.bf16.mxu0 0
      %1756 = vmatpush1.bf16.msra.mxu0 %v1738
      %1757 = vmatprep.subr.bf16.mxu0 0
      %1758 = vmatpush1.bf16.msra.mxu0 %v1739
      %1759 = vmatprep.subr.bf16.mxu0 0
      %1760 = vmatpush1.bf16.msra.mxu0 %v1740
      %1761 = vmatprep.subr.bf16.mxu0 0
      %1762 = vmatpush1.bf16.msra.mxu0 %v1741
      %1763 = vmatprep.subr.bf16.mxu0 0
      %1764 = vmatpush1.bf16.msra.mxu0 %v1742
      %1765 = vmatprep.subr.bf16.mxu0 0
      %1766 = vmatpush1.bf16.msra.mxu0 %v1743
      %1767 = vmatprep.subr.bf16.mxu0 0
      %1768 = vmatpush1.bf16.msra.mxu0 %v1744
      %1769 = vmatprep.subr.bf16.mxu0 0
      %1770 = vmatpush1.bf16.msra.mxu0 0
      %1771 = vmatprep.subr.bf16.mxu0 0
      %1772 = vmatpush1.bf16.msra.mxu0 0
      %1773 = vmatprep.subr.bf16.mxu0 0
      %1774 = vmatpush1.bf16.msra.mxu0 0
      %1775 = vmatprep.subr.bf16.mxu0 0
      %1776 = vmatpush1.bf16.msra.mxu0 0
      %1777 = vmatprep.subr.bf16.mxu0 0
      %1778 = vmatpush1.bf16.msra.mxu0 0
      %1779 = vmatprep.subr.bf16.mxu0 0
      %1780 = vmatpush1.bf16.msra.mxu0 0
      %1781 = vmatprep.subr.bf16.mxu0 0
      %1782 = vmatpush1.bf16.msra.mxu0 0
      %1783 = vmatprep.subr.bf16.mxu0 0
      %1784 = vmatpush1.bf16.msra.mxu0 0
      %1785 = vmatprep.mubr.bf16.mxu0 0
      %1786 = vmatmul.mubr.bf16.gmra.mrb[0].mxu0 %v1689
      %v1787 = vpop.f32.mrb[0].mxu0
      %v1788 = vadd.f32 0.0, %v1787
      %v1789 = vpop.f32.mrb[0].mxu0
      %v1790 = vpop.f32.mrb[0].mxu0
      %v1791 = vadd.f32 0.0, %v1790
      %v1792 = vpop.f32.mrb[0].mxu0
      %1793 = vmatprep.mubr.bf16.mxu0 0
      %1794 = vmatmul.mubr.bf16.gmra.mrb[0].mxu0 %v1690
      %v1795 = vpop.f32.mrb[0].mxu0
      %v1796 = vadd.f32 0.0, %v1795
      %v1797 = vpop.f32.mrb[0].mxu0
      %v1798 = vpop.f32.mrb[0].mxu0
      %v1799 = vadd.f32 0.0, %v1798
      %v1800 = vpop.f32.mrb[0].mxu0
      %1801 = vmatprep.mubr.bf16.mxu0 0
      %1802 = vmatmul.mubr.bf16.gmra.mrb[0].mxu0 %v1691
      %v1803 = vpop.f32.mrb[0].mxu0
      %v1804 = vadd.f32 0.0, %v1803
      %v1805 = vpop.f32.mrb[0].mxu0
      %v1806 = vpop.f32.mrb[0].mxu0
      %v1807 = vadd.f32 0.0, %v1806
      %v1808 = vpop.f32.mrb[0].mxu0
      %1809 = vmatprep.mubr.bf16.mxu0 0
      %1810 = vmatmul.mubr.bf16.gmra.mrb[0].mxu0 %v1692
      %v1811 = vpop.f32.mrb[0].mxu0
      %v1812 = vadd.f32 0.0, %v1811
      %v1813 = vpop.f32.mrb[0].mxu0
      %v1814 = vpop.f32.mrb[0].mxu0
      %v1815 = vadd.f32 0.0, %v1814
      %v1816 = vpop.f32.mrb[0].mxu0
      %1817 = vmatprep.mubr.bf16.mxu0 0
      %1818 = vmatmul.mubr.bf16.gmra.mrb[0].mxu0 %v1693
      %v1819 = vpop.f32.mrb[0].mxu0
      %v1820 = vadd.f32 0.0, %v1819
      %v1821 = vpop.f32.mrb[0].mxu0
      %v1822 = vpop.f32.mrb[0].mxu0
      %v1823 = vadd.f32 0.0, %v1822
      %v1824 = vpop.f32.mrb[0].mxu0
      %1825 = vmatprep.mubr.bf16.mxu0 0
      %1826 = vmatmul.mubr.bf16.gmra.mrb[0].mxu0 %v1694
      %v1827 = vpop.f32.mrb[0].mxu0
      %v1828 = vadd.f32 0.0, %v1827
      %v1829 = vpop.f32.mrb[0].mxu0
      %v1830 = vpop.f32.mrb[0].mxu0
      %v1831 = vadd.f32 0.0, %v1830
      %v1832 = vpop.f32.mrb[0].mxu0
      %1833 = vmatprep.mubr.bf16.mxu0 0
      %1834 = vmatmul.mubr.bf16.gmra.mrb[0].mxu0 %v1695
      %v1835 = vpop.f32.mrb[0].mxu0
      %v1836 = vadd.f32 0.0, %v1835
      %v1837 = vpop.f32.mrb[0].mxu0
      %v1838 = vpop.f32.mrb[0].mxu0
      %v1839 = vadd.f32 0.0, %v1838
      %v1840 = vpop.f32.mrb[0].mxu0
      %1841 = vmatprep.mubr.bf16.mxu0 0
      %1842 = vmatmul.mubr.bf16.gmra.mrb[0].mxu0 %v1696
      %v1843 = vpop.f32.mrb[0].mxu0
      %v1844 = vadd.f32 0.0, %v1843
      %v1845 = vpop.f32.mrb[0].mxu0
      %v1846 = vpop.f32.mrb[0].mxu0
      %v1847 = vadd.f32 0.0, %v1846
      %v1848 = vpop.f32.mrb[0].mxu0
      %1849 = vdwg.mxu0
      %v1850 = vadd.f32 %v1608, %v1788
      %v1851 = vadd.f32 %v1609, %v1791
      %v1852 = vadd.f32 %v1610, %v1796
      %v1853 = vadd.f32 %v1611, %v1799
      %v1854 = vadd.f32 %v1612, %v1804
      %v1855 = vadd.f32 %v1613, %v1807
      %v1856 = vadd.f32 %v1614, %v1812
      %v1857 = vadd.f32 %v1615, %v1815
      %v1858 = vadd.f32 %v1616, %v1820
      %v1859 = vadd.f32 %v1617, %v1823
      %v1860 = vadd.f32 %v1618, %v1828
      %v1861 = vadd.f32 %v1619, %v1831
      %v1862 = vadd.f32 %v1620, %v1836
      %v1863 = vadd.f32 %v1621, %v1839
      %v1864 = vadd.f32 %v1622, %v1844
      %v1865 = vadd.f32 %v1623, %v1847
      %s1866 = scalar_lea.vmem [#allocation2], 32
      %v1867 = vld [vmem:[%s1866] sm:$0xf]
      %v1868 = vld [vmem:[%s1866 + $0x4] sm:$0xf]
      %v1869 = vld [vmem:[%s1866 + $0x8] sm:$0xf]
      %v1870 = vld [vmem:[%s1866 + $0xc] sm:$0xf]
      %v1871 = vld [vmem:[%s1866 + $0x18] sm:$0xf]
      %v1872 = vld [vmem:[%s1866 + $0x1c] sm:$0xf]
      %v1873 = vld [vmem:[%s1866 + $0x20] sm:$0xf]
      %v1874 = vld [vmem:[%s1866 + $0x24] sm:$0xf]
      %v1875 = vld [vmem:[%s1866 + $0x30] sm:$0xf]
      %v1876 = vld [vmem:[%s1866 + $0x34] sm:$0xf]
      %v1877 = vld [vmem:[%s1866 + $0x38] sm:$0xf]
      %v1878 = vld [vmem:[%s1866 + $0x3c] sm:$0xf]
      %v1879 = vld [vmem:[%s1866 + $0x48] sm:$0xf]
      %v1880 = vld [vmem:[%s1866 + $0x4c] sm:$0xf]
      %v1881 = vld [vmem:[%s1866 + $0x50] sm:$0xf]
      %v1882 = vld [vmem:[%s1866 + $0x54] sm:$0xf]
      %s1883 = scalar_lea.vmem %s238, 384
      %v1884 = vld [vmem:[%s1883] sm:$0xf]
      %v1885 = vld [vmem:[%s1883 + $0x4] sm:$0xf]
      %v1886 = vld [vmem:[%s1883 + $0x8] sm:$0xf]
      %v1887 = vld [vmem:[%s1883 + $0xc] sm:$0xf]
      %v1888 = vld [vmem:[%s1883 + $0x10] sm:$0xf]
      %v1889 = vld [vmem:[%s1883 + $0x14] sm:$0xf]
      %v1890 = vld [vmem:[%s1883 + $0x18] sm:$0xf]
      %v1891 = vld [vmem:[%s1883 + $0x1c] sm:$0xf]
      %v1892 = vld [vmem:[%s1883 + $0x20] sm:$0xf]
      %v1893 = vld [vmem:[%s1883 + $0x24] sm:$0xf]
      %v1894 = vld [vmem:[%s1883 + $0x28] sm:$0xf]
      %v1895 = vld [vmem:[%s1883 + $0x2c] sm:$0xf]
      %v1896 = vld [vmem:[%s1883 + $0x30] sm:$0xf]
      %v1897 = vld [vmem:[%s1883 + $0x34] sm:$0xf]
      %v1898 = vld [vmem:[%s1883 + $0x38] sm:$0xf]
      %v1899 = vld [vmem:[%s1883 + $0x3c] sm:$0xf]
      %v1916 = vunpack.c.l.b16 %v1867
      %v1917 = vunpack.c.l.b16 %v1868
      %v1918 = vunpack.c.l.b16 %v1869
      %v1919 = vunpack.c.l.b16 %v1870
      %v1920 = vunpack.c.l.b16 %v1871
      %v1921 = vunpack.c.l.b16 %v1872
      %v1922 = vunpack.c.l.b16 %v1873
      %v1923 = vunpack.c.l.b16 %v1874
      %v1924 = vunpack.c.l.b16 %v1875
      %v1925 = vunpack.c.l.b16 %v1876
      %v1926 = vunpack.c.l.b16 %v1877
      %v1927 = vunpack.c.l.b16 %v1878
      %v1928 = vunpack.c.l.b16 %v1879
      %v1929 = vunpack.c.l.b16 %v1880
      %v1930 = vunpack.c.l.b16 %v1881
      %v1931 = vunpack.c.l.b16 %v1882
      %v1932 = vpack.c.b16 %v1917, %v1916
      %v1933 = vpack.c.b16 %v1919, %v1918
      %v1934 = vpack.c.b16 %v1921, %v1920
      %v1935 = vpack.c.b16 %v1923, %v1922
      %v1936 = vpack.c.b16 %v1925, %v1924
      %v1937 = vpack.c.b16 %v1927, %v1926
      %v1938 = vpack.c.b16 %v1929, %v1928
      %v1939 = vpack.c.b16 %v1931, %v1930
      %v1964 = vunpack.c.l.b16 %v1884
      %v1965 = vunpack.c.l.b16 %v1885
      %v1966 = vunpack.c.l.b16 %v1886
      %v1967 = vunpack.c.l.b16 %v1887
      %v1968 = vunpack.c.l.b16 %v1888
      %v1969 = vunpack.c.l.b16 %v1889
      %v1970 = vunpack.c.l.b16 %v1890
      %v1971 = vunpack.c.l.b16 %v1891
      %v1972 = vunpack.c.l.b16 %v1892
      %v1973 = vunpack.c.l.b16 %v1893
      %v1974 = vunpack.c.l.b16 %v1894
      %v1975 = vunpack.c.l.b16 %v1895
      %v1976 = vunpack.c.l.b16 %v1896
      %v1977 = vunpack.c.l.b16 %v1897
      %v1978 = vunpack.c.l.b16 %v1898
      %v1979 = vunpack.c.l.b16 %v1899
      %v1980 = vpack.c.b16 %v1965, %v1964
      %v1981 = vpack.c.b16 %v1967, %v1966
      %v1982 = vpack.c.b16 %v1969, %v1968
      %v1983 = vpack.c.b16 %v1971, %v1970
      %v1984 = vpack.c.b16 %v1973, %v1972
      %v1985 = vpack.c.b16 %v1975, %v1974
      %v1986 = vpack.c.b16 %v1977, %v1976
      %v1987 = vpack.c.b16 %v1979, %v1978
      %1996 = vmatprep.subr.bf16.mxu0 0
      %1997 = vmatpush1.bf16.msra.mxu0 %v1980
      %1998 = vmatprep.subr.bf16.mxu0 0
      %1999 = vmatpush1.bf16.msra.mxu0 %v1981
      %2000 = vmatprep.subr.bf16.mxu0 0
      %2001 = vmatpush1.bf16.msra.mxu0 %v1982
      %2002 = vmatprep.subr.bf16.mxu0 0
      %2003 = vmatpush1.bf16.msra.mxu0 %v1983
      %2004 = vmatprep.subr.bf16.mxu0 0
      %2005 = vmatpush1.bf16.msra.mxu0 %v1984
      %2006 = vmatprep.subr.bf16.mxu0 0
      %2007 = vmatpush1.bf16.msra.mxu0 %v1985
      %2008 = vmatprep.subr.bf16.mxu0 0
      %2009 = vmatpush1.bf16.msra.mxu0 %v1986
      %2010 = vmatprep.subr.bf16.mxu0 0
      %2011 = vmatpush1.bf16.msra.mxu0 %v1987
      %2012 = vmatprep.subr.bf16.mxu0 0
      %2013 = vmatpush1.bf16.msra.mxu0 0
      %2014 = vmatprep.subr.bf16.mxu0 0
      %2015 = vmatpush1.bf16.msra.mxu0 0
      %2016 = vmatprep.subr.bf16.mxu0 0
      %2017 = vmatpush1.bf16.msra.mxu0 0
      %2018 = vmatprep.subr.bf16.mxu0 0
      %2019 = vmatpush1.bf16.msra.mxu0 0
      %2020 = vmatprep.subr.bf16.mxu0 0
      %2021 = vmatpush1.bf16.msra.mxu0 0
      %2022 = vmatprep.subr.bf16.mxu0 0
      %2023 = vmatpush1.bf16.msra.mxu0 0
      %2024 = vmatprep.subr.bf16.mxu0 0
      %2025 = vmatpush1.bf16.msra.mxu0 0
      %2026 = vmatprep.subr.bf16.mxu0 0
      %2027 = vmatpush1.bf16.msra.mxu0 0
      %2028 = vmatprep.mubr.bf16.mxu0 0
      %2029 = vmatmul.mubr.bf16.gmra.mrb[0].mxu0 %v1932
      %v2030 = vpop.f32.mrb[0].mxu0
      %v2031 = vadd.f32 0.0, %v2030
      %v2032 = vpop.f32.mrb[0].mxu0
      %v2033 = vpop.f32.mrb[0].mxu0
      %v2034 = vadd.f32 0.0, %v2033
      %v2035 = vpop.f32.mrb[0].mxu0
      %2036 = vmatprep.mubr.bf16.mxu0 0
      %2037 = vmatmul.mubr.bf16.gmra.mrb[0].mxu0 %v1933
      %v2038 = vpop.f32.mrb[0].mxu0
      %v2039 = vadd.f32 0.0, %v2038
      %v2040 = vpop.f32.mrb[0].mxu0
      %v2041 = vpop.f32.mrb[0].mxu0
      %v2042 = vadd.f32 0.0, %v2041
      %v2043 = vpop.f32.mrb[0].mxu0
      %2044 = vmatprep.mubr.bf16.mxu0 0
      %2045 = vmatmul.mubr.bf16.gmra.mrb[0].mxu0 %v1934
      %v2046 = vpop.f32.mrb[0].mxu0
      %v2047 = vadd.f32 0.0, %v2046
      %v2048 = vpop.f32.mrb[0].mxu0
      %v2049 = vpop.f32.mrb[0].mxu0
      %v2050 = vadd.f32 0.0, %v2049
      %v2051 = vpop.f32.mrb[0].mxu0
      %2052 = vmatprep.mubr.bf16.mxu0 0
      %2053 = vmatmul.mubr.bf16.gmra.mrb[0].mxu0 %v1935
      %v2054 = vpop.f32.mrb[0].mxu0
      %v2055 = vadd.f32 0.0, %v2054
      %v2056 = vpop.f32.mrb[0].mxu0
      %v2057 = vpop.f32.mrb[0].mxu0
      %v2058 = vadd.f32 0.0, %v2057
      %v2059 = vpop.f32.mrb[0].mxu0
      %2060 = vmatprep.mubr.bf16.mxu0 0
      %2061 = vmatmul.mubr.bf16.gmra.mrb[0].mxu0 %v1936
      %v2062 = vpop.f32.mrb[0].mxu0
      %v2063 = vadd.f32 0.0, %v2062
      %v2064 = vpop.f32.mrb[0].mxu0
      %v2065 = vpop.f32.mrb[0].mxu0
      %v2066 = vadd.f32 0.0, %v2065
      %v2067 = vpop.f32.mrb[0].mxu0
      %2068 = vmatprep.mubr.bf16.mxu0 0
      %2069 = vmatmul.mubr.bf16.gmra.mrb[0].mxu0 %v1937
      %v2070 = vpop.f32.mrb[0].mxu0
      %v2071 = vadd.f32 0.0, %v2070
      %v2072 = vpop.f32.mrb[0].mxu0
      %v2073 = vpop.f32.mrb[0].mxu0
      %v2074 = vadd.f32 0.0, %v2073
      %v2075 = vpop.f32.mrb[0].mxu0
      %2076 = vmatprep.mubr.bf16.mxu0 0
      %2077 = vmatmul.mubr.bf16.gmra.mrb[0].mxu0 %v1938
      %v2078 = vpop.f32.mrb[0].mxu0
      %v2079 = vadd.f32 0.0, %v2078
      %v2080 = vpop.f32.mrb[0].mxu0
      %v2081 = vpop.f32.mrb[0].mxu0
      %v2082 = vadd.f32 0.0, %v2081
      %v2083 = vpop.f32.mrb[0].mxu0
      %2084 = vmatprep.mubr.bf16.mxu0 0
      %2085 = vmatmul.mubr.bf16.gmra.mrb[0].mxu0 %v1939
      %v2086 = vpop.f32.mrb[0].mxu0
      %v2087 = vadd.f32 0.0, %v2086
      %v2088 = vpop.f32.mrb[0].mxu0
      %v2089 = vpop.f32.mrb[0].mxu0
      %v2090 = vadd.f32 0.0, %v2089
      %v2091 = vpop.f32.mrb[0].mxu0
      %2092 = vdwg.mxu0
      %v2093 = vadd.f32 %v1850, %v2031
      %v2094 = vadd.f32 %v1851, %v2034
      %v2095 = vadd.f32 %v1852, %v2039
      %v2096 = vadd.f32 %v1853, %v2042
      %v2097 = vadd.f32 %v1854, %v2047
      %v2098 = vadd.f32 %v1855, %v2050
      %v2099 = vadd.f32 %v1856, %v2055
      %v2100 = vadd.f32 %v1857, %v2058
      %v2101 = vadd.f32 %v1858, %v2063
      %v2102 = vadd.f32 %v1859, %v2066
      %v2103 = vadd.f32 %v1860, %v2071
      %v2104 = vadd.f32 %v1861, %v2074
      %v2105 = vadd.f32 %v1862, %v2079
      %v2106 = vadd.f32 %v1863, %v2082
      %v2107 = vadd.f32 %v1864, %v2087
      %v2108 = vadd.f32 %v1865, %v2090
      %s2109 = scalar_lea.vmem [#allocation2], 48
      %v2110 = vld [vmem:[%s2109] sm:$0xf]
      %v2111 = vld [vmem:[%s2109 + $0x4] sm:$0xf]
      %v2112 = vld [vmem:[%s2109 + $0x8] sm:$0xf]
      %v2113 = vld [vmem:[%s2109 + $0xc] sm:$0xf]
      %v2114 = vld [vmem:[%s2109 + $0x18] sm:$0xf]
      %v2115 = vld [vmem:[%s2109 + $0x1c] sm:$0xf]
      %v2116 = vld [vmem:[%s2109 + $0x20] sm:$0xf]
      %v2117 = vld [vmem:[%s2109 + $0x24] sm:$0xf]
      %v2118 = vld [vmem:[%s2109 + $0x30] sm:$0xf]
      %v2119 = vld [vmem:[%s2109 + $0x34] sm:$0xf]
      %v2120 = vld [vmem:[%s2109 + $0x38] sm:$0xf]
      %v2121 = vld [vmem:[%s2109 + $0x3c] sm:$0xf]
      %v2122 = vld [vmem:[%s2109 + $0x48] sm:$0xf]
      %v2123 = vld [vmem:[%s2109 + $0x4c] sm:$0xf]
      %v2124 = vld [vmem:[%s2109 + $0x50] sm:$0xf]
      %v2125 = vld [vmem:[%s2109 + $0x54] sm:$0xf]
      %s2126 = scalar_lea.vmem %s238, 448
      %v2127 = vld [vmem:[%s2126] sm:$0xf]
      %v2128 = vld [vmem:[%s2126 + $0x4] sm:$0xf]
      %v2129 = vld [vmem:[%s2126 + $0x8] sm:$0xf]
      %v2130 = vld [vmem:[%s2126 + $0xc] sm:$0xf]
      %v2131 = vld [vmem:[%s2126 + $0x10] sm:$0xf]
      %v2132 = vld [vmem:[%s2126 + $0x14] sm:$0xf]
      %v2133 = vld [vmem:[%s2126 + $0x18] sm:$0xf]
      %v2134 = vld [vmem:[%s2126 + $0x1c] sm:$0xf]
      %v2135 = vld [vmem:[%s2126 + $0x20] sm:$0xf]
      %v2136 = vld [vmem:[%s2126 + $0x24] sm:$0xf]
      %v2137 = vld [vmem:[%s2126 + $0x28] sm:$0xf]
      %v2138 = vld [vmem:[%s2126 + $0x2c] sm:$0xf]
      %v2139 = vld [vmem:[%s2126 + $0x30] sm:$0xf]
      %v2140 = vld [vmem:[%s2126 + $0x34] sm:$0xf]
      %v2141 = vld [vmem:[%s2126 + $0x38] sm:$0xf]
      %v2142 = vld [vmem:[%s2126 + $0x3c] sm:$0xf]
      %v2159 = vunpack.c.l.b16 %v2110
      %v2160 = vunpack.c.l.b16 %v2111
      %v2161 = vunpack.c.l.b16 %v2112
      %v2162 = vunpack.c.l.b16 %v2113
      %v2163 = vunpack.c.l.b16 %v2114
      %v2164 = vunpack.c.l.b16 %v2115
      %v2165 = vunpack.c.l.b16 %v2116
      %v2166 = vunpack.c.l.b16 %v2117
      %v2167 = vunpack.c.l.b16 %v2118
      %v2168 = vunpack.c.l.b16 %v2119
      %v2169 = vunpack.c.l.b16 %v2120
      %v2170 = vunpack.c.l.b16 %v2121
      %v2171 = vunpack.c.l.b16 %v2122
      %v2172 = vunpack.c.l.b16 %v2123
      %v2173 = vunpack.c.l.b16 %v2124
      %v2174 = vunpack.c.l.b16 %v2125
      %v2175 = vpack.c.b16 %v2160, %v2159
      %v2176 = vpack.c.b16 %v2162, %v2161
      %v2177 = vpack.c.b16 %v2164, %v2163
      %v2178 = vpack.c.b16 %v2166, %v2165
      %v2179 = vpack.c.b16 %v2168, %v2167
      %v2180 = vpack.c.b16 %v2170, %v2169
      %v2181 = vpack.c.b16 %v2172, %v2171
      %v2182 = vpack.c.b16 %v2174, %v2173
      %v2207 = vunpack.c.l.b16 %v2127
      %v2208 = vunpack.c.l.b16 %v2128
      %v2209 = vunpack.c.l.b16 %v2129
      %v2210 = vunpack.c.l.b16 %v2130
      %v2211 = vunpack.c.l.b16 %v2131
      %v2212 = vunpack.c.l.b16 %v2132
      %v2213 = vunpack.c.l.b16 %v2133
      %v2214 = vunpack.c.l.b16 %v2134
      %v2215 = vunpack.c.l.b16 %v2135
      %v2216 = vunpack.c.l.b16 %v2136
      %v2217 = vunpack.c.l.b16 %v2137
      %v2218 = vunpack.c.l.b16 %v2138
      %v2219 = vunpack.c.l.b16 %v2139
      %v2220 = vunpack.c.l.b16 %v2140
      %v2221 = vunpack.c.l.b16 %v2141
      %v2222 = vunpack.c.l.b16 %v2142
      %v2223 = vpack.c.b16 %v2208, %v2207
      %v2224 = vpack.c.b16 %v2210, %v2209
      %v2225 = vpack.c.b16 %v2212, %v2211
      %v2226 = vpack.c.b16 %v2214, %v2213
      %v2227 = vpack.c.b16 %v2216, %v2215
      %v2228 = vpack.c.b16 %v2218, %v2217
      %v2229 = vpack.c.b16 %v2220, %v2219
      %v2230 = vpack.c.b16 %v2222, %v2221
      %2239 = vmatprep.subr.bf16.mxu0 0
      %2240 = vmatpush1.bf16.msra.mxu0 %v2223
      %2241 = vmatprep.subr.bf16.mxu0 0
      %2242 = vmatpush1.bf16.msra.mxu0 %v2224
      %2243 = vmatprep.subr.bf16.mxu0 0
      %2244 = vmatpush1.bf16.msra.mxu0 %v2225
      %2245 = vmatprep.subr.bf16.mxu0 0
      %2246 = vmatpush1.bf16.msra.mxu0 %v2226
      %2247 = vmatprep.subr.bf16.mxu0 0
      %2248 = vmatpush1.bf16.msra.mxu0 %v2227
      %2249 = vmatprep.subr.bf16.mxu0 0
      %2250 = vmatpush1.bf16.msra.mxu0 %v2228
      %2251 = vmatprep.subr.bf16.mxu0 0
      %2252 = vmatpush1.bf16.msra.mxu0 %v2229
      %2253 = vmatprep.subr.bf16.mxu0 0
      %2254 = vmatpush1.bf16.msra.mxu0 %v2230
      %2255 = vmatprep.subr.bf16.mxu0 0
      %2256 = vmatpush1.bf16.msra.mxu0 0
      %2257 = vmatprep.subr.bf16.mxu0 0
      %2258 = vmatpush1.bf16.msra.mxu0 0
      %2259 = vmatprep.subr.bf16.mxu0 0
      %2260 = vmatpush1.bf16.msra.mxu0 0
      %2261 = vmatprep.subr.bf16.mxu0 0
      %2262 = vmatpush1.bf16.msra.mxu0 0
      %2263 = vmatprep.subr.bf16.mxu0 0
      %2264 = vmatpush1.bf16.msra.mxu0 0
      %2265 = vmatprep.subr.bf16.mxu0 0
      %2266 = vmatpush1.bf16.msra.mxu0 0
      %2267 = vmatprep.subr.bf16.mxu0 0
      %2268 = vmatpush1.bf16.msra.mxu0 0
      %2269 = vmatprep.subr.bf16.mxu0 0
      %2270 = vmatpush1.bf16.msra.mxu0 0
      %2271 = vmatprep.mubr.bf16.mxu0 0
      %2272 = vmatmul.mubr.bf16.gmra.mrb[0].mxu0 %v2175
      %v2273 = vpop.f32.mrb[0].mxu0
      %v2274 = vadd.f32 0.0, %v2273
      %v2275 = vpop.f32.mrb[0].mxu0
      %v2276 = vpop.f32.mrb[0].mxu0
      %v2277 = vadd.f32 0.0, %v2276
      %v2278 = vpop.f32.mrb[0].mxu0
      %2279 = vmatprep.mubr.bf16.mxu0 0
      %2280 = vmatmul.mubr.bf16.gmra.mrb[0].mxu0 %v2176
      %v2281 = vpop.f32.mrb[0].mxu0
      %v2282 = vadd.f32 0.0, %v2281
      %v2283 = vpop.f32.mrb[0].mxu0
      %v2284 = vpop.f32.mrb[0].mxu0
      %v2285 = vadd.f32 0.0, %v2284
      %v2286 = vpop.f32.mrb[0].mxu0
      %2287 = vmatprep.mubr.bf16.mxu0 0
      %2288 = vmatmul.mubr.bf16.gmra.mrb[0].mxu0 %v2177
      %v2289 = vpop.f32.mrb[0].mxu0
      %v2290 = vadd.f32 0.0, %v2289
      %v2291 = vpop.f32.mrb[0].mxu0
      %v2292 = vpop.f32.mrb[0].mxu0
      %v2293 = vadd.f32 0.0, %v2292
      %v2294 = vpop.f32.mrb[0].mxu0
      %2295 = vmatprep.mubr.bf16.mxu0 0
      %2296 = vmatmul.mubr.bf16.gmra.mrb[0].mxu0 %v2178
      %v2297 = vpop.f32.mrb[0].mxu0
      %v2298 = vadd.f32 0.0, %v2297
      %v2299 = vpop.f32.mrb[0].mxu0
      %v2300 = vpop.f32.mrb[0].mxu0
      %v2301 = vadd.f32 0.0, %v2300
      %v2302 = vpop.f32.mrb[0].mxu0
      %2303 = vmatprep.mubr.bf16.mxu0 0
      %2304 = vmatmul.mubr.bf16.gmra.mrb[0].mxu0 %v2179
      %v2305 = vpop.f32.mrb[0].mxu0
      %v2306 = vadd.f32 0.0, %v2305
      %v2307 = vpop.f32.mrb[0].mxu0
      %v2308 = vpop.f32.mrb[0].mxu0
      %v2309 = vadd.f32 0.0, %v2308
      %v2310 = vpop.f32.mrb[0].mxu0
      %2311 = vmatprep.mubr.bf16.mxu0 0
      %2312 = vmatmul.mubr.bf16.gmra.mrb[0].mxu0 %v2180
      %v2313 = vpop.f32.mrb[0].mxu0
      %v2314 = vadd.f32 0.0, %v2313
      %v2315 = vpop.f32.mrb[0].mxu0
      %v2316 = vpop.f32.mrb[0].mxu0
      %v2317 = vadd.f32 0.0, %v2316
      %v2318 = vpop.f32.mrb[0].mxu0
      %2319 = vmatprep.mubr.bf16.mxu0 0
      %2320 = vmatmul.mubr.bf16.gmra.mrb[0].mxu0 %v2181
      %v2321 = vpop.f32.mrb[0].mxu0
      %v2322 = vadd.f32 0.0, %v2321
      %v2323 = vpop.f32.mrb[0].mxu0
      %v2324 = vpop.f32.mrb[0].mxu0
      %v2325 = vadd.f32 0.0, %v2324
      %v2326 = vpop.f32.mrb[0].mxu0
      %2327 = vmatprep.mubr.bf16.mxu0 0
      %2328 = vmatmul.mubr.bf16.gmra.mrb[0].mxu0 %v2182
      %v2329 = vpop.f32.mrb[0].mxu0
      %v2330 = vadd.f32 0.0, %v2329
      %v2331 = vpop.f32.mrb[0].mxu0
      %v2332 = vpop.f32.mrb[0].mxu0
      %v2333 = vadd.f32 0.0, %v2332
      %v2334 = vpop.f32.mrb[0].mxu0
      %2335 = vdwg.mxu0
      %v2336 = vadd.f32 %v2093, %v2274
      %v2337 = vadd.f32 %v2094, %v2277
      %v2338 = vadd.f32 %v2095, %v2282
      %v2339 = vadd.f32 %v2096, %v2285
      %v2340 = vadd.f32 %v2097, %v2290
      %v2341 = vadd.f32 %v2098, %v2293
      %v2342 = vadd.f32 %v2099, %v2298
      %v2343 = vadd.f32 %v2100, %v2301
      %v2344 = vadd.f32 %v2101, %v2306
      %v2345 = vadd.f32 %v2102, %v2309
      %v2346 = vadd.f32 %v2103, %v2314
      %v2347 = vadd.f32 %v2104, %v2317
      %v2348 = vadd.f32 %v2105, %v2322
      %v2349 = vadd.f32 %v2106, %v2325
      %v2350 = vadd.f32 %v2107, %v2330
      %v2351 = vadd.f32 %v2108, %v2333
      %s2352 = scalar_lea.vmem [#allocation2], 52
      %v2353 = vld [vmem:[%s2352] sm:$0xf]
      %v2354 = vld [vmem:[%s2352 + $0x4] sm:$0xf]
      %v2355 = vld [vmem:[%s2352 + $0x8] sm:$0xf]
      %v2356 = vld [vmem:[%s2352 + $0xc] sm:$0xf]
      %v2357 = vld [vmem:[%s2352 + $0x18] sm:$0xf]
      %v2358 = vld [vmem:[%s2352 + $0x1c] sm:$0xf]
      %v2359 = vld [vmem:[%s2352 + $0x20] sm:$0xf]
      %v2360 = vld [vmem:[%s2352 + $0x24] sm:$0xf]
      %v2361 = vld [vmem:[%s2352 + $0x30] sm:$0xf]
      %v2362 = vld [vmem:[%s2352 + $0x34] sm:$0xf]
      %v2363 = vld [vmem:[%s2352 + $0x38] sm:$0xf]
      %v2364 = vld [vmem:[%s2352 + $0x3c] sm:$0xf]
      %v2365 = vld [vmem:[%s2352 + $0x48] sm:$0xf]
      %v2366 = vld [vmem:[%s2352 + $0x4c] sm:$0xf]
      %v2367 = vld [vmem:[%s2352 + $0x50] sm:$0xf]
      %v2368 = vld [vmem:[%s2352 + $0x54] sm:$0xf]
      %s2369 = scalar_lea.vmem %s238, 512
      %v2370 = vld [vmem:[%s2369] sm:$0xf]
      %v2371 = vld [vmem:[%s2369 + $0x4] sm:$0xf]
      %v2372 = vld [vmem:[%s2369 + $0x8] sm:$0xf]
      %v2373 = vld [vmem:[%s2369 + $0xc] sm:$0xf]
      %v2374 = vld [vmem:[%s2369 + $0x10] sm:$0xf]
      %v2375 = vld [vmem:[%s2369 + $0x14] sm:$0xf]
      %v2376 = vld [vmem:[%s2369 + $0x18] sm:$0xf]
      %v2377 = vld [vmem:[%s2369 + $0x1c] sm:$0xf]
      %v2378 = vld [vmem:[%s2369 + $0x20] sm:$0xf]
      %v2379 = vld [vmem:[%s2369 + $0x24] sm:$0xf]
      %v2380 = vld [vmem:[%s2369 + $0x28] sm:$0xf]
      %v2381 = vld [vmem:[%s2369 + $0x2c] sm:$0xf]
      %v2382 = vld [vmem:[%s2369 + $0x30] sm:$0xf]
      %v2383 = vld [vmem:[%s2369 + $0x34] sm:$0xf]
      %v2384 = vld [vmem:[%s2369 + $0x38] sm:$0xf]
      %v2385 = vld [vmem:[%s2369 + $0x3c] sm:$0xf]
      %v2402 = vunpack.c.l.b16 %v2353
      %v2403 = vunpack.c.l.b16 %v2354
      %v2404 = vunpack.c.l.b16 %v2355
      %v2405 = vunpack.c.l.b16 %v2356
      %v2406 = vunpack.c.l.b16 %v2357
      %v2407 = vunpack.c.l.b16 %v2358
      %v2408 = vunpack.c.l.b16 %v2359
      %v2409 = vunpack.c.l.b16 %v2360
      %v2410 = vunpack.c.l.b16 %v2361
      %v2411 = vunpack.c.l.b16 %v2362
      %v2412 = vunpack.c.l.b16 %v2363
      %v2413 = vunpack.c.l.b16 %v2364
      %v2414 = vunpack.c.l.b16 %v2365
      %v2415 = vunpack.c.l.b16 %v2366
      %v2416 = vunpack.c.l.b16 %v2367
      %v2417 = vunpack.c.l.b16 %v2368
      %v2418 = vpack.c.b16 %v2403, %v2402
      %v2419 = vpack.c.b16 %v2405, %v2404
      %v2420 = vpack.c.b16 %v2407, %v2406
      %v2421 = vpack.c.b16 %v2409, %v2408
      %v2422 = vpack.c.b16 %v2411, %v2410
      %v2423 = vpack.c.b16 %v2413, %v2412
      %v2424 = vpack.c.b16 %v2415, %v2414
      %v2425 = vpack.c.b16 %v2417, %v2416
      %v2450 = vunpack.c.l.b16 %v2370
      %v2451 = vunpack.c.l.b16 %v2371
      %v2452 = vunpack.c.l.b16 %v2372
      %v2453 = vunpack.c.l.b16 %v2373
      %v2454 = vunpack.c.l.b16 %v2374
      %v2455 = vunpack.c.l.b16 %v2375
      %v2456 = vunpack.c.l.b16 %v2376
      %v2457 = vunpack.c.l.b16 %v2377
      %v2458 = vunpack.c.l.b16 %v2378
      %v2459 = vunpack.c.l.b16 %v2379
      %v2460 = vunpack.c.l.b16 %v2380
      %v2461 = vunpack.c.l.b16 %v2381
      %v2462 = vunpack.c.l.b16 %v2382
      %v2463 = vunpack.c.l.b16 %v2383
      %v2464 = vunpack.c.l.b16 %v2384
      %v2465 = vunpack.c.l.b16 %v2385
      %v2466 = vpack.c.b16 %v2451, %v2450
      %v2467 = vpack.c.b16 %v2453, %v2452
      %v2468 = vpack.c.b16 %v2455, %v2454
      %v2469 = vpack.c.b16 %v2457, %v2456
      %v2470 = vpack.c.b16 %v2459, %v2458
      %v2471 = vpack.c.b16 %v2461, %v2460
      %v2472 = vpack.c.b16 %v2463, %v2462
      %v2473 = vpack.c.b16 %v2465, %v2464
      %2482 = vmatprep.subr.bf16.mxu0 0
      %2483 = vmatpush1.bf16.msra.mxu0 %v2466
      %2484 = vmatprep.subr.bf16.mxu0 0
      %2485 = vmatpush1.bf16.msra.mxu0 %v2467
      %2486 = vmatprep.subr.bf16.mxu0 0
      %2487 = vmatpush1.bf16.msra.mxu0 %v2468
      %2488 = vmatprep.subr.bf16.mxu0 0
      %2489 = vmatpush1.bf16.msra.mxu0 %v2469
      %2490 = vmatprep.subr.bf16.mxu0 0
      %2491 = vmatpush1.bf16.msra.mxu0 %v2470
      %2492 = vmatprep.subr.bf16.mxu0 0
      %2493 = vmatpush1.bf16.msra.mxu0 %v2471
      %2494 = vmatprep.subr.bf16.mxu0 0
      %2495 = vmatpush1.bf16.msra.mxu0 %v2472
      %2496 = vmatprep.subr.bf16.mxu0 0
      %2497 = vmatpush1.bf16.msra.mxu0 %v2473
      %2498 = vmatprep.subr.bf16.mxu0 0
      %2499 = vmatpush1.bf16.msra.mxu0 0
      %2500 = vmatprep.subr.bf16.mxu0 0
      %2501 = vmatpush1.bf16.msra.mxu0 0
      %2502 = vmatprep.subr.bf16.mxu0 0
      %2503 = vmatpush1.bf16.msra.mxu0 0
      %2504 = vmatprep.subr.bf16.mxu0 0
      %2505 = vmatpush1.bf16.msra.mxu0 0
      %2506 = vmatprep.subr.bf16.mxu0 0
      %2507 = vmatpush1.bf16.msra.mxu0 0
      %2508 = vmatprep.subr.bf16.mxu0 0
      %2509 = vmatpush1.bf16.msra.mxu0 0
      %2510 = vmatprep.subr.bf16.mxu0 0
      %2511 = vmatpush1.bf16.msra.mxu0 0
      %2512 = vmatprep.subr.bf16.mxu0 0
      %2513 = vmatpush1.bf16.msra.mxu0 0
      %2514 = vmatprep.mubr.bf16.mxu0 0
      %2515 = vmatmul.mubr.bf16.gmra.mrb[0].mxu0 %v2418
      %v2516 = vpop.f32.mrb[0].mxu0
      %v2517 = vadd.f32 0.0, %v2516
      %v2518 = vpop.f32.mrb[0].mxu0
      %v2519 = vpop.f32.mrb[0].mxu0
      %v2520 = vadd.f32 0.0, %v2519
      %v2521 = vpop.f32.mrb[0].mxu0
      %2522 = vmatprep.mubr.bf16.mxu0 0
      %2523 = vmatmul.mubr.bf16.gmra.mrb[0].mxu0 %v2419
      %v2524 = vpop.f32.mrb[0].mxu0
      %v2525 = vadd.f32 0.0, %v2524
      %v2526 = vpop.f32.mrb[0].mxu0
      %v2527 = vpop.f32.mrb[0].mxu0
      %v2528 = vadd.f32 0.0, %v2527
      %v2529 = vpop.f32.mrb[0].mxu0
      %2530 = vmatprep.mubr.bf16.mxu0 0
      %2531 = vmatmul.mubr.bf16.gmra.mrb[0].mxu0 %v2420
      %v2532 = vpop.f32.mrb[0].mxu0
      %v2533 = vadd.f32 0.0, %v2532
      %v2534 = vpop.f32.mrb[0].mxu0
      %v2535 = vpop.f32.mrb[0].mxu0
      %v2536 = vadd.f32 0.0, %v2535
      %v2537 = vpop.f32.mrb[0].mxu0
      %2538 = vmatprep.mubr.bf16.mxu0 0
      %2539 = vmatmul.mubr.bf16.gmra.mrb[0].mxu0 %v2421
      %v2540 = vpop.f32.mrb[0].mxu0
      %v2541 = vadd.f32 0.0, %v2540
      %v2542 = vpop.f32.mrb[0].mxu0
      %v2543 = vpop.f32.mrb[0].mxu0
      %v2544 = vadd.f32 0.0, %v2543
      %v2545 = vpop.f32.mrb[0].mxu0
      %2546 = vmatprep.mubr.bf16.mxu0 0
      %2547 = vmatmul.mubr.bf16.gmra.mrb[0].mxu0 %v2422
      %v2548 = vpop.f32.mrb[0].mxu0
      %v2549 = vadd.f32 0.0, %v2548
      %v2550 = vpop.f32.mrb[0].mxu0
      %v2551 = vpop.f32.mrb[0].mxu0
      %v2552 = vadd.f32 0.0, %v2551
      %v2553 = vpop.f32.mrb[0].mxu0
      %2554 = vmatprep.mubr.bf16.mxu0 0
      %2555 = vmatmul.mubr.bf16.gmra.mrb[0].mxu0 %v2423
      %v2556 = vpop.f32.mrb[0].mxu0
      %v2557 = vadd.f32 0.0, %v2556
      %v2558 = vpop.f32.mrb[0].mxu0
      %v2559 = vpop.f32.mrb[0].mxu0
      %v2560 = vadd.f32 0.0, %v2559
      %v2561 = vpop.f32.mrb[0].mxu0
      %2562 = vmatprep.mubr.bf16.mxu0 0
      %2563 = vmatmul.mubr.bf16.gmra.mrb[0].mxu0 %v2424
      %v2564 = vpop.f32.mrb[0].mxu0
      %v2565 = vadd.f32 0.0, %v2564
      %v2566 = vpop.f32.mrb[0].mxu0
      %v2567 = vpop.f32.mrb[0].mxu0
      %v2568 = vadd.f32 0.0, %v2567
      %v2569 = vpop.f32.mrb[0].mxu0
      %2570 = vmatprep.mubr.bf16.mxu0 0
      %2571 = vmatmul.mubr.bf16.gmra.mrb[0].mxu0 %v2425
      %v2572 = vpop.f32.mrb[0].mxu0
      %v2573 = vadd.f32 0.0, %v2572
      %v2574 = vpop.f32.mrb[0].mxu0
      %v2575 = vpop.f32.mrb[0].mxu0
      %v2576 = vadd.f32 0.0, %v2575
      %v2577 = vpop.f32.mrb[0].mxu0
      %2578 = vdwg.mxu0
      %v2579 = vadd.f32 %v2336, %v2517
      %v2580 = vadd.f32 %v2337, %v2520
      %v2581 = vadd.f32 %v2338, %v2525
      %v2582 = vadd.f32 %v2339, %v2528
      %v2583 = vadd.f32 %v2340, %v2533
      %v2584 = vadd.f32 %v2341, %v2536
      %v2585 = vadd.f32 %v2342, %v2541
      %v2586 = vadd.f32 %v2343, %v2544
      %v2587 = vadd.f32 %v2344, %v2549
      %v2588 = vadd.f32 %v2345, %v2552
      %v2589 = vadd.f32 %v2346, %v2557
      %v2590 = vadd.f32 %v2347, %v2560
      %v2591 = vadd.f32 %v2348, %v2565
      %v2592 = vadd.f32 %v2349, %v2568
      %v2593 = vadd.f32 %v2350, %v2573
      %v2594 = vadd.f32 %v2351, %v2576
      %s2595 = scalar_lea.vmem [#allocation2], 56
      %v2596 = vld [vmem:[%s2595] sm:$0xf]
      %v2597 = vld [vmem:[%s2595 + $0x4] sm:$0xf]
      %v2598 = vld [vmem:[%s2595 + $0x8] sm:$0xf]
      %v2599 = vld [vmem:[%s2595 + $0xc] sm:$0xf]
      %v2600 = vld [vmem:[%s2595 + $0x18] sm:$0xf]
      %v2601 = vld [vmem:[%s2595 + $0x1c] sm:$0xf]
      %v2602 = vld [vmem:[%s2595 + $0x20] sm:$0xf]
      %v2603 = vld [vmem:[%s2595 + $0x24] sm:$0xf]
      %v2604 = vld [vmem:[%s2595 + $0x30] sm:$0xf]
      %v2605 = vld [vmem:[%s2595 + $0x34] sm:$0xf]
      %v2606 = vld [vmem:[%s2595 + $0x38] sm:$0xf]
      %v2607 = vld [vmem:[%s2595 + $0x3c] sm:$0xf]
      %v2608 = vld [vmem:[%s2595 + $0x48] sm:$0xf]
      %v2609 = vld [vmem:[%s2595 + $0x4c] sm:$0xf]
      %v2610 = vld [vmem:[%s2595 + $0x50] sm:$0xf]
      %v2611 = vld [vmem:[%s2595 + $0x54] sm:$0xf]
      %s2612 = scalar_lea.vmem %s238, 576
      %v2613 = vld [vmem:[%s2612] sm:$0xf]
      %v2614 = vld [vmem:[%s2612 + $0x4] sm:$0xf]
      %v2615 = vld [vmem:[%s2612 + $0x8] sm:$0xf]
      %v2616 = vld [vmem:[%s2612 + $0xc] sm:$0xf]
      %v2617 = vld [vmem:[%s2612 + $0x10] sm:$0xf]
      %v2618 = vld [vmem:[%s2612 + $0x14] sm:$0xf]
      %v2619 = vld [vmem:[%s2612 + $0x18] sm:$0xf]
      %v2620 = vld [vmem:[%s2612 + $0x1c] sm:$0xf]
      %v2621 = vld [vmem:[%s2612 + $0x20] sm:$0xf]
      %v2622 = vld [vmem:[%s2612 + $0x24] sm:$0xf]
      %v2623 = vld [vmem:[%s2612 + $0x28] sm:$0xf]
      %v2624 = vld [vmem:[%s2612 + $0x2c] sm:$0xf]
      %v2625 = vld [vmem:[%s2612 + $0x30] sm:$0xf]
      %v2626 = vld [vmem:[%s2612 + $0x34] sm:$0xf]
      %v2627 = vld [vmem:[%s2612 + $0x38] sm:$0xf]
      %v2628 = vld [vmem:[%s2612 + $0x3c] sm:$0xf]
      %v2645 = vunpack.c.l.b16 %v2596
      %v2646 = vunpack.c.l.b16 %v2597
      %v2647 = vunpack.c.l.b16 %v2598
      %v2648 = vunpack.c.l.b16 %v2599
      %v2649 = vunpack.c.l.b16 %v2600
      %v2650 = vunpack.c.l.b16 %v2601
      %v2651 = vunpack.c.l.b16 %v2602
      %v2652 = vunpack.c.l.b16 %v2603
      %v2653 = vunpack.c.l.b16 %v2604
      %v2654 = vunpack.c.l.b16 %v2605
      %v2655 = vunpack.c.l.b16 %v2606
      %v2656 = vunpack.c.l.b16 %v2607
      %v2657 = vunpack.c.l.b16 %v2608
      %v2658 = vunpack.c.l.b16 %v2609
      %v2659 = vunpack.c.l.b16 %v2610
      %v2660 = vunpack.c.l.b16 %v2611
      %v2661 = vpack.c.b16 %v2646, %v2645
      %v2662 = vpack.c.b16 %v2648, %v2647
      %v2663 = vpack.c.b16 %v2650, %v2649
      %v2664 = vpack.c.b16 %v2652, %v2651
      %v2665 = vpack.c.b16 %v2654, %v2653
      %v2666 = vpack.c.b16 %v2656, %v2655
      %v2667 = vpack.c.b16 %v2658, %v2657
      %v2668 = vpack.c.b16 %v2660, %v2659
      %v2693 = vunpack.c.l.b16 %v2613
      %v2694 = vunpack.c.l.b16 %v2614
      %v2695 = vunpack.c.l.b16 %v2615
      %v2696 = vunpack.c.l.b16 %v2616
      %v2697 = vunpack.c.l.b16 %v2617
      %v2698 = vunpack.c.l.b16 %v2618
      %v2699 = vunpack.c.l.b16 %v2619
      %v2700 = vunpack.c.l.b16 %v2620
      %v2701 = vunpack.c.l.b16 %v2621
      %v2702 = vunpack.c.l.b16 %v2622
      %v2703 = vunpack.c.l.b16 %v2623
      %v2704 = vunpack.c.l.b16 %v2624
      %v2705 = vunpack.c.l.b16 %v2625
      %v2706 = vunpack.c.l.b16 %v2626
      %v2707 = vunpack.c.l.b16 %v2627
      %v2708 = vunpack.c.l.b16 %v2628
      %v2709 = vpack.c.b16 %v2694, %v2693
      %v2710 = vpack.c.b16 %v2696, %v2695
      %v2711 = vpack.c.b16 %v2698, %v2697
      %v2712 = vpack.c.b16 %v2700, %v2699
      %v2713 = vpack.c.b16 %v2702, %v2701
      %v2714 = vpack.c.b16 %v2704, %v2703
      %v2715 = vpack.c.b16 %v2706, %v2705
      %v2716 = vpack.c.b16 %v2708, %v2707
      %2725 = vmatprep.subr.bf16.mxu0 0
      %2726 = vmatpush1.bf16.msra.mxu0 %v2709
      %2727 = vmatprep.subr.bf16.mxu0 0
      %2728 = vmatpush1.bf16.msra.mxu0 %v2710
      %2729 = vmatprep.subr.bf16.mxu0 0
      %2730 = vmatpush1.bf16.msra.mxu0 %v2711
      %2731 = vmatprep.subr.bf16.mxu0 0
      %2732 = vmatpush1.bf16.msra.mxu0 %v2712
      %2733 = vmatprep.subr.bf16.mxu0 0
      %2734 = vmatpush1.bf16.msra.mxu0 %v2713
      %2735 = vmatprep.subr.bf16.mxu0 0
      %2736 = vmatpush1.bf16.msra.mxu0 %v2714
      %2737 = vmatprep.subr.bf16.mxu0 0
      %2738 = vmatpush1.bf16.msra.mxu0 %v2715
      %2739 = vmatprep.subr.bf16.mxu0 0
      %2740 = vmatpush1.bf16.msra.mxu0 %v2716
      %2741 = vmatprep.subr.bf16.mxu0 0
      %2742 = vmatpush1.bf16.msra.mxu0 0
      %2743 = vmatprep.subr.bf16.mxu0 0
      %2744 = vmatpush1.bf16.msra.mxu0 0
      %2745 = vmatprep.subr.bf16.mxu0 0
      %2746 = vmatpush1.bf16.msra.mxu0 0
      %2747 = vmatprep.subr.bf16.mxu0 0
      %2748 = vmatpush1.bf16.msra.mxu0 0
      %2749 = vmatprep.subr.bf16.mxu0 0
      %2750 = vmatpush1.bf16.msra.mxu0 0
      %2751 = vmatprep.subr.bf16.mxu0 0
      %2752 = vmatpush1.bf16.msra.mxu0 0
      %2753 = vmatprep.subr.bf16.mxu0 0
      %2754 = vmatpush1.bf16.msra.mxu0 0
      %2755 = vmatprep.subr.bf16.mxu0 0
      %2756 = vmatpush1.bf16.msra.mxu0 0
      %2757 = vmatprep.mubr.bf16.mxu0 0
      %2758 = vmatmul.mubr.bf16.gmra.mrb[0].mxu0 %v2661
      %v2759 = vpop.f32.mrb[0].mxu0
      %v2760 = vadd.f32 0.0, %v2759
      %v2761 = vpop.f32.mrb[0].mxu0
      %v2762 = vpop.f32.mrb[0].mxu0
      %v2763 = vadd.f32 0.0, %v2762
      %v2764 = vpop.f32.mrb[0].mxu0
      %2765 = vmatprep.mubr.bf16.mxu0 0
      %2766 = vmatmul.mubr.bf16.gmra.mrb[0].mxu0 %v2662
      %v2767 = vpop.f32.mrb[0].mxu0
      %v2768 = vadd.f32 0.0, %v2767
      %v2769 = vpop.f32.mrb[0].mxu0
      %v2770 = vpop.f32.mrb[0].mxu0
      %v2771 = vadd.f32 0.0, %v2770
      %v2772 = vpop.f32.mrb[0].mxu0
      %2773 = vmatprep.mubr.bf16.mxu0 0
      %2774 = vmatmul.mubr.bf16.gmra.mrb[0].mxu0 %v2663
      %v2775 = vpop.f32.mrb[0].mxu0
      %v2776 = vadd.f32 0.0, %v2775
      %v2777 = vpop.f32.mrb[0].mxu0
      %v2778 = vpop.f32.mrb[0].mxu0
      %v2779 = vadd.f32 0.0, %v2778
      %v2780 = vpop.f32.mrb[0].mxu0
      %2781 = vmatprep.mubr.bf16.mxu0 0
      %2782 = vmatmul.mubr.bf16.gmra.mrb[0].mxu0 %v2664
      %v2783 = vpop.f32.mrb[0].mxu0
      %v2784 = vadd.f32 0.0, %v2783
      %v2785 = vpop.f32.mrb[0].mxu0
      %v2786 = vpop.f32.mrb[0].mxu0
      %v2787 = vadd.f32 0.0, %v2786
      %v2788 = vpop.f32.mrb[0].mxu0
      %2789 = vmatprep.mubr.bf16.mxu0 0
      %2790 = vmatmul.mubr.bf16.gmra.mrb[0].mxu0 %v2665
      %v2791 = vpop.f32.mrb[0].mxu0
      %v2792 = vadd.f32 0.0, %v2791
      %v2793 = vpop.f32.mrb[0].mxu0
      %v2794 = vpop.f32.mrb[0].mxu0
      %v2795 = vadd.f32 0.0, %v2794
      %v2796 = vpop.f32.mrb[0].mxu0
      %2797 = vmatprep.mubr.bf16.mxu0 0
      %2798 = vmatmul.mubr.bf16.gmra.mrb[0].mxu0 %v2666
      %v2799 = vpop.f32.mrb[0].mxu0
      %v2800 = vadd.f32 0.0, %v2799
      %v2801 = vpop.f32.mrb[0].mxu0
      %v2802 = vpop.f32.mrb[0].mxu0
      %v2803 = vadd.f32 0.0, %v2802
      %v2804 = vpop.f32.mrb[0].mxu0
      %2805 = vmatprep.mubr.bf16.mxu0 0
      %2806 = vmatmul.mubr.bf16.gmra.mrb[0].mxu0 %v2667
      %v2807 = vpop.f32.mrb[0].mxu0
      %v2808 = vadd.f32 0.0, %v2807
      %v2809 = vpop.f32.mrb[0].mxu0
      %v2810 = vpop.f32.mrb[0].mxu0
      %v2811 = vadd.f32 0.0, %v2810
      %v2812 = vpop.f32.mrb[0].mxu0
      %2813 = vmatprep.mubr.bf16.mxu0 0
      %2814 = vmatmul.mubr.bf16.gmra.mrb[0].mxu0 %v2668
      %v2815 = vpop.f32.mrb[0].mxu0
      %v2816 = vadd.f32 0.0, %v2815
      %v2817 = vpop.f32.mrb[0].mxu0
      %v2818 = vpop.f32.mrb[0].mxu0
      %v2819 = vadd.f32 0.0, %v2818
      %v2820 = vpop.f32.mrb[0].mxu0
      %2821 = vdwg.mxu0
      %v2822 = vadd.f32 %v2579, %v2760
      %v2823 = vadd.f32 %v2580, %v2763
      %v2824 = vadd.f32 %v2581, %v2768
      %v2825 = vadd.f32 %v2582, %v2771
      %v2826 = vadd.f32 %v2583, %v2776
      %v2827 = vadd.f32 %v2584, %v2779
      %v2828 = vadd.f32 %v2585, %v2784
      %v2829 = vadd.f32 %v2586, %v2787
      %v2830 = vadd.f32 %v2587, %v2792
      %v2831 = vadd.f32 %v2588, %v2795
      %v2832 = vadd.f32 %v2589, %v2800
      %v2833 = vadd.f32 %v2590, %v2803
      %v2834 = vadd.f32 %v2591, %v2808
      %v2835 = vadd.f32 %v2592, %v2811
      %v2836 = vadd.f32 %v2593, %v2816
      %v2837 = vadd.f32 %v2594, %v2819
      %v2838 = vld [vmem:[%s242 + $0x1] sm:$0x1]
      %v2839 = vlaneseq
      %v2840 = vshrl.u32 %v2839, 7
      %v2841 = vsub.s32 0, %v2840
      %v2842 = vrot.slane %v2838, %v2841
      %v2843 = vmul.f32 %v2822, %v2842
      %v2844 = vmul.f32 %v2823, %v2842
      %v2845 = vmul.f32 %v2824, %v2842
      %v2846 = vmul.f32 %v2825, %v2842
      %v2847 = vmul.f32 %v2826, %v2842
      %v2848 = vmul.f32 %v2827, %v2842
      %v2849 = vmul.f32 %v2828, %v2842
      %v2850 = vmul.f32 %v2829, %v2842
      %v2851 = vmul.f32 %v2830, %v2842
      %v2852 = vmul.f32 %v2831, %v2842
      %v2853 = vmul.f32 %v2832, %v2842
      %v2854 = vmul.f32 %v2833, %v2842
      %v2855 = vmul.f32 %v2834, %v2842
      %v2856 = vmul.f32 %v2835, %v2842
      %v2857 = vmul.f32 %v2836, %v2842
      %v2858 = vmul.f32 %v2837, %v2842
      %v2859 = vld [vmem:[%s246 + $0x1] sm:$0x1]
      %v2860 = vlaneseq
      %v2861 = vshrl.u32 %v2860, 7
      %v2862 = vsub.s32 0, %v2861
      %v2863 = vrot.slane %v2859, %v2862
      %v2864 = vadd.f32 %v2843, %v2863
      %v2865 = vadd.f32 %v2844, %v2863
      %v2866 = vadd.f32 %v2845, %v2863
      %v2867 = vadd.f32 %v2846, %v2863
      %v2868 = vadd.f32 %v2847, %v2863
      %v2869 = vadd.f32 %v2848, %v2863
      %v2870 = vadd.f32 %v2849, %v2863
      %v2871 = vadd.f32 %v2850, %v2863
      %v2872 = vadd.f32 %v2851, %v2863
      %v2873 = vadd.f32 %v2852, %v2863
      %v2874 = vadd.f32 %v2853, %v2863
      %v2875 = vadd.f32 %v2854, %v2863
      %v2876 = vadd.f32 %v2855, %v2863
      %v2877 = vadd.f32 %v2856, %v2863
      %v2878 = vadd.f32 %v2857, %v2863
      %v2879 = vadd.f32 %v2858, %v2863
      %v2880 = vmax.f32 %v2864, 0.0
      %v2881 = vmax.f32 %v2865, 0.0
      %v2882 = vmax.f32 %v2866, 0.0
      %v2883 = vmax.f32 %v2867, 0.0
      %v2884 = vmax.f32 %v2868, 0.0
      %v2885 = vmax.f32 %v2869, 0.0
      %v2886 = vmax.f32 %v2870, 0.0
      %v2887 = vmax.f32 %v2871, 0.0
      %v2888 = vmax.f32 %v2872, 0.0
      %v2889 = vmax.f32 %v2873, 0.0
      %v2890 = vmax.f32 %v2874, 0.0
      %v2891 = vmax.f32 %v2875, 0.0
      %v2892 = vmax.f32 %v2876, 0.0
      %v2893 = vmax.f32 %v2877, 0.0
      %v2894 = vmax.f32 %v2878, 0.0
      %v2895 = vmax.f32 %v2879, 0.0
      %v2896 = vpack.c.bf16 %v2881, %v2880
      %v2897 = vpack.c.bf16 %v2883, %v2882
      %v2898 = vpack.c.bf16 %v2885, %v2884
      %v2899 = vpack.c.bf16 %v2887, %v2886
      %v2900 = vpack.c.bf16 %v2889, %v2888
      %v2901 = vpack.c.bf16 %v2891, %v2890
      %v2902 = vpack.c.bf16 %v2893, %v2892
      %v2903 = vpack.c.bf16 %v2895, %v2894
      %s2904 = scalar_lea.vmem %s238, 640
      %v2905 = vld [vmem:[%s2904] sm:$0xf]
      %v2906 = vld [vmem:[%s2904 + $0x4] sm:$0xf]
      %v2907 = vld [vmem:[%s2904 + $0x8] sm:$0xf]
      %v2908 = vld [vmem:[%s2904 + $0xc] sm:$0xf]
      %v2909 = vld [vmem:[%s2904 + $0x10] sm:$0xf]
      %v2910 = vld [vmem:[%s2904 + $0x14] sm:$0xf]
      %v2911 = vld [vmem:[%s2904 + $0x18] sm:$0xf]
      %v2912 = vld [vmem:[%s2904 + $0x1c] sm:$0xf]
      %v2913 = vld [vmem:[%s2904 + $0x20] sm:$0xf]
      %v2914 = vld [vmem:[%s2904 + $0x24] sm:$0xf]
      %v2915 = vld [vmem:[%s2904 + $0x28] sm:$0xf]
      %v2916 = vld [vmem:[%s2904 + $0x2c] sm:$0xf]
      %v2917 = vld [vmem:[%s2904 + $0x30] sm:$0xf]
      %v2918 = vld [vmem:[%s2904 + $0x34] sm:$0xf]
      %v2919 = vld [vmem:[%s2904 + $0x38] sm:$0xf]
      %v2920 = vld [vmem:[%s2904 + $0x3c] sm:$0xf]
      %v2937 = vunpack.c.l.b16 %v2905
      %v2938 = vunpack.c.l.b16 %v2906
      %v2939 = vunpack.c.l.b16 %v2907
      %v2940 = vunpack.c.l.b16 %v2908
      %v2941 = vunpack.c.l.b16 %v2909
      %v2942 = vunpack.c.l.b16 %v2910
      %v2943 = vunpack.c.l.b16 %v2911
      %v2944 = vunpack.c.l.b16 %v2912
      %v2945 = vunpack.c.l.b16 %v2913
      %v2946 = vunpack.c.l.b16 %v2914
      %v2947 = vunpack.c.l.b16 %v2915
      %v2948 = vunpack.c.l.b16 %v2916
      %v2949 = vunpack.c.l.b16 %v2917
      %v2950 = vunpack.c.l.b16 %v2918
      %v2951 = vunpack.c.l.b16 %v2919
      %v2952 = vunpack.c.l.b16 %v2920
      %v2953 = vpack.c.b16 %v2938, %v2937
      %v2954 = vpack.c.b16 %v2940, %v2939
      %v2955 = vpack.c.b16 %v2942, %v2941
      %v2956 = vpack.c.b16 %v2944, %v2943
      %v2957 = vpack.c.b16 %v2946, %v2945
      %v2958 = vpack.c.b16 %v2948, %v2947
      %v2959 = vpack.c.b16 %v2950, %v2949
      %v2960 = vpack.c.b16 %v2952, %v2951
      %2969 = vmatprep.subr.bf16.mxu0 0
      %2970 = vmatpush1.bf16.msra.mxu0 %v2953
      %2971 = vmatprep.subr.bf16.mxu0 0
      %2972 = vmatpush1.bf16.msra.mxu0 %v2954
      %2973 = vmatprep.subr.bf16.mxu0 0
      %2974 = vmatpush1.bf16.msra.mxu0 %v2955
      %2975 = vmatprep.subr.bf16.mxu0 0
      %2976 = vmatpush1.bf16.msra.mxu0 %v2956
      %2977 = vmatprep.subr.bf16.mxu0 0
      %2978 = vmatpush1.bf16.msra.mxu0 %v2957
      %2979 = vmatprep.subr.bf16.mxu0 0
      %2980 = vmatpush1.bf16.msra.mxu0 %v2958
      %2981 = vmatprep.subr.bf16.mxu0 0
      %2982 = vmatpush1.bf16.msra.mxu0 %v2959
      %2983 = vmatprep.subr.bf16.mxu0 0
      %2984 = vmatpush1.bf16.msra.mxu0 %v2960
      %2985 = vmatprep.subr.bf16.mxu0 0
      %2986 = vmatpush1.bf16.msra.mxu0 0
      %2987 = vmatprep.subr.bf16.mxu0 0
      %2988 = vmatpush1.bf16.msra.mxu0 0
      %2989 = vmatprep.subr.bf16.mxu0 0
      %2990 = vmatpush1.bf16.msra.mxu0 0
      %2991 = vmatprep.subr.bf16.mxu0 0
      %2992 = vmatpush1.bf16.msra.mxu0 0
      %2993 = vmatprep.subr.bf16.mxu0 0
      %2994 = vmatpush1.bf16.msra.mxu0 0
      %2995 = vmatprep.subr.bf16.mxu0 0
      %2996 = vmatpush1.bf16.msra.mxu0 0
      %2997 = vmatprep.subr.bf16.mxu0 0
      %2998 = vmatpush1.bf16.msra.mxu0 0
      %2999 = vmatprep.subr.bf16.mxu0 0
      %3000 = vmatpush1.bf16.msra.mxu0 0
      %3001 = vmatprep.mubr.bf16.mxu0 0
      %3002 = vmatmul.mubr.bf16.gmra.mrb[0].mxu0 %v2896
      %v3003 = vpop.f32.mrb[0].mxu0
      %v3004 = vadd.f32 0.0, %v3003
      %v3005 = vpop.f32.mrb[0].mxu0
      %v3006 = vpop.f32.mrb[0].mxu0
      %v3007 = vadd.f32 0.0, %v3006
      %v3008 = vpop.f32.mrb[0].mxu0
      %3009 = vmatprep.mubr.bf16.mxu0 0
      %3010 = vmatmul.mubr.bf16.gmra.mrb[0].mxu0 %v2897
      %v3011 = vpop.f32.mrb[0].mxu0
      %v3012 = vadd.f32 0.0, %v3011
      %v3013 = vpop.f32.mrb[0].mxu0
      %v3014 = vpop.f32.mrb[0].mxu0
      %v3015 = vadd.f32 0.0, %v3014
      %v3016 = vpop.f32.mrb[0].mxu0
      %3017 = vmatprep.mubr.bf16.mxu0 0
      %3018 = vmatmul.mubr.bf16.gmra.mrb[0].mxu0 %v2898
      %v3019 = vpop.f32.mrb[0].mxu0
      %v3020 = vadd.f32 0.0, %v3019
      %v3021 = vpop.f32.mrb[0].mxu0
      %v3022 = vpop.f32.mrb[0].mxu0
      %v3023 = vadd.f32 0.0, %v3022
      %v3024 = vpop.f32.mrb[0].mxu0
      %3025 = vmatprep.mubr.bf16.mxu0 0
      %3026 = vmatmul.mubr.bf16.gmra.mrb[0].mxu0 %v2899
      %v3027 = vpop.f32.mrb[0].mxu0
      %v3028 = vadd.f32 0.0, %v3027
      %v3029 = vpop.f32.mrb[0].mxu0
      %v3030 = vpop.f32.mrb[0].mxu0
      %v3031 = vadd.f32 0.0, %v3030
      %v3032 = vpop.f32.mrb[0].mxu0
      %3033 = vmatprep.mubr.bf16.mxu0 0
      %3034 = vmatmul.mubr.bf16.gmra.mrb[0].mxu0 %v2900
      %v3035 = vpop.f32.mrb[0].mxu0
      %v3036 = vadd.f32 0.0, %v3035
      %v3037 = vpop.f32.mrb[0].mxu0
      %v3038 = vpop.f32.mrb[0].mxu0
      %v3039 = vadd.f32 0.0, %v3038
      %v3040 = vpop.f32.mrb[0].mxu0
      %3041 = vmatprep.mubr.bf16.mxu0 0
      %3042 = vmatmul.mubr.bf16.gmra.mrb[0].mxu0 %v2901
      %v3043 = vpop.f32.mrb[0].mxu0
      %v3044 = vadd.f32 0.0, %v3043
      %v3045 = vpop.f32.mrb[0].mxu0
      %v3046 = vpop.f32.mrb[0].mxu0
      %v3047 = vadd.f32 0.0, %v3046
      %v3048 = vpop.f32.mrb[0].mxu0
      %3049 = vmatprep.mubr.bf16.mxu0 0
      %3050 = vmatmul.mubr.bf16.gmra.mrb[0].mxu0 %v2902
      %v3051 = vpop.f32.mrb[0].mxu0
      %v3052 = vadd.f32 0.0, %v3051
      %v3053 = vpop.f32.mrb[0].mxu0
      %v3054 = vpop.f32.mrb[0].mxu0
      %v3055 = vadd.f32 0.0, %v3054
      %v3056 = vpop.f32.mrb[0].mxu0
      %3057 = vmatprep.mubr.bf16.mxu0 0
      %3058 = vmatmul.mubr.bf16.gmra.mrb[0].mxu0 %v2903
      %v3059 = vpop.f32.mrb[0].mxu0
      %v3060 = vadd.f32 0.0, %v3059
      %v3061 = vpop.f32.mrb[0].mxu0
      %v3062 = vpop.f32.mrb[0].mxu0
      %v3063 = vadd.f32 0.0, %v3062
      %v3064 = vpop.f32.mrb[0].mxu0
      %3065 = vdwg.mxu0
      %v3066 = vld [vmem:[%s242 + $0x2] sm:$0x1]
      %v3067 = vlaneseq
      %v3068 = vshrl.u32 %v3067, 7
      %v3069 = vsub.s32 0, %v3068
      %v3070 = vrot.slane %v3066, %v3069
      %v3071 = vmul.f32 %v3004, %v3070
      %v3072 = vmul.f32 %v3007, %v3070
      %v3073 = vmul.f32 %v3012, %v3070
      %v3074 = vmul.f32 %v3015, %v3070
      %v3075 = vmul.f32 %v3020, %v3070
      %v3076 = vmul.f32 %v3023, %v3070
      %v3077 = vmul.f32 %v3028, %v3070
      %v3078 = vmul.f32 %v3031, %v3070
      %v3079 = vmul.f32 %v3036, %v3070
      %v3080 = vmul.f32 %v3039, %v3070
      %v3081 = vmul.f32 %v3044, %v3070
      %v3082 = vmul.f32 %v3047, %v3070
      %v3083 = vmul.f32 %v3052, %v3070
      %v3084 = vmul.f32 %v3055, %v3070
      %v3085 = vmul.f32 %v3060, %v3070
      %v3086 = vmul.f32 %v3063, %v3070
      %v3087 = vld [vmem:[%s246 + $0x2] sm:$0x1]
      %v3088 = vlaneseq
      %v3089 = vshrl.u32 %v3088, 7
      %v3090 = vsub.s32 0, %v3089
      %v3091 = vrot.slane %v3087, %v3090
      %v3092 = vadd.f32 %v3071, %v3091
      %v3093 = vadd.f32 %v3072, %v3091
      %v3094 = vadd.f32 %v3073, %v3091
      %v3095 = vadd.f32 %v3074, %v3091
      %v3096 = vadd.f32 %v3075, %v3091
      %v3097 = vadd.f32 %v3076, %v3091
      %v3098 = vadd.f32 %v3077, %v3091
      %v3099 = vadd.f32 %v3078, %v3091
      %v3100 = vadd.f32 %v3079, %v3091
      %v3101 = vadd.f32 %v3080, %v3091
      %v3102 = vadd.f32 %v3081, %v3091
      %v3103 = vadd.f32 %v3082, %v3091
      %v3104 = vadd.f32 %v3083, %v3091
      %v3105 = vadd.f32 %v3084, %v3091
      %v3106 = vadd.f32 %v3085, %v3091
      %v3107 = vadd.f32 %v3086, %v3091
      %s3108 = scalar_lea.vmem %s238, 704
      %v3109 = vld [vmem:[%s3108] sm:$0xf]
      %v3110 = vld [vmem:[%s3108 + $0x4] sm:$0xf]
      %v3111 = vld [vmem:[%s3108 + $0x8] sm:$0xf]
      %v3112 = vld [vmem:[%s3108 + $0xc] sm:$0xf]
      %v3113 = vld [vmem:[%s3108 + $0x10] sm:$0xf]
      %v3114 = vld [vmem:[%s3108 + $0x14] sm:$0xf]
      %v3115 = vld [vmem:[%s3108 + $0x18] sm:$0xf]
      %v3116 = vld [vmem:[%s3108 + $0x1c] sm:$0xf]
      %v3117 = vld [vmem:[%s3108 + $0x20] sm:$0xf]
      %v3118 = vld [vmem:[%s3108 + $0x24] sm:$0xf]
      %v3119 = vld [vmem:[%s3108 + $0x28] sm:$0xf]
      %v3120 = vld [vmem:[%s3108 + $0x2c] sm:$0xf]
      %v3121 = vld [vmem:[%s3108 + $0x30] sm:$0xf]
      %v3122 = vld [vmem:[%s3108 + $0x34] sm:$0xf]
      %v3123 = vld [vmem:[%s3108 + $0x38] sm:$0xf]
      %v3124 = vld [vmem:[%s3108 + $0x3c] sm:$0xf]
      %v3141 = vunpack.c.l.b16 %v3109
      %v3142 = vunpack.c.l.b16 %v3110
      %v3143 = vunpack.c.l.b16 %v3111
      %v3144 = vunpack.c.l.b16 %v3112
      %v3145 = vunpack.c.l.b16 %v3113
      %v3146 = vunpack.c.l.b16 %v3114
      %v3147 = vunpack.c.l.b16 %v3115
      %v3148 = vunpack.c.l.b16 %v3116
      %v3149 = vunpack.c.l.b16 %v3117
      %v3150 = vunpack.c.l.b16 %v3118
      %v3151 = vunpack.c.l.b16 %v3119
      %v3152 = vunpack.c.l.b16 %v3120
      %v3153 = vunpack.c.l.b16 %v3121
      %v3154 = vunpack.c.l.b16 %v3122
      %v3155 = vunpack.c.l.b16 %v3123
      %v3156 = vunpack.c.l.b16 %v3124
      %v3157 = vpack.c.b16 %v3142, %v3141
      %v3158 = vpack.c.b16 %v3144, %v3143
      %v3159 = vpack.c.b16 %v3146, %v3145
      %v3160 = vpack.c.b16 %v3148, %v3147
      %v3161 = vpack.c.b16 %v3150, %v3149
      %v3162 = vpack.c.b16 %v3152, %v3151
      %v3163 = vpack.c.b16 %v3154, %v3153
      %v3164 = vpack.c.b16 %v3156, %v3155
      %3173 = vmatprep.subr.bf16.mxu0 0
      %3174 = vmatpush1.bf16.msra.mxu0 %v3157
      %3175 = vmatprep.subr.bf16.mxu0 0
      %3176 = vmatpush1.bf16.msra.mxu0 %v3158
      %3177 = vmatprep.subr.bf16.mxu0 0
      %3178 = vmatpush1.bf16.msra.mxu0 %v3159
      %3179 = vmatprep.subr.bf16.mxu0 0
      %3180 = vmatpush1.bf16.msra.mxu0 %v3160
      %3181 = vmatprep.subr.bf16.mxu0 0
      %3182 = vmatpush1.bf16.msra.mxu0 %v3161
      %3183 = vmatprep.subr.bf16.mxu0 0
      %3184 = vmatpush1.bf16.msra.mxu0 %v3162
      %3185 = vmatprep.subr.bf16.mxu0 0
      %3186 = vmatpush1.bf16.msra.mxu0 %v3163
      %3187 = vmatprep.subr.bf16.mxu0 0
      %3188 = vmatpush1.bf16.msra.mxu0 %v3164
      %3189 = vmatprep.subr.bf16.mxu0 0
      %3190 = vmatpush1.bf16.msra.mxu0 0
      %3191 = vmatprep.subr.bf16.mxu0 0
      %3192 = vmatpush1.bf16.msra.mxu0 0
      %3193 = vmatprep.subr.bf16.mxu0 0
      %3194 = vmatpush1.bf16.msra.mxu0 0
      %3195 = vmatprep.subr.bf16.mxu0 0
      %3196 = vmatpush1.bf16.msra.mxu0 0
      %3197 = vmatprep.subr.bf16.mxu0 0
      %3198 = vmatpush1.bf16.msra.mxu0 0
      %3199 = vmatprep.subr.bf16.mxu0 0
      %3200 = vmatpush1.bf16.msra.mxu0 0
      %3201 = vmatprep.subr.bf16.mxu0 0
      %3202 = vmatpush1.bf16.msra.mxu0 0
      %3203 = vmatprep.subr.bf16.mxu0 0
      %3204 = vmatpush1.bf16.msra.mxu0 0
      %3205 = vmatprep.mubr.bf16.mxu0 0
      %3206 = vmatmul.mubr.bf16.gmra.mrb[0].mxu0 %v385
      %v3207 = vpop.f32.mrb[0].mxu0
      %v3208 = vadd.f32 0.0, %v3207
      %v3209 = vpop.f32.mrb[0].mxu0
      %v3210 = vpop.f32.mrb[0].mxu0
      %v3211 = vadd.f32 0.0, %v3210
      %v3212 = vpop.f32.mrb[0].mxu0
      %3213 = vmatprep.mubr.bf16.mxu0 0
      %3214 = vmatmul.mubr.bf16.gmra.mrb[0].mxu0 %v386
      %v3215 = vpop.f32.mrb[0].mxu0
      %v3216 = vadd.f32 0.0, %v3215
      %v3217 = vpop.f32.mrb[0].mxu0
      %v3218 = vpop.f32.mrb[0].mxu0
      %v3219 = vadd.f32 0.0, %v3218
      %v3220 = vpop.f32.mrb[0].mxu0
      %3221 = vmatprep.mubr.bf16.mxu0 0
      %3222 = vmatmul.mubr.bf16.gmra.mrb[0].mxu0 %v387
      %v3223 = vpop.f32.mrb[0].mxu0
      %v3224 = vadd.f32 0.0, %v3223
      %v3225 = vpop.f32.mrb[0].mxu0
      %v3226 = vpop.f32.mrb[0].mxu0
      %v3227 = vadd.f32 0.0, %v3226
      %v3228 = vpop.f32.mrb[0].mxu0
      %3229 = vmatprep.mubr.bf16.mxu0 0
      %3230 = vmatmul.mubr.bf16.gmra.mrb[0].mxu0 %v388
      %v3231 = vpop.f32.mrb[0].mxu0
      %v3232 = vadd.f32 0.0, %v3231
      %v3233 = vpop.f32.mrb[0].mxu0
      %v3234 = vpop.f32.mrb[0].mxu0
      %v3235 = vadd.f32 0.0, %v3234
      %v3236 = vpop.f32.mrb[0].mxu0
      %3237 = vmatprep.mubr.bf16.mxu0 0
      %3238 = vmatmul.mubr.bf16.gmra.mrb[0].mxu0 %v389
      %v3239 = vpop.f32.mrb[0].mxu0
      %v3240 = vadd.f32 0.0, %v3239
      %v3241 = vpop.f32.mrb[0].mxu0
      %v3242 = vpop.f32.mrb[0].mxu0
      %v3243 = vadd.f32 0.0, %v3242
      %v3244 = vpop.f32.mrb[0].mxu0
      %3245 = vmatprep.mubr.bf16.mxu0 0
      %3246 = vmatmul.mubr.bf16.gmra.mrb[0].mxu0 %v390
      %v3247 = vpop.f32.mrb[0].mxu0
      %v3248 = vadd.f32 0.0, %v3247
      %v3249 = vpop.f32.mrb[0].mxu0
      %v3250 = vpop.f32.mrb[0].mxu0
      %v3251 = vadd.f32 0.0, %v3250
      %v3252 = vpop.f32.mrb[0].mxu0
      %3253 = vmatprep.mubr.bf16.mxu0 0
      %3254 = vmatmul.mubr.bf16.gmra.mrb[0].mxu0 %v391
      %v3255 = vpop.f32.mrb[0].mxu0
      %v3256 = vadd.f32 0.0, %v3255
      %v3257 = vpop.f32.mrb[0].mxu0
      %v3258 = vpop.f32.mrb[0].mxu0
      %v3259 = vadd.f32 0.0, %v3258
      %v3260 = vpop.f32.mrb[0].mxu0
      %3261 = vmatprep.mubr.bf16.mxu0 0
      %3262 = vmatmul.mubr.bf16.gmra.mrb[0].mxu0 %v392
      %v3263 = vpop.f32.mrb[0].mxu0
      %v3264 = vadd.f32 0.0, %v3263
      %v3265 = vpop.f32.mrb[0].mxu0
      %v3266 = vpop.f32.mrb[0].mxu0
      %v3267 = vadd.f32 0.0, %v3266
      %v3268 = vpop.f32.mrb[0].mxu0
      %3269 = vdwg.mxu0
      %v3270 = vld [vmem:[%s242 + $0x3] sm:$0x1]
      %v3271 = vlaneseq
      %v3272 = vshrl.u32 %v3271, 7
      %v3273 = vsub.s32 0, %v3272
      %v3274 = vrot.slane %v3270, %v3273
      %v3275 = vmul.f32 %v3208, %v3274
      %v3276 = vmul.f32 %v3211, %v3274
      %v3277 = vmul.f32 %v3216, %v3274
      %v3278 = vmul.f32 %v3219, %v3274
      %v3279 = vmul.f32 %v3224, %v3274
      %v3280 = vmul.f32 %v3227, %v3274
      %v3281 = vmul.f32 %v3232, %v3274
      %v3282 = vmul.f32 %v3235, %v3274
      %v3283 = vmul.f32 %v3240, %v3274
      %v3284 = vmul.f32 %v3243, %v3274
      %v3285 = vmul.f32 %v3248, %v3274
      %v3286 = vmul.f32 %v3251, %v3274
      %v3287 = vmul.f32 %v3256, %v3274
      %v3288 = vmul.f32 %v3259, %v3274
      %v3289 = vmul.f32 %v3264, %v3274
      %v3290 = vmul.f32 %v3267, %v3274
      %v3291 = vld [vmem:[%s246 + $0x3] sm:$0x1]
      %v3292 = vlaneseq
      %v3293 = vshrl.u32 %v3292, 7
      %v3294 = vsub.s32 0, %v3293
      %v3295 = vrot.slane %v3291, %v3294
      %v3296 = vadd.f32 %v3275, %v3295
      %v3297 = vadd.f32 %v3276, %v3295
      %v3298 = vadd.f32 %v3277, %v3295
      %v3299 = vadd.f32 %v3278, %v3295
      %v3300 = vadd.f32 %v3279, %v3295
      %v3301 = vadd.f32 %v3280, %v3295
      %v3302 = vadd.f32 %v3281, %v3295
      %v3303 = vadd.f32 %v3282, %v3295
      %v3304 = vadd.f32 %v3283, %v3295
      %v3305 = vadd.f32 %v3284, %v3295
      %v3306 = vadd.f32 %v3285, %v3295
      %v3307 = vadd.f32 %v3286, %v3295
      %v3308 = vadd.f32 %v3287, %v3295
      %v3309 = vadd.f32 %v3288, %v3295
      %v3310 = vadd.f32 %v3289, %v3295
      %v3311 = vadd.f32 %v3290, %v3295
      %v3312 = vadd.f32 %v3092, %v3296
      %v3313 = vadd.f32 %v3093, %v3297
      %v3314 = vadd.f32 %v3094, %v3298
      %v3315 = vadd.f32 %v3095, %v3299
      %v3316 = vadd.f32 %v3096, %v3300
      %v3317 = vadd.f32 %v3097, %v3301
      %v3318 = vadd.f32 %v3098, %v3302
      %v3319 = vadd.f32 %v3099, %v3303
      %v3320 = vadd.f32 %v3100, %v3304
      %v3321 = vadd.f32 %v3101, %v3305
      %v3322 = vadd.f32 %v3102, %v3306
      %v3323 = vadd.f32 %v3103, %v3307
      %v3324 = vadd.f32 %v3104, %v3308
      %v3325 = vadd.f32 %v3105, %v3309
      %v3326 = vadd.f32 %v3106, %v3310
      %v3327 = vadd.f32 %v3107, %v3311
      %v3328 = vmax.f32 %v3312, 0.0
      %v3329 = vmax.f32 %v3313, 0.0
      %v3330 = vmax.f32 %v3314, 0.0
      %v3331 = vmax.f32 %v3315, 0.0
      %v3332 = vmax.f32 %v3316, 0.0
      %v3333 = vmax.f32 %v3317, 0.0
      %v3334 = vmax.f32 %v3318, 0.0
      %v3335 = vmax.f32 %v3319, 0.0
      %v3336 = vmax.f32 %v3320, 0.0
      %v3337 = vmax.f32 %v3321, 0.0
      %v3338 = vmax.f32 %v3322, 0.0
      %v3339 = vmax.f32 %v3323, 0.0
      %v3340 = vmax.f32 %v3324, 0.0
      %v3341 = vmax.f32 %v3325, 0.0
      %v3342 = vmax.f32 %v3326, 0.0
      %v3343 = vmax.f32 %v3327, 0.0
      %v3344 = vpack.c.bf16 %v3329, %v3328
      %v3345 = vpack.c.bf16 %v3331, %v3330
      %v3346 = vpack.c.bf16 %v3333, %v3332
      %v3347 = vpack.c.bf16 %v3335, %v3334
      %v3348 = vpack.c.bf16 %v3337, %v3336
      %v3349 = vpack.c.bf16 %v3339, %v3338
      %v3350 = vpack.c.bf16 %v3341, %v3340
      %v3351 = vpack.c.bf16 %v3343, %v3342
      %v3360 = vunpack.c.l.b16 %v3344
      %v3361 = vunpack.c.h.b16 %v3344
      %v3362 = vunpack.c.l.b16 %v3345
      %v3363 = vunpack.c.h.b16 %v3345
      %v3364 = vunpack.c.l.b16 %v3346
      %v3365 = vunpack.c.h.b16 %v3346
      %v3366 = vunpack.c.l.b16 %v3347
      %v3367 = vunpack.c.h.b16 %v3347
      %v3368 = vunpack.c.l.b16 %v3348
      %v3369 = vunpack.c.h.b16 %v3348
      %v3370 = vunpack.c.l.b16 %v3349
      %v3371 = vunpack.c.h.b16 %v3349
      %v3372 = vunpack.c.l.b16 %v3350
      %v3373 = vunpack.c.h.b16 %v3350
      %v3374 = vunpack.c.l.b16 %v3351
      %v3375 = vunpack.c.h.b16 %v3351
      %v3376 = vpack.c.b16 %v3360, %v3360
      %v3377 = vpack.c.b16 %v3361, %v3361
      %v3378 = vpack.c.b16 %v3362, %v3362
      %v3379 = vpack.c.b16 %v3363, %v3363
      %v3380 = vpack.c.b16 %v3364, %v3364
      %v3381 = vpack.c.b16 %v3365, %v3365
      %v3382 = vpack.c.b16 %v3366, %v3366
      %v3383 = vpack.c.b16 %v3367, %v3367
      %v3384 = vpack.c.b16 %v3368, %v3368
      %v3385 = vpack.c.b16 %v3369, %v3369
      %v3386 = vpack.c.b16 %v3370, %v3370
      %v3387 = vpack.c.b16 %v3371, %v3371
      %v3388 = vpack.c.b16 %v3372, %v3372
      %v3389 = vpack.c.b16 %v3373, %v3373
      %v3390 = vpack.c.b16 %v3374, %v3374
      %v3391 = vpack.c.b16 %v3375, %v3375
      %v3392 = vrot.slane %v3376, 7
      %v3393 = vrot.slane %v3392, 4
      %v3394 = vrot.slane %v3377, 7
      %v3395 = vrot.slane %v3394, 4
      %v3396 = vrot.slane %v3378, 7
      %v3397 = vrot.slane %v3396, 4
      %v3398 = vrot.slane %v3379, 7
      %v3399 = vrot.slane %v3398, 4
      %v3400 = vrot.slane %v3380, 7
      %v3401 = vrot.slane %v3400, 4
      %v3402 = vrot.slane %v3381, 7
      %v3403 = vrot.slane %v3402, 4
      %v3404 = vrot.slane %v3382, 7
      %v3405 = vrot.slane %v3404, 4
      %v3406 = vrot.slane %v3383, 7
      %v3407 = vrot.slane %v3406, 4
      %v3408 = vrot.slane %v3384, 7
      %v3409 = vrot.slane %v3408, 4
      %v3410 = vrot.slane %v3385, 7
      %v3411 = vrot.slane %v3410, 4
      %v3412 = vrot.slane %v3386, 7
      %v3413 = vrot.slane %v3412, 4
      %v3414 = vrot.slane %v3387, 7
      %v3415 = vrot.slane %v3414, 4
      %v3416 = vrot.slane %v3388, 7
      %v3417 = vrot.slane %v3416, 4
      %v3418 = vrot.slane %v3389, 7
      %v3419 = vrot.slane %v3418, 4
      %v3420 = vrot.slane %v3390, 7
      %v3421 = vrot.slane %v3420, 4
      %v3422 = vrot.slane %v3391, 7
      %v3423 = vrot.slane %v3422, 4
      %3456 = vst [vmem:[#allocation3] sm:$0xe] %v3392
      %3457 = vst [vmem:[#allocation3 + $0x4] sm:$0x1] %v3393
      %3458 = vst [vmem:[#allocation3 + $0x8] sm:$0xe] %v3394
      %3459 = vst [vmem:[#allocation3 + $0xc] sm:$0x1] %v3395
      %3460 = vst [vmem:[#allocation3 + $0x10] sm:$0xe] %v3396
      %3461 = vst [vmem:[#allocation3 + $0x14] sm:$0x1] %v3397
      %3462 = vst [vmem:[#allocation3 + $0x18] sm:$0xe] %v3398
      %3463 = vst [vmem:[#allocation3 + $0x1c] sm:$0x1] %v3399
      %3464 = vst [vmem:[#allocation3 + $0x20] sm:$0xe] %v3400
      %3465 = vst [vmem:[#allocation3 + $0x24] sm:$0x1] %v3401
      %3466 = vst [vmem:[#allocation3 + $0x28] sm:$0xe] %v3402
      %3467 = vst [vmem:[#allocation3 + $0x2c] sm:$0x1] %v3403
      %3468 = vst [vmem:[#allocation3 + $0x30] sm:$0xe] %v3404
      %3469 = vst [vmem:[#allocation3 + $0x34] sm:$0x1] %v3405
      %3470 = vst [vmem:[#allocation3 + $0x38] sm:$0xe] %v3406
      %3471 = vst [vmem:[#allocation3 + $0x3c] sm:$0x1] %v3407
      %3472 = vst [vmem:[#allocation3 + $0x40] sm:$0xe] %v3408
      %3473 = vst [vmem:[#allocation3 + $0x44] sm:$0x1] %v3409
      %3474 = vst [vmem:[#allocation3 + $0x48] sm:$0xe] %v3410
      %3475 = vst [vmem:[#allocation3 + $0x4c] sm:$0x1] %v3411
      %3476 = vst [vmem:[#allocation3 + $0x50] sm:$0xe] %v3412
      %3477 = vst [vmem:[#allocation3 + $0x54] sm:$0x1] %v3413
      %3478 = vst [vmem:[#allocation3 + $0x58] sm:$0xe] %v3414
      %3479 = vst [vmem:[#allocation3 + $0x5c] sm:$0x1] %v3415
      %3480 = vst [vmem:[#allocation3 + $0x60] sm:$0xe] %v3416
      %3481 = vst [vmem:[#allocation3 + $0x64] sm:$0x1] %v3417
      %3482 = vst [vmem:[#allocation3 + $0x68] sm:$0xe] %v3418
      %3483 = vst [vmem:[#allocation3 + $0x6c] sm:$0x1] %v3419
      %3484 = vst [vmem:[#allocation3 + $0x70] sm:$0xe] %v3420
      %3485 = vst [vmem:[#allocation3 + $0x74] sm:$0x1] %v3421
      %3486 = vst [vmem:[#allocation3 + $0x78] sm:$0xe] %v3422
      %3487 = vst [vmem:[#allocation3 + $0x7c] sm:$0x1] %v3423
      %v3488 = vld [vmem:[#allocation3] sm:$0xf]
      %v3489 = vld [vmem:[#allocation3 + $0x8] sm:$0xf]
      %v3490 = vld [vmem:[#allocation3 + $0x10] sm:$0xf]
      %v3491 = vld [vmem:[#allocation3 + $0x18] sm:$0xf]
      %v3492 = vld [vmem:[#allocation3 + $0x20] sm:$0xf]
      %v3493 = vld [vmem:[#allocation3 + $0x28] sm:$0xf]
      %v3494 = vld [vmem:[#allocation3 + $0x30] sm:$0xf]
      %v3495 = vld [vmem:[#allocation3 + $0x38] sm:$0xf]
      %v3496 = vld [vmem:[#allocation3 + $0x40] sm:$0xf]
      %v3497 = vld [vmem:[#allocation3 + $0x48] sm:$0xf]
      %v3498 = vld [vmem:[#allocation3 + $0x50] sm:$0xf]
      %v3499 = vld [vmem:[#allocation3 + $0x58] sm:$0xf]
      %v3500 = vld [vmem:[#allocation3 + $0x60] sm:$0xf]
      %v3501 = vld [vmem:[#allocation3 + $0x68] sm:$0xf]
      %v3502 = vld [vmem:[#allocation3 + $0x70] sm:$0xf]
      %v3503 = vld [vmem:[#allocation3 + $0x78] sm:$0xf]
      %s3504 = scalar_lea.vmem %s238, 768
      %v3505 = vld [vmem:[%s3504] sm:$0xf]
      %v3506 = vld [vmem:[%s3504 + $0x4] sm:$0xf]
      %v3507 = vld [vmem:[%s3504 + $0x8] sm:$0xf]
      %v3508 = vld [vmem:[%s3504 + $0xc] sm:$0xf]
      %v3509 = vld [vmem:[%s3504 + $0x10] sm:$0xf]
      %v3510 = vld [vmem:[%s3504 + $0x14] sm:$0xf]
      %v3511 = vld [vmem:[%s3504 + $0x18] sm:$0xf]
      %v3512 = vld [vmem:[%s3504 + $0x1c] sm:$0xf]
      %v3513 = vld [vmem:[%s3504 + $0x20] sm:$0xf]
      %v3514 = vld [vmem:[%s3504 + $0x24] sm:$0xf]
      %v3515 = vld [vmem:[%s3504 + $0x28] sm:$0xf]
      %v3516 = vld [vmem:[%s3504 + $0x2c] sm:$0xf]
      %v3517 = vld [vmem:[%s3504 + $0x30] sm:$0xf]
      %v3518 = vld [vmem:[%s3504 + $0x34] sm:$0xf]
      %v3519 = vld [vmem:[%s3504 + $0x38] sm:$0xf]
      %v3520 = vld [vmem:[%s3504 + $0x3c] sm:$0xf]
      %v3521 = vld [vmem:[#allocation3] sm:$0xe]
      %v3522 = vld [vmem:[#allocation3 + $0x4] sm:$0x1]
      %v3523 = vld [vmem:[#allocation3 + $0x8] sm:$0xe]
      %v3524 = vld [vmem:[#allocation3 + $0xc] sm:$0x1]
      %v3525 = vld [vmem:[#allocation3 + $0x10] sm:$0xe]
      %v3526 = vld [vmem:[#allocation3 + $0x14] sm:$0x1]
      %v3527 = vld [vmem:[#allocation3 + $0x18] sm:$0xe]
      %v3528 = vld [vmem:[#allocation3 + $0x1c] sm:$0x1]
      %v3529 = vld [vmem:[#allocation3 + $0x20] sm:$0xe]
      %v3530 = vld [vmem:[#allocation3 + $0x24] sm:$0x1]
      %v3531 = vld [vmem:[#allocation3 + $0x28] sm:$0xe]
      %v3532 = vld [vmem:[#allocation3 + $0x2c] sm:$0x1]
      %v3533 = vld [vmem:[#allocation3 + $0x30] sm:$0xe]
      %v3534 = vld [vmem:[#allocation3 + $0x34] sm:$0x1]
      %v3535 = vld [vmem:[#allocation3 + $0x38] sm:$0xe]
      %v3536 = vld [vmem:[#allocation3 + $0x3c] sm:$0x1]
      %v3537 = vld [vmem:[#allocation3 + $0x40] sm:$0xe]
      %v3538 = vld [vmem:[#allocation3 + $0x44] sm:$0x1]
      %v3539 = vld [vmem:[#allocation3 + $0x48] sm:$0xe]
      %v3540 = vld [vmem:[#allocation3 + $0x4c] sm:$0x1]
      %v3541 = vld [vmem:[#allocation3 + $0x50] sm:$0xe]
      %v3542 = vld [vmem:[#allocation3 + $0x54] sm:$0x1]
      %v3543 = vld [vmem:[#allocation3 + $0x58] sm:$0xe]
      %v3544 = vld [vmem:[#allocation3 + $0x5c] sm:$0x1]
      %v3545 = vld [vmem:[#allocation3 + $0x60] sm:$0xe]
      %v3546 = vld [vmem:[#allocation3 + $0x64] sm:$0x1]
      %v3547 = vld [vmem:[#allocation3 + $0x68] sm:$0xe]
      %v3548 = vld [vmem:[#allocation3 + $0x6c] sm:$0x1]
      %v3549 = vld [vmem:[#allocation3 + $0x70] sm:$0xe]
      %v3550 = vld [vmem:[#allocation3 + $0x74] sm:$0x1]
      %v3551 = vld [vmem:[#allocation3 + $0x78] sm:$0xe]
      %v3552 = vld [vmem:[#allocation3 + $0x7c] sm:$0x1]
      %vm3585 = vcmask 1042432
      %vm3586 = vcmask 1046532
      %vm3587 = vmor %vm3585, %vm3586
      %v3588 = vrot.slane %v3521, 5
      %v3589 = vrot.slane %v3588, 4
      %v3590 = vrot.slane %v3522, 5
      %v3591 = vsel %vm3587, %v3589, %v3590
      %v3592 = vrot.slane %v3523, 5
      %v3593 = vrot.slane %v3592, 4
      %v3594 = vrot.slane %v3524, 5
      %v3595 = vsel %vm3587, %v3593, %v3594
      %v3596 = vrot.slane %v3525, 5
      %v3597 = vrot.slane %v3596, 4
      %v3598 = vrot.slane %v3526, 5
      %v3599 = vsel %vm3587, %v3597, %v3598
      %v3600 = vrot.slane %v3527, 5
      %v3601 = vrot.slane %v3600, 4
      %v3602 = vrot.slane %v3528, 5
      %v3603 = vsel %vm3587, %v3601, %v3602
      %v3604 = vrot.slane %v3529, 5
      %v3605 = vrot.slane %v3604, 4
      %v3606 = vrot.slane %v3530, 5
      %v3607 = vsel %vm3587, %v3605, %v3606
      %v3608 = vrot.slane %v3531, 5
      %v3609 = vrot.slane %v3608, 4
      %v3610 = vrot.slane %v3532, 5
      %v3611 = vsel %vm3587, %v3609, %v3610
      %v3612 = vrot.slane %v3533, 5
      %v3613 = vrot.slane %v3612, 4
      %v3614 = vrot.slane %v3534, 5
      %v3615 = vsel %vm3587, %v3613, %v3614
      %v3616 = vrot.slane %v3535, 5
      %v3617 = vrot.slane %v3616, 4
      %v3618 = vrot.slane %v3536, 5
      %v3619 = vsel %vm3587, %v3617, %v3618
      %v3620 = vrot.slane %v3537, 5
      %v3621 = vrot.slane %v3620, 4
      %v3622 = vrot.slane %v3538, 5
      %v3623 = vsel %vm3587, %v3621, %v3622
      %v3624 = vrot.slane %v3539, 5
      %v3625 = vrot.slane %v3624, 4
      %v3626 = vrot.slane %v3540, 5
      %v3627 = vsel %vm3587, %v3625, %v3626
      %v3628 = vrot.slane %v3541, 5
      %v3629 = vrot.slane %v3628, 4
      %v3630 = vrot.slane %v3542, 5
      %v3631 = vsel %vm3587, %v3629, %v3630
      %v3632 = vrot.slane %v3543, 5
      %v3633 = vrot.slane %v3632, 4
      %v3634 = vrot.slane %v3544, 5
      %v3635 = vsel %vm3587, %v3633, %v3634
      %v3636 = vrot.slane %v3545, 5
      %v3637 = vrot.slane %v3636, 4
      %v3638 = vrot.slane %v3546, 5
      %v3639 = vsel %vm3587, %v3637, %v3638
      %v3640 = vrot.slane %v3547, 5
      %v3641 = vrot.slane %v3640, 4
      %v3642 = vrot.slane %v3548, 5
      %v3643 = vsel %vm3587, %v3641, %v3642
      %v3644 = vrot.slane %v3549, 5
      %v3645 = vrot.slane %v3644, 4
      %v3646 = vrot.slane %v3550, 5
      %v3647 = vsel %vm3587, %v3645, %v3646
      %v3648 = vrot.slane %v3551, 5
      %v3649 = vrot.slane %v3648, 4
      %v3650 = vrot.slane %v3552, 5
      %v3651 = vsel %vm3587, %v3649, %v3650
      %s3652 = scalar_lea.vmem %s238, 832
      %v3653 = vld [vmem:[%s3652] sm:$0xf]
      %v3654 = vld [vmem:[%s3652 + $0x4] sm:$0xf]
      %v3655 = vld [vmem:[%s3652 + $0x8] sm:$0xf]
      %v3656 = vld [vmem:[%s3652 + $0xc] sm:$0xf]
      %v3657 = vld [vmem:[%s3652 + $0x10] sm:$0xf]
      %v3658 = vld [vmem:[%s3652 + $0x14] sm:$0xf]
      %v3659 = vld [vmem:[%s3652 + $0x18] sm:$0xf]
      %v3660 = vld [vmem:[%s3652 + $0x1c] sm:$0xf]
      %v3661 = vld [vmem:[%s3652 + $0x20] sm:$0xf]
      %v3662 = vld [vmem:[%s3652 + $0x24] sm:$0xf]
      %v3663 = vld [vmem:[%s3652 + $0x28] sm:$0xf]
      %v3664 = vld [vmem:[%s3652 + $0x2c] sm:$0xf]
      %v3665 = vld [vmem:[%s3652 + $0x30] sm:$0xf]
      %v3666 = vld [vmem:[%s3652 + $0x34] sm:$0xf]
      %v3667 = vld [vmem:[%s3652 + $0x38] sm:$0xf]
      %v3668 = vld [vmem:[%s3652 + $0x3c] sm:$0xf]
      %v3669 = vunpack.c.l.b16 %v3591
      %v3670 = vunpack.c.l.b16 %v3595
      %v3671 = vunpack.c.l.b16 %v3599
      %v3672 = vunpack.c.l.b16 %v3603
      %v3673 = vunpack.c.l.b16 %v3607
      %v3674 = vunpack.c.l.b16 %v3611
      %v3675 = vunpack.c.l.b16 %v3615
      %v3676 = vunpack.c.l.b16 %v3619
      %v3677 = vunpack.c.l.b16 %v3623
      %v3678 = vunpack.c.l.b16 %v3627
      %v3679 = vunpack.c.l.b16 %v3631
      %v3680 = vunpack.c.l.b16 %v3635
      %v3681 = vunpack.c.l.b16 %v3639
      %v3682 = vunpack.c.l.b16 %v3643
      %v3683 = vunpack.c.l.b16 %v3647
      %v3684 = vunpack.c.l.b16 %v3651
      %v3685 = vpack.c.b16 %v3670, %v3669
      %v3686 = vpack.c.b16 %v3672, %v3671
      %v3687 = vpack.c.b16 %v3674, %v3673
      %v3688 = vpack.c.b16 %v3676, %v3675
      %v3689 = vpack.c.b16 %v3678, %v3677
      %v3690 = vpack.c.b16 %v3680, %v3679
      %v3691 = vpack.c.b16 %v3682, %v3681
      %v3692 = vpack.c.b16 %v3684, %v3683
      %v3717 = vunpack.c.l.b16 %v3653
      %v3718 = vunpack.c.l.b16 %v3654
      %v3719 = vunpack.c.l.b16 %v3655
      %v3720 = vunpack.c.l.b16 %v3656
      %v3721 = vunpack.c.l.b16 %v3657
      %v3722 = vunpack.c.l.b16 %v3658
      %v3723 = vunpack.c.l.b16 %v3659
      %v3724 = vunpack.c.l.b16 %v3660
      %v3725 = vunpack.c.l.b16 %v3661
      %v3726 = vunpack.c.l.b16 %v3662
      %v3727 = vunpack.c.l.b16 %v3663
      %v3728 = vunpack.c.l.b16 %v3664
      %v3729 = vunpack.c.l.b16 %v3665
      %v3730 = vunpack.c.l.b16 %v3666
      %v3731 = vunpack.c.l.b16 %v3667
      %v3732 = vunpack.c.l.b16 %v3668
      %v3733 = vpack.c.b16 %v3718, %v3717
      %v3734 = vpack.c.b16 %v3720, %v3719
      %v3735 = vpack.c.b16 %v3722, %v3721
      %v3736 = vpack.c.b16 %v3724, %v3723
      %v3737 = vpack.c.b16 %v3726, %v3725
      %v3738 = vpack.c.b16 %v3728, %v3727
      %v3739 = vpack.c.b16 %v3730, %v3729
      %v3740 = vpack.c.b16 %v3732, %v3731
      %3749 = vmatprep.subr.bf16.mxu0 0
      %3750 = vmatpush1.bf16.msra.mxu0 %v3733
      %3751 = vmatprep.subr.bf16.mxu0 0
      %3752 = vmatpush1.bf16.msra.mxu0 %v3734
      %3753 = vmatprep.subr.bf16.mxu0 0
      %3754 = vmatpush1.bf16.msra.mxu0 %v3735
      %3755 = vmatprep.subr.bf16.mxu0 0
      %3756 = vmatpush1.bf16.msra.mxu0 %v3736
      %3757 = vmatprep.subr.bf16.mxu0 0
      %3758 = vmatpush1.bf16.msra.mxu0 %v3737
      %3759 = vmatprep.subr.bf16.mxu0 0
      %3760 = vmatpush1.bf16.msra.mxu0 %v3738
      %3761 = vmatprep.subr.bf16.mxu0 0
      %3762 = vmatpush1.bf16.msra.mxu0 %v3739
      %3763 = vmatprep.subr.bf16.mxu0 0
      %3764 = vmatpush1.bf16.msra.mxu0 %v3740
      %3765 = vmatprep.subr.bf16.mxu0 0
      %3766 = vmatpush1.bf16.msra.mxu0 0
      %3767 = vmatprep.subr.bf16.mxu0 0
      %3768 = vmatpush1.bf16.msra.mxu0 0
      %3769 = vmatprep.subr.bf16.mxu0 0
      %3770 = vmatpush1.bf16.msra.mxu0 0
      %3771 = vmatprep.subr.bf16.mxu0 0
      %3772 = vmatpush1.bf16.msra.mxu0 0
      %3773 = vmatprep.subr.bf16.mxu0 0
      %3774 = vmatpush1.bf16.msra.mxu0 0
      %3775 = vmatprep.subr.bf16.mxu0 0
      %3776 = vmatpush1.bf16.msra.mxu0 0
      %3777 = vmatprep.subr.bf16.mxu0 0
      %3778 = vmatpush1.bf16.msra.mxu0 0
      %3779 = vmatprep.subr.bf16.mxu0 0
      %3780 = vmatpush1.bf16.msra.mxu0 0
      %3781 = vmatprep.mubr.bf16.mxu0 0
      %3782 = vmatmul.mubr.bf16.gmra.mrb[0].mxu0 %v3685
      %v3783 = vpop.f32.mrb[0].mxu0
      %v3784 = vadd.f32 0.0, %v3783
      %v3785 = vpop.f32.mrb[0].mxu0
      %v3786 = vpop.f32.mrb[0].mxu0
      %v3787 = vadd.f32 0.0, %v3786
      %v3788 = vpop.f32.mrb[0].mxu0
      %3789 = vmatprep.mubr.bf16.mxu0 0
      %3790 = vmatmul.mubr.bf16.gmra.mrb[0].mxu0 %v3686
      %v3791 = vpop.f32.mrb[0].mxu0
      %v3792 = vadd.f32 0.0, %v3791
      %v3793 = vpop.f32.mrb[0].mxu0
      %v3794 = vpop.f32.mrb[0].mxu0
      %v3795 = vadd.f32 0.0, %v3794
      %v3796 = vpop.f32.mrb[0].mxu0
      %3797 = vmatprep.mubr.bf16.mxu0 0
      %3798 = vmatmul.mubr.bf16.gmra.mrb[0].mxu0 %v3687
      %v3799 = vpop.f32.mrb[0].mxu0
      %v3800 = vadd.f32 0.0, %v3799
      %v3801 = vpop.f32.mrb[0].mxu0
      %v3802 = vpop.f32.mrb[0].mxu0
      %v3803 = vadd.f32 0.0, %v3802
      %v3804 = vpop.f32.mrb[0].mxu0
      %3805 = vmatprep.mubr.bf16.mxu0 0
      %3806 = vmatmul.mubr.bf16.gmra.mrb[0].mxu0 %v3688
      %v3807 = vpop.f32.mrb[0].mxu0
      %v3808 = vadd.f32 0.0, %v3807
      %v3809 = vpop.f32.mrb[0].mxu0
      %v3810 = vpop.f32.mrb[0].mxu0
      %v3811 = vadd.f32 0.0, %v3810
      %v3812 = vpop.f32.mrb[0].mxu0
      %3813 = vmatprep.mubr.bf16.mxu0 0
      %3814 = vmatmul.mubr.bf16.gmra.mrb[0].mxu0 %v3689
      %v3815 = vpop.f32.mrb[0].mxu0
      %v3816 = vadd.f32 0.0, %v3815
      %v3817 = vpop.f32.mrb[0].mxu0
      %v3818 = vpop.f32.mrb[0].mxu0
      %v3819 = vadd.f32 0.0, %v3818
      %v3820 = vpop.f32.mrb[0].mxu0
      %3821 = vmatprep.mubr.bf16.mxu0 0
      %3822 = vmatmul.mubr.bf16.gmra.mrb[0].mxu0 %v3690
      %v3823 = vpop.f32.mrb[0].mxu0
      %v3824 = vadd.f32 0.0, %v3823
      %v3825 = vpop.f32.mrb[0].mxu0
      %v3826 = vpop.f32.mrb[0].mxu0
      %v3827 = vadd.f32 0.0, %v3826
      %v3828 = vpop.f32.mrb[0].mxu0
      %3829 = vmatprep.mubr.bf16.mxu0 0
      %3830 = vmatmul.mubr.bf16.gmra.mrb[0].mxu0 %v3691
      %v3831 = vpop.f32.mrb[0].mxu0
      %v3832 = vadd.f32 0.0, %v3831
      %v3833 = vpop.f32.mrb[0].mxu0
      %v3834 = vpop.f32.mrb[0].mxu0
      %v3835 = vadd.f32 0.0, %v3834
      %v3836 = vpop.f32.mrb[0].mxu0
      %3837 = vmatprep.mubr.bf16.mxu0 0
      %3838 = vmatmul.mubr.bf16.gmra.mrb[0].mxu0 %v3692
      %v3839 = vpop.f32.mrb[0].mxu0
      %v3840 = vadd.f32 0.0, %v3839
      %v3841 = vpop.f32.mrb[0].mxu0
      %v3842 = vpop.f32.mrb[0].mxu0
      %v3843 = vadd.f32 0.0, %v3842
      %v3844 = vpop.f32.mrb[0].mxu0
      %3845 = vdwg.mxu0
      %v3862 = vunpack.c.l.b16 %v3488
      %v3863 = vunpack.c.l.b16 %v3489
      %v3864 = vunpack.c.l.b16 %v3490
      %v3865 = vunpack.c.l.b16 %v3491
      %v3866 = vunpack.c.l.b16 %v3492
      %v3867 = vunpack.c.l.b16 %v3493
      %v3868 = vunpack.c.l.b16 %v3494
      %v3869 = vunpack.c.l.b16 %v3495
      %v3870 = vunpack.c.l.b16 %v3496
      %v3871 = vunpack.c.l.b16 %v3497
      %v3872 = vunpack.c.l.b16 %v3498
      %v3873 = vunpack.c.l.b16 %v3499
      %v3874 = vunpack.c.l.b16 %v3500
      %v3875 = vunpack.c.l.b16 %v3501
      %v3876 = vunpack.c.l.b16 %v3502
      %v3877 = vunpack.c.l.b16 %v3503
      %v3878 = vpack.c.b16 %v3863, %v3862
      %v3879 = vpack.c.b16 %v3865, %v3864
      %v3880 = vpack.c.b16 %v3867, %v3866
      %v3881 = vpack.c.b16 %v3869, %v3868
      %v3882 = vpack.c.b16 %v3871, %v3870
      %v3883 = vpack.c.b16 %v3873, %v3872
      %v3884 = vpack.c.b16 %v3875, %v3874
      %v3885 = vpack.c.b16 %v3877, %v3876
      %v3910 = vunpack.c.l.b16 %v3505
      %v3911 = vunpack.c.l.b16 %v3506
      %v3912 = vunpack.c.l.b16 %v3507
      %v3913 = vunpack.c.l.b16 %v3508
      %v3914 = vunpack.c.l.b16 %v3509
      %v3915 = vunpack.c.l.b16 %v3510
      %v3916 = vunpack.c.l.b16 %v3511
      %v3917 = vunpack.c.l.b16 %v3512
      %v3918 = vunpack.c.l.b16 %v3513
      %v3919 = vunpack.c.l.b16 %v3514
      %v3920 = vunpack.c.l.b16 %v3515
      %v3921 = vunpack.c.l.b16 %v3516
      %v3922 = vunpack.c.l.b16 %v3517
      %v3923 = vunpack.c.l.b16 %v3518
      %v3924 = vunpack.c.l.b16 %v3519
      %v3925 = vunpack.c.l.b16 %v3520
      %v3926 = vpack.c.b16 %v3911, %v3910
      %v3927 = vpack.c.b16 %v3913, %v3912
      %v3928 = vpack.c.b16 %v3915, %v3914
      %v3929 = vpack.c.b16 %v3917, %v3916
      %v3930 = vpack.c.b16 %v3919, %v3918
      %v3931 = vpack.c.b16 %v3921, %v3920
      %v3932 = vpack.c.b16 %v3923, %v3922
      %v3933 = vpack.c.b16 %v3925, %v3924
      %3942 = vmatprep.subr.bf16.mxu0 0
      %3943 = vmatpush1.bf16.msra.mxu0 %v3926
      %3944 = vmatprep.subr.bf16.mxu0 0
      %3945 = vmatpush1.bf16.msra.mxu0 %v3927
      %3946 = vmatprep.subr.bf16.mxu0 0
      %3947 = vmatpush1.bf16.msra.mxu0 %v3928
      %3948 = vmatprep.subr.bf16.mxu0 0
      %3949 = vmatpush1.bf16.msra.mxu0 %v3929
      %3950 = vmatprep.subr.bf16.mxu0 0
      %3951 = vmatpush1.bf16.msra.mxu0 %v3930
      %3952 = vmatprep.subr.bf16.mxu0 0
      %3953 = vmatpush1.bf16.msra.mxu0 %v3931
      %3954 = vmatprep.subr.bf16.mxu0 0
      %3955 = vmatpush1.bf16.msra.mxu0 %v3932
      %3956 = vmatprep.subr.bf16.mxu0 0
      %3957 = vmatpush1.bf16.msra.mxu0 %v3933
      %3958 = vmatprep.subr.bf16.mxu0 0
      %3959 = vmatpush1.bf16.msra.mxu0 0
      %3960 = vmatprep.subr.bf16.mxu0 0
      %3961 = vmatpush1.bf16.msra.mxu0 0
      %3962 = vmatprep.subr.bf16.mxu0 0
      %3963 = vmatpush1.bf16.msra.mxu0 0
      %3964 = vmatprep.subr.bf16.mxu0 0
      %3965 = vmatpush1.bf16.msra.mxu0 0
      %3966 = vmatprep.subr.bf16.mxu0 0
      %3967 = vmatpush1.bf16.msra.mxu0 0
      %3968 = vmatprep.subr.bf16.mxu0 0
      %3969 = vmatpush1.bf16.msra.mxu0 0
      %3970 = vmatprep.subr.bf16.mxu0 0
      %3971 = vmatpush1.bf16.msra.mxu0 0
      %3972 = vmatprep.subr.bf16.mxu0 0
      %3973 = vmatpush1.bf16.msra.mxu0 0
      %3974 = vmatprep.mubr.bf16.mxu0 0
      %3975 = vmatmul.mubr.bf16.gmra.mrb[0].mxu0 %v3878
      %v3976 = vpop.f32.mrb[0].mxu0
      %v3977 = vadd.f32 %v3784, %v3976
      %v3978 = vpop.f32.mrb[0].mxu0
      %v3979 = vpop.f32.mrb[0].mxu0
      %v3980 = vadd.f32 %v3787, %v3979
      %v3981 = vpop.f32.mrb[0].mxu0
      %3982 = vmatprep.mubr.bf16.mxu0 0
      %3983 = vmatmul.mubr.bf16.gmra.mrb[0].mxu0 %v3879
      %v3984 = vpop.f32.mrb[0].mxu0
      %v3985 = vadd.f32 %v3792, %v3984
      %v3986 = vpop.f32.mrb[0].mxu0
      %v3987 = vpop.f32.mrb[0].mxu0
      %v3988 = vadd.f32 %v3795, %v3987
      %v3989 = vpop.f32.mrb[0].mxu0
      %3990 = vmatprep.mubr.bf16.mxu0 0
      %3991 = vmatmul.mubr.bf16.gmra.mrb[0].mxu0 %v3880
      %v3992 = vpop.f32.mrb[0].mxu0
      %v3993 = vadd.f32 %v3800, %v3992
      %v3994 = vpop.f32.mrb[0].mxu0
      %v3995 = vpop.f32.mrb[0].mxu0
      %v3996 = vadd.f32 %v3803, %v3995
      %v3997 = vpop.f32.mrb[0].mxu0
      %3998 = vmatprep.mubr.bf16.mxu0 0
      %3999 = vmatmul.mubr.bf16.gmra.mrb[0].mxu0 %v3881
      %v4000 = vpop.f32.mrb[0].mxu0
      %v4001 = vadd.f32 %v3808, %v4000
      %v4002 = vpop.f32.mrb[0].mxu0
      %v4003 = vpop.f32.mrb[0].mxu0
      %v4004 = vadd.f32 %v3811, %v4003
      %v4005 = vpop.f32.mrb[0].mxu0
      %4006 = vmatprep.mubr.bf16.mxu0 0
      %4007 = vmatmul.mubr.bf16.gmra.mrb[0].mxu0 %v3882
      %v4008 = vpop.f32.mrb[0].mxu0
      %v4009 = vadd.f32 %v3816, %v4008
      %v4010 = vpop.f32.mrb[0].mxu0
      %v4011 = vpop.f32.mrb[0].mxu0
      %v4012 = vadd.f32 %v3819, %v4011
      %v4013 = vpop.f32.mrb[0].mxu0
      %4014 = vmatprep.mubr.bf16.mxu0 0
      %4015 = vmatmul.mubr.bf16.gmra.mrb[0].mxu0 %v3883
      %v4016 = vpop.f32.mrb[0].mxu0
      %v4017 = vadd.f32 %v3824, %v4016
      %v4018 = vpop.f32.mrb[0].mxu0
      %v4019 = vpop.f32.mrb[0].mxu0
      %v4020 = vadd.f32 %v3827, %v4019
      %v4021 = vpop.f32.mrb[0].mxu0
      %4022 = vmatprep.mubr.bf16.mxu0 0
      %4023 = vmatmul.mubr.bf16.gmra.mrb[0].mxu0 %v3884
      %v4024 = vpop.f32.mrb[0].mxu0
      %v4025 = vadd.f32 %v3832, %v4024
      %v4026 = vpop.f32.mrb[0].mxu0
      %v4027 = vpop.f32.mrb[0].mxu0
      %v4028 = vadd.f32 %v3835, %v4027
      %v4029 = vpop.f32.mrb[0].mxu0
      %4030 = vmatprep.mubr.bf16.mxu0 0
      %4031 = vmatmul.mubr.bf16.gmra.mrb[0].mxu0 %v3885
      %v4032 = vpop.f32.mrb[0].mxu0
      %v4033 = vadd.f32 %v3840, %v4032
      %v4034 = vpop.f32.mrb[0].mxu0
      %v4035 = vpop.f32.mrb[0].mxu0
      %v4036 = vadd.f32 %v3843, %v4035
      %v4037 = vpop.f32.mrb[0].mxu0
      %4038 = vdwg.mxu0
      %v4039 = vld [vmem:[#allocation3] sm:$0xc]
      %v4040 = vld [vmem:[#allocation3 + $0x4] sm:$0x3]
      %v4041 = vld [vmem:[#allocation3 + $0x8] sm:$0xc]
      %v4042 = vld [vmem:[#allocation3 + $0xc] sm:$0x3]
      %v4043 = vld [vmem:[#allocation3 + $0x10] sm:$0xc]
      %v4044 = vld [vmem:[#allocation3 + $0x14] sm:$0x3]
      %v4045 = vld [vmem:[#allocation3 + $0x18] sm:$0xc]
      %v4046 = vld [vmem:[#allocation3 + $0x1c] sm:$0x3]
      %v4047 = vld [vmem:[#allocation3 + $0x20] sm:$0xc]
      %v4048 = vld [vmem:[#allocation3 + $0x24] sm:$0x3]
      %v4049 = vld [vmem:[#allocation3 + $0x28] sm:$0xc]
      %v4050 = vld [vmem:[#allocation3 + $0x2c] sm:$0x3]
      %v4051 = vld [vmem:[#allocation3 + $0x30] sm:$0xc]
      %v4052 = vld [vmem:[#allocation3 + $0x34] sm:$0x3]
      %v4053 = vld [vmem:[#allocation3 + $0x38] sm:$0xc]
      %v4054 = vld [vmem:[#allocation3 + $0x3c] sm:$0x3]
      %v4055 = vld [vmem:[#allocation3 + $0x40] sm:$0xc]
      %v4056 = vld [vmem:[#allocation3 + $0x44] sm:$0x3]
      %v4057 = vld [vmem:[#allocation3 + $0x48] sm:$0xc]
      %v4058 = vld [vmem:[#allocation3 + $0x4c] sm:$0x3]
      %v4059 = vld [vmem:[#allocation3 + $0x50] sm:$0xc]
      %v4060 = vld [vmem:[#allocation3 + $0x54] sm:$0x3]
      %v4061 = vld [vmem:[#allocation3 + $0x58] sm:$0xc]
      %v4062 = vld [vmem:[#allocation3 + $0x5c] sm:$0x3]
      %v4063 = vld [vmem:[#allocation3 + $0x60] sm:$0xc]
      %v4064 = vld [vmem:[#allocation3 + $0x64] sm:$0x3]
      %v4065 = vld [vmem:[#allocation3 + $0x68] sm:$0xc]
      %v4066 = vld [vmem:[#allocation3 + $0x6c] sm:$0x3]
      %v4067 = vld [vmem:[#allocation3 + $0x70] sm:$0xc]
      %v4068 = vld [vmem:[#allocation3 + $0x74] sm:$0x3]
      %v4069 = vld [vmem:[#allocation3 + $0x78] sm:$0xc]
      %v4070 = vld [vmem:[#allocation3 + $0x7c] sm:$0x3]
      %vm4103 = vcmask 1041408
      %vm4104 = vcmask 1045508
      %vm4105 = vmor %vm4103, %vm4104
      %v4106 = vrot.slane %v4039, 6
      %v4107 = vrot.slane %v4106, 4
      %v4108 = vrot.slane %v4040, 6
      %v4109 = vsel %vm4105, %v4107, %v4108
      %v4110 = vrot.slane %v4041, 6
      %v4111 = vrot.slane %v4110, 4
      %v4112 = vrot.slane %v4042, 6
      %v4113 = vsel %vm4105, %v4111, %v4112
      %v4114 = vrot.slane %v4043, 6
      %v4115 = vrot.slane %v4114, 4
      %v4116 = vrot.slane %v4044, 6
      %v4117 = vsel %vm4105, %v4115, %v4116
      %v4118 = vrot.slane %v4045, 6
      %v4119 = vrot.slane %v4118, 4
      %v4120 = vrot.slane %v4046, 6
      %v4121 = vsel %vm4105, %v4119, %v4120
      %v4122 = vrot.slane %v4047, 6
      %v4123 = vrot.slane %v4122, 4
      %v4124 = vrot.slane %v4048, 6
      %v4125 = vsel %vm4105, %v4123, %v4124
      %v4126 = vrot.slane %v4049, 6
      %v4127 = vrot.slane %v4126, 4
      %v4128 = vrot.slane %v4050, 6
      %v4129 = vsel %vm4105, %v4127, %v4128
      %v4130 = vrot.slane %v4051, 6
      %v4131 = vrot.slane %v4130, 4
      %v4132 = vrot.slane %v4052, 6
      %v4133 = vsel %vm4105, %v4131, %v4132
      %v4134 = vrot.slane %v4053, 6
      %v4135 = vrot.slane %v4134, 4
      %v4136 = vrot.slane %v4054, 6
      %v4137 = vsel %vm4105, %v4135, %v4136
      %v4138 = vrot.slane %v4055, 6
      %v4139 = vrot.slane %v4138, 4
      %v4140 = vrot.slane %v4056, 6
      %v4141 = vsel %vm4105, %v4139, %v4140
      %v4142 = vrot.slane %v4057, 6
      %v4143 = vrot.slane %v4142, 4
      %v4144 = vrot.slane %v4058, 6
      %v4145 = vsel %vm4105, %v4143, %v4144
      %v4146 = vrot.slane %v4059, 6
      %v4147 = vrot.slane %v4146, 4
      %v4148 = vrot.slane %v4060, 6
      %v4149 = vsel %vm4105, %v4147, %v4148
      %v4150 = vrot.slane %v4061, 6
      %v4151 = vrot.slane %v4150, 4
      %v4152 = vrot.slane %v4062, 6
      %v4153 = vsel %vm4105, %v4151, %v4152
      %v4154 = vrot.slane %v4063, 6
      %v4155 = vrot.slane %v4154, 4
      %v4156 = vrot.slane %v4064, 6
      %v4157 = vsel %vm4105, %v4155, %v4156
      %v4158 = vrot.slane %v4065, 6
      %v4159 = vrot.slane %v4158, 4
      %v4160 = vrot.slane %v4066, 6
      %v4161 = vsel %vm4105, %v4159, %v4160
      %v4162 = vrot.slane %v4067, 6
      %v4163 = vrot.slane %v4162, 4
      %v4164 = vrot.slane %v4068, 6
      %v4165 = vsel %vm4105, %v4163, %v4164
      %v4166 = vrot.slane %v4069, 6
      %v4167 = vrot.slane %v4166, 4
      %v4168 = vrot.slane %v4070, 6
      %v4169 = vsel %vm4105, %v4167, %v4168
      %s4170 = scalar_lea.vmem %s238, 896
      %v4171 = vld [vmem:[%s4170] sm:$0xf]
      %v4172 = vld [vmem:[%s4170 + $0x4] sm:$0xf]
      %v4173 = vld [vmem:[%s4170 + $0x8] sm:$0xf]
      %v4174 = vld [vmem:[%s4170 + $0xc] sm:$0xf]
      %v4175 = vld [vmem:[%s4170 + $0x10] sm:$0xf]
      %v4176 = vld [vmem:[%s4170 + $0x14] sm:$0xf]
      %v4177 = vld [vmem:[%s4170 + $0x18] sm:$0xf]
      %v4178 = vld [vmem:[%s4170 + $0x1c] sm:$0xf]
      %v4179 = vld [vmem:[%s4170 + $0x20] sm:$0xf]
      %v4180 = vld [vmem:[%s4170 + $0x24] sm:$0xf]
      %v4181 = vld [vmem:[%s4170 + $0x28] sm:$0xf]
      %v4182 = vld [vmem:[%s4170 + $0x2c] sm:$0xf]
      %v4183 = vld [vmem:[%s4170 + $0x30] sm:$0xf]
      %v4184 = vld [vmem:[%s4170 + $0x34] sm:$0xf]
      %v4185 = vld [vmem:[%s4170 + $0x38] sm:$0xf]
      %v4186 = vld [vmem:[%s4170 + $0x3c] sm:$0xf]
      %v4187 = vunpack.c.l.b16 %v4109
      %v4188 = vunpack.c.l.b16 %v4113
      %v4189 = vunpack.c.l.b16 %v4117
      %v4190 = vunpack.c.l.b16 %v4121
      %v4191 = vunpack.c.l.b16 %v4125
      %v4192 = vunpack.c.l.b16 %v4129
      %v4193 = vunpack.c.l.b16 %v4133
      %v4194 = vunpack.c.l.b16 %v4137
      %v4195 = vunpack.c.l.b16 %v4141
      %v4196 = vunpack.c.l.b16 %v4145
      %v4197 = vunpack.c.l.b16 %v4149
      %v4198 = vunpack.c.l.b16 %v4153
      %v4199 = vunpack.c.l.b16 %v4157
      %v4200 = vunpack.c.l.b16 %v4161
      %v4201 = vunpack.c.l.b16 %v4165
      %v4202 = vunpack.c.l.b16 %v4169
      %v4203 = vpack.c.b16 %v4188, %v4187
      %v4204 = vpack.c.b16 %v4190, %v4189
      %v4205 = vpack.c.b16 %v4192, %v4191
      %v4206 = vpack.c.b16 %v4194, %v4193
      %v4207 = vpack.c.b16 %v4196, %v4195
      %v4208 = vpack.c.b16 %v4198, %v4197
      %v4209 = vpack.c.b16 %v4200, %v4199
      %v4210 = vpack.c.b16 %v4202, %v4201
      %v4235 = vunpack.c.l.b16 %v4171
      %v4236 = vunpack.c.l.b16 %v4172
      %v4237 = vunpack.c.l.b16 %v4173
      %v4238 = vunpack.c.l.b16 %v4174
      %v4239 = vunpack.c.l.b16 %v4175
      %v4240 = vunpack.c.l.b16 %v4176
      %v4241 = vunpack.c.l.b16 %v4177
      %v4242 = vunpack.c.l.b16 %v4178
      %v4243 = vunpack.c.l.b16 %v4179
      %v4244 = vunpack.c.l.b16 %v4180
      %v4245 = vunpack.c.l.b16 %v4181
      %v4246 = vunpack.c.l.b16 %v4182
      %v4247 = vunpack.c.l.b16 %v4183
      %v4248 = vunpack.c.l.b16 %v4184
      %v4249 = vunpack.c.l.b16 %v4185
      %v4250 = vunpack.c.l.b16 %v4186
      %v4251 = vpack.c.b16 %v4236, %v4235
      %v4252 = vpack.c.b16 %v4238, %v4237
      %v4253 = vpack.c.b16 %v4240, %v4239
      %v4254 = vpack.c.b16 %v4242, %v4241
      %v4255 = vpack.c.b16 %v4244, %v4243
      %v4256 = vpack.c.b16 %v4246, %v4245
      %v4257 = vpack.c.b16 %v4248, %v4247
      %v4258 = vpack.c.b16 %v4250, %v4249
      %4267 = vmatprep.subr.bf16.mxu0 0
      %4268 = vmatpush1.bf16.msra.mxu0 %v4251
      %4269 = vmatprep.subr.bf16.mxu0 0
      %4270 = vmatpush1.bf16.msra.mxu0 %v4252
      %4271 = vmatprep.subr.bf16.mxu0 0
      %4272 = vmatpush1.bf16.msra.mxu0 %v4253
      %4273 = vmatprep.subr.bf16.mxu0 0
      %4274 = vmatpush1.bf16.msra.mxu0 %v4254
      %4275 = vmatprep.subr.bf16.mxu0 0
      %4276 = vmatpush1.bf16.msra.mxu0 %v4255
      %4277 = vmatprep.subr.bf16.mxu0 0
      %4278 = vmatpush1.bf16.msra.mxu0 %v4256
      %4279 = vmatprep.subr.bf16.mxu0 0
      %4280 = vmatpush1.bf16.msra.mxu0 %v4257
      %4281 = vmatprep.subr.bf16.mxu0 0
      %4282 = vmatpush1.bf16.msra.mxu0 %v4258
      %4283 = vmatprep.subr.bf16.mxu0 0
      %4284 = vmatpush1.bf16.msra.mxu0 0
      %4285 = vmatprep.subr.bf16.mxu0 0
      %4286 = vmatpush1.bf16.msra.mxu0 0
      %4287 = vmatprep.subr.bf16.mxu0 0
      %4288 = vmatpush1.bf16.msra.mxu0 0
      %4289 = vmatprep.subr.bf16.mxu0 0
      %4290 = vmatpush1.bf16.msra.mxu0 0
      %4291 = vmatprep.subr.bf16.mxu0 0
      %4292 = vmatpush1.bf16.msra.mxu0 0
      %4293 = vmatprep.subr.bf16.mxu0 0
      %4294 = vmatpush1.bf16.msra.mxu0 0
      %4295 = vmatprep.subr.bf16.mxu0 0
      %4296 = vmatpush1.bf16.msra.mxu0 0
      %4297 = vmatprep.subr.bf16.mxu0 0
      %4298 = vmatpush1.bf16.msra.mxu0 0
      %4299 = vmatprep.mubr.bf16.mxu0 0
      %4300 = vmatmul.mubr.bf16.gmra.mrb[0].mxu0 %v4203
      %v4301 = vpop.f32.mrb[0].mxu0
      %v4302 = vadd.f32 0.0, %v4301
      %v4303 = vpop.f32.mrb[0].mxu0
      %v4304 = vpop.f32.mrb[0].mxu0
      %v4305 = vadd.f32 0.0, %v4304
      %v4306 = vpop.f32.mrb[0].mxu0
      %4307 = vmatprep.mubr.bf16.mxu0 0
      %4308 = vmatmul.mubr.bf16.gmra.mrb[0].mxu0 %v4204
      %v4309 = vpop.f32.mrb[0].mxu0
      %v4310 = vadd.f32 0.0, %v4309
      %v4311 = vpop.f32.mrb[0].mxu0
      %v4312 = vpop.f32.mrb[0].mxu0
      %v4313 = vadd.f32 0.0, %v4312
      %v4314 = vpop.f32.mrb[0].mxu0
      %4315 = vmatprep.mubr.bf16.mxu0 0
      %4316 = vmatmul.mubr.bf16.gmra.mrb[0].mxu0 %v4205
      %v4317 = vpop.f32.mrb[0].mxu0
      %v4318 = vadd.f32 0.0, %v4317
      %v4319 = vpop.f32.mrb[0].mxu0
      %v4320 = vpop.f32.mrb[0].mxu0
      %v4321 = vadd.f32 0.0, %v4320
      %v4322 = vpop.f32.mrb[0].mxu0
      %4323 = vmatprep.mubr.bf16.mxu0 0
      %4324 = vmatmul.mubr.bf16.gmra.mrb[0].mxu0 %v4206
      %v4325 = vpop.f32.mrb[0].mxu0
      %v4326 = vadd.f32 0.0, %v4325
      %v4327 = vpop.f32.mrb[0].mxu0
      %v4328 = vpop.f32.mrb[0].mxu0
      %v4329 = vadd.f32 0.0, %v4328
      %v4330 = vpop.f32.mrb[0].mxu0
      %4331 = vmatprep.mubr.bf16.mxu0 0
      %4332 = vmatmul.mubr.bf16.gmra.mrb[0].mxu0 %v4207
      %v4333 = vpop.f32.mrb[0].mxu0
      %v4334 = vadd.f32 0.0, %v4333
      %v4335 = vpop.f32.mrb[0].mxu0
      %v4336 = vpop.f32.mrb[0].mxu0
      %v4337 = vadd.f32 0.0, %v4336
      %v4338 = vpop.f32.mrb[0].mxu0
      %4339 = vmatprep.mubr.bf16.mxu0 0
      %4340 = vmatmul.mubr.bf16.gmra.mrb[0].mxu0 %v4208
      %v4341 = vpop.f32.mrb[0].mxu0
      %v4342 = vadd.f32 0.0, %v4341
      %v4343 = vpop.f32.mrb[0].mxu0
      %v4344 = vpop.f32.mrb[0].mxu0
      %v4345 = vadd.f32 0.0, %v4344
      %v4346 = vpop.f32.mrb[0].mxu0
      %4347 = vmatprep.mubr.bf16.mxu0 0
      %4348 = vmatmul.mubr.bf16.gmra.mrb[0].mxu0 %v4209
      %v4349 = vpop.f32.mrb[0].mxu0
      %v4350 = vadd.f32 0.0, %v4349
      %v4351 = vpop.f32.mrb[0].mxu0
      %v4352 = vpop.f32.mrb[0].mxu0
      %v4353 = vadd.f32 0.0, %v4352
      %v4354 = vpop.f32.mrb[0].mxu0
      %4355 = vmatprep.mubr.bf16.mxu0 0
      %4356 = vmatmul.mubr.bf16.gmra.mrb[0].mxu0 %v4210
      %v4357 = vpop.f32.mrb[0].mxu0
      %v4358 = vadd.f32 0.0, %v4357
      %v4359 = vpop.f32.mrb[0].mxu0
      %v4360 = vpop.f32.mrb[0].mxu0
      %v4361 = vadd.f32 0.0, %v4360
      %v4362 = vpop.f32.mrb[0].mxu0
      %4363 = vdwg.mxu0
      %v4364 = vadd.f32 %v3977, %v4302
      %v4365 = vadd.f32 %v3980, %v4305
      %v4366 = vadd.f32 %v3985, %v4310
      %v4367 = vadd.f32 %v3988, %v4313
      %v4368 = vadd.f32 %v3993, %v4318
      %v4369 = vadd.f32 %v3996, %v4321
      %v4370 = vadd.f32 %v4001, %v4326
      %v4371 = vadd.f32 %v4004, %v4329
      %v4372 = vadd.f32 %v4009, %v4334
      %v4373 = vadd.f32 %v4012, %v4337
      %v4374 = vadd.f32 %v4017, %v4342
      %v4375 = vadd.f32 %v4020, %v4345
      %v4376 = vadd.f32 %v4025, %v4350
      %v4377 = vadd.f32 %v4028, %v4353
      %v4378 = vadd.f32 %v4033, %v4358
      %v4379 = vadd.f32 %v4036, %v4361
      %v4380 = vld [vmem:[%s242 + $0x4] sm:$0x1]
      %v4381 = vlaneseq
      %v4382 = vshrl.u32 %v4381, 7
      %v4383 = vsub.s32 0, %v4382
      %v4384 = vrot.slane %v4380, %v4383
      %v4385 = vmul.f32 %v4364, %v4384
      %v4386 = vmul.f32 %v4365, %v4384
      %v4387 = vmul.f32 %v4366, %v4384
      %v4388 = vmul.f32 %v4367, %v4384
      %v4389 = vmul.f32 %v4368, %v4384
      %v4390 = vmul.f32 %v4369, %v4384
      %v4391 = vmul.f32 %v4370, %v4384
      %v4392 = vmul.f32 %v4371, %v4384
      %v4393 = vmul.f32 %v4372, %v4384
      %v4394 = vmul.f32 %v4373, %v4384
      %v4395 = vmul.f32 %v4374, %v4384
      %v4396 = vmul.f32 %v4375, %v4384
      %v4397 = vmul.f32 %v4376, %v4384
      %v4398 = vmul.f32 %v4377, %v4384
      %v4399 = vmul.f32 %v4378, %v4384
      %v4400 = vmul.f32 %v4379, %v4384
      %v4401 = vld [vmem:[%s246 + $0x4] sm:$0x1]
      %v4402 = vlaneseq
      %v4403 = vshrl.u32 %v4402, 7
      %v4404 = vsub.s32 0, %v4403
      %v4405 = vrot.slane %v4401, %v4404
      %v4406 = vadd.f32 %v4385, %v4405
      %v4407 = vadd.f32 %v4386, %v4405
      %v4408 = vadd.f32 %v4387, %v4405
      %v4409 = vadd.f32 %v4388, %v4405
      %v4410 = vadd.f32 %v4389, %v4405
      %v4411 = vadd.f32 %v4390, %v4405
      %v4412 = vadd.f32 %v4391, %v4405
      %v4413 = vadd.f32 %v4392, %v4405
      %v4414 = vadd.f32 %v4393, %v4405
      %v4415 = vadd.f32 %v4394, %v4405
      %v4416 = vadd.f32 %v4395, %v4405
      %v4417 = vadd.f32 %v4396, %v4405
      %v4418 = vadd.f32 %v4397, %v4405
      %v4419 = vadd.f32 %v4398, %v4405
      %v4420 = vadd.f32 %v4399, %v4405
      %v4421 = vadd.f32 %v4400, %v4405
      %v4422 = vmax.f32 %v4406, 0.0
      %v4423 = vmax.f32 %v4407, 0.0
      %v4424 = vmax.f32 %v4408, 0.0
      %v4425 = vmax.f32 %v4409, 0.0
      %v4426 = vmax.f32 %v4410, 0.0
      %v4427 = vmax.f32 %v4411, 0.0
      %v4428 = vmax.f32 %v4412, 0.0
      %v4429 = vmax.f32 %v4413, 0.0
      %v4430 = vmax.f32 %v4414, 0.0
      %v4431 = vmax.f32 %v4415, 0.0
      %v4432 = vmax.f32 %v4416, 0.0
      %v4433 = vmax.f32 %v4417, 0.0
      %v4434 = vmax.f32 %v4418, 0.0
      %v4435 = vmax.f32 %v4419, 0.0
      %v4436 = vmax.f32 %v4420, 0.0
      %v4437 = vmax.f32 %v4421, 0.0
      %v4438 = vpack.c.bf16 %v4423, %v4422
      %v4439 = vpack.c.bf16 %v4425, %v4424
      %v4440 = vpack.c.bf16 %v4427, %v4426
      %v4441 = vpack.c.bf16 %v4429, %v4428
      %v4442 = vpack.c.bf16 %v4431, %v4430
      %v4443 = vpack.c.bf16 %v4433, %v4432
      %v4444 = vpack.c.bf16 %v4435, %v4434
      %v4445 = vpack.c.bf16 %v4437, %v4436
      %v4454 = vunpack.c.l.b16 %v4438
      %v4455 = vunpack.c.h.b16 %v4438
      %v4456 = vunpack.c.l.b16 %v4439
      %v4457 = vunpack.c.h.b16 %v4439
      %v4458 = vunpack.c.l.b16 %v4440
      %v4459 = vunpack.c.h.b16 %v4440
      %v4460 = vunpack.c.l.b16 %v4441
      %v4461 = vunpack.c.h.b16 %v4441
      %v4462 = vunpack.c.l.b16 %v4442
      %v4463 = vunpack.c.h.b16 %v4442
      %v4464 = vunpack.c.l.b16 %v4443
      %v4465 = vunpack.c.h.b16 %v4443
      %v4466 = vunpack.c.l.b16 %v4444
      %v4467 = vunpack.c.h.b16 %v4444
      %v4468 = vunpack.c.l.b16 %v4445
      %v4469 = vunpack.c.h.b16 %v4445
      %v4470 = vpack.c.b16 %v4454, %v4454
      %v4471 = vpack.c.b16 %v4455, %v4455
      %v4472 = vpack.c.b16 %v4456, %v4456
      %v4473 = vpack.c.b16 %v4457, %v4457
      %v4474 = vpack.c.b16 %v4458, %v4458
      %v4475 = vpack.c.b16 %v4459, %v4459
      %v4476 = vpack.c.b16 %v4460, %v4460
      %v4477 = vpack.c.b16 %v4461, %v4461
      %v4478 = vpack.c.b16 %v4462, %v4462
      %v4479 = vpack.c.b16 %v4463, %v4463
      %v4480 = vpack.c.b16 %v4464, %v4464
      %v4481 = vpack.c.b16 %v4465, %v4465
      %v4482 = vpack.c.b16 %v4466, %v4466
      %v4483 = vpack.c.b16 %v4467, %v4467
      %v4484 = vpack.c.b16 %v4468, %v4468
      %v4485 = vpack.c.b16 %v4469, %v4469
      %4502 = vst [vmem:[%s668] sm:$0xf] %v4470
      %4503 = vst [vmem:[%s668 + $0x4] sm:$0xf] %v4471
      %4504 = vst [vmem:[%s668 + $0x8] sm:$0xf] %v4472
      %4505 = vst [vmem:[%s668 + $0xc] sm:$0xf] %v4473
      %4506 = vst [vmem:[%s668 + $0x18] sm:$0xf] %v4474
      %4507 = vst [vmem:[%s668 + $0x1c] sm:$0xf] %v4475
      %4508 = vst [vmem:[%s668 + $0x20] sm:$0xf] %v4476
      %4509 = vst [vmem:[%s668 + $0x24] sm:$0xf] %v4477
      %4510 = vst [vmem:[%s668 + $0x30] sm:$0xf] %v4478
      %4511 = vst [vmem:[%s668 + $0x34] sm:$0xf] %v4479
      %4512 = vst [vmem:[%s668 + $0x38] sm:$0xf] %v4480
      %4513 = vst [vmem:[%s668 + $0x3c] sm:$0xf] %v4481
      %4514 = vst [vmem:[%s668 + $0x48] sm:$0xf] %v4482
      %4515 = vst [vmem:[%s668 + $0x4c] sm:$0xf] %v4483
      %4516 = vst [vmem:[%s668 + $0x50] sm:$0xf] %v4484
      %4517 = vst [vmem:[%s668 + $0x54] sm:$0xf] %v4485
      %v4518 = vld [vmem:[#allocation2] sm:$0xf]
      %v4519 = vld [vmem:[#allocation2 + $0x4] sm:$0xf]
      %v4520 = vld [vmem:[#allocation2 + $0x8] sm:$0xf]
      %v4521 = vld [vmem:[#allocation2 + $0xc] sm:$0xf]
      %v4522 = vld [vmem:[#allocation2 + $0x18] sm:$0xf]
      %v4523 = vld [vmem:[#allocation2 + $0x1c] sm:$0xf]
      %v4524 = vld [vmem:[#allocation2 + $0x20] sm:$0xf]
      %v4525 = vld [vmem:[#allocation2 + $0x24] sm:$0xf]
      %v4526 = vld [vmem:[#allocation2 + $0x30] sm:$0xf]
      %v4527 = vld [vmem:[#allocation2 + $0x34] sm:$0xf]
      %v4528 = vld [vmem:[#allocation2 + $0x38] sm:$0xf]
      %v4529 = vld [vmem:[#allocation2 + $0x3c] sm:$0xf]
      %v4530 = vld [vmem:[#allocation2 + $0x48] sm:$0xf]
      %v4531 = vld [vmem:[#allocation2 + $0x4c] sm:$0xf]
      %v4532 = vld [vmem:[#allocation2 + $0x50] sm:$0xf]
      %v4533 = vld [vmem:[#allocation2 + $0x54] sm:$0xf]
      %s4534 = scalar_lea.vmem %s238, 960
      %v4535 = vld [vmem:[%s4534] sm:$0xf]
      %v4536 = vld [vmem:[%s4534 + $0x4] sm:$0xf]
      %v4537 = vld [vmem:[%s4534 + $0x8] sm:$0xf]
      %v4538 = vld [vmem:[%s4534 + $0xc] sm:$0xf]
      %v4539 = vld [vmem:[%s4534 + $0x10] sm:$0xf]
      %v4540 = vld [vmem:[%s4534 + $0x14] sm:$0xf]
      %v4541 = vld [vmem:[%s4534 + $0x18] sm:$0xf]
      %v4542 = vld [vmem:[%s4534 + $0x1c] sm:$0xf]
      %v4543 = vld [vmem:[%s4534 + $0x20] sm:$0xf]
      %v4544 = vld [vmem:[%s4534 + $0x24] sm:$0xf]
      %v4545 = vld [vmem:[%s4534 + $0x28] sm:$0xf]
      %v4546 = vld [vmem:[%s4534 + $0x2c] sm:$0xf]
      %v4547 = vld [vmem:[%s4534 + $0x30] sm:$0xf]
      %v4548 = vld [vmem:[%s4534 + $0x34] sm:$0xf]
      %v4549 = vld [vmem:[%s4534 + $0x38] sm:$0xf]
      %v4550 = vld [vmem:[%s4534 + $0x3c] sm:$0xf]
      %v4551 = vld [vmem:[%s718] sm:$0xf]
      %v4552 = vld [vmem:[%s718 + $0x4] sm:$0xf]
      %v4553 = vld [vmem:[%s718 + $0x8] sm:$0xf]
      %v4554 = vld [vmem:[%s718 + $0xc] sm:$0xf]
      %v4555 = vld [vmem:[%s718 + $0x18] sm:$0xf]
      %v4556 = vld [vmem:[%s718 + $0x1c] sm:$0xf]
      %v4557 = vld [vmem:[%s718 + $0x20] sm:$0xf]
      %v4558 = vld [vmem:[%s718 + $0x24] sm:$0xf]
      %v4559 = vld [vmem:[%s718 + $0x30] sm:$0xf]
      %v4560 = vld [vmem:[%s718 + $0x34] sm:$0xf]
      %v4561 = vld [vmem:[%s718 + $0x38] sm:$0xf]
      %v4562 = vld [vmem:[%s718 + $0x3c] sm:$0xf]
      %v4563 = vld [vmem:[%s718 + $0x48] sm:$0xf]
      %v4564 = vld [vmem:[%s718 + $0x4c] sm:$0xf]
      %v4565 = vld [vmem:[%s718 + $0x50] sm:$0xf]
      %v4566 = vld [vmem:[%s718 + $0x54] sm:$0xf]
      %s4567 = scalar_lea.vmem %s238, 1024
      %v4568 = vld [vmem:[%s4567] sm:$0xf]
      %v4569 = vld [vmem:[%s4567 + $0x4] sm:$0xf]
      %v4570 = vld [vmem:[%s4567 + $0x8] sm:$0xf]
      %v4571 = vld [vmem:[%s4567 + $0xc] sm:$0xf]
      %v4572 = vld [vmem:[%s4567 + $0x10] sm:$0xf]
      %v4573 = vld [vmem:[%s4567 + $0x14] sm:$0xf]
      %v4574 = vld [vmem:[%s4567 + $0x18] sm:$0xf]
      %v4575 = vld [vmem:[%s4567 + $0x1c] sm:$0xf]
      %v4576 = vld [vmem:[%s4567 + $0x20] sm:$0xf]
      %v4577 = vld [vmem:[%s4567 + $0x24] sm:$0xf]
      %v4578 = vld [vmem:[%s4567 + $0x28] sm:$0xf]
      %v4579 = vld [vmem:[%s4567 + $0x2c] sm:$0xf]
      %v4580 = vld [vmem:[%s4567 + $0x30] sm:$0xf]
      %v4581 = vld [vmem:[%s4567 + $0x34] sm:$0xf]
      %v4582 = vld [vmem:[%s4567 + $0x38] sm:$0xf]
      %v4583 = vld [vmem:[%s4567 + $0x3c] sm:$0xf]
      %v4600 = vunpack.c.l.b16 %v4551
      %v4601 = vunpack.c.l.b16 %v4552
      %v4602 = vunpack.c.l.b16 %v4553
      %v4603 = vunpack.c.l.b16 %v4554
      %v4604 = vunpack.c.l.b16 %v4555
      %v4605 = vunpack.c.l.b16 %v4556
      %v4606 = vunpack.c.l.b16 %v4557
      %v4607 = vunpack.c.l.b16 %v4558
      %v4608 = vunpack.c.l.b16 %v4559
      %v4609 = vunpack.c.l.b16 %v4560
      %v4610 = vunpack.c.l.b16 %v4561
      %v4611 = vunpack.c.l.b16 %v4562
      %v4612 = vunpack.c.l.b16 %v4563
      %v4613 = vunpack.c.l.b16 %v4564
      %v4614 = vunpack.c.l.b16 %v4565
      %v4615 = vunpack.c.l.b16 %v4566
      %v4616 = vpack.c.b16 %v4601, %v4600
      %v4617 = vpack.c.b16 %v4603, %v4602
      %v4618 = vpack.c.b16 %v4605, %v4604
      %v4619 = vpack.c.b16 %v4607, %v4606
      %v4620 = vpack.c.b16 %v4609, %v4608
      %v4621 = vpack.c.b16 %v4611, %v4610
      %v4622 = vpack.c.b16 %v4613, %v4612
      %v4623 = vpack.c.b16 %v4615, %v4614
      %v4648 = vunpack.c.l.b16 %v4568
      %v4649 = vunpack.c.l.b16 %v4569
      %v4650 = vunpack.c.l.b16 %v4570
      %v4651 = vunpack.c.l.b16 %v4571
      %v4652 = vunpack.c.l.b16 %v4572
      %v4653 = vunpack.c.l.b16 %v4573
      %v4654 = vunpack.c.l.b16 %v4574
      %v4655 = vunpack.c.l.b16 %v4575
      %v4656 = vunpack.c.l.b16 %v4576
      %v4657 = vunpack.c.l.b16 %v4577
      %v4658 = vunpack.c.l.b16 %v4578
      %v4659 = vunpack.c.l.b16 %v4579
      %v4660 = vunpack.c.l.b16 %v4580
      %v4661 = vunpack.c.l.b16 %v4581
      %v4662 = vunpack.c.l.b16 %v4582
      %v4663 = vunpack.c.l.b16 %v4583
      %v4664 = vpack.c.b16 %v4649, %v4648
      %v4665 = vpack.c.b16 %v4651, %v4650
      %v4666 = vpack.c.b16 %v4653, %v4652
      %v4667 = vpack.c.b16 %v4655, %v4654
      %v4668 = vpack.c.b16 %v4657, %v4656
      %v4669 = vpack.c.b16 %v4659, %v4658
      %v4670 = vpack.c.b16 %v4661, %v4660
      %v4671 = vpack.c.b16 %v4663, %v4662
      %4680 = vmatprep.subr.bf16.mxu0 0
      %4681 = vmatpush1.bf16.msra.mxu0 %v4664
      %4682 = vmatprep.subr.bf16.mxu0 0
      %4683 = vmatpush1.bf16.msra.mxu0 %v4665
      %4684 = vmatprep.subr.bf16.mxu0 0
      %4685 = vmatpush1.bf16.msra.mxu0 %v4666
      %4686 = vmatprep.subr.bf16.mxu0 0
      %4687 = vmatpush1.bf16.msra.mxu0 %v4667
      %4688 = vmatprep.subr.bf16.mxu0 0
      %4689 = vmatpush1.bf16.msra.mxu0 %v4668
      %4690 = vmatprep.subr.bf16.mxu0 0
      %4691 = vmatpush1.bf16.msra.mxu0 %v4669
      %4692 = vmatprep.subr.bf16.mxu0 0
      %4693 = vmatpush1.bf16.msra.mxu0 %v4670
      %4694 = vmatprep.subr.bf16.mxu0 0
      %4695 = vmatpush1.bf16.msra.mxu0 %v4671
      %4696 = vmatprep.subr.bf16.mxu0 0
      %4697 = vmatpush1.bf16.msra.mxu0 0
      %4698 = vmatprep.subr.bf16.mxu0 0
      %4699 = vmatpush1.bf16.msra.mxu0 0
      %4700 = vmatprep.subr.bf16.mxu0 0
      %4701 = vmatpush1.bf16.msra.mxu0 0
      %4702 = vmatprep.subr.bf16.mxu0 0
      %4703 = vmatpush1.bf16.msra.mxu0 0
      %4704 = vmatprep.subr.bf16.mxu0 0
      %4705 = vmatpush1.bf16.msra.mxu0 0
      %4706 = vmatprep.subr.bf16.mxu0 0
      %4707 = vmatpush1.bf16.msra.mxu0 0
      %4708 = vmatprep.subr.bf16.mxu0 0
      %4709 = vmatpush1.bf16.msra.mxu0 0
      %4710 = vmatprep.subr.bf16.mxu0 0
      %4711 = vmatpush1.bf16.msra.mxu0 0
      %4712 = vmatprep.mubr.bf16.mxu0 0
      %4713 = vmatmul.mubr.bf16.gmra.mrb[0].mxu0 %v4616
      %v4714 = vpop.f32.mrb[0].mxu0
      %v4715 = vadd.f32 0.0, %v4714
      %v4716 = vpop.f32.mrb[0].mxu0
      %v4717 = vpop.f32.mrb[0].mxu0
      %v4718 = vadd.f32 0.0, %v4717
      %v4719 = vpop.f32.mrb[0].mxu0
      %4720 = vmatprep.mubr.bf16.mxu0 0
      %4721 = vmatmul.mubr.bf16.gmra.mrb[0].mxu0 %v4617
      %v4722 = vpop.f32.mrb[0].mxu0
      %v4723 = vadd.f32 0.0, %v4722
      %v4724 = vpop.f32.mrb[0].mxu0
      %v4725 = vpop.f32.mrb[0].mxu0
      %v4726 = vadd.f32 0.0, %v4725
      %v4727 = vpop.f32.mrb[0].mxu0
      %4728 = vmatprep.mubr.bf16.mxu0 0
      %4729 = vmatmul.mubr.bf16.gmra.mrb[0].mxu0 %v4618
      %v4730 = vpop.f32.mrb[0].mxu0
      %v4731 = vadd.f32 0.0, %v4730
      %v4732 = vpop.f32.mrb[0].mxu0
      %v4733 = vpop.f32.mrb[0].mxu0
      %v4734 = vadd.f32 0.0, %v4733
      %v4735 = vpop.f32.mrb[0].mxu0
      %4736 = vmatprep.mubr.bf16.mxu0 0
      %4737 = vmatmul.mubr.bf16.gmra.mrb[0].mxu0 %v4619
      %v4738 = vpop.f32.mrb[0].mxu0
      %v4739 = vadd.f32 0.0, %v4738
      %v4740 = vpop.f32.mrb[0].mxu0
      %v4741 = vpop.f32.mrb[0].mxu0
      %v4742 = vadd.f32 0.0, %v4741
      %v4743 = vpop.f32.mrb[0].mxu0
      %4744 = vmatprep.mubr.bf16.mxu0 0
      %4745 = vmatmul.mubr.bf16.gmra.mrb[0].mxu0 %v4620
      %v4746 = vpop.f32.mrb[0].mxu0
      %v4747 = vadd.f32 0.0, %v4746
      %v4748 = vpop.f32.mrb[0].mxu0
      %v4749 = vpop.f32.mrb[0].mxu0
      %v4750 = vadd.f32 0.0, %v4749
      %v4751 = vpop.f32.mrb[0].mxu0
      %4752 = vmatprep.mubr.bf16.mxu0 0
      %4753 = vmatmul.mubr.bf16.gmra.mrb[0].mxu0 %v4621
      %v4754 = vpop.f32.mrb[0].mxu0
      %v4755 = vadd.f32 0.0, %v4754
      %v4756 = vpop.f32.mrb[0].mxu0
      %v4757 = vpop.f32.mrb[0].mxu0
      %v4758 = vadd.f32 0.0, %v4757
      %v4759 = vpop.f32.mrb[0].mxu0
      %4760 = vmatprep.mubr.bf16.mxu0 0
      %4761 = vmatmul.mubr.bf16.gmra.mrb[0].mxu0 %v4622
      %v4762 = vpop.f32.mrb[0].mxu0
      %v4763 = vadd.f32 0.0, %v4762
      %v4764 = vpop.f32.mrb[0].mxu0
      %v4765 = vpop.f32.mrb[0].mxu0
      %v4766 = vadd.f32 0.0, %v4765
      %v4767 = vpop.f32.mrb[0].mxu0
      %4768 = vmatprep.mubr.bf16.mxu0 0
      %4769 = vmatmul.mubr.bf16.gmra.mrb[0].mxu0 %v4623
      %v4770 = vpop.f32.mrb[0].mxu0
      %v4771 = vadd.f32 0.0, %v4770
      %v4772 = vpop.f32.mrb[0].mxu0
      %v4773 = vpop.f32.mrb[0].mxu0
      %v4774 = vadd.f32 0.0, %v4773
      %v4775 = vpop.f32.mrb[0].mxu0
      %4776 = vdwg.mxu0
      %v4793 = vunpack.c.l.b16 %v4518
      %v4794 = vunpack.c.l.b16 %v4519
      %v4795 = vunpack.c.l.b16 %v4520
      %v4796 = vunpack.c.l.b16 %v4521
      %v4797 = vunpack.c.l.b16 %v4522
      %v4798 = vunpack.c.l.b16 %v4523
      %v4799 = vunpack.c.l.b16 %v4524
      %v4800 = vunpack.c.l.b16 %v4525
      %v4801 = vunpack.c.l.b16 %v4526
      %v4802 = vunpack.c.l.b16 %v4527
      %v4803 = vunpack.c.l.b16 %v4528
      %v4804 = vunpack.c.l.b16 %v4529
      %v4805 = vunpack.c.l.b16 %v4530
      %v4806 = vunpack.c.l.b16 %v4531
      %v4807 = vunpack.c.l.b16 %v4532
      %v4808 = vunpack.c.l.b16 %v4533
      %v4809 = vpack.c.b16 %v4794, %v4793
      %v4810 = vpack.c.b16 %v4796, %v4795
      %v4811 = vpack.c.b16 %v4798, %v4797
      %v4812 = vpack.c.b16 %v4800, %v4799
      %v4813 = vpack.c.b16 %v4802, %v4801
      %v4814 = vpack.c.b16 %v4804, %v4803
      %v4815 = vpack.c.b16 %v4806, %v4805
      %v4816 = vpack.c.b16 %v4808, %v4807
      %v4841 = vunpack.c.l.b16 %v4535
      %v4842 = vunpack.c.l.b16 %v4536
      %v4843 = vunpack.c.l.b16 %v4537
      %v4844 = vunpack.c.l.b16 %v4538
      %v4845 = vunpack.c.l.b16 %v4539
      %v4846 = vunpack.c.l.b16 %v4540
      %v4847 = vunpack.c.l.b16 %v4541
      %v4848 = vunpack.c.l.b16 %v4542
      %v4849 = vunpack.c.l.b16 %v4543
      %v4850 = vunpack.c.l.b16 %v4544
      %v4851 = vunpack.c.l.b16 %v4545
      %v4852 = vunpack.c.l.b16 %v4546
      %v4853 = vunpack.c.l.b16 %v4547
      %v4854 = vunpack.c.l.b16 %v4548
      %v4855 = vunpack.c.l.b16 %v4549
      %v4856 = vunpack.c.l.b16 %v4550
      %v4857 = vpack.c.b16 %v4842, %v4841
      %v4858 = vpack.c.b16 %v4844, %v4843
      %v4859 = vpack.c.b16 %v4846, %v4845
      %v4860 = vpack.c.b16 %v4848, %v4847
      %v4861 = vpack.c.b16 %v4850, %v4849
      %v4862 = vpack.c.b16 %v4852, %v4851
      %v4863 = vpack.c.b16 %v4854, %v4853
      %v4864 = vpack.c.b16 %v4856, %v4855
      %4873 = vmatprep.subr.bf16.mxu0 0
      %4874 = vmatpush1.bf16.msra.mxu0 %v4857
      %4875 = vmatprep.subr.bf16.mxu0 0
      %4876 = vmatpush1.bf16.msra.mxu0 %v4858
      %4877 = vmatprep.subr.bf16.mxu0 0
      %4878 = vmatpush1.bf16.msra.mxu0 %v4859
      %4879 = vmatprep.subr.bf16.mxu0 0
      %4880 = vmatpush1.bf16.msra.mxu0 %v4860
      %4881 = vmatprep.subr.bf16.mxu0 0
      %4882 = vmatpush1.bf16.msra.mxu0 %v4861
      %4883 = vmatprep.subr.bf16.mxu0 0
      %4884 = vmatpush1.bf16.msra.mxu0 %v4862
      %4885 = vmatprep.subr.bf16.mxu0 0
      %4886 = vmatpush1.bf16.msra.mxu0 %v4863
      %4887 = vmatprep.subr.bf16.mxu0 0
      %4888 = vmatpush1.bf16.msra.mxu0 %v4864
      %4889 = vmatprep.subr.bf16.mxu0 0
      %4890 = vmatpush1.bf16.msra.mxu0 0
      %4891 = vmatprep.subr.bf16.mxu0 0
      %4892 = vmatpush1.bf16.msra.mxu0 0
      %4893 = vmatprep.subr.bf16.mxu0 0
      %4894 = vmatpush1.bf16.msra.mxu0 0
      %4895 = vmatprep.subr.bf16.mxu0 0
      %4896 = vmatpush1.bf16.msra.mxu0 0
      %4897 = vmatprep.subr.bf16.mxu0 0
      %4898 = vmatpush1.bf16.msra.mxu0 0
      %4899 = vmatprep.subr.bf16.mxu0 0
      %4900 = vmatpush1.bf16.msra.mxu0 0
      %4901 = vmatprep.subr.bf16.mxu0 0
      %4902 = vmatpush1.bf16.msra.mxu0 0
      %4903 = vmatprep.subr.bf16.mxu0 0
      %4904 = vmatpush1.bf16.msra.mxu0 0
      %4905 = vmatprep.mubr.bf16.mxu0 0
      %4906 = vmatmul.mubr.bf16.gmra.mrb[0].mxu0 %v4809
      %v4907 = vpop.f32.mrb[0].mxu0
      %v4908 = vadd.f32 %v4715, %v4907
      %v4909 = vpop.f32.mrb[0].mxu0
      %v4910 = vpop.f32.mrb[0].mxu0
      %v4911 = vadd.f32 %v4718, %v4910
      %v4912 = vpop.f32.mrb[0].mxu0
      %4913 = vmatprep.mubr.bf16.mxu0 0
      %4914 = vmatmul.mubr.bf16.gmra.mrb[0].mxu0 %v4810
      %v4915 = vpop.f32.mrb[0].mxu0
      %v4916 = vadd.f32 %v4723, %v4915
      %v4917 = vpop.f32.mrb[0].mxu0
      %v4918 = vpop.f32.mrb[0].mxu0
      %v4919 = vadd.f32 %v4726, %v4918
      %v4920 = vpop.f32.mrb[0].mxu0
      %4921 = vmatprep.mubr.bf16.mxu0 0
      %4922 = vmatmul.mubr.bf16.gmra.mrb[0].mxu0 %v4811
      %v4923 = vpop.f32.mrb[0].mxu0
      %v4924 = vadd.f32 %v4731, %v4923
      %v4925 = vpop.f32.mrb[0].mxu0
      %v4926 = vpop.f32.mrb[0].mxu0
      %v4927 = vadd.f32 %v4734, %v4926
      %v4928 = vpop.f32.mrb[0].mxu0
      %4929 = vmatprep.mubr.bf16.mxu0 0
      %4930 = vmatmul.mubr.bf16.gmra.mrb[0].mxu0 %v4812
      %v4931 = vpop.f32.mrb[0].mxu0
      %v4932 = vadd.f32 %v4739, %v4931
      %v4933 = vpop.f32.mrb[0].mxu0
      %v4934 = vpop.f32.mrb[0].mxu0
      %v4935 = vadd.f32 %v4742, %v4934
      %v4936 = vpop.f32.mrb[0].mxu0
      %4937 = vmatprep.mubr.bf16.mxu0 0
      %4938 = vmatmul.mubr.bf16.gmra.mrb[0].mxu0 %v4813
      %v4939 = vpop.f32.mrb[0].mxu0
      %v4940 = vadd.f32 %v4747, %v4939
      %v4941 = vpop.f32.mrb[0].mxu0
      %v4942 = vpop.f32.mrb[0].mxu0
      %v4943 = vadd.f32 %v4750, %v4942
      %v4944 = vpop.f32.mrb[0].mxu0
      %4945 = vmatprep.mubr.bf16.mxu0 0
      %4946 = vmatmul.mubr.bf16.gmra.mrb[0].mxu0 %v4814
      %v4947 = vpop.f32.mrb[0].mxu0
      %v4948 = vadd.f32 %v4755, %v4947
      %v4949 = vpop.f32.mrb[0].mxu0
      %v4950 = vpop.f32.mrb[0].mxu0
      %v4951 = vadd.f32 %v4758, %v4950
      %v4952 = vpop.f32.mrb[0].mxu0
      %4953 = vmatprep.mubr.bf16.mxu0 0
      %4954 = vmatmul.mubr.bf16.gmra.mrb[0].mxu0 %v4815
      %v4955 = vpop.f32.mrb[0].mxu0
      %v4956 = vadd.f32 %v4763, %v4955
      %v4957 = vpop.f32.mrb[0].mxu0
      %v4958 = vpop.f32.mrb[0].mxu0
      %v4959 = vadd.f32 %v4766, %v4958
      %v4960 = vpop.f32.mrb[0].mxu0
      %4961 = vmatprep.mubr.bf16.mxu0 0
      %4962 = vmatmul.mubr.bf16.gmra.mrb[0].mxu0 %v4816
      %v4963 = vpop.f32.mrb[0].mxu0
      %v4964 = vadd.f32 %v4771, %v4963
      %v4965 = vpop.f32.mrb[0].mxu0
      %v4966 = vpop.f32.mrb[0].mxu0
      %v4967 = vadd.f32 %v4774, %v4966
      %v4968 = vpop.f32.mrb[0].mxu0
      %4969 = vdwg.mxu0
      %v4970 = vld [vmem:[%s1138] sm:$0xf]
      %v4971 = vld [vmem:[%s1138 + $0x4] sm:$0xf]
      %v4972 = vld [vmem:[%s1138 + $0x8] sm:$0xf]
      %v4973 = vld [vmem:[%s1138 + $0xc] sm:$0xf]
      %v4974 = vld [vmem:[%s1138 + $0x18] sm:$0xf]
      %v4975 = vld [vmem:[%s1138 + $0x1c] sm:$0xf]
      %v4976 = vld [vmem:[%s1138 + $0x20] sm:$0xf]
      %v4977 = vld [vmem:[%s1138 + $0x24] sm:$0xf]
      %v4978 = vld [vmem:[%s1138 + $0x30] sm:$0xf]
      %v4979 = vld [vmem:[%s1138 + $0x34] sm:$0xf]
      %v4980 = vld [vmem:[%s1138 + $0x38] sm:$0xf]
      %v4981 = vld [vmem:[%s1138 + $0x3c] sm:$0xf]
      %v4982 = vld [vmem:[%s1138 + $0x48] sm:$0xf]
      %v4983 = vld [vmem:[%s1138 + $0x4c] sm:$0xf]
      %v4984 = vld [vmem:[%s1138 + $0x50] sm:$0xf]
      %v4985 = vld [vmem:[%s1138 + $0x54] sm:$0xf]
      %s4986 = scalar_lea.vmem %s238, 1088
      %v4987 = vld [vmem:[%s4986] sm:$0xf]
      %v4988 = vld [vmem:[%s4986 + $0x4] sm:$0xf]
      %v4989 = vld [vmem:[%s4986 + $0x8] sm:$0xf]
      %v4990 = vld [vmem:[%s4986 + $0xc] sm:$0xf]
      %v4991 = vld [vmem:[%s4986 + $0x10] sm:$0xf]
      %v4992 = vld [vmem:[%s4986 + $0x14] sm:$0xf]
      %v4993 = vld [vmem:[%s4986 + $0x18] sm:$0xf]
      %v4994 = vld [vmem:[%s4986 + $0x1c] sm:$0xf]
      %v4995 = vld [vmem:[%s4986 + $0x20] sm:$0xf]
      %v4996 = vld [vmem:[%s4986 + $0x24] sm:$0xf]
      %v4997 = vld [vmem:[%s4986 + $0x28] sm:$0xf]
      %v4998 = vld [vmem:[%s4986 + $0x2c] sm:$0xf]
      %v4999 = vld [vmem:[%s4986 + $0x30] sm:$0xf]
      %v5000 = vld [vmem:[%s4986 + $0x34] sm:$0xf]
      %v5001 = vld [vmem:[%s4986 + $0x38] sm:$0xf]
      %v5002 = vld [vmem:[%s4986 + $0x3c] sm:$0xf]
      %v5019 = vunpack.c.l.b16 %v4970
      %v5020 = vunpack.c.l.b16 %v4971
      %v5021 = vunpack.c.l.b16 %v4972
      %v5022 = vunpack.c.l.b16 %v4973
      %v5023 = vunpack.c.l.b16 %v4974
      %v5024 = vunpack.c.l.b16 %v4975
      %v5025 = vunpack.c.l.b16 %v4976
      %v5026 = vunpack.c.l.b16 %v4977
      %v5027 = vunpack.c.l.b16 %v4978
      %v5028 = vunpack.c.l.b16 %v4979
      %v5029 = vunpack.c.l.b16 %v4980
      %v5030 = vunpack.c.l.b16 %v4981
      %v5031 = vunpack.c.l.b16 %v4982
      %v5032 = vunpack.c.l.b16 %v4983
      %v5033 = vunpack.c.l.b16 %v4984
      %v5034 = vunpack.c.l.b16 %v4985
      %v5035 = vpack.c.b16 %v5020, %v5019
      %v5036 = vpack.c.b16 %v5022, %v5021
      %v5037 = vpack.c.b16 %v5024, %v5023
      %v5038 = vpack.c.b16 %v5026, %v5025
      %v5039 = vpack.c.b16 %v5028, %v5027
      %v5040 = vpack.c.b16 %v5030, %v5029
      %v5041 = vpack.c.b16 %v5032, %v5031
      %v5042 = vpack.c.b16 %v5034, %v5033
      %v5067 = vunpack.c.l.b16 %v4987
      %v5068 = vunpack.c.l.b16 %v4988
      %v5069 = vunpack.c.l.b16 %v4989
      %v5070 = vunpack.c.l.b16 %v4990
      %v5071 = vunpack.c.l.b16 %v4991
      %v5072 = vunpack.c.l.b16 %v4992
      %v5073 = vunpack.c.l.b16 %v4993
      %v5074 = vunpack.c.l.b16 %v4994
      %v5075 = vunpack.c.l.b16 %v4995
      %v5076 = vunpack.c.l.b16 %v4996
      %v5077 = vunpack.c.l.b16 %v4997
      %v5078 = vunpack.c.l.b16 %v4998
      %v5079 = vunpack.c.l.b16 %v4999
      %v5080 = vunpack.c.l.b16 %v5000
      %v5081 = vunpack.c.l.b16 %v5001
      %v5082 = vunpack.c.l.b16 %v5002
      %v5083 = vpack.c.b16 %v5068, %v5067
      %v5084 = vpack.c.b16 %v5070, %v5069
      %v5085 = vpack.c.b16 %v5072, %v5071
      %v5086 = vpack.c.b16 %v5074, %v5073
      %v5087 = vpack.c.b16 %v5076, %v5075
      %v5088 = vpack.c.b16 %v5078, %v5077
      %v5089 = vpack.c.b16 %v5080, %v5079
      %v5090 = vpack.c.b16 %v5082, %v5081
      %5099 = vmatprep.subr.bf16.mxu0 0
      %5100 = vmatpush1.bf16.msra.mxu0 %v5083
      %5101 = vmatprep.subr.bf16.mxu0 0
      %5102 = vmatpush1.bf16.msra.mxu0 %v5084
      %5103 = vmatprep.subr.bf16.mxu0 0
      %5104 = vmatpush1.bf16.msra.mxu0 %v5085
      %5105 = vmatprep.subr.bf16.mxu0 0
      %5106 = vmatpush1.bf16.msra.mxu0 %v5086
      %5107 = vmatprep.subr.bf16.mxu0 0
      %5108 = vmatpush1.bf16.msra.mxu0 %v5087
      %5109 = vmatprep.subr.bf16.mxu0 0
      %5110 = vmatpush1.bf16.msra.mxu0 %v5088
      %5111 = vmatprep.subr.bf16.mxu0 0
      %5112 = vmatpush1.bf16.msra.mxu0 %v5089
      %5113 = vmatprep.subr.bf16.mxu0 0
      %5114 = vmatpush1.bf16.msra.mxu0 %v5090
      %5115 = vmatprep.subr.bf16.mxu0 0
      %5116 = vmatpush1.bf16.msra.mxu0 0
      %5117 = vmatprep.subr.bf16.mxu0 0
      %5118 = vmatpush1.bf16.msra.mxu0 0
      %5119 = vmatprep.subr.bf16.mxu0 0
      %5120 = vmatpush1.bf16.msra.mxu0 0
      %5121 = vmatprep.subr.bf16.mxu0 0
      %5122 = vmatpush1.bf16.msra.mxu0 0
      %5123 = vmatprep.subr.bf16.mxu0 0
      %5124 = vmatpush1.bf16.msra.mxu0 0
      %5125 = vmatprep.subr.bf16.mxu0 0
      %5126 = vmatpush1.bf16.msra.mxu0 0
      %5127 = vmatprep.subr.bf16.mxu0 0
      %5128 = vmatpush1.bf16.msra.mxu0 0
      %5129 = vmatprep.subr.bf16.mxu0 0
      %5130 = vmatpush1.bf16.msra.mxu0 0
      %5131 = vmatprep.mubr.bf16.mxu0 0
      %5132 = vmatmul.mubr.bf16.gmra.mrb[0].mxu0 %v5035
      %v5133 = vpop.f32.mrb[0].mxu0
      %v5134 = vadd.f32 0.0, %v5133
      %v5135 = vpop.f32.mrb[0].mxu0
      %v5136 = vpop.f32.mrb[0].mxu0
      %v5137 = vadd.f32 0.0, %v5136
      %v5138 = vpop.f32.mrb[0].mxu0
      %5139 = vmatprep.mubr.bf16.mxu0 0
      %5140 = vmatmul.mubr.bf16.gmra.mrb[0].mxu0 %v5036
      %v5141 = vpop.f32.mrb[0].mxu0
      %v5142 = vadd.f32 0.0, %v5141
      %v5143 = vpop.f32.mrb[0].mxu0
      %v5144 = vpop.f32.mrb[0].mxu0
      %v5145 = vadd.f32 0.0, %v5144
      %v5146 = vpop.f32.mrb[0].mxu0
      %5147 = vmatprep.mubr.bf16.mxu0 0
      %5148 = vmatmul.mubr.bf16.gmra.mrb[0].mxu0 %v5037
      %v5149 = vpop.f32.mrb[0].mxu0
      %v5150 = vadd.f32 0.0, %v5149
      %v5151 = vpop.f32.mrb[0].mxu0
      %v5152 = vpop.f32.mrb[0].mxu0
      %v5153 = vadd.f32 0.0, %v5152
      %v5154 = vpop.f32.mrb[0].mxu0
      %5155 = vmatprep.mubr.bf16.mxu0 0
      %5156 = vmatmul.mubr.bf16.gmra.mrb[0].mxu0 %v5038
      %v5157 = vpop.f32.mrb[0].mxu0
      %v5158 = vadd.f32 0.0, %v5157
      %v5159 = vpop.f32.mrb[0].mxu0
      %v5160 = vpop.f32.mrb[0].mxu0
      %v5161 = vadd.f32 0.0, %v5160
      %v5162 = vpop.f32.mrb[0].mxu0
      %5163 = vmatprep.mubr.bf16.mxu0 0
      %5164 = vmatmul.mubr.bf16.gmra.mrb[0].mxu0 %v5039
      %v5165 = vpop.f32.mrb[0].mxu0
      %v5166 = vadd.f32 0.0, %v5165
      %v5167 = vpop.f32.mrb[0].mxu0
      %v5168 = vpop.f32.mrb[0].mxu0
      %v5169 = vadd.f32 0.0, %v5168
      %v5170 = vpop.f32.mrb[0].mxu0
      %5171 = vmatprep.mubr.bf16.mxu0 0
      %5172 = vmatmul.mubr.bf16.gmra.mrb[0].mxu0 %v5040
      %v5173 = vpop.f32.mrb[0].mxu0
      %v5174 = vadd.f32 0.0, %v5173
      %v5175 = vpop.f32.mrb[0].mxu0
      %v5176 = vpop.f32.mrb[0].mxu0
      %v5177 = vadd.f32 0.0, %v5176
      %v5178 = vpop.f32.mrb[0].mxu0
      %5179 = vmatprep.mubr.bf16.mxu0 0
      %5180 = vmatmul.mubr.bf16.gmra.mrb[0].mxu0 %v5041
      %v5181 = vpop.f32.mrb[0].mxu0
      %v5182 = vadd.f32 0.0, %v5181
      %v5183 = vpop.f32.mrb[0].mxu0
      %v5184 = vpop.f32.mrb[0].mxu0
      %v5185 = vadd.f32 0.0, %v5184
      %v5186 = vpop.f32.mrb[0].mxu0
      %5187 = vmatprep.mubr.bf16.mxu0 0
      %5188 = vmatmul.mubr.bf16.gmra.mrb[0].mxu0 %v5042
      %v5189 = vpop.f32.mrb[0].mxu0
      %v5190 = vadd.f32 0.0, %v5189
      %v5191 = vpop.f32.mrb[0].mxu0
      %v5192 = vpop.f32.mrb[0].mxu0
      %v5193 = vadd.f32 0.0, %v5192
      %v5194 = vpop.f32.mrb[0].mxu0
      %5195 = vdwg.mxu0
      %v5196 = vadd.f32 %v4908, %v5134
      %v5197 = vadd.f32 %v4911, %v5137
      %v5198 = vadd.f32 %v4916, %v5142
      %v5199 = vadd.f32 %v4919, %v5145
      %v5200 = vadd.f32 %v4924, %v5150
      %v5201 = vadd.f32 %v4927, %v5153
      %v5202 = vadd.f32 %v4932, %v5158
      %v5203 = vadd.f32 %v4935, %v5161
      %v5204 = vadd.f32 %v4940, %v5166
      %v5205 = vadd.f32 %v4943, %v5169
      %v5206 = vadd.f32 %v4948, %v5174
      %v5207 = vadd.f32 %v4951, %v5177
      %v5208 = vadd.f32 %v4956, %v5182
      %v5209 = vadd.f32 %v4959, %v5185
      %v5210 = vadd.f32 %v4964, %v5190
      %v5211 = vadd.f32 %v4967, %v5193
      %v5212 = vld [vmem:[%s1381] sm:$0xf]
      %v5213 = vld [vmem:[%s1381 + $0x4] sm:$0xf]
      %v5214 = vld [vmem:[%s1381 + $0x8] sm:$0xf]
      %v5215 = vld [vmem:[%s1381 + $0xc] sm:$0xf]
      %v5216 = vld [vmem:[%s1381 + $0x18] sm:$0xf]
      %v5217 = vld [vmem:[%s1381 + $0x1c] sm:$0xf]
      %v5218 = vld [vmem:[%s1381 + $0x20] sm:$0xf]
      %v5219 = vld [vmem:[%s1381 + $0x24] sm:$0xf]
      %v5220 = vld [vmem:[%s1381 + $0x30] sm:$0xf]
      %v5221 = vld [vmem:[%s1381 + $0x34] sm:$0xf]
      %v5222 = vld [vmem:[%s1381 + $0x38] sm:$0xf]
      %v5223 = vld [vmem:[%s1381 + $0x3c] sm:$0xf]
      %v5224 = vld [vmem:[%s1381 + $0x48] sm:$0xf]
      %v5225 = vld [vmem:[%s1381 + $0x4c] sm:$0xf]
      %v5226 = vld [vmem:[%s1381 + $0x50] sm:$0xf]
      %v5227 = vld [vmem:[%s1381 + $0x54] sm:$0xf]
      %s5228 = scalar_lea.vmem %s238, 1152
      %v5229 = vld [vmem:[%s5228] sm:$0xf]
      %v5230 = vld [vmem:[%s5228 + $0x4] sm:$0xf]
      %v5231 = vld [vmem:[%s5228 + $0x8] sm:$0xf]
      %v5232 = vld [vmem:[%s5228 + $0xc] sm:$0xf]
      %v5233 = vld [vmem:[%s5228 + $0x10] sm:$0xf]
      %v5234 = vld [vmem:[%s5228 + $0x14] sm:$0xf]
      %v5235 = vld [vmem:[%s5228 + $0x18] sm:$0xf]
      %v5236 = vld [vmem:[%s5228 + $0x1c] sm:$0xf]
      %v5237 = vld [vmem:[%s5228 + $0x20] sm:$0xf]
      %v5238 = vld [vmem:[%s5228 + $0x24] sm:$0xf]
      %v5239 = vld [vmem:[%s5228 + $0x28] sm:$0xf]
      %v5240 = vld [vmem:[%s5228 + $0x2c] sm:$0xf]
      %v5241 = vld [vmem:[%s5228 + $0x30] sm:$0xf]
      %v5242 = vld [vmem:[%s5228 + $0x34] sm:$0xf]
      %v5243 = vld [vmem:[%s5228 + $0x38] sm:$0xf]
      %v5244 = vld [vmem:[%s5228 + $0x3c] sm:$0xf]
      %v5261 = vunpack.c.l.b16 %v5212
      %v5262 = vunpack.c.l.b16 %v5213
      %v5263 = vunpack.c.l.b16 %v5214
      %v5264 = vunpack.c.l.b16 %v5215
      %v5265 = vunpack.c.l.b16 %v5216
      %v5266 = vunpack.c.l.b16 %v5217
      %v5267 = vunpack.c.l.b16 %v5218
      %v5268 = vunpack.c.l.b16 %v5219
      %v5269 = vunpack.c.l.b16 %v5220
      %v5270 = vunpack.c.l.b16 %v5221
      %v5271 = vunpack.c.l.b16 %v5222
      %v5272 = vunpack.c.l.b16 %v5223
      %v5273 = vunpack.c.l.b16 %v5224
      %v5274 = vunpack.c.l.b16 %v5225
      %v5275 = vunpack.c.l.b16 %v5226
      %v5276 = vunpack.c.l.b16 %v5227
      %v5277 = vpack.c.b16 %v5262, %v5261
      %v5278 = vpack.c.b16 %v5264, %v5263
      %v5279 = vpack.c.b16 %v5266, %v5265
      %v5280 = vpack.c.b16 %v5268, %v5267
      %v5281 = vpack.c.b16 %v5270, %v5269
      %v5282 = vpack.c.b16 %v5272, %v5271
      %v5283 = vpack.c.b16 %v5274, %v5273
      %v5284 = vpack.c.b16 %v5276, %v5275
      %v5309 = vunpack.c.l.b16 %v5229
      %v5310 = vunpack.c.l.b16 %v5230
      %v5311 = vunpack.c.l.b16 %v5231
      %v5312 = vunpack.c.l.b16 %v5232
      %v5313 = vunpack.c.l.b16 %v5233
      %v5314 = vunpack.c.l.b16 %v5234
      %v5315 = vunpack.c.l.b16 %v5235
      %v5316 = vunpack.c.l.b16 %v5236
      %v5317 = vunpack.c.l.b16 %v5237
      %v5318 = vunpack.c.l.b16 %v5238
      %v5319 = vunpack.c.l.b16 %v5239
      %v5320 = vunpack.c.l.b16 %v5240
      %v5321 = vunpack.c.l.b16 %v5241
      %v5322 = vunpack.c.l.b16 %v5242
      %v5323 = vunpack.c.l.b16 %v5243
      %v5324 = vunpack.c.l.b16 %v5244
      %v5325 = vpack.c.b16 %v5310, %v5309
      %v5326 = vpack.c.b16 %v5312, %v5311
      %v5327 = vpack.c.b16 %v5314, %v5313
      %v5328 = vpack.c.b16 %v5316, %v5315
      %v5329 = vpack.c.b16 %v5318, %v5317
      %v5330 = vpack.c.b16 %v5320, %v5319
      %v5331 = vpack.c.b16 %v5322, %v5321
      %v5332 = vpack.c.b16 %v5324, %v5323
      %5341 = vmatprep.subr.bf16.mxu0 0
      %5342 = vmatpush1.bf16.msra.mxu0 %v5325
      %5343 = vmatprep.subr.bf16.mxu0 0
      %5344 = vmatpush1.bf16.msra.mxu0 %v5326
      %5345 = vmatprep.subr.bf16.mxu0 0
      %5346 = vmatpush1.bf16.msra.mxu0 %v5327
      %5347 = vmatprep.subr.bf16.mxu0 0
      %5348 = vmatpush1.bf16.msra.mxu0 %v5328
      %5349 = vmatprep.subr.bf16.mxu0 0
      %5350 = vmatpush1.bf16.msra.mxu0 %v5329
      %5351 = vmatprep.subr.bf16.mxu0 0
      %5352 = vmatpush1.bf16.msra.mxu0 %v5330
      %5353 = vmatprep.subr.bf16.mxu0 0
      %5354 = vmatpush1.bf16.msra.mxu0 %v5331
      %5355 = vmatprep.subr.bf16.mxu0 0
      %5356 = vmatpush1.bf16.msra.mxu0 %v5332
      %5357 = vmatprep.subr.bf16.mxu0 0
      %5358 = vmatpush1.bf16.msra.mxu0 0
      %5359 = vmatprep.subr.bf16.mxu0 0
      %5360 = vmatpush1.bf16.msra.mxu0 0
      %5361 = vmatprep.subr.bf16.mxu0 0
      %5362 = vmatpush1.bf16.msra.mxu0 0
      %5363 = vmatprep.subr.bf16.mxu0 0
      %5364 = vmatpush1.bf16.msra.mxu0 0
      %5365 = vmatprep.subr.bf16.mxu0 0
      %5366 = vmatpush1.bf16.msra.mxu0 0
      %5367 = vmatprep.subr.bf16.mxu0 0
      %5368 = vmatpush1.bf16.msra.mxu0 0
      %5369 = vmatprep.subr.bf16.mxu0 0
      %5370 = vmatpush1.bf16.msra.mxu0 0
      %5371 = vmatprep.subr.bf16.mxu0 0
      %5372 = vmatpush1.bf16.msra.mxu0 0
      %5373 = vmatprep.mubr.bf16.mxu0 0
      %5374 = vmatmul.mubr.bf16.gmra.mrb[0].mxu0 %v5277
      %v5375 = vpop.f32.mrb[0].mxu0
      %v5376 = vadd.f32 0.0, %v5375
      %v5377 = vpop.f32.mrb[0].mxu0
      %v5378 = vpop.f32.mrb[0].mxu0
      %v5379 = vadd.f32 0.0, %v5378
      %v5380 = vpop.f32.mrb[0].mxu0
      %5381 = vmatprep.mubr.bf16.mxu0 0
      %5382 = vmatmul.mubr.bf16.gmra.mrb[0].mxu0 %v5278
      %v5383 = vpop.f32.mrb[0].mxu0
      %v5384 = vadd.f32 0.0, %v5383
      %v5385 = vpop.f32.mrb[0].mxu0
      %v5386 = vpop.f32.mrb[0].mxu0
      %v5387 = vadd.f32 0.0, %v5386
      %v5388 = vpop.f32.mrb[0].mxu0
      %5389 = vmatprep.mubr.bf16.mxu0 0
      %5390 = vmatmul.mubr.bf16.gmra.mrb[0].mxu0 %v5279
      %v5391 = vpop.f32.mrb[0].mxu0
      %v5392 = vadd.f32 0.0, %v5391
      %v5393 = vpop.f32.mrb[0].mxu0
      %v5394 = vpop.f32.mrb[0].mxu0
      %v5395 = vadd.f32 0.0, %v5394
      %v5396 = vpop.f32.mrb[0].mxu0
      %5397 = vmatprep.mubr.bf16.mxu0 0
      %5398 = vmatmul.mubr.bf16.gmra.mrb[0].mxu0 %v5280
      %v5399 = vpop.f32.mrb[0].mxu0
      %v5400 = vadd.f32 0.0, %v5399
      %v5401 = vpop.f32.mrb[0].mxu0
      %v5402 = vpop.f32.mrb[0].mxu0
      %v5403 = vadd.f32 0.0, %v5402
      %v5404 = vpop.f32.mrb[0].mxu0
      %5405 = vmatprep.mubr.bf16.mxu0 0
      %5406 = vmatmul.mubr.bf16.gmra.mrb[0].mxu0 %v5281
      %v5407 = vpop.f32.mrb[0].mxu0
      %v5408 = vadd.f32 0.0, %v5407
      %v5409 = vpop.f32.mrb[0].mxu0
      %v5410 = vpop.f32.mrb[0].mxu0
      %v5411 = vadd.f32 0.0, %v5410
      %v5412 = vpop.f32.mrb[0].mxu0
      %5413 = vmatprep.mubr.bf16.mxu0 0
      %5414 = vmatmul.mubr.bf16.gmra.mrb[0].mxu0 %v5282
      %v5415 = vpop.f32.mrb[0].mxu0
      %v5416 = vadd.f32 0.0, %v5415
      %v5417 = vpop.f32.mrb[0].mxu0
      %v5418 = vpop.f32.mrb[0].mxu0
      %v5419 = vadd.f32 0.0, %v5418
      %v5420 = vpop.f32.mrb[0].mxu0
      %5421 = vmatprep.mubr.bf16.mxu0 0
      %5422 = vmatmul.mubr.bf16.gmra.mrb[0].mxu0 %v5283
      %v5423 = vpop.f32.mrb[0].mxu0
      %v5424 = vadd.f32 0.0, %v5423
      %v5425 = vpop.f32.mrb[0].mxu0
      %v5426 = vpop.f32.mrb[0].mxu0
      %v5427 = vadd.f32 0.0, %v5426
      %v5428 = vpop.f32.mrb[0].mxu0
      %5429 = vmatprep.mubr.bf16.mxu0 0
      %5430 = vmatmul.mubr.bf16.gmra.mrb[0].mxu0 %v5284
      %v5431 = vpop.f32.mrb[0].mxu0
      %v5432 = vadd.f32 0.0, %v5431
      %v5433 = vpop.f32.mrb[0].mxu0
      %v5434 = vpop.f32.mrb[0].mxu0
      %v5435 = vadd.f32 0.0, %v5434
      %v5436 = vpop.f32.mrb[0].mxu0
      %5437 = vdwg.mxu0
      %v5438 = vadd.f32 %v5196, %v5376
      %v5439 = vadd.f32 %v5197, %v5379
      %v5440 = vadd.f32 %v5198, %v5384
      %v5441 = vadd.f32 %v5199, %v5387
      %v5442 = vadd.f32 %v5200, %v5392
      %v5443 = vadd.f32 %v5201, %v5395
      %v5444 = vadd.f32 %v5202, %v5400
      %v5445 = vadd.f32 %v5203, %v5403
      %v5446 = vadd.f32 %v5204, %v5408
      %v5447 = vadd.f32 %v5205, %v5411
      %v5448 = vadd.f32 %v5206, %v5416
      %v5449 = vadd.f32 %v5207, %v5419
      %v5450 = vadd.f32 %v5208, %v5424
      %v5451 = vadd.f32 %v5209, %v5427
      %v5452 = vadd.f32 %v5210, %v5432
      %v5453 = vadd.f32 %v5211, %v5435
      %v5454 = vld [vmem:[%s668] sm:$0xf]
      %v5455 = vld [vmem:[%s668 + $0x4] sm:$0xf]
      %v5456 = vld [vmem:[%s668 + $0x8] sm:$0xf]
      %v5457 = vld [vmem:[%s668 + $0xc] sm:$0xf]
      %v5458 = vld [vmem:[%s668 + $0x18] sm:$0xf]
      %v5459 = vld [vmem:[%s668 + $0x1c] sm:$0xf]
      %v5460 = vld [vmem:[%s668 + $0x20] sm:$0xf]
      %v5461 = vld [vmem:[%s668 + $0x24] sm:$0xf]
      %v5462 = vld [vmem:[%s668 + $0x30] sm:$0xf]
      %v5463 = vld [vmem:[%s668 + $0x34] sm:$0xf]
      %v5464 = vld [vmem:[%s668 + $0x38] sm:$0xf]
      %v5465 = vld [vmem:[%s668 + $0x3c] sm:$0xf]
      %v5466 = vld [vmem:[%s668 + $0x48] sm:$0xf]
      %v5467 = vld [vmem:[%s668 + $0x4c] sm:$0xf]
      %v5468 = vld [vmem:[%s668 + $0x50] sm:$0xf]
      %v5469 = vld [vmem:[%s668 + $0x54] sm:$0xf]
      %s5470 = scalar_lea.vmem %s238, 1216
      %v5471 = vld [vmem:[%s5470] sm:$0xf]
      %v5472 = vld [vmem:[%s5470 + $0x4] sm:$0xf]
      %v5473 = vld [vmem:[%s5470 + $0x8] sm:$0xf]
      %v5474 = vld [vmem:[%s5470 + $0xc] sm:$0xf]
      %v5475 = vld [vmem:[%s5470 + $0x10] sm:$0xf]
      %v5476 = vld [vmem:[%s5470 + $0x14] sm:$0xf]
      %v5477 = vld [vmem:[%s5470 + $0x18] sm:$0xf]
      %v5478 = vld [vmem:[%s5470 + $0x1c] sm:$0xf]
      %v5479 = vld [vmem:[%s5470 + $0x20] sm:$0xf]
      %v5480 = vld [vmem:[%s5470 + $0x24] sm:$0xf]
      %v5481 = vld [vmem:[%s5470 + $0x28] sm:$0xf]
      %v5482 = vld [vmem:[%s5470 + $0x2c] sm:$0xf]
      %v5483 = vld [vmem:[%s5470 + $0x30] sm:$0xf]
      %v5484 = vld [vmem:[%s5470 + $0x34] sm:$0xf]
      %v5485 = vld [vmem:[%s5470 + $0x38] sm:$0xf]
      %v5486 = vld [vmem:[%s5470 + $0x3c] sm:$0xf]
      %v5503 = vunpack.c.l.b16 %v5454
      %v5504 = vunpack.c.l.b16 %v5455
      %v5505 = vunpack.c.l.b16 %v5456
      %v5506 = vunpack.c.l.b16 %v5457
      %v5507 = vunpack.c.l.b16 %v5458
      %v5508 = vunpack.c.l.b16 %v5459
      %v5509 = vunpack.c.l.b16 %v5460
      %v5510 = vunpack.c.l.b16 %v5461
      %v5511 = vunpack.c.l.b16 %v5462
      %v5512 = vunpack.c.l.b16 %v5463
      %v5513 = vunpack.c.l.b16 %v5464
      %v5514 = vunpack.c.l.b16 %v5465
      %v5515 = vunpack.c.l.b16 %v5466
      %v5516 = vunpack.c.l.b16 %v5467
      %v5517 = vunpack.c.l.b16 %v5468
      %v5518 = vunpack.c.l.b16 %v5469
      %v5519 = vpack.c.b16 %v5504, %v5503
      %v5520 = vpack.c.b16 %v5506, %v5505
      %v5521 = vpack.c.b16 %v5508, %v5507
      %v5522 = vpack.c.b16 %v5510, %v5509
      %v5523 = vpack.c.b16 %v5512, %v5511
      %v5524 = vpack.c.b16 %v5514, %v5513
      %v5525 = vpack.c.b16 %v5516, %v5515
      %v5526 = vpack.c.b16 %v5518, %v5517
      %v5551 = vunpack.c.l.b16 %v5471
      %v5552 = vunpack.c.l.b16 %v5472
      %v5553 = vunpack.c.l.b16 %v5473
      %v5554 = vunpack.c.l.b16 %v5474
      %v5555 = vunpack.c.l.b16 %v5475
      %v5556 = vunpack.c.l.b16 %v5476
      %v5557 = vunpack.c.l.b16 %v5477
      %v5558 = vunpack.c.l.b16 %v5478
      %v5559 = vunpack.c.l.b16 %v5479
      %v5560 = vunpack.c.l.b16 %v5480
      %v5561 = vunpack.c.l.b16 %v5481
      %v5562 = vunpack.c.l.b16 %v5482
      %v5563 = vunpack.c.l.b16 %v5483
      %v5564 = vunpack.c.l.b16 %v5484
      %v5565 = vunpack.c.l.b16 %v5485
      %v5566 = vunpack.c.l.b16 %v5486
      %v5567 = vpack.c.b16 %v5552, %v5551
      %v5568 = vpack.c.b16 %v5554, %v5553
      %v5569 = vpack.c.b16 %v5556, %v5555
      %v5570 = vpack.c.b16 %v5558, %v5557
      %v5571 = vpack.c.b16 %v5560, %v5559
      %v5572 = vpack.c.b16 %v5562, %v5561
      %v5573 = vpack.c.b16 %v5564, %v5563
      %v5574 = vpack.c.b16 %v5566, %v5565
      %5583 = vmatprep.subr.bf16.mxu0 0
      %5584 = vmatpush1.bf16.msra.mxu0 %v5567
      %5585 = vmatprep.subr.bf16.mxu0 0
      %5586 = vmatpush1.bf16.msra.mxu0 %v5568
      %5587 = vmatprep.subr.bf16.mxu0 0
      %5588 = vmatpush1.bf16.msra.mxu0 %v5569
      %5589 = vmatprep.subr.bf16.mxu0 0
      %5590 = vmatpush1.bf16.msra.mxu0 %v5570
      %5591 = vmatprep.subr.bf16.mxu0 0
      %5592 = vmatpush1.bf16.msra.mxu0 %v5571
      %5593 = vmatprep.subr.bf16.mxu0 0
      %5594 = vmatpush1.bf16.msra.mxu0 %v5572
      %5595 = vmatprep.subr.bf16.mxu0 0
      %5596 = vmatpush1.bf16.msra.mxu0 %v5573
      %5597 = vmatprep.subr.bf16.mxu0 0
      %5598 = vmatpush1.bf16.msra.mxu0 %v5574
      %5599 = vmatprep.subr.bf16.mxu0 0
      %5600 = vmatpush1.bf16.msra.mxu0 0
      %5601 = vmatprep.subr.bf16.mxu0 0
      %5602 = vmatpush1.bf16.msra.mxu0 0
      %5603 = vmatprep.subr.bf16.mxu0 0
      %5604 = vmatpush1.bf16.msra.mxu0 0
      %5605 = vmatprep.subr.bf16.mxu0 0
      %5606 = vmatpush1.bf16.msra.mxu0 0
      %5607 = vmatprep.subr.bf16.mxu0 0
      %5608 = vmatpush1.bf16.msra.mxu0 0
      %5609 = vmatprep.subr.bf16.mxu0 0
      %5610 = vmatpush1.bf16.msra.mxu0 0
      %5611 = vmatprep.subr.bf16.mxu0 0
      %5612 = vmatpush1.bf16.msra.mxu0 0
      %5613 = vmatprep.subr.bf16.mxu0 0
      %5614 = vmatpush1.bf16.msra.mxu0 0
      %5615 = vmatprep.mubr.bf16.mxu0 0
      %5616 = vmatmul.mubr.bf16.gmra.mrb[0].mxu0 %v5519
      %v5617 = vpop.f32.mrb[0].mxu0
      %v5618 = vadd.f32 0.0, %v5617
      %v5619 = vpop.f32.mrb[0].mxu0
      %v5620 = vpop.f32.mrb[0].mxu0
      %v5621 = vadd.f32 0.0, %v5620
      %v5622 = vpop.f32.mrb[0].mxu0
      %5623 = vmatprep.mubr.bf16.mxu0 0
      %5624 = vmatmul.mubr.bf16.gmra.mrb[0].mxu0 %v5520
      %v5625 = vpop.f32.mrb[0].mxu0
      %v5626 = vadd.f32 0.0, %v5625
      %v5627 = vpop.f32.mrb[0].mxu0
      %v5628 = vpop.f32.mrb[0].mxu0
      %v5629 = vadd.f32 0.0, %v5628
      %v5630 = vpop.f32.mrb[0].mxu0
      %5631 = vmatprep.mubr.bf16.mxu0 0
      %5632 = vmatmul.mubr.bf16.gmra.mrb[0].mxu0 %v5521
      %v5633 = vpop.f32.mrb[0].mxu0
      %v5634 = vadd.f32 0.0, %v5633
      %v5635 = vpop.f32.mrb[0].mxu0
      %v5636 = vpop.f32.mrb[0].mxu0
      %v5637 = vadd.f32 0.0, %v5636
      %v5638 = vpop.f32.mrb[0].mxu0
      %5639 = vmatprep.mubr.bf16.mxu0 0
      %5640 = vmatmul.mubr.bf16.gmra.mrb[0].mxu0 %v5522
      %v5641 = vpop.f32.mrb[0].mxu0
      %v5642 = vadd.f32 0.0, %v5641
      %v5643 = vpop.f32.mrb[0].mxu0
      %v5644 = vpop.f32.mrb[0].mxu0
      %v5645 = vadd.f32 0.0, %v5644
      %v5646 = vpop.f32.mrb[0].mxu0
      %5647 = vmatprep.mubr.bf16.mxu0 0
      %5648 = vmatmul.mubr.bf16.gmra.mrb[0].mxu0 %v5523
      %v5649 = vpop.f32.mrb[0].mxu0
      %v5650 = vadd.f32 0.0, %v5649
      %v5651 = vpop.f32.mrb[0].mxu0
      %v5652 = vpop.f32.mrb[0].mxu0
      %v5653 = vadd.f32 0.0, %v5652
      %v5654 = vpop.f32.mrb[0].mxu0
      %5655 = vmatprep.mubr.bf16.mxu0 0
      %5656 = vmatmul.mubr.bf16.gmra.mrb[0].mxu0 %v5524
      %v5657 = vpop.f32.mrb[0].mxu0
      %v5658 = vadd.f32 0.0, %v5657
      %v5659 = vpop.f32.mrb[0].mxu0
      %v5660 = vpop.f32.mrb[0].mxu0
      %v5661 = vadd.f32 0.0, %v5660
      %v5662 = vpop.f32.mrb[0].mxu0
      %5663 = vmatprep.mubr.bf16.mxu0 0
      %5664 = vmatmul.mubr.bf16.gmra.mrb[0].mxu0 %v5525
      %v5665 = vpop.f32.mrb[0].mxu0
      %v5666 = vadd.f32 0.0, %v5665
      %v5667 = vpop.f32.mrb[0].mxu0
      %v5668 = vpop.f32.mrb[0].mxu0
      %v5669 = vadd.f32 0.0, %v5668
      %v5670 = vpop.f32.mrb[0].mxu0
      %5671 = vmatprep.mubr.bf16.mxu0 0
      %5672 = vmatmul.mubr.bf16.gmra.mrb[0].mxu0 %v5526
      %v5673 = vpop.f32.mrb[0].mxu0
      %v5674 = vadd.f32 0.0, %v5673
      %v5675 = vpop.f32.mrb[0].mxu0
      %v5676 = vpop.f32.mrb[0].mxu0
      %v5677 = vadd.f32 0.0, %v5676
      %v5678 = vpop.f32.mrb[0].mxu0
      %5679 = vdwg.mxu0
      %v5680 = vadd.f32 %v5438, %v5618
      %v5681 = vadd.f32 %v5439, %v5621
      %v5682 = vadd.f32 %v5440, %v5626
      %v5683 = vadd.f32 %v5441, %v5629
      %v5684 = vadd.f32 %v5442, %v5634
      %v5685 = vadd.f32 %v5443, %v5637
      %v5686 = vadd.f32 %v5444, %v5642
      %v5687 = vadd.f32 %v5445, %v5645
      %v5688 = vadd.f32 %v5446, %v5650
      %v5689 = vadd.f32 %v5447, %v5653
      %v5690 = vadd.f32 %v5448, %v5658
      %v5691 = vadd.f32 %v5449, %v5661
      %v5692 = vadd.f32 %v5450, %v5666
      %v5693 = vadd.f32 %v5451, %v5669
      %v5694 = vadd.f32 %v5452, %v5674
      %v5695 = vadd.f32 %v5453, %v5677
      %v5696 = vld [vmem:[%s1866] sm:$0xf]
      %v5697 = vld [vmem:[%s1866 + $0x4] sm:$0xf]
      %v5698 = vld [vmem:[%s1866 + $0x8] sm:$0xf]
      %v5699 = vld [vmem:[%s1866 + $0xc] sm:$0xf]
      %v5700 = vld [vmem:[%s1866 + $0x18] sm:$0xf]
      %v5701 = vld [vmem:[%s1866 + $0x1c] sm:$0xf]
      %v5702 = vld [vmem:[%s1866 + $0x20] sm:$0xf]
      %v5703 = vld [vmem:[%s1866 + $0x24] sm:$0xf]
      %v5704 = vld [vmem:[%s1866 + $0x30] sm:$0xf]
      %v5705 = vld [vmem:[%s1866 + $0x34] sm:$0xf]
      %v5706 = vld [vmem:[%s1866 + $0x38] sm:$0xf]
      %v5707 = vld [vmem:[%s1866 + $0x3c] sm:$0xf]
      %v5708 = vld [vmem:[%s1866 + $0x48] sm:$0xf]
      %v5709 = vld [vmem:[%s1866 + $0x4c] sm:$0xf]
      %v5710 = vld [vmem:[%s1866 + $0x50] sm:$0xf]
      %v5711 = vld [vmem:[%s1866 + $0x54] sm:$0xf]
      %s5712 = scalar_lea.vmem %s238, 1280
      %v5713 = vld [vmem:[%s5712] sm:$0xf]
      %v5714 = vld [vmem:[%s5712 + $0x4] sm:$0xf]
      %v5715 = vld [vmem:[%s5712 + $0x8] sm:$0xf]
      %v5716 = vld [vmem:[%s5712 + $0xc] sm:$0xf]
      %v5717 = vld [vmem:[%s5712 + $0x10] sm:$0xf]
      %v5718 = vld [vmem:[%s5712 + $0x14] sm:$0xf]
      %v5719 = vld [vmem:[%s5712 + $0x18] sm:$0xf]
      %v5720 = vld [vmem:[%s5712 + $0x1c] sm:$0xf]
      %v5721 = vld [vmem:[%s5712 + $0x20] sm:$0xf]
      %v5722 = vld [vmem:[%s5712 + $0x24] sm:$0xf]
      %v5723 = vld [vmem:[%s5712 + $0x28] sm:$0xf]
      %v5724 = vld [vmem:[%s5712 + $0x2c] sm:$0xf]
      %v5725 = vld [vmem:[%s5712 + $0x30] sm:$0xf]
      %v5726 = vld [vmem:[%s5712 + $0x34] sm:$0xf]
      %v5727 = vld [vmem:[%s5712 + $0x38] sm:$0xf]
      %v5728 = vld [vmem:[%s5712 + $0x3c] sm:$0xf]
      %v5745 = vunpack.c.l.b16 %v5696
      %v5746 = vunpack.c.l.b16 %v5697
      %v5747 = vunpack.c.l.b16 %v5698
      %v5748 = vunpack.c.l.b16 %v5699
      %v5749 = vunpack.c.l.b16 %v5700
      %v5750 = vunpack.c.l.b16 %v5701
      %v5751 = vunpack.c.l.b16 %v5702
      %v5752 = vunpack.c.l.b16 %v5703
      %v5753 = vunpack.c.l.b16 %v5704
      %v5754 = vunpack.c.l.b16 %v5705
      %v5755 = vunpack.c.l.b16 %v5706
      %v5756 = vunpack.c.l.b16 %v5707
      %v5757 = vunpack.c.l.b16 %v5708
      %v5758 = vunpack.c.l.b16 %v5709
      %v5759 = vunpack.c.l.b16 %v5710
      %v5760 = vunpack.c.l.b16 %v5711
      %v5761 = vpack.c.b16 %v5746, %v5745
      %v5762 = vpack.c.b16 %v5748, %v5747
      %v5763 = vpack.c.b16 %v5750, %v5749
      %v5764 = vpack.c.b16 %v5752, %v5751
      %v5765 = vpack.c.b16 %v5754, %v5753
      %v5766 = vpack.c.b16 %v5756, %v5755
      %v5767 = vpack.c.b16 %v5758, %v5757
      %v5768 = vpack.c.b16 %v5760, %v5759
      %v5793 = vunpack.c.l.b16 %v5713
      %v5794 = vunpack.c.l.b16 %v5714
      %v5795 = vunpack.c.l.b16 %v5715
      %v5796 = vunpack.c.l.b16 %v5716
      %v5797 = vunpack.c.l.b16 %v5717
      %v5798 = vunpack.c.l.b16 %v5718
      %v5799 = vunpack.c.l.b16 %v5719
      %v5800 = vunpack.c.l.b16 %v5720
      %v5801 = vunpack.c.l.b16 %v5721
      %v5802 = vunpack.c.l.b16 %v5722
      %v5803 = vunpack.c.l.b16 %v5723
      %v5804 = vunpack.c.l.b16 %v5724
      %v5805 = vunpack.c.l.b16 %v5725
      %v5806 = vunpack.c.l.b16 %v5726
      %v5807 = vunpack.c.l.b16 %v5727
      %v5808 = vunpack.c.l.b16 %v5728
      %v5809 = vpack.c.b16 %v5794, %v5793
      %v5810 = vpack.c.b16 %v5796, %v5795
      %v5811 = vpack.c.b16 %v5798, %v5797
      %v5812 = vpack.c.b16 %v5800, %v5799
      %v5813 = vpack.c.b16 %v5802, %v5801
      %v5814 = vpack.c.b16 %v5804, %v5803
      %v5815 = vpack.c.b16 %v5806, %v5805
      %v5816 = vpack.c.b16 %v5808, %v5807
      %5825 = vmatprep.subr.bf16.mxu0 0
      %5826 = vmatpush1.bf16.msra.mxu0 %v5809
      %5827 = vmatprep.subr.bf16.mxu0 0
      %5828 = vmatpush1.bf16.msra.mxu0 %v5810
      %5829 = vmatprep.subr.bf16.mxu0 0
      %5830 = vmatpush1.bf16.msra.mxu0 %v5811
      %5831 = vmatprep.subr.bf16.mxu0 0
      %5832 = vmatpush1.bf16.msra.mxu0 %v5812
      %5833 = vmatprep.subr.bf16.mxu0 0
      %5834 = vmatpush1.bf16.msra.mxu0 %v5813
      %5835 = vmatprep.subr.bf16.mxu0 0
      %5836 = vmatpush1.bf16.msra.mxu0 %v5814
      %5837 = vmatprep.subr.bf16.mxu0 0
      %5838 = vmatpush1.bf16.msra.mxu0 %v5815
      %5839 = vmatprep.subr.bf16.mxu0 0
      %5840 = vmatpush1.bf16.msra.mxu0 %v5816
      %5841 = vmatprep.subr.bf16.mxu0 0
      %5842 = vmatpush1.bf16.msra.mxu0 0
      %5843 = vmatprep.subr.bf16.mxu0 0
      %5844 = vmatpush1.bf16.msra.mxu0 0
      %5845 = vmatprep.subr.bf16.mxu0 0
      %5846 = vmatpush1.bf16.msra.mxu0 0
      %5847 = vmatprep.subr.bf16.mxu0 0
      %5848 = vmatpush1.bf16.msra.mxu0 0
      %5849 = vmatprep.subr.bf16.mxu0 0
      %5850 = vmatpush1.bf16.msra.mxu0 0
      %5851 = vmatprep.subr.bf16.mxu0 0
      %5852 = vmatpush1.bf16.msra.mxu0 0
      %5853 = vmatprep.subr.bf16.mxu0 0
      %5854 = vmatpush1.bf16.msra.mxu0 0
      %5855 = vmatprep.subr.bf16.mxu0 0
      %5856 = vmatpush1.bf16.msra.mxu0 0
      %5857 = vmatprep.mubr.bf16.mxu0 0
      %5858 = vmatmul.mubr.bf16.gmra.mrb[0].mxu0 %v5761
      %v5859 = vpop.f32.mrb[0].mxu0
      %v5860 = vadd.f32 0.0, %v5859
      %v5861 = vpop.f32.mrb[0].mxu0
      %v5862 = vpop.f32.mrb[0].mxu0
      %v5863 = vadd.f32 0.0, %v5862
      %v5864 = vpop.f32.mrb[0].mxu0
      %5865 = vmatprep.mubr.bf16.mxu0 0
      %5866 = vmatmul.mubr.bf16.gmra.mrb[0].mxu0 %v5762
      %v5867 = vpop.f32.mrb[0].mxu0
      %v5868 = vadd.f32 0.0, %v5867
      %v5869 = vpop.f32.mrb[0].mxu0
      %v5870 = vpop.f32.mrb[0].mxu0
      %v5871 = vadd.f32 0.0, %v5870
      %v5872 = vpop.f32.mrb[0].mxu0
      %5873 = vmatprep.mubr.bf16.mxu0 0
      %5874 = vmatmul.mubr.bf16.gmra.mrb[0].mxu0 %v5763
      %v5875 = vpop.f32.mrb[0].mxu0
      %v5876 = vadd.f32 0.0, %v5875
      %v5877 = vpop.f32.mrb[0].mxu0
      %v5878 = vpop.f32.mrb[0].mxu0
      %v5879 = vadd.f32 0.0, %v5878
      %v5880 = vpop.f32.mrb[0].mxu0
      %5881 = vmatprep.mubr.bf16.mxu0 0
      %5882 = vmatmul.mubr.bf16.gmra.mrb[0].mxu0 %v5764
      %v5883 = vpop.f32.mrb[0].mxu0
      %v5884 = vadd.f32 0.0, %v5883
      %v5885 = vpop.f32.mrb[0].mxu0
      %v5886 = vpop.f32.mrb[0].mxu0
      %v5887 = vadd.f32 0.0, %v5886
      %v5888 = vpop.f32.mrb[0].mxu0
      %5889 = vmatprep.mubr.bf16.mxu0 0
      %5890 = vmatmul.mubr.bf16.gmra.mrb[0].mxu0 %v5765
      %v5891 = vpop.f32.mrb[0].mxu0
      %v5892 = vadd.f32 0.0, %v5891
      %v5893 = vpop.f32.mrb[0].mxu0
      %v5894 = vpop.f32.mrb[0].mxu0
      %v5895 = vadd.f32 0.0, %v5894
      %v5896 = vpop.f32.mrb[0].mxu0
      %5897 = vmatprep.mubr.bf16.mxu0 0
      %5898 = vmatmul.mubr.bf16.gmra.mrb[0].mxu0 %v5766
      %v5899 = vpop.f32.mrb[0].mxu0
      %v5900 = vadd.f32 0.0, %v5899
      %v5901 = vpop.f32.mrb[0].mxu0
      %v5902 = vpop.f32.mrb[0].mxu0
      %v5903 = vadd.f32 0.0, %v5902
      %v5904 = vpop.f32.mrb[0].mxu0
      %5905 = vmatprep.mubr.bf16.mxu0 0
      %5906 = vmatmul.mubr.bf16.gmra.mrb[0].mxu0 %v5767
      %v5907 = vpop.f32.mrb[0].mxu0
      %v5908 = vadd.f32 0.0, %v5907
      %v5909 = vpop.f32.mrb[0].mxu0
      %v5910 = vpop.f32.mrb[0].mxu0
      %v5911 = vadd.f32 0.0, %v5910
      %v5912 = vpop.f32.mrb[0].mxu0
      %5913 = vmatprep.mubr.bf16.mxu0 0
      %5914 = vmatmul.mubr.bf16.gmra.mrb[0].mxu0 %v5768
      %v5915 = vpop.f32.mrb[0].mxu0
      %v5916 = vadd.f32 0.0, %v5915
      %v5917 = vpop.f32.mrb[0].mxu0
      %v5918 = vpop.f32.mrb[0].mxu0
      %v5919 = vadd.f32 0.0, %v5918
      %v5920 = vpop.f32.mrb[0].mxu0
      %5921 = vdwg.mxu0
      %v5922 = vadd.f32 %v5680, %v5860
      %v5923 = vadd.f32 %v5681, %v5863
      %v5924 = vadd.f32 %v5682, %v5868
      %v5925 = vadd.f32 %v5683, %v5871
      %v5926 = vadd.f32 %v5684, %v5876
      %v5927 = vadd.f32 %v5685, %v5879
      %v5928 = vadd.f32 %v5686, %v5884
      %v5929 = vadd.f32 %v5687, %v5887
      %v5930 = vadd.f32 %v5688, %v5892
      %v5931 = vadd.f32 %v5689, %v5895
      %v5932 = vadd.f32 %v5690, %v5900
      %v5933 = vadd.f32 %v5691, %v5903
      %v5934 = vadd.f32 %v5692, %v5908
      %v5935 = vadd.f32 %v5693, %v5911
      %v5936 = vadd.f32 %v5694, %v5916
      %v5937 = vadd.f32 %v5695, %v5919
      %v5938 = vld [vmem:[%s2109] sm:$0xf]
      %v5939 = vld [vmem:[%s2109 + $0x4] sm:$0xf]
      %v5940 = vld [vmem:[%s2109 + $0x8] sm:$0xf]
      %v5941 = vld [vmem:[%s2109 + $0xc] sm:$0xf]
      %v5942 = vld [vmem:[%s2109 + $0x18] sm:$0xf]
      %v5943 = vld [vmem:[%s2109 + $0x1c] sm:$0xf]
      %v5944 = vld [vmem:[%s2109 + $0x20] sm:$0xf]
      %v5945 = vld [vmem:[%s2109 + $0x24] sm:$0xf]
      %v5946 = vld [vmem:[%s2109 + $0x30] sm:$0xf]
      %v5947 = vld [vmem:[%s2109 + $0x34] sm:$0xf]
      %v5948 = vld [vmem:[%s2109 + $0x38] sm:$0xf]
      %v5949 = vld [vmem:[%s2109 + $0x3c] sm:$0xf]
      %v5950 = vld [vmem:[%s2109 + $0x48] sm:$0xf]
      %v5951 = vld [vmem:[%s2109 + $0x4c] sm:$0xf]
      %v5952 = vld [vmem:[%s2109 + $0x50] sm:$0xf]
      %v5953 = vld [vmem:[%s2109 + $0x54] sm:$0xf]
      %s5954 = scalar_lea.vmem %s238, 1344
      %v5955 = vld [vmem:[%s5954] sm:$0xf]
      %v5956 = vld [vmem:[%s5954 + $0x4] sm:$0xf]
      %v5957 = vld [vmem:[%s5954 + $0x8] sm:$0xf]
      %v5958 = vld [vmem:[%s5954 + $0xc] sm:$0xf]
      %v5959 = vld [vmem:[%s5954 + $0x10] sm:$0xf]
      %v5960 = vld [vmem:[%s5954 + $0x14] sm:$0xf]
      %v5961 = vld [vmem:[%s5954 + $0x18] sm:$0xf]
      %v5962 = vld [vmem:[%s5954 + $0x1c] sm:$0xf]
      %v5963 = vld [vmem:[%s5954 + $0x20] sm:$0xf]
      %v5964 = vld [vmem:[%s5954 + $0x24] sm:$0xf]
      %v5965 = vld [vmem:[%s5954 + $0x28] sm:$0xf]
      %v5966 = vld [vmem:[%s5954 + $0x2c] sm:$0xf]
      %v5967 = vld [vmem:[%s5954 + $0x30] sm:$0xf]
      %v5968 = vld [vmem:[%s5954 + $0x34] sm:$0xf]
      %v5969 = vld [vmem:[%s5954 + $0x38] sm:$0xf]
      %v5970 = vld [vmem:[%s5954 + $0x3c] sm:$0xf]
      %v5987 = vunpack.c.l.b16 %v5938
      %v5988 = vunpack.c.l.b16 %v5939
      %v5989 = vunpack.c.l.b16 %v5940
      %v5990 = vunpack.c.l.b16 %v5941
      %v5991 = vunpack.c.l.b16 %v5942
      %v5992 = vunpack.c.l.b16 %v5943
      %v5993 = vunpack.c.l.b16 %v5944
      %v5994 = vunpack.c.l.b16 %v5945
      %v5995 = vunpack.c.l.b16 %v5946
      %v5996 = vunpack.c.l.b16 %v5947
      %v5997 = vunpack.c.l.b16 %v5948
      %v5998 = vunpack.c.l.b16 %v5949
      %v5999 = vunpack.c.l.b16 %v5950
      %v6000 = vunpack.c.l.b16 %v5951
      %v6001 = vunpack.c.l.b16 %v5952
      %v6002 = vunpack.c.l.b16 %v5953
      %v6003 = vpack.c.b16 %v5988, %v5987
      %v6004 = vpack.c.b16 %v5990, %v5989
      %v6005 = vpack.c.b16 %v5992, %v5991
      %v6006 = vpack.c.b16 %v5994, %v5993
      %v6007 = vpack.c.b16 %v5996, %v5995
      %v6008 = vpack.c.b16 %v5998, %v5997
      %v6009 = vpack.c.b16 %v6000, %v5999
      %v6010 = vpack.c.b16 %v6002, %v6001
      %v6035 = vunpack.c.l.b16 %v5955
      %v6036 = vunpack.c.l.b16 %v5956
      %v6037 = vunpack.c.l.b16 %v5957
      %v6038 = vunpack.c.l.b16 %v5958
      %v6039 = vunpack.c.l.b16 %v5959
      %v6040 = vunpack.c.l.b16 %v5960
      %v6041 = vunpack.c.l.b16 %v5961
      %v6042 = vunpack.c.l.b16 %v5962
      %v6043 = vunpack.c.l.b16 %v5963
      %v6044 = vunpack.c.l.b16 %v5964
      %v6045 = vunpack.c.l.b16 %v5965
      %v6046 = vunpack.c.l.b16 %v5966
      %v6047 = vunpack.c.l.b16 %v5967
      %v6048 = vunpack.c.l.b16 %v5968
      %v6049 = vunpack.c.l.b16 %v5969
      %v6050 = vunpack.c.l.b16 %v5970
      %v6051 = vpack.c.b16 %v6036, %v6035
      %v6052 = vpack.c.b16 %v6038, %v6037
      %v6053 = vpack.c.b16 %v6040, %v6039
      %v6054 = vpack.c.b16 %v6042, %v6041
      %v6055 = vpack.c.b16 %v6044, %v6043
      %v6056 = vpack.c.b16 %v6046, %v6045
      %v6057 = vpack.c.b16 %v6048, %v6047
      %v6058 = vpack.c.b16 %v6050, %v6049
      %6067 = vmatprep.subr.bf16.mxu0 0
      %6068 = vmatpush1.bf16.msra.mxu0 %v6051
      %6069 = vmatprep.subr.bf16.mxu0 0
      %6070 = vmatpush1.bf16.msra.mxu0 %v6052
      %6071 = vmatprep.subr.bf16.mxu0 0
      %6072 = vmatpush1.bf16.msra.mxu0 %v6053
      %6073 = vmatprep.subr.bf16.mxu0 0
      %6074 = vmatpush1.bf16.msra.mxu0 %v6054
      %6075 = vmatprep.subr.bf16.mxu0 0
      %6076 = vmatpush1.bf16.msra.mxu0 %v6055
      %6077 = vmatprep.subr.bf16.mxu0 0
      %6078 = vmatpush1.bf16.msra.mxu0 %v6056
      %6079 = vmatprep.subr.bf16.mxu0 0
      %6080 = vmatpush1.bf16.msra.mxu0 %v6057
      %6081 = vmatprep.subr.bf16.mxu0 0
      %6082 = vmatpush1.bf16.msra.mxu0 %v6058
      %6083 = vmatprep.subr.bf16.mxu0 0
      %6084 = vmatpush1.bf16.msra.mxu0 0
      %6085 = vmatprep.subr.bf16.mxu0 0
      %6086 = vmatpush1.bf16.msra.mxu0 0
      %6087 = vmatprep.subr.bf16.mxu0 0
      %6088 = vmatpush1.bf16.msra.mxu0 0
      %6089 = vmatprep.subr.bf16.mxu0 0
      %6090 = vmatpush1.bf16.msra.mxu0 0
      %6091 = vmatprep.subr.bf16.mxu0 0
      %6092 = vmatpush1.bf16.msra.mxu0 0
      %6093 = vmatprep.subr.bf16.mxu0 0
      %6094 = vmatpush1.bf16.msra.mxu0 0
      %6095 = vmatprep.subr.bf16.mxu0 0
      %6096 = vmatpush1.bf16.msra.mxu0 0
      %6097 = vmatprep.subr.bf16.mxu0 0
      %6098 = vmatpush1.bf16.msra.mxu0 0
      %6099 = vmatprep.mubr.bf16.mxu0 0
      %6100 = vmatmul.mubr.bf16.gmra.mrb[0].mxu0 %v6003
      %v6101 = vpop.f32.mrb[0].mxu0
      %v6102 = vadd.f32 0.0, %v6101
      %v6103 = vpop.f32.mrb[0].mxu0
      %v6104 = vpop.f32.mrb[0].mxu0
      %v6105 = vadd.f32 0.0, %v6104
      %v6106 = vpop.f32.mrb[0].mxu0
      %6107 = vmatprep.mubr.bf16.mxu0 0
      %6108 = vmatmul.mubr.bf16.gmra.mrb[0].mxu0 %v6004
      %v6109 = vpop.f32.mrb[0].mxu0
      %v6110 = vadd.f32 0.0, %v6109
      %v6111 = vpop.f32.mrb[0].mxu0
      %v6112 = vpop.f32.mrb[0].mxu0
      %v6113 = vadd.f32 0.0, %v6112
      %v6114 = vpop.f32.mrb[0].mxu0
      %6115 = vmatprep.mubr.bf16.mxu0 0
      %6116 = vmatmul.mubr.bf16.gmra.mrb[0].mxu0 %v6005
      %v6117 = vpop.f32.mrb[0].mxu0
      %v6118 = vadd.f32 0.0, %v6117
      %v6119 = vpop.f32.mrb[0].mxu0
      %v6120 = vpop.f32.mrb[0].mxu0
      %v6121 = vadd.f32 0.0, %v6120
      %v6122 = vpop.f32.mrb[0].mxu0
      %6123 = vmatprep.mubr.bf16.mxu0 0
      %6124 = vmatmul.mubr.bf16.gmra.mrb[0].mxu0 %v6006
      %v6125 = vpop.f32.mrb[0].mxu0
      %v6126 = vadd.f32 0.0, %v6125
      %v6127 = vpop.f32.mrb[0].mxu0
      %v6128 = vpop.f32.mrb[0].mxu0
      %v6129 = vadd.f32 0.0, %v6128
      %v6130 = vpop.f32.mrb[0].mxu0
      %6131 = vmatprep.mubr.bf16.mxu0 0
      %6132 = vmatmul.mubr.bf16.gmra.mrb[0].mxu0 %v6007
      %v6133 = vpop.f32.mrb[0].mxu0
      %v6134 = vadd.f32 0.0, %v6133
      %v6135 = vpop.f32.mrb[0].mxu0
      %v6136 = vpop.f32.mrb[0].mxu0
      %v6137 = vadd.f32 0.0, %v6136
      %v6138 = vpop.f32.mrb[0].mxu0
      %6139 = vmatprep.mubr.bf16.mxu0 0
      %6140 = vmatmul.mubr.bf16.gmra.mrb[0].mxu0 %v6008
      %v6141 = vpop.f32.mrb[0].mxu0
      %v6142 = vadd.f32 0.0, %v6141
      %v6143 = vpop.f32.mrb[0].mxu0
      %v6144 = vpop.f32.mrb[0].mxu0
      %v6145 = vadd.f32 0.0, %v6144
      %v6146 = vpop.f32.mrb[0].mxu0
      %6147 = vmatprep.mubr.bf16.mxu0 0
      %6148 = vmatmul.mubr.bf16.gmra.mrb[0].mxu0 %v6009
      %v6149 = vpop.f32.mrb[0].mxu0
      %v6150 = vadd.f32 0.0, %v6149
      %v6151 = vpop.f32.mrb[0].mxu0
      %v6152 = vpop.f32.mrb[0].mxu0
      %v6153 = vadd.f32 0.0, %v6152
      %v6154 = vpop.f32.mrb[0].mxu0
      %6155 = vmatprep.mubr.bf16.mxu0 0
      %6156 = vmatmul.mubr.bf16.gmra.mrb[0].mxu0 %v6010
      %v6157 = vpop.f32.mrb[0].mxu0
      %v6158 = vadd.f32 0.0, %v6157
      %v6159 = vpop.f32.mrb[0].mxu0
      %v6160 = vpop.f32.mrb[0].mxu0
      %v6161 = vadd.f32 0.0, %v6160
      %v6162 = vpop.f32.mrb[0].mxu0
      %6163 = vdwg.mxu0
      %v6164 = vadd.f32 %v5922, %v6102
      %v6165 = vadd.f32 %v5923, %v6105
      %v6166 = vadd.f32 %v5924, %v6110
      %v6167 = vadd.f32 %v5925, %v6113
      %v6168 = vadd.f32 %v5926, %v6118
      %v6169 = vadd.f32 %v5927, %v6121
      %v6170 = vadd.f32 %v5928, %v6126
      %v6171 = vadd.f32 %v5929, %v6129
      %v6172 = vadd.f32 %v5930, %v6134
      %v6173 = vadd.f32 %v5931, %v6137
      %v6174 = vadd.f32 %v5932, %v6142
      %v6175 = vadd.f32 %v5933, %v6145
      %v6176 = vadd.f32 %v5934, %v6150
      %v6177 = vadd.f32 %v5935, %v6153
      %v6178 = vadd.f32 %v5936, %v6158
      %v6179 = vadd.f32 %v5937, %v6161
      %v6180 = vld [vmem:[%s2352] sm:$0xf]
      %v6181 = vld [vmem:[%s2352 + $0x4] sm:$0xf]
      %v6182 = vld [vmem:[%s2352 + $0x8] sm:$0xf]
      %v6183 = vld [vmem:[%s2352 + $0xc] sm:$0xf]
      %v6184 = vld [vmem:[%s2352 + $0x18] sm:$0xf]
      %v6185 = vld [vmem:[%s2352 + $0x1c] sm:$0xf]
      %v6186 = vld [vmem:[%s2352 + $0x20] sm:$0xf]
      %v6187 = vld [vmem:[%s2352 + $0x24] sm:$0xf]
      %v6188 = vld [vmem:[%s2352 + $0x30] sm:$0xf]
      %v6189 = vld [vmem:[%s2352 + $0x34] sm:$0xf]
      %v6190 = vld [vmem:[%s2352 + $0x38] sm:$0xf]
      %v6191 = vld [vmem:[%s2352 + $0x3c] sm:$0xf]
      %v6192 = vld [vmem:[%s2352 + $0x48] sm:$0xf]
      %v6193 = vld [vmem:[%s2352 + $0x4c] sm:$0xf]
      %v6194 = vld [vmem:[%s2352 + $0x50] sm:$0xf]
      %v6195 = vld [vmem:[%s2352 + $0x54] sm:$0xf]
      %s6196 = scalar_lea.vmem %s238, 1408
      %v6197 = vld [vmem:[%s6196] sm:$0xf]
      %v6198 = vld [vmem:[%s6196 + $0x4] sm:$0xf]
      %v6199 = vld [vmem:[%s6196 + $0x8] sm:$0xf]
      %v6200 = vld [vmem:[%s6196 + $0xc] sm:$0xf]
      %v6201 = vld [vmem:[%s6196 + $0x10] sm:$0xf]
      %v6202 = vld [vmem:[%s6196 + $0x14] sm:$0xf]
      %v6203 = vld [vmem:[%s6196 + $0x18] sm:$0xf]
      %v6204 = vld [vmem:[%s6196 + $0x1c] sm:$0xf]
      %v6205 = vld [vmem:[%s6196 + $0x20] sm:$0xf]
      %v6206 = vld [vmem:[%s6196 + $0x24] sm:$0xf]
      %v6207 = vld [vmem:[%s6196 + $0x28] sm:$0xf]
      %v6208 = vld [vmem:[%s6196 + $0x2c] sm:$0xf]
      %v6209 = vld [vmem:[%s6196 + $0x30] sm:$0xf]
      %v6210 = vld [vmem:[%s6196 + $0x34] sm:$0xf]
      %v6211 = vld [vmem:[%s6196 + $0x38] sm:$0xf]
      %v6212 = vld [vmem:[%s6196 + $0x3c] sm:$0xf]
      %v6229 = vunpack.c.l.b16 %v6180
      %v6230 = vunpack.c.l.b16 %v6181
      %v6231 = vunpack.c.l.b16 %v6182
      %v6232 = vunpack.c.l.b16 %v6183
      %v6233 = vunpack.c.l.b16 %v6184
      %v6234 = vunpack.c.l.b16 %v6185
      %v6235 = vunpack.c.l.b16 %v6186
      %v6236 = vunpack.c.l.b16 %v6187
      %v6237 = vunpack.c.l.b16 %v6188
      %v6238 = vunpack.c.l.b16 %v6189
      %v6239 = vunpack.c.l.b16 %v6190
      %v6240 = vunpack.c.l.b16 %v6191
      %v6241 = vunpack.c.l.b16 %v6192
      %v6242 = vunpack.c.l.b16 %v6193
      %v6243 = vunpack.c.l.b16 %v6194
      %v6244 = vunpack.c.l.b16 %v6195
      %v6245 = vpack.c.b16 %v6230, %v6229
      %v6246 = vpack.c.b16 %v6232, %v6231
      %v6247 = vpack.c.b16 %v6234, %v6233
      %v6248 = vpack.c.b16 %v6236, %v6235
      %v6249 = vpack.c.b16 %v6238, %v6237
      %v6250 = vpack.c.b16 %v6240, %v6239
      %v6251 = vpack.c.b16 %v6242, %v6241
      %v6252 = vpack.c.b16 %v6244, %v6243
      %v6277 = vunpack.c.l.b16 %v6197
      %v6278 = vunpack.c.l.b16 %v6198
      %v6279 = vunpack.c.l.b16 %v6199
      %v6280 = vunpack.c.l.b16 %v6200
      %v6281 = vunpack.c.l.b16 %v6201
      %v6282 = vunpack.c.l.b16 %v6202
      %v6283 = vunpack.c.l.b16 %v6203
      %v6284 = vunpack.c.l.b16 %v6204
      %v6285 = vunpack.c.l.b16 %v6205
      %v6286 = vunpack.c.l.b16 %v6206
      %v6287 = vunpack.c.l.b16 %v6207
      %v6288 = vunpack.c.l.b16 %v6208
      %v6289 = vunpack.c.l.b16 %v6209
      %v6290 = vunpack.c.l.b16 %v6210
      %v6291 = vunpack.c.l.b16 %v6211
      %v6292 = vunpack.c.l.b16 %v6212
      %v6293 = vpack.c.b16 %v6278, %v6277
      %v6294 = vpack.c.b16 %v6280, %v6279
      %v6295 = vpack.c.b16 %v6282, %v6281
      %v6296 = vpack.c.b16 %v6284, %v6283
      %v6297 = vpack.c.b16 %v6286, %v6285
      %v6298 = vpack.c.b16 %v6288, %v6287
      %v6299 = vpack.c.b16 %v6290, %v6289
      %v6300 = vpack.c.b16 %v6292, %v6291
      %6309 = vmatprep.subr.bf16.mxu0 0
      %6310 = vmatpush1.bf16.msra.mxu0 %v6293
      %6311 = vmatprep.subr.bf16.mxu0 0
      %6312 = vmatpush1.bf16.msra.mxu0 %v6294
      %6313 = vmatprep.subr.bf16.mxu0 0
      %6314 = vmatpush1.bf16.msra.mxu0 %v6295
      %6315 = vmatprep.subr.bf16.mxu0 0
      %6316 = vmatpush1.bf16.msra.mxu0 %v6296
      %6317 = vmatprep.subr.bf16.mxu0 0
      %6318 = vmatpush1.bf16.msra.mxu0 %v6297
      %6319 = vmatprep.subr.bf16.mxu0 0
      %6320 = vmatpush1.bf16.msra.mxu0 %v6298
      %6321 = vmatprep.subr.bf16.mxu0 0
      %6322 = vmatpush1.bf16.msra.mxu0 %v6299
      %6323 = vmatprep.subr.bf16.mxu0 0
      %6324 = vmatpush1.bf16.msra.mxu0 %v6300
      %6325 = vmatprep.subr.bf16.mxu0 0
      %6326 = vmatpush1.bf16.msra.mxu0 0
      %6327 = vmatprep.subr.bf16.mxu0 0
      %6328 = vmatpush1.bf16.msra.mxu0 0
      %6329 = vmatprep.subr.bf16.mxu0 0
      %6330 = vmatpush1.bf16.msra.mxu0 0
      %6331 = vmatprep.subr.bf16.mxu0 0
      %6332 = vmatpush1.bf16.msra.mxu0 0
      %6333 = vmatprep.subr.bf16.mxu0 0
      %6334 = vmatpush1.bf16.msra.mxu0 0
      %6335 = vmatprep.subr.bf16.mxu0 0
      %6336 = vmatpush1.bf16.msra.mxu0 0
      %6337 = vmatprep.subr.bf16.mxu0 0
      %6338 = vmatpush1.bf16.msra.mxu0 0
      %6339 = vmatprep.subr.bf16.mxu0 0
      %6340 = vmatpush1.bf16.msra.mxu0 0
      %6341 = vmatprep.mubr.bf16.mxu0 0
      %6342 = vmatmul.mubr.bf16.gmra.mrb[0].mxu0 %v6245
      %v6343 = vpop.f32.mrb[0].mxu0
      %v6344 = vadd.f32 0.0, %v6343
      %v6345 = vpop.f32.mrb[0].mxu0
      %v6346 = vpop.f32.mrb[0].mxu0
      %v6347 = vadd.f32 0.0, %v6346
      %v6348 = vpop.f32.mrb[0].mxu0
      %6349 = vmatprep.mubr.bf16.mxu0 0
      %6350 = vmatmul.mubr.bf16.gmra.mrb[0].mxu0 %v6246
      %v6351 = vpop.f32.mrb[0].mxu0
      %v6352 = vadd.f32 0.0, %v6351
      %v6353 = vpop.f32.mrb[0].mxu0
      %v6354 = vpop.f32.mrb[0].mxu0
      %v6355 = vadd.f32 0.0, %v6354
      %v6356 = vpop.f32.mrb[0].mxu0
      %6357 = vmatprep.mubr.bf16.mxu0 0
      %6358 = vmatmul.mubr.bf16.gmra.mrb[0].mxu0 %v6247
      %v6359 = vpop.f32.mrb[0].mxu0
      %v6360 = vadd.f32 0.0, %v6359
      %v6361 = vpop.f32.mrb[0].mxu0
      %v6362 = vpop.f32.mrb[0].mxu0
      %v6363 = vadd.f32 0.0, %v6362
      %v6364 = vpop.f32.mrb[0].mxu0
      %6365 = vmatprep.mubr.bf16.mxu0 0
      %6366 = vmatmul.mubr.bf16.gmra.mrb[0].mxu0 %v6248
      %v6367 = vpop.f32.mrb[0].mxu0
      %v6368 = vadd.f32 0.0, %v6367
      %v6369 = vpop.f32.mrb[0].mxu0
      %v6370 = vpop.f32.mrb[0].mxu0
      %v6371 = vadd.f32 0.0, %v6370
      %v6372 = vpop.f32.mrb[0].mxu0
      %6373 = vmatprep.mubr.bf16.mxu0 0
      %6374 = vmatmul.mubr.bf16.gmra.mrb[0].mxu0 %v6249
      %v6375 = vpop.f32.mrb[0].mxu0
      %v6376 = vadd.f32 0.0, %v6375
      %v6377 = vpop.f32.mrb[0].mxu0
      %v6378 = vpop.f32.mrb[0].mxu0
      %v6379 = vadd.f32 0.0, %v6378
      %v6380 = vpop.f32.mrb[0].mxu0
      %6381 = vmatprep.mubr.bf16.mxu0 0
      %6382 = vmatmul.mubr.bf16.gmra.mrb[0].mxu0 %v6250
      %v6383 = vpop.f32.mrb[0].mxu0
      %v6384 = vadd.f32 0.0, %v6383
      %v6385 = vpop.f32.mrb[0].mxu0
      %v6386 = vpop.f32.mrb[0].mxu0
      %v6387 = vadd.f32 0.0, %v6386
      %v6388 = vpop.f32.mrb[0].mxu0
      %6389 = vmatprep.mubr.bf16.mxu0 0
      %6390 = vmatmul.mubr.bf16.gmra.mrb[0].mxu0 %v6251
      %v6391 = vpop.f32.mrb[0].mxu0
      %v6392 = vadd.f32 0.0, %v6391
      %v6393 = vpop.f32.mrb[0].mxu0
      %v6394 = vpop.f32.mrb[0].mxu0
      %v6395 = vadd.f32 0.0, %v6394
      %v6396 = vpop.f32.mrb[0].mxu0
      %6397 = vmatprep.mubr.bf16.mxu0 0
      %6398 = vmatmul.mubr.bf16.gmra.mrb[0].mxu0 %v6252
      %v6399 = vpop.f32.mrb[0].mxu0
      %v6400 = vadd.f32 0.0, %v6399
      %v6401 = vpop.f32.mrb[0].mxu0
      %v6402 = vpop.f32.mrb[0].mxu0
      %v6403 = vadd.f32 0.0, %v6402
      %v6404 = vpop.f32.mrb[0].mxu0
      %6405 = vdwg.mxu0
      %v6406 = vadd.f32 %v6164, %v6344
      %v6407 = vadd.f32 %v6165, %v6347
      %v6408 = vadd.f32 %v6166, %v6352
      %v6409 = vadd.f32 %v6167, %v6355
      %v6410 = vadd.f32 %v6168, %v6360
      %v6411 = vadd.f32 %v6169, %v6363
      %v6412 = vadd.f32 %v6170, %v6368
      %v6413 = vadd.f32 %v6171, %v6371
      %v6414 = vadd.f32 %v6172, %v6376
      %v6415 = vadd.f32 %v6173, %v6379
      %v6416 = vadd.f32 %v6174, %v6384
      %v6417 = vadd.f32 %v6175, %v6387
      %v6418 = vadd.f32 %v6176, %v6392
      %v6419 = vadd.f32 %v6177, %v6395
      %v6420 = vadd.f32 %v6178, %v6400
      %v6421 = vadd.f32 %v6179, %v6403
      %v6422 = vld [vmem:[%s2595] sm:$0xf]
      %v6423 = vld [vmem:[%s2595 + $0x4] sm:$0xf]
      %v6424 = vld [vmem:[%s2595 + $0x8] sm:$0xf]
      %v6425 = vld [vmem:[%s2595 + $0xc] sm:$0xf]
      %v6426 = vld [vmem:[%s2595 + $0x18] sm:$0xf]
      %v6427 = vld [vmem:[%s2595 + $0x1c] sm:$0xf]
      %v6428 = vld [vmem:[%s2595 + $0x20] sm:$0xf]
      %v6429 = vld [vmem:[%s2595 + $0x24] sm:$0xf]
      %v6430 = vld [vmem:[%s2595 + $0x30] sm:$0xf]
      %v6431 = vld [vmem:[%s2595 + $0x34] sm:$0xf]
      %v6432 = vld [vmem:[%s2595 + $0x38] sm:$0xf]
      %v6433 = vld [vmem:[%s2595 + $0x3c] sm:$0xf]
      %v6434 = vld [vmem:[%s2595 + $0x48] sm:$0xf]
      %v6435 = vld [vmem:[%s2595 + $0x4c] sm:$0xf]
      %v6436 = vld [vmem:[%s2595 + $0x50] sm:$0xf]
      %v6437 = vld [vmem:[%s2595 + $0x54] sm:$0xf]
      %s6438 = scalar_lea.vmem %s238, 1472
      %v6439 = vld [vmem:[%s6438] sm:$0xf]
      %v6440 = vld [vmem:[%s6438 + $0x4] sm:$0xf]
      %v6441 = vld [vmem:[%s6438 + $0x8] sm:$0xf]
      %v6442 = vld [vmem:[%s6438 + $0xc] sm:$0xf]
      %v6443 = vld [vmem:[%s6438 + $0x10] sm:$0xf]
      %v6444 = vld [vmem:[%s6438 + $0x14] sm:$0xf]
      %v6445 = vld [vmem:[%s6438 + $0x18] sm:$0xf]
      %v6446 = vld [vmem:[%s6438 + $0x1c] sm:$0xf]
      %v6447 = vld [vmem:[%s6438 + $0x20] sm:$0xf]
      %v6448 = vld [vmem:[%s6438 + $0x24] sm:$0xf]
      %v6449 = vld [vmem:[%s6438 + $0x28] sm:$0xf]
      %v6450 = vld [vmem:[%s6438 + $0x2c] sm:$0xf]
      %v6451 = vld [vmem:[%s6438 + $0x30] sm:$0xf]
      %v6452 = vld [vmem:[%s6438 + $0x34] sm:$0xf]
      %v6453 = vld [vmem:[%s6438 + $0x38] sm:$0xf]
      %v6454 = vld [vmem:[%s6438 + $0x3c] sm:$0xf]
      %v6471 = vunpack.c.l.b16 %v6422
      %v6472 = vunpack.c.l.b16 %v6423
      %v6473 = vunpack.c.l.b16 %v6424
      %v6474 = vunpack.c.l.b16 %v6425
      %v6475 = vunpack.c.l.b16 %v6426
      %v6476 = vunpack.c.l.b16 %v6427
      %v6477 = vunpack.c.l.b16 %v6428
      %v6478 = vunpack.c.l.b16 %v6429
      %v6479 = vunpack.c.l.b16 %v6430
      %v6480 = vunpack.c.l.b16 %v6431
      %v6481 = vunpack.c.l.b16 %v6432
      %v6482 = vunpack.c.l.b16 %v6433
      %v6483 = vunpack.c.l.b16 %v6434
      %v6484 = vunpack.c.l.b16 %v6435
      %v6485 = vunpack.c.l.b16 %v6436
      %v6486 = vunpack.c.l.b16 %v6437
      %v6487 = vpack.c.b16 %v6472, %v6471
      %v6488 = vpack.c.b16 %v6474, %v6473
      %v6489 = vpack.c.b16 %v6476, %v6475
      %v6490 = vpack.c.b16 %v6478, %v6477
      %v6491 = vpack.c.b16 %v6480, %v6479
      %v6492 = vpack.c.b16 %v6482, %v6481
      %v6493 = vpack.c.b16 %v6484, %v6483
      %v6494 = vpack.c.b16 %v6486, %v6485
      %v6519 = vunpack.c.l.b16 %v6439
      %v6520 = vunpack.c.l.b16 %v6440
      %v6521 = vunpack.c.l.b16 %v6441
      %v6522 = vunpack.c.l.b16 %v6442
      %v6523 = vunpack.c.l.b16 %v6443
      %v6524 = vunpack.c.l.b16 %v6444
      %v6525 = vunpack.c.l.b16 %v6445
      %v6526 = vunpack.c.l.b16 %v6446
      %v6527 = vunpack.c.l.b16 %v6447
      %v6528 = vunpack.c.l.b16 %v6448
      %v6529 = vunpack.c.l.b16 %v6449
      %v6530 = vunpack.c.l.b16 %v6450
      %v6531 = vunpack.c.l.b16 %v6451
      %v6532 = vunpack.c.l.b16 %v6452
      %v6533 = vunpack.c.l.b16 %v6453
      %v6534 = vunpack.c.l.b16 %v6454
      %v6535 = vpack.c.b16 %v6520, %v6519
      %v6536 = vpack.c.b16 %v6522, %v6521
      %v6537 = vpack.c.b16 %v6524, %v6523
      %v6538 = vpack.c.b16 %v6526, %v6525
      %v6539 = vpack.c.b16 %v6528, %v6527
      %v6540 = vpack.c.b16 %v6530, %v6529
      %v6541 = vpack.c.b16 %v6532, %v6531
      %v6542 = vpack.c.b16 %v6534, %v6533
      %6551 = vmatprep.subr.bf16.mxu0 0
      %6552 = vmatpush1.bf16.msra.mxu0 %v6535
      %6553 = vmatprep.subr.bf16.mxu0 0
      %6554 = vmatpush1.bf16.msra.mxu0 %v6536
      %6555 = vmatprep.subr.bf16.mxu0 0
      %6556 = vmatpush1.bf16.msra.mxu0 %v6537
      %6557 = vmatprep.subr.bf16.mxu0 0
      %6558 = vmatpush1.bf16.msra.mxu0 %v6538
      %6559 = vmatprep.subr.bf16.mxu0 0
      %6560 = vmatpush1.bf16.msra.mxu0 %v6539
      %6561 = vmatprep.subr.bf16.mxu0 0
      %6562 = vmatpush1.bf16.msra.mxu0 %v6540
      %6563 = vmatprep.subr.bf16.mxu0 0
      %6564 = vmatpush1.bf16.msra.mxu0 %v6541
      %6565 = vmatprep.subr.bf16.mxu0 0
      %6566 = vmatpush1.bf16.msra.mxu0 %v6542
      %6567 = vmatprep.subr.bf16.mxu0 0
      %6568 = vmatpush1.bf16.msra.mxu0 0
      %6569 = vmatprep.subr.bf16.mxu0 0
      %6570 = vmatpush1.bf16.msra.mxu0 0
      %6571 = vmatprep.subr.bf16.mxu0 0
      %6572 = vmatpush1.bf16.msra.mxu0 0
      %6573 = vmatprep.subr.bf16.mxu0 0
      %6574 = vmatpush1.bf16.msra.mxu0 0
      %6575 = vmatprep.subr.bf16.mxu0 0
      %6576 = vmatpush1.bf16.msra.mxu0 0
      %6577 = vmatprep.subr.bf16.mxu0 0
      %6578 = vmatpush1.bf16.msra.mxu0 0
      %6579 = vmatprep.subr.bf16.mxu0 0
      %6580 = vmatpush1.bf16.msra.mxu0 0
      %6581 = vmatprep.subr.bf16.mxu0 0
      %6582 = vmatpush1.bf16.msra.mxu0 0
      %6583 = vmatprep.mubr.bf16.mxu0 0
      %6584 = vmatmul.mubr.bf16.gmra.mrb[0].mxu0 %v6487
      %v6585 = vpop.f32.mrb[0].mxu0
      %v6586 = vadd.f32 0.0, %v6585
      %v6587 = vpop.f32.mrb[0].mxu0
      %v6588 = vpop.f32.mrb[0].mxu0
      %v6589 = vadd.f32 0.0, %v6588
      %v6590 = vpop.f32.mrb[0].mxu0
      %6591 = vmatprep.mubr.bf16.mxu0 0
      %6592 = vmatmul.mubr.bf16.gmra.mrb[0].mxu0 %v6488
      %v6593 = vpop.f32.mrb[0].mxu0
      %v6594 = vadd.f32 0.0, %v6593
      %v6595 = vpop.f32.mrb[0].mxu0
      %v6596 = vpop.f32.mrb[0].mxu0
      %v6597 = vadd.f32 0.0, %v6596
      %v6598 = vpop.f32.mrb[0].mxu0
      %6599 = vmatprep.mubr.bf16.mxu0 0
      %6600 = vmatmul.mubr.bf16.gmra.mrb[0].mxu0 %v6489
      %v6601 = vpop.f32.mrb[0].mxu0
      %v6602 = vadd.f32 0.0, %v6601
      %v6603 = vpop.f32.mrb[0].mxu0
      %v6604 = vpop.f32.mrb[0].mxu0
      %v6605 = vadd.f32 0.0, %v6604
      %v6606 = vpop.f32.mrb[0].mxu0
      %6607 = vmatprep.mubr.bf16.mxu0 0
      %6608 = vmatmul.mubr.bf16.gmra.mrb[0].mxu0 %v6490
      %v6609 = vpop.f32.mrb[0].mxu0
      %v6610 = vadd.f32 0.0, %v6609
      %v6611 = vpop.f32.mrb[0].mxu0
      %v6612 = vpop.f32.mrb[0].mxu0
      %v6613 = vadd.f32 0.0, %v6612
      %v6614 = vpop.f32.mrb[0].mxu0
      %6615 = vmatprep.mubr.bf16.mxu0 0
      %6616 = vmatmul.mubr.bf16.gmra.mrb[0].mxu0 %v6491
      %v6617 = vpop.f32.mrb[0].mxu0
      %v6618 = vadd.f32 0.0, %v6617
      %v6619 = vpop.f32.mrb[0].mxu0
      %v6620 = vpop.f32.mrb[0].mxu0
      %v6621 = vadd.f32 0.0, %v6620
      %v6622 = vpop.f32.mrb[0].mxu0
      %6623 = vmatprep.mubr.bf16.mxu0 0
      %6624 = vmatmul.mubr.bf16.gmra.mrb[0].mxu0 %v6492
      %v6625 = vpop.f32.mrb[0].mxu0
      %v6626 = vadd.f32 0.0, %v6625
      %v6627 = vpop.f32.mrb[0].mxu0
      %v6628 = vpop.f32.mrb[0].mxu0
      %v6629 = vadd.f32 0.0, %v6628
      %v6630 = vpop.f32.mrb[0].mxu0
      %6631 = vmatprep.mubr.bf16.mxu0 0
      %6632 = vmatmul.mubr.bf16.gmra.mrb[0].mxu0 %v6493
      %v6633 = vpop.f32.mrb[0].mxu0
      %v6634 = vadd.f32 0.0, %v6633
      %v6635 = vpop.f32.mrb[0].mxu0
      %v6636 = vpop.f32.mrb[0].mxu0
      %v6637 = vadd.f32 0.0, %v6636
      %v6638 = vpop.f32.mrb[0].mxu0
      %6639 = vmatprep.mubr.bf16.mxu0 0
      %6640 = vmatmul.mubr.bf16.gmra.mrb[0].mxu0 %v6494
      %v6641 = vpop.f32.mrb[0].mxu0
      %v6642 = vadd.f32 0.0, %v6641
      %v6643 = vpop.f32.mrb[0].mxu0
      %v6644 = vpop.f32.mrb[0].mxu0
      %v6645 = vadd.f32 0.0, %v6644
      %v6646 = vpop.f32.mrb[0].mxu0
      %6647 = vdwg.mxu0
      %v6648 = vadd.f32 %v6406, %v6586
      %v6649 = vadd.f32 %v6407, %v6589
      %v6650 = vadd.f32 %v6408, %v6594
      %v6651 = vadd.f32 %v6409, %v6597
      %v6652 = vadd.f32 %v6410, %v6602
      %v6653 = vadd.f32 %v6411, %v6605
      %v6654 = vadd.f32 %v6412, %v6610
      %v6655 = vadd.f32 %v6413, %v6613
      %v6656 = vadd.f32 %v6414, %v6618
      %v6657 = vadd.f32 %v6415, %v6621
      %v6658 = vadd.f32 %v6416, %v6626
      %v6659 = vadd.f32 %v6417, %v6629
      %v6660 = vadd.f32 %v6418, %v6634
      %v6661 = vadd.f32 %v6419, %v6637
      %v6662 = vadd.f32 %v6420, %v6642
      %v6663 = vadd.f32 %v6421, %v6645
      %v6664 = vld [vmem:[%s242 + $0x5] sm:$0x1]
      %v6665 = vlaneseq
      %v6666 = vshrl.u32 %v6665, 7
      %v6667 = vsub.s32 0, %v6666
      %v6668 = vrot.slane %v6664, %v6667
      %v6669 = vmul.f32 %v6648, %v6668
      %v6670 = vmul.f32 %v6649, %v6668
      %v6671 = vmul.f32 %v6650, %v6668
      %v6672 = vmul.f32 %v6651, %v6668
      %v6673 = vmul.f32 %v6652, %v6668
      %v6674 = vmul.f32 %v6653, %v6668
      %v6675 = vmul.f32 %v6654, %v6668
      %v6676 = vmul.f32 %v6655, %v6668
      %v6677 = vmul.f32 %v6656, %v6668
      %v6678 = vmul.f32 %v6657, %v6668
      %v6679 = vmul.f32 %v6658, %v6668
      %v6680 = vmul.f32 %v6659, %v6668
      %v6681 = vmul.f32 %v6660, %v6668
      %v6682 = vmul.f32 %v6661, %v6668
      %v6683 = vmul.f32 %v6662, %v6668
      %v6684 = vmul.f32 %v6663, %v6668
      %v6685 = vld [vmem:[%s246 + $0x5] sm:$0x1]
      %v6686 = vlaneseq
      %v6687 = vshrl.u32 %v6686, 7
      %v6688 = vsub.s32 0, %v6687
      %v6689 = vrot.slane %v6685, %v6688
      %v6690 = vadd.f32 %v6669, %v6689
      %v6691 = vadd.f32 %v6670, %v6689
      %v6692 = vadd.f32 %v6671, %v6689
      %v6693 = vadd.f32 %v6672, %v6689
      %v6694 = vadd.f32 %v6673, %v6689
      %v6695 = vadd.f32 %v6674, %v6689
      %v6696 = vadd.f32 %v6675, %v6689
      %v6697 = vadd.f32 %v6676, %v6689
      %v6698 = vadd.f32 %v6677, %v6689
      %v6699 = vadd.f32 %v6678, %v6689
      %v6700 = vadd.f32 %v6679, %v6689
      %v6701 = vadd.f32 %v6680, %v6689
      %v6702 = vadd.f32 %v6681, %v6689
      %v6703 = vadd.f32 %v6682, %v6689
      %v6704 = vadd.f32 %v6683, %v6689
      %v6705 = vadd.f32 %v6684, %v6689
      %v6706 = vmax.f32 %v6690, 0.0
      %v6707 = vmax.f32 %v6691, 0.0
      %v6708 = vmax.f32 %v6692, 0.0
      %v6709 = vmax.f32 %v6693, 0.0
      %v6710 = vmax.f32 %v6694, 0.0
      %v6711 = vmax.f32 %v6695, 0.0
      %v6712 = vmax.f32 %v6696, 0.0
      %v6713 = vmax.f32 %v6697, 0.0
      %v6714 = vmax.f32 %v6698, 0.0
      %v6715 = vmax.f32 %v6699, 0.0
      %v6716 = vmax.f32 %v6700, 0.0
      %v6717 = vmax.f32 %v6701, 0.0
      %v6718 = vmax.f32 %v6702, 0.0
      %v6719 = vmax.f32 %v6703, 0.0
      %v6720 = vmax.f32 %v6704, 0.0
      %v6721 = vmax.f32 %v6705, 0.0
      %v6722 = vpack.c.bf16 %v6707, %v6706
      %v6723 = vpack.c.bf16 %v6709, %v6708
      %v6724 = vpack.c.bf16 %v6711, %v6710
      %v6725 = vpack.c.bf16 %v6713, %v6712
      %v6726 = vpack.c.bf16 %v6715, %v6714
      %v6727 = vpack.c.bf16 %v6717, %v6716
      %v6728 = vpack.c.bf16 %v6719, %v6718
      %v6729 = vpack.c.bf16 %v6721, %v6720
      %s6730 = scalar_lea.vmem %s238, 1536
      %v6731 = vld [vmem:[%s6730] sm:$0xf]
      %v6732 = vld [vmem:[%s6730 + $0x4] sm:$0xf]
      %v6733 = vld [vmem:[%s6730 + $0x8] sm:$0xf]
      %v6734 = vld [vmem:[%s6730 + $0xc] sm:$0xf]
      %v6735 = vld [vmem:[%s6730 + $0x10] sm:$0xf]
      %v6736 = vld [vmem:[%s6730 + $0x14] sm:$0xf]
      %v6737 = vld [vmem:[%s6730 + $0x18] sm:$0xf]
      %v6738 = vld [vmem:[%s6730 + $0x1c] sm:$0xf]
      %v6739 = vld [vmem:[%s6730 + $0x20] sm:$0xf]
      %v6740 = vld [vmem:[%s6730 + $0x24] sm:$0xf]
      %v6741 = vld [vmem:[%s6730 + $0x28] sm:$0xf]
      %v6742 = vld [vmem:[%s6730 + $0x2c] sm:$0xf]
      %v6743 = vld [vmem:[%s6730 + $0x30] sm:$0xf]
      %v6744 = vld [vmem:[%s6730 + $0x34] sm:$0xf]
      %v6745 = vld [vmem:[%s6730 + $0x38] sm:$0xf]
      %v6746 = vld [vmem:[%s6730 + $0x3c] sm:$0xf]
      %v6763 = vunpack.c.l.b16 %v6731
      %v6764 = vunpack.c.l.b16 %v6732
      %v6765 = vunpack.c.l.b16 %v6733
      %v6766 = vunpack.c.l.b16 %v6734
      %v6767 = vunpack.c.l.b16 %v6735
      %v6768 = vunpack.c.l.b16 %v6736
      %v6769 = vunpack.c.l.b16 %v6737
      %v6770 = vunpack.c.l.b16 %v6738
      %v6771 = vunpack.c.l.b16 %v6739
      %v6772 = vunpack.c.l.b16 %v6740
      %v6773 = vunpack.c.l.b16 %v6741
      %v6774 = vunpack.c.l.b16 %v6742
      %v6775 = vunpack.c.l.b16 %v6743
      %v6776 = vunpack.c.l.b16 %v6744
      %v6777 = vunpack.c.l.b16 %v6745
      %v6778 = vunpack.c.l.b16 %v6746
      %v6779 = vpack.c.b16 %v6764, %v6763
      %v6780 = vpack.c.b16 %v6766, %v6765
      %v6781 = vpack.c.b16 %v6768, %v6767
      %v6782 = vpack.c.b16 %v6770, %v6769
      %v6783 = vpack.c.b16 %v6772, %v6771
      %v6784 = vpack.c.b16 %v6774, %v6773
      %v6785 = vpack.c.b16 %v6776, %v6775
      %v6786 = vpack.c.b16 %v6778, %v6777
      %6795 = vmatprep.subr.bf16.mxu0 0
      %6796 = vmatpush1.bf16.msra.mxu0 %v6779
      %6797 = vmatprep.subr.bf16.mxu0 0
      %6798 = vmatpush1.bf16.msra.mxu0 %v6780
      %6799 = vmatprep.subr.bf16.mxu0 0
      %6800 = vmatpush1.bf16.msra.mxu0 %v6781
      %6801 = vmatprep.subr.bf16.mxu0 0
      %6802 = vmatpush1.bf16.msra.mxu0 %v6782
      %6803 = vmatprep.subr.bf16.mxu0 0
      %6804 = vmatpush1.bf16.msra.mxu0 %v6783
      %6805 = vmatprep.subr.bf16.mxu0 0
      %6806 = vmatpush1.bf16.msra.mxu0 %v6784
      %6807 = vmatprep.subr.bf16.mxu0 0
      %6808 = vmatpush1.bf16.msra.mxu0 %v6785
      %6809 = vmatprep.subr.bf16.mxu0 0
      %6810 = vmatpush1.bf16.msra.mxu0 %v6786
      %6811 = vmatprep.subr.bf16.mxu0 0
      %6812 = vmatpush1.bf16.msra.mxu0 0
      %6813 = vmatprep.subr.bf16.mxu0 0
      %6814 = vmatpush1.bf16.msra.mxu0 0
      %6815 = vmatprep.subr.bf16.mxu0 0
      %6816 = vmatpush1.bf16.msra.mxu0 0
      %6817 = vmatprep.subr.bf16.mxu0 0
      %6818 = vmatpush1.bf16.msra.mxu0 0
      %6819 = vmatprep.subr.bf16.mxu0 0
      %6820 = vmatpush1.bf16.msra.mxu0 0
      %6821 = vmatprep.subr.bf16.mxu0 0
      %6822 = vmatpush1.bf16.msra.mxu0 0
      %6823 = vmatprep.subr.bf16.mxu0 0
      %6824 = vmatpush1.bf16.msra.mxu0 0
      %6825 = vmatprep.subr.bf16.mxu0 0
      %6826 = vmatpush1.bf16.msra.mxu0 0
      %6827 = vmatprep.mubr.bf16.mxu0 0
      %6828 = vmatmul.mubr.bf16.gmra.mrb[0].mxu0 %v6722
      %v6829 = vpop.f32.mrb[0].mxu0
      %v6830 = vadd.f32 0.0, %v6829
      %v6831 = vpop.f32.mrb[0].mxu0
      %v6832 = vpop.f32.mrb[0].mxu0
      %v6833 = vpop.f32.mrb[0].mxu0
      %6834 = vmatprep.mubr.bf16.mxu0 0
      %6835 = vmatmul.mubr.bf16.gmra.mrb[0].mxu0 %v6723
      %v6836 = vpop.f32.mrb[0].mxu0
      %v6837 = vadd.f32 0.0, %v6836
      %v6838 = vpop.f32.mrb[0].mxu0
      %v6839 = vpop.f32.mrb[0].mxu0
      %v6840 = vpop.f32.mrb[0].mxu0
      %6841 = vmatprep.mubr.bf16.mxu0 0
      %6842 = vmatmul.mubr.bf16.gmra.mrb[0].mxu0 %v6724
      %v6843 = vpop.f32.mrb[0].mxu0
      %v6844 = vpop.f32.mrb[0].mxu0
      %v6845 = vpop.f32.mrb[0].mxu0
      %v6846 = vpop.f32.mrb[0].mxu0
      %6847 = vmatprep.mubr.bf16.mxu0 0
      %6848 = vmatmul.mubr.bf16.gmra.mrb[0].mxu0 %v6725
      %v6849 = vpop.f32.mrb[0].mxu0
      %v6850 = vpop.f32.mrb[0].mxu0
      %v6851 = vpop.f32.mrb[0].mxu0
      %v6852 = vpop.f32.mrb[0].mxu0
      %6853 = vmatprep.mubr.bf16.mxu0 0
      %6854 = vmatmul.mubr.bf16.gmra.mrb[0].mxu0 %v6726
      %v6855 = vpop.f32.mrb[0].mxu0
      %v6856 = vadd.f32 0.0, %v6855
      %v6857 = vpop.f32.mrb[0].mxu0
      %v6858 = vpop.f32.mrb[0].mxu0
      %v6859 = vpop.f32.mrb[0].mxu0
      %6860 = vmatprep.mubr.bf16.mxu0 0
      %6861 = vmatmul.mubr.bf16.gmra.mrb[0].mxu0 %v6727
      %v6862 = vpop.f32.mrb[0].mxu0
      %v6863 = vadd.f32 0.0, %v6862
      %v6864 = vpop.f32.mrb[0].mxu0
      %v6865 = vpop.f32.mrb[0].mxu0
      %v6866 = vpop.f32.mrb[0].mxu0
      %6867 = vmatprep.mubr.bf16.mxu0 0
      %6868 = vmatmul.mubr.bf16.gmra.mrb[0].mxu0 %v6728
      %v6869 = vpop.f32.mrb[0].mxu0
      %v6870 = vpop.f32.mrb[0].mxu0
      %v6871 = vpop.f32.mrb[0].mxu0
      %v6872 = vpop.f32.mrb[0].mxu0
      %6873 = vmatprep.mubr.bf16.mxu0 0
      %6874 = vmatmul.mubr.bf16.gmra.mrb[0].mxu0 %v6729
      %v6875 = vpop.f32.mrb[0].mxu0
      %v6876 = vpop.f32.mrb[0].mxu0
      %v6877 = vpop.f32.mrb[0].mxu0
      %v6878 = vpop.f32.mrb[0].mxu0
      %6879 = vdwg.mxu0
      %v6880 = vld [vmem:[%s242 + $0x6] sm:$0x1]
      %v6881 = vlaneseq
      %v6882 = vshrl.u32 %v6881, 7
      %v6883 = vsub.s32 0, %v6882
      %v6884 = vrot.slane %v6880, %v6883
      %v6885 = vmul.f32 %v6830, %v6884
      %v6886 = vmul.f32 %v6837, %v6884
      %v6887 = vmul.f32 %v6856, %v6884
      %v6888 = vmul.f32 %v6863, %v6884
      %v6889 = vld [vmem:[%s246 + $0x6] sm:$0x1]
      %v6890 = vlaneseq
      %v6891 = vshrl.u32 %v6890, 7
      %v6892 = vsub.s32 0, %v6891
      %v6893 = vrot.slane %v6889, %v6892
      %v6894 = vadd.f32 %v6885, %v6893
      %v6895 = vadd.f32 %v6886, %v6893
      %v6896 = vadd.f32 %v6887, %v6893
      %v6897 = vadd.f32 %v6888, %v6893
      %s6898 = scalar_lea.vmem %s238, 1600
      %v6899 = vld [vmem:[%s6898] sm:$0xf]
      %v6900 = vld [vmem:[%s6898 + $0x4] sm:$0xf]
      %v6901 = vld [vmem:[%s6898 + $0x8] sm:$0xf]
      %v6902 = vld [vmem:[%s6898 + $0xc] sm:$0xf]
      %v6903 = vld [vmem:[%s6898 + $0x10] sm:$0xf]
      %v6904 = vld [vmem:[%s6898 + $0x14] sm:$0xf]
      %v6905 = vld [vmem:[%s6898 + $0x18] sm:$0xf]
      %v6906 = vld [vmem:[%s6898 + $0x1c] sm:$0xf]
      %v6907 = vld [vmem:[%s6898 + $0x20] sm:$0xf]
      %v6908 = vld [vmem:[%s6898 + $0x24] sm:$0xf]
      %v6909 = vld [vmem:[%s6898 + $0x28] sm:$0xf]
      %v6910 = vld [vmem:[%s6898 + $0x2c] sm:$0xf]
      %v6911 = vld [vmem:[%s6898 + $0x30] sm:$0xf]
      %v6912 = vld [vmem:[%s6898 + $0x34] sm:$0xf]
      %v6913 = vld [vmem:[%s6898 + $0x38] sm:$0xf]
      %v6914 = vld [vmem:[%s6898 + $0x3c] sm:$0xf]
      %v6931 = vunpack.c.l.b16 %v6899
      %v6932 = vunpack.c.l.b16 %v6900
      %v6933 = vunpack.c.l.b16 %v6901
      %v6934 = vunpack.c.l.b16 %v6902
      %v6935 = vunpack.c.l.b16 %v6903
      %v6936 = vunpack.c.l.b16 %v6904
      %v6937 = vunpack.c.l.b16 %v6905
      %v6938 = vunpack.c.l.b16 %v6906
      %v6939 = vunpack.c.l.b16 %v6907
      %v6940 = vunpack.c.l.b16 %v6908
      %v6941 = vunpack.c.l.b16 %v6909
      %v6942 = vunpack.c.l.b16 %v6910
      %v6943 = vunpack.c.l.b16 %v6911
      %v6944 = vunpack.c.l.b16 %v6912
      %v6945 = vunpack.c.l.b16 %v6913
      %v6946 = vunpack.c.l.b16 %v6914
      %v6947 = vpack.c.b16 %v6932, %v6931
      %v6948 = vpack.c.b16 %v6934, %v6933
      %v6949 = vpack.c.b16 %v6936, %v6935
      %v6950 = vpack.c.b16 %v6938, %v6937
      %v6951 = vpack.c.b16 %v6940, %v6939
      %v6952 = vpack.c.b16 %v6942, %v6941
      %v6953 = vpack.c.b16 %v6944, %v6943
      %v6954 = vpack.c.b16 %v6946, %v6945
      %6963 = vmatprep.subr.bf16.mxu0 0
      %6964 = vmatpush1.bf16.msra.mxu0 %v6947
      %6965 = vmatprep.subr.bf16.mxu0 0
      %6966 = vmatpush1.bf16.msra.mxu0 %v6948
      %6967 = vmatprep.subr.bf16.mxu0 0
      %6968 = vmatpush1.bf16.msra.mxu0 %v6949
      %6969 = vmatprep.subr.bf16.mxu0 0
      %6970 = vmatpush1.bf16.msra.mxu0 %v6950
      %6971 = vmatprep.subr.bf16.mxu0 0
      %6972 = vmatpush1.bf16.msra.mxu0 %v6951
      %6973 = vmatprep.subr.bf16.mxu0 0
      %6974 = vmatpush1.bf16.msra.mxu0 %v6952
      %6975 = vmatprep.subr.bf16.mxu0 0
      %6976 = vmatpush1.bf16.msra.mxu0 %v6953
      %6977 = vmatprep.subr.bf16.mxu0 0
      %6978 = vmatpush1.bf16.msra.mxu0 %v6954
      %6979 = vmatprep.subr.bf16.mxu0 0
      %6980 = vmatpush1.bf16.msra.mxu0 0
      %6981 = vmatprep.subr.bf16.mxu0 0
      %6982 = vmatpush1.bf16.msra.mxu0 0
      %6983 = vmatprep.subr.bf16.mxu0 0
      %6984 = vmatpush1.bf16.msra.mxu0 0
      %6985 = vmatprep.subr.bf16.mxu0 0
      %6986 = vmatpush1.bf16.msra.mxu0 0
      %6987 = vmatprep.subr.bf16.mxu0 0
      %6988 = vmatpush1.bf16.msra.mxu0 0
      %6989 = vmatprep.subr.bf16.mxu0 0
      %6990 = vmatpush1.bf16.msra.mxu0 0
      %6991 = vmatprep.subr.bf16.mxu0 0
      %6992 = vmatpush1.bf16.msra.mxu0 0
      %6993 = vmatprep.subr.bf16.mxu0 0
      %6994 = vmatpush1.bf16.msra.mxu0 0
      %6995 = vmatprep.mubr.bf16.mxu0 0
      %6996 = vmatmul.mubr.bf16.gmra.mrb[0].mxu0 %v3344
      %v6997 = vpop.f32.mrb[0].mxu0
      %v6998 = vadd.f32 0.0, %v6997
      %v6999 = vpop.f32.mrb[0].mxu0
      %v7000 = vpop.f32.mrb[0].mxu0
      %v7001 = vpop.f32.mrb[0].mxu0
      %7002 = vmatprep.mubr.bf16.mxu0 0
      %7003 = vmatmul.mubr.bf16.gmra.mrb[0].mxu0 %v3345
      %v7004 = vpop.f32.mrb[0].mxu0
      %v7005 = vadd.f32 0.0, %v7004
      %v7006 = vpop.f32.mrb[0].mxu0
      %v7007 = vpop.f32.mrb[0].mxu0
      %v7008 = vpop.f32.mrb[0].mxu0
      %7009 = vmatprep.mubr.bf16.mxu0 0
      %7010 = vmatmul.mubr.bf16.gmra.mrb[0].mxu0 %v3346
      %v7011 = vpop.f32.mrb[0].mxu0
      %v7012 = vpop.f32.mrb[0].mxu0
      %v7013 = vpop.f32.mrb[0].mxu0
      %v7014 = vpop.f32.mrb[0].mxu0
      %7015 = vmatprep.mubr.bf16.mxu0 0
      %7016 = vmatmul.mubr.bf16.gmra.mrb[0].mxu0 %v3347
      %v7017 = vpop.f32.mrb[0].mxu0
      %v7018 = vpop.f32.mrb[0].mxu0
      %v7019 = vpop.f32.mrb[0].mxu0
      %v7020 = vpop.f32.mrb[0].mxu0
      %7021 = vmatprep.mubr.bf16.mxu0 0
      %7022 = vmatmul.mubr.bf16.gmra.mrb[0].mxu0 %v3348
      %v7023 = vpop.f32.mrb[0].mxu0
      %v7024 = vadd.f32 0.0, %v7023
      %v7025 = vpop.f32.mrb[0].mxu0
      %v7026 = vpop.f32.mrb[0].mxu0
      %v7027 = vpop.f32.mrb[0].mxu0
      %7028 = vmatprep.mubr.bf16.mxu0 0
      %7029 = vmatmul.mubr.bf16.gmra.mrb[0].mxu0 %v3349
      %v7030 = vpop.f32.mrb[0].mxu0
      %v7031 = vadd.f32 0.0, %v7030
      %v7032 = vpop.f32.mrb[0].mxu0
      %v7033 = vpop.f32.mrb[0].mxu0
      %v7034 = vpop.f32.mrb[0].mxu0
      %7035 = vmatprep.mubr.bf16.mxu0 0
      %7036 = vmatmul.mubr.bf16.gmra.mrb[0].mxu0 %v3350
      %v7037 = vpop.f32.mrb[0].mxu0
      %v7038 = vpop.f32.mrb[0].mxu0
      %v7039 = vpop.f32.mrb[0].mxu0
      %v7040 = vpop.f32.mrb[0].mxu0
      %7041 = vmatprep.mubr.bf16.mxu0 0
      %7042 = vmatmul.mubr.bf16.gmra.mrb[0].mxu0 %v3351
      %v7043 = vpop.f32.mrb[0].mxu0
      %v7044 = vpop.f32.mrb[0].mxu0
      %v7045 = vpop.f32.mrb[0].mxu0
      %v7046 = vpop.f32.mrb[0].mxu0
      %7047 = vdwg.mxu0
      %v7048 = vld [vmem:[%s242 + $0x7] sm:$0x1]
      %v7049 = vlaneseq
      %v7050 = vshrl.u32 %v7049, 7
      %v7051 = vsub.s32 0, %v7050
      %v7052 = vrot.slane %v7048, %v7051
      %v7053 = vmul.f32 %v6998, %v7052
      %v7054 = vmul.f32 %v7005, %v7052
      %v7055 = vmul.f32 %v7024, %v7052
      %v7056 = vmul.f32 %v7031, %v7052
      %v7057 = vld [vmem:[%s246 + $0x7] sm:$0x1]
      %v7058 = vlaneseq
      %v7059 = vshrl.u32 %v7058, 7
      %v7060 = vsub.s32 0, %v7059
      %v7061 = vrot.slane %v7057, %v7060
      %v7062 = vadd.f32 %v7053, %v7061
      %v7063 = vadd.f32 %v7054, %v7061
      %v7064 = vadd.f32 %v7055, %v7061
      %v7065 = vadd.f32 %v7056, %v7061
      %v7066 = vadd.f32 %v6894, %v7062
      %v7067 = vmax.f32 %v7066, 0.0
      %7068 = vst [vmem:[%s251] sm:$0xff] %v7067
      %v7069 = vadd.f32 %v6895, %v7063
      %v7070 = vmax.f32 %v7069, 0.0
      %s7071 = scalar_lea.vmem %s251, 8
      %7072 = vst [vmem:[%s7071] sm:$0xff] %v7070
      %v7073 = vadd.f32 %v6896, %v7064
      %v7074 = vmax.f32 %v7073, 0.0
      %s7075 = scalar_lea.vmem %s251, 16
      %7076 = vst [vmem:[%s7075] sm:$0xff] %v7074
      %v7077 = vadd.f32 %v6897, %v7065
      %v7078 = vmax.f32 %v7077, 0.0
      %s7079 = scalar_lea.vmem %s251, 24
      %7080 = vst [vmem:[%s7079] sm:$0xff] %v7078
      %p7081 = scmp.lt.s32.totalorder %s15, 1
      %s7082 = scalar_select %p7081, %s15, 1
      %s7083 = smul.addr %s7082, 4
      %s7084 = smul.addr %s7083, 8
      %s7085 = scalar_lea.vmem %s4, %s7084
      // Predicated region
      $region37: #{resnet3d_slowonly_2s_flc3_forward.3} parent=35 // pred_check
        %p7086 = pneg %p137
      $region38: #{resnet3d_slowonly_2s_flc3_forward.3} parent=35 // pred_check_branch
        %7088 = sbr.rel (%p7086) target = $region40
      $region39: #{resnet3d_slowonly_2s_flc3_forward.3} parent=35 // pred_region
        _
      $region40: #{resnet3d_slowonly_2s_flc3_forward.3} parent=35 // pred_fallthru
        _
    $region36: #{resnet3d_slowonly_2s_flc3_forward.3} parent=5 // pred_fallthru
      _
    %p7089 = scmp.le.s32.totalorder 2, %s10
    // Predicated region
    $region41: #{resnet3d_slowonly_2s_flc3_forward.3} parent=5 // pred_check
      %p7090 = pneg %p7089
    $region42: #{resnet3d_slowonly_2s_flc3_forward.3} parent=5 // pred_check_branch
      %7092 = sbr.rel (%p7090) target = $region44
    $region43: #{resnet3d_slowonly_2s_flc3_forward.3} parent=5 // pred_region
      %s7093 = ssub.s32 %s10, 2
      // Predicated region
      $region45: #{resnet3d_slowonly_2s_flc3_forward.3} parent=43 // pred_check
        %p7094 = pneg %p143
      $region46: #{resnet3d_slowonly_2s_flc3_forward.3} parent=43 // pred_check_branch
        %7096 = sbr.rel (%p7094) target = $region48
      $region47: #{resnet3d_slowonly_2s_flc3_forward.3} parent=43 // pred_region
        %p7097 = scmp.lt.s32.totalorder %s16, 1
        %s7098 = scalar_select %p7097, %s16, 1
        %s7099 = smul.addr %s7098, 4
        %s7100 = smul.addr %s7099, 8
        %s7101 = scalar_lea.vmem %s4, %s7100
      $region48: #{resnet3d_slowonly_2s_flc3_forward.3} parent=43 // pred_fallthru
        _
    $region44: #{resnet3d_slowonly_2s_flc3_forward.3} parent=5 // pred_fallthru
      _
  $region6: #{resnet3d_slowonly_2s_flc3_forward.3} parent=0 // loop_footer
    %s14 = sadd.s32 1, %s10
  $region7: #{resnet3d_slowonly_2s_flc3_forward.3} parent=0 // loop_footer_branch
    %9 = sbr.rel target = $region3
  $region8: #{resnet3d_slowonly_2s_flc3_forward.3} parent=0 // loop_exit
    _

</llo_original>
